<compile_context>
chip_gen: v7x
topology: tpu7x:2x2x1
jax: 0.10.0
libtpu: 0.0.40
codegen_flags: <defaults>
</compile_context>

<pallas_src>
import math

import jax
import jax.numpy as jnp
import numpy as np
from jax.experimental import pallas as pl
from jax.experimental.pallas import tpu as pltpu

D_MODEL = 32
NHEAD = 4
HEAD_DIM = D_MODEL // NHEAD
NUM_LAYERS = 2
D_FF = 2048          # nn.TransformerEncoderLayer default dim_feedforward
FF_CHUNK = 256       # keeps the live (rows, FF_CHUNK) f32 ReLU intermediate small
LN_EPS = 1e-5
TARGET_ROWS = 256    # aim for ~256 matmul rows (sublane/M axis) per grid step


def _layer_norm(x, g, b):
    mu = jnp.mean(x, axis=-1, keepdims=True)
    var = jnp.mean((x - mu) ** 2, axis=-1, keepdims=True)
    return (x - mu) * jax.lax.rsqrt(var + LN_EPS) * g + b


def tab_transformer_kernel(
    x_ref,                      # (1, rows, 1)   rows = b_tile * F, sample-major
    in_w_ref, in_b_ref,         # (1, D), (1, D)           f32
    pos_ref,                    # (rows, D)                f32 (pos tiled over b_tile)
    mask_ref,                   # (rows, rows)             f32 block-diag bias (hoisted)
    qkv_wT_ref, qkv_b_ref,      # (L, D, 3D) bf16 (Q pre-scaled), (L, 1, 3D) f32
    proj_wT_ref, proj_b_ref,    # (L, D, D) bf16, (L, 1, D) f32
    ln1_g_ref, ln1_b_ref,       # (L, 1, D) f32
    ln2_g_ref, ln2_b_ref,       # (L, 1, D) f32
    ff1_wT_ref, ff1_b_ref,      # (L, D, FF) bf16, (L, 1, FF) f32
    ff2_wT_ref, ff2_b_ref,      # (L, FF, D) bf16, (L, 1, D) f32
    out_w_ref, out_b_ref,       # (1, D), (1, 1) f32
    o_ref,                      # (1, 1, b_tile)  lane-dense output block
):
    rows, D = pos_ref.shape
    bt = o_ref.shape[2]
    F = rows // bt
    H, Dh = NHEAD, HEAD_DIM
    L = qkv_wT_ref.shape[0]
    FF = ff1_wT_ref.shape[2]
    n_chunks = FF // FF_CHUNK

    # ---- input embedding: whole batch tile at once, (rows, D) row-major ----
    xs = x_ref[0]                                              # (rows, 1)
    h = xs * in_w_ref[...] + in_b_ref[...] + pos_ref[...]      # (rows, D) f32
    mask = mask_ref[...]                                       # grid-invariant, resident

    for l in range(L):                                         # static unroll (L = 2)
        # ---- attention: one packed bf16 QKV matmul, unrolled heads, fused proj ----
        h_b = h.astype(jnp.bfloat16)
        qkv = jnp.dot(h_b, qkv_wT_ref[l],
                      preferred_element_type=jnp.float32) + qkv_b_ref[l]   # (rows, 3D) f32

        attn = jnp.zeros((rows, D), dtype=jnp.float32)
        for hd in range(H):                                    # static unroll (H = 4)
            q_h = qkv[:, hd * Dh:(hd + 1) * Dh].astype(jnp.bfloat16)
            k_h = qkv[:, D + hd * Dh:D + (hd + 1) * Dh].astype(jnp.bfloat16)
            v_h = qkv[:, 2 * D + hd * Dh:2 * D + (hd + 1) * Dh].astype(jnp.bfloat16)
            # scores: q_h @ k_h^T   (f32 accumulation)
            s = jax.lax.dot_general(q_h, k_h, (((1,), (1,)), ((), ())),
                                    preferred_element_type=jnp.float32)    # (rows, rows)
            s = s + mask
            s = s - jnp.max(s, axis=-1, keepdims=True)
            e = jnp.exp(s)
            p = (e * pl.reciprocal(jnp.sum(e, axis=-1, keepdims=True),
                                   approx=True)).astype(jnp.bfloat16)
            ctx_h = jnp.dot(p, v_h, preferred_element_type=jnp.float32)    # (rows, Dh)
            # fold this head straight into the output projection (no lane concat)
            attn = attn + jnp.dot(ctx_h.astype(jnp.bfloat16),
                                  proj_wT_ref[l, hd * Dh:(hd + 1) * Dh, :],
                                  preferred_element_type=jnp.float32)
        attn = attn + proj_b_ref[l]
        h = _layer_norm(h + attn, ln1_g_ref[l], ln1_b_ref[l])

        # ---- feed-forward, chunked over D_FF, bf16 weights, f32 accumulation ----
        h_b = h.astype(jnp.bfloat16)
        ff = jnp.zeros((rows, D), dtype=jnp.float32)
        for c in range(n_chunks):                              # static unroll (8 chunks)
            cs = c * FF_CHUNK
            a = jnp.dot(h_b, ff1_wT_ref[l, :, cs:cs + FF_CHUNK],
                        preferred_element_type=jnp.float32) + ff1_b_ref[l, :, cs:cs + FF_CHUNK]
            a = jnp.maximum(a, 0.0).astype(jnp.bfloat16)
            ff = ff + jnp.dot(a, ff2_wT_ref[l, cs:cs + FF_CHUNK, :],
                              preferred_element_type=jnp.float32)
        ff = ff + ff2_b_ref[l]
        h = _layer_norm(h + ff, ln2_g_ref[l], ln2_b_ref[l])

    # ---- mean-pool tokens per sample: rows are sample-major, so just reshape ----
    # (F = 8 is a whole sublane tile, so this reshape is relayout-free.)
    pooled = jnp.mean(h.reshape(bt, F, D), axis=1)             # (bt, D) f32

    # ---- output head, emitted lane-dense: (1, D) · (bt, D)^T -> (1, bt) ----
    out_row = jax.lax.dot_general(out_w_ref[...], pooled, (((1,), (1,)), ((), ())),
                                  preferred_element_type=jnp.float32)      # (1, bt)
    o_ref[0] = (out_row + out_b_ref[...]).astype(o_ref.dtype)


def init_torch_shaped_params(key, input_dim):
    """Parameters with the same shapes as the PyTorch module (deterministic)."""
    D, L, FF = D_MODEL, NUM_LAYERS, D_FF
    ks = jax.random.split(key, 12)
    s = 0.05

    def nrm(k, shape):
        return jax.random.normal(k, shape, dtype=jnp.float32) * s

    return dict(
        in_w=nrm(ks[0], (D, 1)),          # input_layer.weight
        in_b=nrm(ks[1], (D,)),            # input_layer.bias
        pos=nrm(ks[2], (input_dim, D)),   # pos_embedding (1, F, D) -> (F, D)
        in_proj_w=nrm(ks[3], (L, 3 * D, D)),
        in_proj_b=nrm(ks[4], (L, 3 * D)),
        out_proj_w=nrm(ks[5], (L, D, D)),
        out_proj_b=nrm(ks[6], (L, D)),
        ln1_g=jnp.ones((L, D), jnp.float32), ln1_b=jnp.zeros((L, D), jnp.float32),
        ln2_g=jnp.ones((L, D), jnp.float32), ln2_b=jnp.zeros((L, D), jnp.float32),
        ff1_w=nrm(ks[7], (L, FF, D)), ff1_b=nrm(ks[8], (L, FF)),
        ff2_w=nrm(ks[9], (L, D, FF)), ff2_b=nrm(ks[10], (L, D)),
        out_w=nrm(ks[11], (1, D)),        # output_layer.weight
        out_b=jnp.zeros((1,), jnp.float32),
    )


def to_kernel_params(P):
    """Re-layout PyTorch-shaped params into the kernel's matmul-friendly layout."""
    D, L, FF = D_MODEL, NUM_LAYERS, D_FF
    scale = 1.0 / math.sqrt(HEAD_DIM)

    Wq = P["in_proj_w"][:, :D, :] * scale        # fold 1/sqrt(Dh) into Q
    Wk = P["in_proj_w"][:, D:2 * D, :]
    Wv = P["in_proj_w"][:, 2 * D:, :]
    bq = P["in_proj_b"][:, :D] * scale
    bk = P["in_proj_b"][:, D:2 * D]
    bv = P["in_proj_b"][:, 2 * D:]

    qkv_wT = jnp.concatenate(
        [Wq.transpose(0, 2, 1), Wk.transpose(0, 2, 1), Wv.transpose(0, 2, 1)],
        axis=-1)                                                    # (L, D, 3D)
    qkv_b = jnp.concatenate([bq, bk, bv], axis=-1).reshape(L, 1, 3 * D)

    return dict(
        in_w=P["in_w"].T,                              # (1, D)
        in_b=P["in_b"].reshape(1, D),
        pos=P["pos"],                                  # (F, D) — tiled in the factory
        qkv_wT=qkv_wT.astype(jnp.bfloat16), qkv_b=qkv_b,
        proj_wT=P["out_proj_w"].transpose(0, 2, 1).astype(jnp.bfloat16),
        proj_b=P["out_proj_b"].reshape(L, 1, D),
        ln1_g=P["ln1_g"].reshape(L, 1, D), ln1_b=P["ln1_b"].reshape(L, 1, D),
        ln2_g=P["ln2_g"].reshape(L, 1, D), ln2_b=P["ln2_b"].reshape(L, 1, D),
        ff1_wT=P["ff1_w"].transpose(0, 2, 1).astype(jnp.bfloat16),   # (L, D, FF)
        ff1_b=P["ff1_b"].reshape(L, 1, FF),
        ff2_wT=P["ff2_w"].transpose(0, 2, 1).astype(jnp.bfloat16),   # (L, FF, D)
        ff2_b=P["ff2_b"].reshape(L, 1, D),
        out_w=P["out_w"],                              # (1, D)
        out_b=P["out_b"].reshape(1, 1),
    )


def pick_b_tile(B, F):
    """rows ≈ TARGET_ROWS per grid step, but keep >= 2 grid steps when possible."""
    bt = min(B, max(1, TARGET_ROWS // F))
    if B > 1 and pl.cdiv(B, bt) < 2:
        bt = pl.cdiv(B, 2)
    return bt


def make_tab_transformer_forward(P, input_dim, b_tile):
    """Precompute all weight re-layouts / the mask once, return a jitted forward."""
    F = input_dim
    D = D_MODEL
    rows = b_tile * F

    KP = to_kernel_params(P)
    pos_tiled = jnp.tile(KP["pos"], (b_tile, 1))                 # (rows, D)

    # Block-diagonal attention bias (tokens never attend across samples).
    # Grid-invariant -> built once here, VMEM-resident inside the kernel.
    sid = jnp.arange(rows, dtype=jnp.int32) // F
    mask = jnp.where(sid[:, None] == sid[None, :], 0.0, -1e30).astype(jnp.float32)

    weight_args = (
        KP["in_w"], KP["in_b"], pos_tiled, mask,
        KP["qkv_wT"], KP["qkv_b"], KP["proj_wT"], KP["proj_b"],
        KP["ln1_g"], KP["ln1_b"], KP["ln2_g"], KP["ln2_b"],
        KP["ff1_wT"], KP["ff1_b"], KP["ff2_wT"], KP["ff2_b"],
        KP["out_w"], KP["out_b"],
    )

    # Full-array block with a constant index_map -> stays VMEM-resident across the
    # grid.  (pipeline_mode=pl.Buffered(1) would halve the resident footprint, but
    # total weights here are <1 MiB so it is omitted for cross-version safety.)
    def resident(a):
        return pl.BlockSpec(a.shape, lambda i, _n=a.ndim: (0,) * _n)

    in_specs = [pl.BlockSpec((1, rows, 1), lambda i: (i, 0, 0))]
    in_specs += [resident(a) for a in weight_args]
    out_spec = pl.BlockSpec((1, 1, b_tile), lambda i: (i, 0, 0))  # lane-dense output

    @jax.jit
    def forward(x):                                   # x: (B, F) f32 -> (B,)
        B = x.shape[0]
        nt = pl.cdiv(B, b_tile)
        Bp = nt * b_tile
        if Bp != B:
            x = jnp.pad(x, ((0, Bp - B), (0, 0)))
        xs = x.reshape(nt, rows, 1)                   # sample-major token order

        out = pl.pallas_call(
            tab_transformer_kernel,
            out_shape=jax.ShapeDtypeStruct((nt, 1, b_tile), jnp.float32),
            grid=(nt,),
            in_specs=in_specs,
            out_specs=out_spec,
            compiler_params=pltpu.CompilerParams(
                dimension_semantics=("parallel",),
                vmem_limit_bytes=32 * 1024 * 1024),
        )(xs, *weight_args)
        return out.reshape(Bp)[:B]

    return forward


def reference_forward(x, P):
    """Pure-JAX (f32) mirror of the PyTorch forward (eval mode)."""
    D, H, Dh, L = D_MODEL, NHEAD, HEAD_DIM, NUM_LAYERS
    B, F = x.shape
    h = x[..., None] * P["in_w"][:, 0].reshape(1, 1, D) + P["in_b"].reshape(1, 1, D)
    h = h + P["pos"][None]
    for l in range(L):
        qkv = jnp.einsum("bfd,ed->bfe", h, P["in_proj_w"][l]) + P["in_proj_b"][l]
        q, k, v = jnp.split(qkv, 3, axis=-1)
        q = q.reshape(B, F, H, Dh); k = k.reshape(B, F, H, Dh); v = v.reshape(B, F, H, Dh)
        s = jnp.einsum("bqhd,bkhd->bhqk", q, k) / math.sqrt(Dh)
        a = jax.nn.softmax(s, axis=-1)
        ctx = jnp.einsum("bhqk,bkhd->bqhd", a, v).reshape(B, F, D)
        attn = ctx @ P["out_proj_w"][l].T + P["out_proj_b"][l]
        h = _layer_norm(h + attn, P["ln1_g"][l], P["ln1_b"][l])
        ff = jax.nn.relu(h @ P["ff1_w"][l].T + P["ff1_b"][l]) @ P["ff2_w"][l].T + P["ff2_b"][l]
        h = _layer_norm(h + ff, P["ln2_g"][l], P["ln2_b"][l])
    pooled = h.mean(axis=1)
    return (pooled @ P["out_w"].T + P["out_b"])[:, 0]


if __name__ == "__main__":
    B, F = 4, 8                           # batch, input_dim (features as tokens)
    key = jax.random.PRNGKey(0)
    kx, kp = jax.random.split(key)
    x = jax.random.normal(kx, (B, F), dtype=jnp.float32)

    P = init_torch_shaped_params(kp, F)
    ref = jax.block_until_ready(reference_forward(x, P))

    # multi-tile grid (heuristic -> b_tile=2, nt=2) and single-tile (b_tile=B, nt=1)
    fwd_multi = make_tab_transformer_forward(P, F, pick_b_tile(B, F))
    fwd_single = make_tab_transformer_forward(P, F, B)
    out_multi = jax.block_until_ready(fwd_multi(x))
    out_single = jax.block_until_ready(fwd_single(x))

    for out in (out_multi, out_single):
        # bf16 MXU operands + approx-reciprocal softmax -> compare at 2e-2
        np.testing.assert_allclose(np.asarray(out), np.asarray(ref), rtol=2e-2, atol=2e-2)
        assert out.shape == (B,) and np.all(np.isfinite(np.asarray(out)))
    print("KERNEL_OK")
</pallas_src>

<mosaic_0001>
module attributes {stable_mosaic.version = 11 : i64} {
  func.func @tab_transformer_kernel(%arg0: i32, %arg1: memref<1x16x1xf32, #tpu.memory_space<vmem>>, %arg2: memref<1x32xf32, #tpu.memory_space<vmem>>, %arg3: memref<1x32xf32, #tpu.memory_space<vmem>>, %arg4: memref<16x32xf32, #tpu.memory_space<vmem>>, %arg5: memref<16x16xf32, #tpu.memory_space<vmem>>, %arg6: memref<2x32x96xbf16, #tpu.memory_space<vmem>>, %arg7: memref<2x1x96xf32, #tpu.memory_space<vmem>>, %arg8: memref<2x32x32xbf16, #tpu.memory_space<vmem>>, %arg9: memref<2x1x32xf32, #tpu.memory_space<vmem>>, %arg10: memref<2x1x32xf32, #tpu.memory_space<vmem>>, %arg11: memref<2x1x32xf32, #tpu.memory_space<vmem>>, %arg12: memref<2x1x32xf32, #tpu.memory_space<vmem>>, %arg13: memref<2x1x32xf32, #tpu.memory_space<vmem>>, %arg14: memref<2x32x2048xbf16, #tpu.memory_space<vmem>>, %arg15: memref<2x1x2048xf32, #tpu.memory_space<vmem>>, %arg16: memref<2x2048x32xbf16, #tpu.memory_space<vmem>>, %arg17: memref<2x1x32xf32, #tpu.memory_space<vmem>>, %arg18: memref<1x32xf32, #tpu.memory_space<vmem>>, %arg19: memref<1x1xf32, #tpu.memory_space<vmem>>, %arg20: memref<1x1x2xf32, #tpu.memory_space<vmem>>) attributes {dimension_semantics = [#tpu.dimension_semantics<parallel>], iteration_bounds = array<i64: 2>, scalar_prefetch = 0 : i64, scratch_operands = 0 : i64, tpu.core_type = #tpu.core_type<tc>, window_params = [{transform_indices = @transform_0, window_bounds = array<i64: 1, 16, 1>}, {pipeline_mode = #tpu.pipeline_mode<synchronous>, transform_indices = @transform_1, window_bounds = array<i64: 1, 32>}, {pipeline_mode = #tpu.pipeline_mode<synchronous>, transform_indices = @transform_2, window_bounds = array<i64: 1, 32>}, {pipeline_mode = #tpu.pipeline_mode<synchronous>, transform_indices = @transform_3, window_bounds = array<i64: 16, 32>}, {pipeline_mode = #tpu.pipeline_mode<synchronous>, transform_indices = @transform_4, window_bounds = array<i64: 16, 16>}, {pipeline_mode = #tpu.pipeline_mode<synchronous>, transform_indices = @transform_5, window_bounds = array<i64: 2, 32, 96>}, {pipeline_mode = #tpu.pipeline_mode<synchronous>, transform_indices = @transform_6, window_bounds = array<i64: 2, 1, 96>}, {pipeline_mode = #tpu.pipeline_mode<synchronous>, transform_indices = @transform_7, window_bounds = array<i64: 2, 32, 32>}, {pipeline_mode = #tpu.pipeline_mode<synchronous>, transform_indices = @transform_8, window_bounds = array<i64: 2, 1, 32>}, {pipeline_mode = #tpu.pipeline_mode<synchronous>, transform_indices = @transform_9, window_bounds = array<i64: 2, 1, 32>}, {pipeline_mode = #tpu.pipeline_mode<synchronous>, transform_indices = @transform_10, window_bounds = array<i64: 2, 1, 32>}, {pipeline_mode = #tpu.pipeline_mode<synchronous>, transform_indices = @transform_11, window_bounds = array<i64: 2, 1, 32>}, {pipeline_mode = #tpu.pipeline_mode<synchronous>, transform_indices = @transform_12, window_bounds = array<i64: 2, 1, 32>}, {pipeline_mode = #tpu.pipeline_mode<synchronous>, transform_indices = @transform_13, window_bounds = array<i64: 2, 32, 2048>}, {pipeline_mode = #tpu.pipeline_mode<synchronous>, transform_indices = @transform_14, window_bounds = array<i64: 2, 1, 2048>}, {pipeline_mode = #tpu.pipeline_mode<synchronous>, transform_indices = @transform_15, window_bounds = array<i64: 2, 2048, 32>}, {pipeline_mode = #tpu.pipeline_mode<synchronous>, transform_indices = @transform_16, window_bounds = array<i64: 2, 1, 32>}, {pipeline_mode = #tpu.pipeline_mode<synchronous>, transform_indices = @transform_17, window_bounds = array<i64: 1, 32>}, {pipeline_mode = #tpu.pipeline_mode<synchronous>, transform_indices = @transform_18, window_bounds = array<i64: 1, 1>}, {transform_indices = @transform_19, window_bounds = array<i64: 1, 1, 2>}]} {
    %c0 = arith.constant 0 : index
    %c0_0 = arith.constant 0 : index
    %c0_1 = arith.constant 0 : index
    %0 = vector.load %arg1[%c0, %c0_0, %c0_1] : memref<1x16x1xf32, #tpu.memory_space<vmem>>, vector<1x16x1xf32>
    %1 = vector.shape_cast %0 : vector<1x16x1xf32> to vector<16x1xf32>
    %c0_2 = arith.constant 0 : index
    %c0_3 = arith.constant 0 : index
    %2 = vector.load %arg2[%c0_2, %c0_3] : memref<1x32xf32, #tpu.memory_space<vmem>>, vector<1x32xf32>
    %3 = vector.broadcast %1 : vector<16x1xf32> to vector<16x32xf32>
    %4 = vector.broadcast %2 : vector<1x32xf32> to vector<16x32xf32>
    %5 = arith.mulf %3, %4 : vector<16x32xf32>
    %c0_4 = arith.constant 0 : index
    %c0_5 = arith.constant 0 : index
    %6 = vector.load %arg3[%c0_4, %c0_5] : memref<1x32xf32, #tpu.memory_space<vmem>>, vector<1x32xf32>
    %7 = vector.broadcast %6 : vector<1x32xf32> to vector<16x32xf32>
    %8 = arith.addf %5, %7 : vector<16x32xf32>
    %c0_6 = arith.constant 0 : index
    %c0_7 = arith.constant 0 : index
    %9 = vector.load %arg4[%c0_6, %c0_7] : memref<16x32xf32, #tpu.memory_space<vmem>>, vector<16x32xf32>
    %10 = arith.addf %8, %9 : vector<16x32xf32>
    %c0_8 = arith.constant 0 : index
    %c0_9 = arith.constant 0 : index
    %11 = vector.load %arg5[%c0_8, %c0_9] : memref<16x16xf32, #tpu.memory_space<vmem>>, vector<16x16xf32>
    %12 = arith.truncf %10 : vector<16x32xf32> to vector<16x32xbf16>
    %c0_10 = arith.constant 0 : index
    %c0_11 = arith.constant 0 : index
    %c0_12 = arith.constant 0 : index
    %13 = vector.load %arg6[%c0_10, %c0_11, %c0_12] : memref<2x32x96xbf16, #tpu.memory_space<vmem>>, vector<1x32x96xbf16>
    %14 = vector.shape_cast %13 : vector<1x32x96xbf16> to vector<32x96xbf16>
    %cst = arith.constant dense<0.000000e+00> : vector<16x96xf32>
    %15 = tpu.matmul %12, %14, %cst {dimension_numbers = #tpu.dot_dimension_numbers<[1], [0], [0], [1], [0, 0, 1, 1], [], []>} : vector<16x32xbf16>, vector<32x96xbf16>, vector<16x96xf32> -> vector<16x96xf32>
    %c0_13 = arith.constant 0 : index
    %c0_14 = arith.constant 0 : index
    %c0_15 = arith.constant 0 : index
    %16 = vector.load %arg7[%c0_13, %c0_14, %c0_15] : memref<2x1x96xf32, #tpu.memory_space<vmem>>, vector<1x1x96xf32>
    %17 = vector.shape_cast %16 : vector<1x1x96xf32> to vector<1x96xf32>
    %18 = vector.broadcast %17 : vector<1x96xf32> to vector<16x96xf32>
    %19 = arith.addf %15, %18 : vector<16x96xf32>
    %cst_16 = arith.constant 0.000000e+00 : f32
    %20 = vector.broadcast %cst_16 : f32 to vector<16x32xf32>
    %21 = vector.extract_strided_slice %19 {offsets = [0, 0], sizes = [16, 8], strides = [1, 1]} : vector<16x96xf32> to vector<16x8xf32>
    %22 = arith.truncf %21 : vector<16x8xf32> to vector<16x8xbf16>
    %23 = vector.extract_strided_slice %19 {offsets = [0, 32], sizes = [16, 8], strides = [1, 1]} : vector<16x96xf32> to vector<16x8xf32>
    %24 = arith.truncf %23 : vector<16x8xf32> to vector<16x8xbf16>
    %25 = vector.extract_strided_slice %19 {offsets = [0, 64], sizes = [16, 8], strides = [1, 1]} : vector<16x96xf32> to vector<16x8xf32>
    %26 = arith.truncf %25 : vector<16x8xf32> to vector<16x8xbf16>
    %cst_17 = arith.constant dense<0.000000e+00> : vector<16x16xf32>
    %27 = tpu.matmul %22, %24, %cst_17 {dimension_numbers = #tpu.dot_dimension_numbers<[1], [1], [0], [0], [0, 0, 1, 0], [], []>} : vector<16x8xbf16>, vector<16x8xbf16>, vector<16x16xf32> -> vector<16x16xf32>
    %28 = arith.addf %27, %11 : vector<16x16xf32>
    %cst_18 = arith.constant dense<0xFF800000> : vector<16xf32>
    %29 = vector.multi_reduction <maximumf>, %28, %cst_18 [1] : vector<16x16xf32> to vector<16xf32>
    %30 = vector.shape_cast %29 : vector<16xf32> to vector<16x1xf32>
    %31 = vector.broadcast %30 : vector<16x1xf32> to vector<16x16xf32>
    %32 = arith.subf %28, %31 : vector<16x16xf32>
    %33 = math.exp %32 : vector<16x16xf32>
    %cst_19 = arith.constant dense<0.000000e+00> : vector<16xf32>
    %34 = vector.multi_reduction <add>, %33, %cst_19 [1] : vector<16x16xf32> to vector<16xf32>
    %35 = vector.shape_cast %34 : vector<16xf32> to vector<16x1xf32>
    %36 = tpu.reciprocal %35 {approx = true} : vector<16x1xf32> -> vector<16x1xf32>
    %37 = vector.broadcast %36 : vector<16x1xf32> to vector<16x16xf32>
    %38 = arith.mulf %33, %37 : vector<16x16xf32>
    %39 = arith.truncf %38 : vector<16x16xf32> to vector<16x16xbf16>
    %cst_20 = arith.constant dense<0.000000e+00> : vector<16x8xf32>
    %40 = tpu.matmul %39, %26, %cst_20 {dimension_numbers = #tpu.dot_dimension_numbers<[1], [0], [0], [1], [0, 0, 1, 1], [], []>} : vector<16x16xbf16>, vector<16x8xbf16>, vector<16x8xf32> -> vector<16x8xf32>
    %41 = arith.truncf %40 : vector<16x8xf32> to vector<16x8xbf16>
    %c0_21 = arith.constant 0 : index
    %c0_22 = arith.constant 0 : index
    %c0_23 = arith.constant 0 : index
    %42 = vector.load %arg8[%c0_21, %c0_22, %c0_23] : memref<2x32x32xbf16, #tpu.memory_space<vmem>>, vector<1x8x32xbf16>
    %43 = vector.shape_cast %42 : vector<1x8x32xbf16> to vector<8x32xbf16>
    %cst_24 = arith.constant dense<0.000000e+00> : vector<16x32xf32>
    %44 = tpu.matmul %41, %43, %cst_24 {dimension_numbers = #tpu.dot_dimension_numbers<[1], [0], [0], [1], [0, 0, 1, 1], [], []>} : vector<16x8xbf16>, vector<8x32xbf16>, vector<16x32xf32> -> vector<16x32xf32>
    %45 = arith.addf %20, %44 : vector<16x32xf32>
    %46 = vector.extract_strided_slice %19 {offsets = [0, 8], sizes = [16, 8], strides = [1, 1]} : vector<16x96xf32> to vector<16x8xf32>
    %47 = arith.truncf %46 : vector<16x8xf32> to vector<16x8xbf16>
    %48 = vector.extract_strided_slice %19 {offsets = [0, 40], sizes = [16, 8], strides = [1, 1]} : vector<16x96xf32> to vector<16x8xf32>
    %49 = arith.truncf %48 : vector<16x8xf32> to vector<16x8xbf16>
    %50 = vector.extract_strided_slice %19 {offsets = [0, 72], sizes = [16, 8], strides = [1, 1]} : vector<16x96xf32> to vector<16x8xf32>
    %51 = arith.truncf %50 : vector<16x8xf32> to vector<16x8xbf16>
    %cst_25 = arith.constant dense<0.000000e+00> : vector<16x16xf32>
    %52 = tpu.matmul %47, %49, %cst_25 {dimension_numbers = #tpu.dot_dimension_numbers<[1], [1], [0], [0], [0, 0, 1, 0], [], []>} : vector<16x8xbf16>, vector<16x8xbf16>, vector<16x16xf32> -> vector<16x16xf32>
    %53 = arith.addf %52, %11 : vector<16x16xf32>
    %cst_26 = arith.constant dense<0xFF800000> : vector<16xf32>
    %54 = vector.multi_reduction <maximumf>, %53, %cst_26 [1] : vector<16x16xf32> to vector<16xf32>
    %55 = vector.shape_cast %54 : vector<16xf32> to vector<16x1xf32>
    %56 = vector.broadcast %55 : vector<16x1xf32> to vector<16x16xf32>
    %57 = arith.subf %53, %56 : vector<16x16xf32>
    %58 = math.exp %57 : vector<16x16xf32>
    %cst_27 = arith.constant dense<0.000000e+00> : vector<16xf32>
    %59 = vector.multi_reduction <add>, %58, %cst_27 [1] : vector<16x16xf32> to vector<16xf32>
    %60 = vector.shape_cast %59 : vector<16xf32> to vector<16x1xf32>
    %61 = tpu.reciprocal %60 {approx = true} : vector<16x1xf32> -> vector<16x1xf32>
    %62 = vector.broadcast %61 : vector<16x1xf32> to vector<16x16xf32>
    %63 = arith.mulf %58, %62 : vector<16x16xf32>
    %64 = arith.truncf %63 : vector<16x16xf32> to vector<16x16xbf16>
    %cst_28 = arith.constant dense<0.000000e+00> : vector<16x8xf32>
    %65 = tpu.matmul %64, %51, %cst_28 {dimension_numbers = #tpu.dot_dimension_numbers<[1], [0], [0], [1], [0, 0, 1, 1], [], []>} : vector<16x16xbf16>, vector<16x8xbf16>, vector<16x8xf32> -> vector<16x8xf32>
    %66 = arith.truncf %65 : vector<16x8xf32> to vector<16x8xbf16>
    %c0_29 = arith.constant 0 : index
    %c8 = arith.constant 8 : index
    %c0_30 = arith.constant 0 : index
    %67 = vector.load %arg8[%c0_29, %c8, %c0_30] : memref<2x32x32xbf16, #tpu.memory_space<vmem>>, vector<1x8x32xbf16>
    %68 = vector.shape_cast %67 : vector<1x8x32xbf16> to vector<8x32xbf16>
    %cst_31 = arith.constant dense<0.000000e+00> : vector<16x32xf32>
    %69 = tpu.matmul %66, %68, %cst_31 {dimension_numbers = #tpu.dot_dimension_numbers<[1], [0], [0], [1], [0, 0, 1, 1], [], []>} : vector<16x8xbf16>, vector<8x32xbf16>, vector<16x32xf32> -> vector<16x32xf32>
    %70 = arith.addf %45, %69 : vector<16x32xf32>
    %71 = vector.extract_strided_slice %19 {offsets = [0, 16], sizes = [16, 8], strides = [1, 1]} : vector<16x96xf32> to vector<16x8xf32>
    %72 = arith.truncf %71 : vector<16x8xf32> to vector<16x8xbf16>
    %73 = vector.extract_strided_slice %19 {offsets = [0, 48], sizes = [16, 8], strides = [1, 1]} : vector<16x96xf32> to vector<16x8xf32>
    %74 = arith.truncf %73 : vector<16x8xf32> to vector<16x8xbf16>
    %75 = vector.extract_strided_slice %19 {offsets = [0, 80], sizes = [16, 8], strides = [1, 1]} : vector<16x96xf32> to vector<16x8xf32>
    %76 = arith.truncf %75 : vector<16x8xf32> to vector<16x8xbf16>
    %cst_32 = arith.constant dense<0.000000e+00> : vector<16x16xf32>
    %77 = tpu.matmul %72, %74, %cst_32 {dimension_numbers = #tpu.dot_dimension_numbers<[1], [1], [0], [0], [0, 0, 1, 0], [], []>} : vector<16x8xbf16>, vector<16x8xbf16>, vector<16x16xf32> -> vector<16x16xf32>
    %78 = arith.addf %77, %11 : vector<16x16xf32>
    %cst_33 = arith.constant dense<0xFF800000> : vector<16xf32>
    %79 = vector.multi_reduction <maximumf>, %78, %cst_33 [1] : vector<16x16xf32> to vector<16xf32>
    %80 = vector.shape_cast %79 : vector<16xf32> to vector<16x1xf32>
    %81 = vector.broadcast %80 : vector<16x1xf32> to vector<16x16xf32>
    %82 = arith.subf %78, %81 : vector<16x16xf32>
    %83 = math.exp %82 : vector<16x16xf32>
    %cst_34 = arith.constant dense<0.000000e+00> : vector<16xf32>
    %84 = vector.multi_reduction <add>, %83, %cst_34 [1] : vector<16x16xf32> to vector<16xf32>
    %85 = vector.shape_cast %84 : vector<16xf32> to vector<16x1xf32>
    %86 = tpu.reciprocal %85 {approx = true} : vector<16x1xf32> -> vector<16x1xf32>
    %87 = vector.broadcast %86 : vector<16x1xf32> to vector<16x16xf32>
    %88 = arith.mulf %83, %87 : vector<16x16xf32>
    %89 = arith.truncf %88 : vector<16x16xf32> to vector<16x16xbf16>
    %cst_35 = arith.constant dense<0.000000e+00> : vector<16x8xf32>
    %90 = tpu.matmul %89, %76, %cst_35 {dimension_numbers = #tpu.dot_dimension_numbers<[1], [0], [0], [1], [0, 0, 1, 1], [], []>} : vector<16x16xbf16>, vector<16x8xbf16>, vector<16x8xf32> -> vector<16x8xf32>
    %91 = arith.truncf %90 : vector<16x8xf32> to vector<16x8xbf16>
    %c0_36 = arith.constant 0 : index
    %c16 = arith.constant 16 : index
    %c0_37 = arith.constant 0 : index
    %92 = vector.load %arg8[%c0_36, %c16, %c0_37] : memref<2x32x32xbf16, #tpu.memory_space<vmem>>, vector<1x8x32xbf16>
    %93 = vector.shape_cast %92 : vector<1x8x32xbf16> to vector<8x32xbf16>
    %cst_38 = arith.constant dense<0.000000e+00> : vector<16x32xf32>
    %94 = tpu.matmul %91, %93, %cst_38 {dimension_numbers = #tpu.dot_dimension_numbers<[1], [0], [0], [1], [0, 0, 1, 1], [], []>} : vector<16x8xbf16>, vector<8x32xbf16>, vector<16x32xf32> -> vector<16x32xf32>
    %95 = arith.addf %70, %94 : vector<16x32xf32>
    %96 = vector.extract_strided_slice %19 {offsets = [0, 24], sizes = [16, 8], strides = [1, 1]} : vector<16x96xf32> to vector<16x8xf32>
    %97 = arith.truncf %96 : vector<16x8xf32> to vector<16x8xbf16>
    %98 = vector.extract_strided_slice %19 {offsets = [0, 56], sizes = [16, 8], strides = [1, 1]} : vector<16x96xf32> to vector<16x8xf32>
    %99 = arith.truncf %98 : vector<16x8xf32> to vector<16x8xbf16>
    %100 = vector.extract_strided_slice %19 {offsets = [0, 88], sizes = [16, 8], strides = [1, 1]} : vector<16x96xf32> to vector<16x8xf32>
    %101 = arith.truncf %100 : vector<16x8xf32> to vector<16x8xbf16>
    %cst_39 = arith.constant dense<0.000000e+00> : vector<16x16xf32>
    %102 = tpu.matmul %97, %99, %cst_39 {dimension_numbers = #tpu.dot_dimension_numbers<[1], [1], [0], [0], [0, 0, 1, 0], [], []>} : vector<16x8xbf16>, vector<16x8xbf16>, vector<16x16xf32> -> vector<16x16xf32>
    %103 = arith.addf %102, %11 : vector<16x16xf32>
    %cst_40 = arith.constant dense<0xFF800000> : vector<16xf32>
    %104 = vector.multi_reduction <maximumf>, %103, %cst_40 [1] : vector<16x16xf32> to vector<16xf32>
    %105 = vector.shape_cast %104 : vector<16xf32> to vector<16x1xf32>
    %106 = vector.broadcast %105 : vector<16x1xf32> to vector<16x16xf32>
    %107 = arith.subf %103, %106 : vector<16x16xf32>
    %108 = math.exp %107 : vector<16x16xf32>
    %cst_41 = arith.constant dense<0.000000e+00> : vector<16xf32>
    %109 = vector.multi_reduction <add>, %108, %cst_41 [1] : vector<16x16xf32> to vector<16xf32>
    %110 = vector.shape_cast %109 : vector<16xf32> to vector<16x1xf32>
    %111 = tpu.reciprocal %110 {approx = true} : vector<16x1xf32> -> vector<16x1xf32>
    %112 = vector.broadcast %111 : vector<16x1xf32> to vector<16x16xf32>
    %113 = arith.mulf %108, %112 : vector<16x16xf32>
    %114 = arith.truncf %113 : vector<16x16xf32> to vector<16x16xbf16>
    %cst_42 = arith.constant dense<0.000000e+00> : vector<16x8xf32>
    %115 = tpu.matmul %114, %101, %cst_42 {dimension_numbers = #tpu.dot_dimension_numbers<[1], [0], [0], [1], [0, 0, 1, 1], [], []>} : vector<16x16xbf16>, vector<16x8xbf16>, vector<16x8xf32> -> vector<16x8xf32>
    %116 = arith.truncf %115 : vector<16x8xf32> to vector<16x8xbf16>
    %c0_43 = arith.constant 0 : index
    %c24 = arith.constant 24 : index
    %c0_44 = arith.constant 0 : index
    %117 = vector.load %arg8[%c0_43, %c24, %c0_44] : memref<2x32x32xbf16, #tpu.memory_space<vmem>>, vector<1x8x32xbf16>
    %118 = vector.shape_cast %117 : vector<1x8x32xbf16> to vector<8x32xbf16>
    %cst_45 = arith.constant dense<0.000000e+00> : vector<16x32xf32>
    %119 = tpu.matmul %116, %118, %cst_45 {dimension_numbers = #tpu.dot_dimension_numbers<[1], [0], [0], [1], [0, 0, 1, 1], [], []>} : vector<16x8xbf16>, vector<8x32xbf16>, vector<16x32xf32> -> vector<16x32xf32>
    %120 = arith.addf %95, %119 : vector<16x32xf32>
    %c0_46 = arith.constant 0 : index
    %c0_47 = arith.constant 0 : index
    %c0_48 = arith.constant 0 : index
    %121 = vector.load %arg9[%c0_46, %c0_47, %c0_48] : memref<2x1x32xf32, #tpu.memory_space<vmem>>, vector<1x1x32xf32>
    %122 = vector.shape_cast %121 : vector<1x1x32xf32> to vector<1x32xf32>
    %123 = vector.broadcast %122 : vector<1x32xf32> to vector<16x32xf32>
    %124 = arith.addf %120, %123 : vector<16x32xf32>
    %125 = arith.addf %10, %124 : vector<16x32xf32>
    %c0_49 = arith.constant 0 : index
    %c0_50 = arith.constant 0 : index
    %c0_51 = arith.constant 0 : index
    %126 = vector.load %arg10[%c0_49, %c0_50, %c0_51] : memref<2x1x32xf32, #tpu.memory_space<vmem>>, vector<1x1x32xf32>
    %127 = vector.shape_cast %126 : vector<1x1x32xf32> to vector<1x32xf32>
    %c0_52 = arith.constant 0 : index
    %c0_53 = arith.constant 0 : index
    %c0_54 = arith.constant 0 : index
    %128 = vector.load %arg11[%c0_52, %c0_53, %c0_54] : memref<2x1x32xf32, #tpu.memory_space<vmem>>, vector<1x1x32xf32>
    %129 = vector.shape_cast %128 : vector<1x1x32xf32> to vector<1x32xf32>
    %cst_55 = arith.constant dense<0.000000e+00> : vector<16xf32>
    %130 = vector.multi_reduction <add>, %125, %cst_55 [1] : vector<16x32xf32> to vector<16xf32>
    %131 = vector.shape_cast %130 : vector<16xf32> to vector<16x1xf32>
    %cst_56 = arith.constant 3.200000e+01 : f32
    %132 = vector.broadcast %cst_56 : f32 to vector<16x1xf32>
    %133 = arith.divf %131, %132 : vector<16x1xf32>
    %134 = vector.broadcast %133 : vector<16x1xf32> to vector<16x32xf32>
    %135 = arith.subf %125, %134 : vector<16x32xf32>
    %136 = arith.mulf %135, %135 : vector<16x32xf32>
    %cst_57 = arith.constant dense<0.000000e+00> : vector<16xf32>
    %137 = vector.multi_reduction <add>, %136, %cst_57 [1] : vector<16x32xf32> to vector<16xf32>
    %138 = vector.shape_cast %137 : vector<16xf32> to vector<16x1xf32>
    %cst_58 = arith.constant 3.200000e+01 : f32
    %139 = vector.broadcast %cst_58 : f32 to vector<16x1xf32>
    %140 = arith.divf %138, %139 : vector<16x1xf32>
    %141 = vector.broadcast %133 : vector<16x1xf32> to vector<16x32xf32>
    %142 = arith.subf %125, %141 : vector<16x32xf32>
    %cst_59 = arith.constant 9.99999974E-6 : f32
    %143 = vector.broadcast %cst_59 : f32 to vector<16x1xf32>
    %144 = arith.addf %140, %143 : vector<16x1xf32>
    %145 = math.rsqrt %144 : vector<16x1xf32>
    %146 = vector.broadcast %145 : vector<16x1xf32> to vector<16x32xf32>
    %147 = arith.mulf %142, %146 : vector<16x32xf32>
    %148 = vector.broadcast %127 : vector<1x32xf32> to vector<16x32xf32>
    %149 = arith.mulf %147, %148 : vector<16x32xf32>
    %150 = vector.broadcast %129 : vector<1x32xf32> to vector<16x32xf32>
    %151 = arith.addf %149, %150 : vector<16x32xf32>
    %152 = arith.truncf %151 : vector<16x32xf32> to vector<16x32xbf16>
    %cst_60 = arith.constant 0.000000e+00 : f32
    %153 = vector.broadcast %cst_60 : f32 to vector<16x32xf32>
    %c0_61 = arith.constant 0 : index
    %c0_62 = arith.constant 0 : index
    %c0_63 = arith.constant 0 : index
    %154 = vector.load %arg14[%c0_61, %c0_62, %c0_63] : memref<2x32x2048xbf16, #tpu.memory_space<vmem>>, vector<1x32x256xbf16>
    %155 = vector.shape_cast %154 : vector<1x32x256xbf16> to vector<32x256xbf16>
    %cst_64 = arith.constant dense<0.000000e+00> : vector<16x256xf32>
    %156 = tpu.matmul %152, %155, %cst_64 {dimension_numbers = #tpu.dot_dimension_numbers<[1], [0], [0], [1], [0, 0, 1, 1], [], []>} : vector<16x32xbf16>, vector<32x256xbf16>, vector<16x256xf32> -> vector<16x256xf32>
    %c0_65 = arith.constant 0 : index
    %c0_66 = arith.constant 0 : index
    %c0_67 = arith.constant 0 : index
    %157 = vector.load %arg15[%c0_65, %c0_66, %c0_67] : memref<2x1x2048xf32, #tpu.memory_space<vmem>>, vector<1x1x256xf32>
    %158 = vector.shape_cast %157 : vector<1x1x256xf32> to vector<1x256xf32>
    %159 = vector.broadcast %158 : vector<1x256xf32> to vector<16x256xf32>
    %160 = arith.addf %156, %159 : vector<16x256xf32>
    %cst_68 = arith.constant 0.000000e+00 : f32
    %161 = vector.broadcast %cst_68 : f32 to vector<16x256xf32>
    %162 = arith.maximumf %160, %161 : vector<16x256xf32>
    %163 = arith.truncf %162 : vector<16x256xf32> to vector<16x256xbf16>
    %c0_69 = arith.constant 0 : index
    %c0_70 = arith.constant 0 : index
    %c0_71 = arith.constant 0 : index
    %164 = vector.load %arg16[%c0_69, %c0_70, %c0_71] : memref<2x2048x32xbf16, #tpu.memory_space<vmem>>, vector<1x256x32xbf16>
    %165 = vector.shape_cast %164 : vector<1x256x32xbf16> to vector<256x32xbf16>
    %cst_72 = arith.constant dense<0.000000e+00> : vector<16x32xf32>
    %166 = tpu.matmul %163, %165, %cst_72 {dimension_numbers = #tpu.dot_dimension_numbers<[1], [0], [0], [1], [0, 0, 1, 1], [], []>} : vector<16x256xbf16>, vector<256x32xbf16>, vector<16x32xf32> -> vector<16x32xf32>
    %167 = arith.addf %153, %166 : vector<16x32xf32>
    %c0_73 = arith.constant 0 : index
    %c0_74 = arith.constant 0 : index
    %c256 = arith.constant 256 : index
    %168 = vector.load %arg14[%c0_73, %c0_74, %c256] : memref<2x32x2048xbf16, #tpu.memory_space<vmem>>, vector<1x32x256xbf16>
    %169 = vector.shape_cast %168 : vector<1x32x256xbf16> to vector<32x256xbf16>
    %cst_75 = arith.constant dense<0.000000e+00> : vector<16x256xf32>
    %170 = tpu.matmul %152, %169, %cst_75 {dimension_numbers = #tpu.dot_dimension_numbers<[1], [0], [0], [1], [0, 0, 1, 1], [], []>} : vector<16x32xbf16>, vector<32x256xbf16>, vector<16x256xf32> -> vector<16x256xf32>
    %c0_76 = arith.constant 0 : index
    %c0_77 = arith.constant 0 : index
    %c256_78 = arith.constant 256 : index
    %171 = vector.load %arg15[%c0_76, %c0_77, %c256_78] : memref<2x1x2048xf32, #tpu.memory_space<vmem>>, vector<1x1x256xf32>
    %172 = vector.shape_cast %171 : vector<1x1x256xf32> to vector<1x256xf32>
    %173 = vector.broadcast %172 : vector<1x256xf32> to vector<16x256xf32>
    %174 = arith.addf %170, %173 : vector<16x256xf32>
    %cst_79 = arith.constant 0.000000e+00 : f32
    %175 = vector.broadcast %cst_79 : f32 to vector<16x256xf32>
    %176 = arith.maximumf %174, %175 : vector<16x256xf32>
    %177 = arith.truncf %176 : vector<16x256xf32> to vector<16x256xbf16>
    %c0_80 = arith.constant 0 : index
    %c256_81 = arith.constant 256 : index
    %c0_82 = arith.constant 0 : index
    %178 = vector.load %arg16[%c0_80, %c256_81, %c0_82] : memref<2x2048x32xbf16, #tpu.memory_space<vmem>>, vector<1x256x32xbf16>
    %179 = vector.shape_cast %178 : vector<1x256x32xbf16> to vector<256x32xbf16>
    %cst_83 = arith.constant dense<0.000000e+00> : vector<16x32xf32>
    %180 = tpu.matmul %177, %179, %cst_83 {dimension_numbers = #tpu.dot_dimension_numbers<[1], [0], [0], [1], [0, 0, 1, 1], [], []>} : vector<16x256xbf16>, vector<256x32xbf16>, vector<16x32xf32> -> vector<16x32xf32>
    %181 = arith.addf %167, %180 : vector<16x32xf32>
    %c0_84 = arith.constant 0 : index
    %c0_85 = arith.constant 0 : index
    %c512 = arith.constant 512 : index
    %182 = vector.load %arg14[%c0_84, %c0_85, %c512] : memref<2x32x2048xbf16, #tpu.memory_space<vmem>>, vector<1x32x256xbf16>
    %183 = vector.shape_cast %182 : vector<1x32x256xbf16> to vector<32x256xbf16>
    %cst_86 = arith.constant dense<0.000000e+00> : vector<16x256xf32>
    %184 = tpu.matmul %152, %183, %cst_86 {dimension_numbers = #tpu.dot_dimension_numbers<[1], [0], [0], [1], [0, 0, 1, 1], [], []>} : vector<16x32xbf16>, vector<32x256xbf16>, vector<16x256xf32> -> vector<16x256xf32>
    %c0_87 = arith.constant 0 : index
    %c0_88 = arith.constant 0 : index
    %c512_89 = arith.constant 512 : index
    %185 = vector.load %arg15[%c0_87, %c0_88, %c512_89] : memref<2x1x2048xf32, #tpu.memory_space<vmem>>, vector<1x1x256xf32>
    %186 = vector.shape_cast %185 : vector<1x1x256xf32> to vector<1x256xf32>
    %187 = vector.broadcast %186 : vector<1x256xf32> to vector<16x256xf32>
    %188 = arith.addf %184, %187 : vector<16x256xf32>
    %cst_90 = arith.constant 0.000000e+00 : f32
    %189 = vector.broadcast %cst_90 : f32 to vector<16x256xf32>
    %190 = arith.maximumf %188, %189 : vector<16x256xf32>
    %191 = arith.truncf %190 : vector<16x256xf32> to vector<16x256xbf16>
    %c0_91 = arith.constant 0 : index
    %c512_92 = arith.constant 512 : index
    %c0_93 = arith.constant 0 : index
    %192 = vector.load %arg16[%c0_91, %c512_92, %c0_93] : memref<2x2048x32xbf16, #tpu.memory_space<vmem>>, vector<1x256x32xbf16>
    %193 = vector.shape_cast %192 : vector<1x256x32xbf16> to vector<256x32xbf16>
    %cst_94 = arith.constant dense<0.000000e+00> : vector<16x32xf32>
    %194 = tpu.matmul %191, %193, %cst_94 {dimension_numbers = #tpu.dot_dimension_numbers<[1], [0], [0], [1], [0, 0, 1, 1], [], []>} : vector<16x256xbf16>, vector<256x32xbf16>, vector<16x32xf32> -> vector<16x32xf32>
    %195 = arith.addf %181, %194 : vector<16x32xf32>
    %c0_95 = arith.constant 0 : index
    %c0_96 = arith.constant 0 : index
    %c768 = arith.constant 768 : index
    %196 = vector.load %arg14[%c0_95, %c0_96, %c768] : memref<2x32x2048xbf16, #tpu.memory_space<vmem>>, vector<1x32x256xbf16>
    %197 = vector.shape_cast %196 : vector<1x32x256xbf16> to vector<32x256xbf16>
    %cst_97 = arith.constant dense<0.000000e+00> : vector<16x256xf32>
    %198 = tpu.matmul %152, %197, %cst_97 {dimension_numbers = #tpu.dot_dimension_numbers<[1], [0], [0], [1], [0, 0, 1, 1], [], []>} : vector<16x32xbf16>, vector<32x256xbf16>, vector<16x256xf32> -> vector<16x256xf32>
    %c0_98 = arith.constant 0 : index
    %c0_99 = arith.constant 0 : index
    %c768_100 = arith.constant 768 : index
    %199 = vector.load %arg15[%c0_98, %c0_99, %c768_100] : memref<2x1x2048xf32, #tpu.memory_space<vmem>>, vector<1x1x256xf32>
    %200 = vector.shape_cast %199 : vector<1x1x256xf32> to vector<1x256xf32>
    %201 = vector.broadcast %200 : vector<1x256xf32> to vector<16x256xf32>
    %202 = arith.addf %198, %201 : vector<16x256xf32>
    %cst_101 = arith.constant 0.000000e+00 : f32
    %203 = vector.broadcast %cst_101 : f32 to vector<16x256xf32>
    %204 = arith.maximumf %202, %203 : vector<16x256xf32>
    %205 = arith.truncf %204 : vector<16x256xf32> to vector<16x256xbf16>
    %c0_102 = arith.constant 0 : index
    %c768_103 = arith.constant 768 : index
    %c0_104 = arith.constant 0 : index
    %206 = vector.load %arg16[%c0_102, %c768_103, %c0_104] : memref<2x2048x32xbf16, #tpu.memory_space<vmem>>, vector<1x256x32xbf16>
    %207 = vector.shape_cast %206 : vector<1x256x32xbf16> to vector<256x32xbf16>
    %cst_105 = arith.constant dense<0.000000e+00> : vector<16x32xf32>
    %208 = tpu.matmul %205, %207, %cst_105 {dimension_numbers = #tpu.dot_dimension_numbers<[1], [0], [0], [1], [0, 0, 1, 1], [], []>} : vector<16x256xbf16>, vector<256x32xbf16>, vector<16x32xf32> -> vector<16x32xf32>
    %209 = arith.addf %195, %208 : vector<16x32xf32>
    %c0_106 = arith.constant 0 : index
    %c0_107 = arith.constant 0 : index
    %c1024 = arith.constant 1024 : index
    %210 = vector.load %arg14[%c0_106, %c0_107, %c1024] : memref<2x32x2048xbf16, #tpu.memory_space<vmem>>, vector<1x32x256xbf16>
    %211 = vector.shape_cast %210 : vector<1x32x256xbf16> to vector<32x256xbf16>
    %cst_108 = arith.constant dense<0.000000e+00> : vector<16x256xf32>
    %212 = tpu.matmul %152, %211, %cst_108 {dimension_numbers = #tpu.dot_dimension_numbers<[1], [0], [0], [1], [0, 0, 1, 1], [], []>} : vector<16x32xbf16>, vector<32x256xbf16>, vector<16x256xf32> -> vector<16x256xf32>
    %c0_109 = arith.constant 0 : index
    %c0_110 = arith.constant 0 : index
    %c1024_111 = arith.constant 1024 : index
    %213 = vector.load %arg15[%c0_109, %c0_110, %c1024_111] : memref<2x1x2048xf32, #tpu.memory_space<vmem>>, vector<1x1x256xf32>
    %214 = vector.shape_cast %213 : vector<1x1x256xf32> to vector<1x256xf32>
    %215 = vector.broadcast %214 : vector<1x256xf32> to vector<16x256xf32>
    %216 = arith.addf %212, %215 : vector<16x256xf32>
    %cst_112 = arith.constant 0.000000e+00 : f32
    %217 = vector.broadcast %cst_112 : f32 to vector<16x256xf32>
    %218 = arith.maximumf %216, %217 : vector<16x256xf32>
    %219 = arith.truncf %218 : vector<16x256xf32> to vector<16x256xbf16>
    %c0_113 = arith.constant 0 : index
    %c1024_114 = arith.constant 1024 : index
    %c0_115 = arith.constant 0 : index
    %220 = vector.load %arg16[%c0_113, %c1024_114, %c0_115] : memref<2x2048x32xbf16, #tpu.memory_space<vmem>>, vector<1x256x32xbf16>
    %221 = vector.shape_cast %220 : vector<1x256x32xbf16> to vector<256x32xbf16>
    %cst_116 = arith.constant dense<0.000000e+00> : vector<16x32xf32>
    %222 = tpu.matmul %219, %221, %cst_116 {dimension_numbers = #tpu.dot_dimension_numbers<[1], [0], [0], [1], [0, 0, 1, 1], [], []>} : vector<16x256xbf16>, vector<256x32xbf16>, vector<16x32xf32> -> vector<16x32xf32>
    %223 = arith.addf %209, %222 : vector<16x32xf32>
    %c0_117 = arith.constant 0 : index
    %c0_118 = arith.constant 0 : index
    %c1280 = arith.constant 1280 : index
    %224 = vector.load %arg14[%c0_117, %c0_118, %c1280] : memref<2x32x2048xbf16, #tpu.memory_space<vmem>>, vector<1x32x256xbf16>
    %225 = vector.shape_cast %224 : vector<1x32x256xbf16> to vector<32x256xbf16>
    %cst_119 = arith.constant dense<0.000000e+00> : vector<16x256xf32>
    %226 = tpu.matmul %152, %225, %cst_119 {dimension_numbers = #tpu.dot_dimension_numbers<[1], [0], [0], [1], [0, 0, 1, 1], [], []>} : vector<16x32xbf16>, vector<32x256xbf16>, vector<16x256xf32> -> vector<16x256xf32>
    %c0_120 = arith.constant 0 : index
    %c0_121 = arith.constant 0 : index
    %c1280_122 = arith.constant 1280 : index
    %227 = vector.load %arg15[%c0_120, %c0_121, %c1280_122] : memref<2x1x2048xf32, #tpu.memory_space<vmem>>, vector<1x1x256xf32>
    %228 = vector.shape_cast %227 : vector<1x1x256xf32> to vector<1x256xf32>
    %229 = vector.broadcast %228 : vector<1x256xf32> to vector<16x256xf32>
    %230 = arith.addf %226, %229 : vector<16x256xf32>
    %cst_123 = arith.constant 0.000000e+00 : f32
    %231 = vector.broadcast %cst_123 : f32 to vector<16x256xf32>
    %232 = arith.maximumf %230, %231 : vector<16x256xf32>
    %233 = arith.truncf %232 : vector<16x256xf32> to vector<16x256xbf16>
    %c0_124 = arith.constant 0 : index
    %c1280_125 = arith.constant 1280 : index
    %c0_126 = arith.constant 0 : index
    %234 = vector.load %arg16[%c0_124, %c1280_125, %c0_126] : memref<2x2048x32xbf16, #tpu.memory_space<vmem>>, vector<1x256x32xbf16>
    %235 = vector.shape_cast %234 : vector<1x256x32xbf16> to vector<256x32xbf16>
    %cst_127 = arith.constant dense<0.000000e+00> : vector<16x32xf32>
    %236 = tpu.matmul %233, %235, %cst_127 {dimension_numbers = #tpu.dot_dimension_numbers<[1], [0], [0], [1], [0, 0, 1, 1], [], []>} : vector<16x256xbf16>, vector<256x32xbf16>, vector<16x32xf32> -> vector<16x32xf32>
    %237 = arith.addf %223, %236 : vector<16x32xf32>
    %c0_128 = arith.constant 0 : index
    %c0_129 = arith.constant 0 : index
    %c1536 = arith.constant 1536 : index
    %238 = vector.load %arg14[%c0_128, %c0_129, %c1536] : memref<2x32x2048xbf16, #tpu.memory_space<vmem>>, vector<1x32x256xbf16>
    %239 = vector.shape_cast %238 : vector<1x32x256xbf16> to vector<32x256xbf16>
    %cst_130 = arith.constant dense<0.000000e+00> : vector<16x256xf32>
    %240 = tpu.matmul %152, %239, %cst_130 {dimension_numbers = #tpu.dot_dimension_numbers<[1], [0], [0], [1], [0, 0, 1, 1], [], []>} : vector<16x32xbf16>, vector<32x256xbf16>, vector<16x256xf32> -> vector<16x256xf32>
    %c0_131 = arith.constant 0 : index
    %c0_132 = arith.constant 0 : index
    %c1536_133 = arith.constant 1536 : index
    %241 = vector.load %arg15[%c0_131, %c0_132, %c1536_133] : memref<2x1x2048xf32, #tpu.memory_space<vmem>>, vector<1x1x256xf32>
    %242 = vector.shape_cast %241 : vector<1x1x256xf32> to vector<1x256xf32>
    %243 = vector.broadcast %242 : vector<1x256xf32> to vector<16x256xf32>
    %244 = arith.addf %240, %243 : vector<16x256xf32>
    %cst_134 = arith.constant 0.000000e+00 : f32
    %245 = vector.broadcast %cst_134 : f32 to vector<16x256xf32>
    %246 = arith.maximumf %244, %245 : vector<16x256xf32>
    %247 = arith.truncf %246 : vector<16x256xf32> to vector<16x256xbf16>
    %c0_135 = arith.constant 0 : index
    %c1536_136 = arith.constant 1536 : index
    %c0_137 = arith.constant 0 : index
    %248 = vector.load %arg16[%c0_135, %c1536_136, %c0_137] : memref<2x2048x32xbf16, #tpu.memory_space<vmem>>, vector<1x256x32xbf16>
    %249 = vector.shape_cast %248 : vector<1x256x32xbf16> to vector<256x32xbf16>
    %cst_138 = arith.constant dense<0.000000e+00> : vector<16x32xf32>
    %250 = tpu.matmul %247, %249, %cst_138 {dimension_numbers = #tpu.dot_dimension_numbers<[1], [0], [0], [1], [0, 0, 1, 1], [], []>} : vector<16x256xbf16>, vector<256x32xbf16>, vector<16x32xf32> -> vector<16x32xf32>
    %251 = arith.addf %237, %250 : vector<16x32xf32>
    %c0_139 = arith.constant 0 : index
    %c0_140 = arith.constant 0 : index
    %c1792 = arith.constant 1792 : index
    %252 = vector.load %arg14[%c0_139, %c0_140, %c1792] : memref<2x32x2048xbf16, #tpu.memory_space<vmem>>, vector<1x32x256xbf16>
    %253 = vector.shape_cast %252 : vector<1x32x256xbf16> to vector<32x256xbf16>
    %cst_141 = arith.constant dense<0.000000e+00> : vector<16x256xf32>
    %254 = tpu.matmul %152, %253, %cst_141 {dimension_numbers = #tpu.dot_dimension_numbers<[1], [0], [0], [1], [0, 0, 1, 1], [], []>} : vector<16x32xbf16>, vector<32x256xbf16>, vector<16x256xf32> -> vector<16x256xf32>
    %c0_142 = arith.constant 0 : index
    %c0_143 = arith.constant 0 : index
    %c1792_144 = arith.constant 1792 : index
    %255 = vector.load %arg15[%c0_142, %c0_143, %c1792_144] : memref<2x1x2048xf32, #tpu.memory_space<vmem>>, vector<1x1x256xf32>
    %256 = vector.shape_cast %255 : vector<1x1x256xf32> to vector<1x256xf32>
    %257 = vector.broadcast %256 : vector<1x256xf32> to vector<16x256xf32>
    %258 = arith.addf %254, %257 : vector<16x256xf32>
    %cst_145 = arith.constant 0.000000e+00 : f32
    %259 = vector.broadcast %cst_145 : f32 to vector<16x256xf32>
    %260 = arith.maximumf %258, %259 : vector<16x256xf32>
    %261 = arith.truncf %260 : vector<16x256xf32> to vector<16x256xbf16>
    %c0_146 = arith.constant 0 : index
    %c1792_147 = arith.constant 1792 : index
    %c0_148 = arith.constant 0 : index
    %262 = vector.load %arg16[%c0_146, %c1792_147, %c0_148] : memref<2x2048x32xbf16, #tpu.memory_space<vmem>>, vector<1x256x32xbf16>
    %263 = vector.shape_cast %262 : vector<1x256x32xbf16> to vector<256x32xbf16>
    %cst_149 = arith.constant dense<0.000000e+00> : vector<16x32xf32>
    %264 = tpu.matmul %261, %263, %cst_149 {dimension_numbers = #tpu.dot_dimension_numbers<[1], [0], [0], [1], [0, 0, 1, 1], [], []>} : vector<16x256xbf16>, vector<256x32xbf16>, vector<16x32xf32> -> vector<16x32xf32>
    %265 = arith.addf %251, %264 : vector<16x32xf32>
    %c0_150 = arith.constant 0 : index
    %c0_151 = arith.constant 0 : index
    %c0_152 = arith.constant 0 : index
    %266 = vector.load %arg17[%c0_150, %c0_151, %c0_152] : memref<2x1x32xf32, #tpu.memory_space<vmem>>, vector<1x1x32xf32>
    %267 = vector.shape_cast %266 : vector<1x1x32xf32> to vector<1x32xf32>
    %268 = vector.broadcast %267 : vector<1x32xf32> to vector<16x32xf32>
    %269 = arith.addf %265, %268 : vector<16x32xf32>
    %270 = arith.addf %151, %269 : vector<16x32xf32>
    %c0_153 = arith.constant 0 : index
    %c0_154 = arith.constant 0 : index
    %c0_155 = arith.constant 0 : index
    %271 = vector.load %arg12[%c0_153, %c0_154, %c0_155] : memref<2x1x32xf32, #tpu.memory_space<vmem>>, vector<1x1x32xf32>
    %272 = vector.shape_cast %271 : vector<1x1x32xf32> to vector<1x32xf32>
    %c0_156 = arith.constant 0 : index
    %c0_157 = arith.constant 0 : index
    %c0_158 = arith.constant 0 : index
    %273 = vector.load %arg13[%c0_156, %c0_157, %c0_158] : memref<2x1x32xf32, #tpu.memory_space<vmem>>, vector<1x1x32xf32>
    %274 = vector.shape_cast %273 : vector<1x1x32xf32> to vector<1x32xf32>
    %cst_159 = arith.constant dense<0.000000e+00> : vector<16xf32>
    %275 = vector.multi_reduction <add>, %270, %cst_159 [1] : vector<16x32xf32> to vector<16xf32>
    %276 = vector.shape_cast %275 : vector<16xf32> to vector<16x1xf32>
    %cst_160 = arith.constant 3.200000e+01 : f32
    %277 = vector.broadcast %cst_160 : f32 to vector<16x1xf32>
    %278 = arith.divf %276, %277 : vector<16x1xf32>
    %279 = vector.broadcast %278 : vector<16x1xf32> to vector<16x32xf32>
    %280 = arith.subf %270, %279 : vector<16x32xf32>
    %281 = arith.mulf %280, %280 : vector<16x32xf32>
    %cst_161 = arith.constant dense<0.000000e+00> : vector<16xf32>
    %282 = vector.multi_reduction <add>, %281, %cst_161 [1] : vector<16x32xf32> to vector<16xf32>
    %283 = vector.shape_cast %282 : vector<16xf32> to vector<16x1xf32>
    %cst_162 = arith.constant 3.200000e+01 : f32
    %284 = vector.broadcast %cst_162 : f32 to vector<16x1xf32>
    %285 = arith.divf %283, %284 : vector<16x1xf32>
    %286 = vector.broadcast %278 : vector<16x1xf32> to vector<16x32xf32>
    %287 = arith.subf %270, %286 : vector<16x32xf32>
    %cst_163 = arith.constant 9.99999974E-6 : f32
    %288 = vector.broadcast %cst_163 : f32 to vector<16x1xf32>
    %289 = arith.addf %285, %288 : vector<16x1xf32>
    %290 = math.rsqrt %289 : vector<16x1xf32>
    %291 = vector.broadcast %290 : vector<16x1xf32> to vector<16x32xf32>
    %292 = arith.mulf %287, %291 : vector<16x32xf32>
    %293 = vector.broadcast %272 : vector<1x32xf32> to vector<16x32xf32>
    %294 = arith.mulf %292, %293 : vector<16x32xf32>
    %295 = vector.broadcast %274 : vector<1x32xf32> to vector<16x32xf32>
    %296 = arith.addf %294, %295 : vector<16x32xf32>
    %297 = arith.truncf %296 : vector<16x32xf32> to vector<16x32xbf16>
    %c1 = arith.constant 1 : index
    %c0_164 = arith.constant 0 : index
    %c0_165 = arith.constant 0 : index
    %298 = vector.load %arg6[%c1, %c0_164, %c0_165] : memref<2x32x96xbf16, #tpu.memory_space<vmem>>, vector<1x32x96xbf16>
    %299 = vector.shape_cast %298 : vector<1x32x96xbf16> to vector<32x96xbf16>
    %cst_166 = arith.constant dense<0.000000e+00> : vector<16x96xf32>
    %300 = tpu.matmul %297, %299, %cst_166 {dimension_numbers = #tpu.dot_dimension_numbers<[1], [0], [0], [1], [0, 0, 1, 1], [], []>} : vector<16x32xbf16>, vector<32x96xbf16>, vector<16x96xf32> -> vector<16x96xf32>
    %c1_167 = arith.constant 1 : index
    %c0_168 = arith.constant 0 : index
    %c0_169 = arith.constant 0 : index
    %301 = vector.load %arg7[%c1_167, %c0_168, %c0_169] : memref<2x1x96xf32, #tpu.memory_space<vmem>>, vector<1x1x96xf32>
    %302 = vector.shape_cast %301 : vector<1x1x96xf32> to vector<1x96xf32>
    %303 = vector.broadcast %302 : vector<1x96xf32> to vector<16x96xf32>
    %304 = arith.addf %300, %303 : vector<16x96xf32>
    %cst_170 = arith.constant 0.000000e+00 : f32
    %305 = vector.broadcast %cst_170 : f32 to vector<16x32xf32>
    %306 = vector.extract_strided_slice %304 {offsets = [0, 0], sizes = [16, 8], strides = [1, 1]} : vector<16x96xf32> to vector<16x8xf32>
    %307 = arith.truncf %306 : vector<16x8xf32> to vector<16x8xbf16>
    %308 = vector.extract_strided_slice %304 {offsets = [0, 32], sizes = [16, 8], strides = [1, 1]} : vector<16x96xf32> to vector<16x8xf32>
    %309 = arith.truncf %308 : vector<16x8xf32> to vector<16x8xbf16>
    %310 = vector.extract_strided_slice %304 {offsets = [0, 64], sizes = [16, 8], strides = [1, 1]} : vector<16x96xf32> to vector<16x8xf32>
    %311 = arith.truncf %310 : vector<16x8xf32> to vector<16x8xbf16>
    %cst_171 = arith.constant dense<0.000000e+00> : vector<16x16xf32>
    %312 = tpu.matmul %307, %309, %cst_171 {dimension_numbers = #tpu.dot_dimension_numbers<[1], [1], [0], [0], [0, 0, 1, 0], [], []>} : vector<16x8xbf16>, vector<16x8xbf16>, vector<16x16xf32> -> vector<16x16xf32>
    %313 = arith.addf %312, %11 : vector<16x16xf32>
    %cst_172 = arith.constant dense<0xFF800000> : vector<16xf32>
    %314 = vector.multi_reduction <maximumf>, %313, %cst_172 [1] : vector<16x16xf32> to vector<16xf32>
    %315 = vector.shape_cast %314 : vector<16xf32> to vector<16x1xf32>
    %316 = vector.broadcast %315 : vector<16x1xf32> to vector<16x16xf32>
    %317 = arith.subf %313, %316 : vector<16x16xf32>
    %318 = math.exp %317 : vector<16x16xf32>
    %cst_173 = arith.constant dense<0.000000e+00> : vector<16xf32>
    %319 = vector.multi_reduction <add>, %318, %cst_173 [1] : vector<16x16xf32> to vector<16xf32>
    %320 = vector.shape_cast %319 : vector<16xf32> to vector<16x1xf32>
    %321 = tpu.reciprocal %320 {approx = true} : vector<16x1xf32> -> vector<16x1xf32>
    %322 = vector.broadcast %321 : vector<16x1xf32> to vector<16x16xf32>
    %323 = arith.mulf %318, %322 : vector<16x16xf32>
    %324 = arith.truncf %323 : vector<16x16xf32> to vector<16x16xbf16>
    %cst_174 = arith.constant dense<0.000000e+00> : vector<16x8xf32>
    %325 = tpu.matmul %324, %311, %cst_174 {dimension_numbers = #tpu.dot_dimension_numbers<[1], [0], [0], [1], [0, 0, 1, 1], [], []>} : vector<16x16xbf16>, vector<16x8xbf16>, vector<16x8xf32> -> vector<16x8xf32>
    %326 = arith.truncf %325 : vector<16x8xf32> to vector<16x8xbf16>
    %c1_175 = arith.constant 1 : index
    %c0_176 = arith.constant 0 : index
    %c0_177 = arith.constant 0 : index
    %327 = vector.load %arg8[%c1_175, %c0_176, %c0_177] : memref<2x32x32xbf16, #tpu.memory_space<vmem>>, vector<1x8x32xbf16>
    %328 = vector.shape_cast %327 : vector<1x8x32xbf16> to vector<8x32xbf16>
    %cst_178 = arith.constant dense<0.000000e+00> : vector<16x32xf32>
    %329 = tpu.matmul %326, %328, %cst_178 {dimension_numbers = #tpu.dot_dimension_numbers<[1], [0], [0], [1], [0, 0, 1, 1], [], []>} : vector<16x8xbf16>, vector<8x32xbf16>, vector<16x32xf32> -> vector<16x32xf32>
    %330 = arith.addf %305, %329 : vector<16x32xf32>
    %331 = vector.extract_strided_slice %304 {offsets = [0, 8], sizes = [16, 8], strides = [1, 1]} : vector<16x96xf32> to vector<16x8xf32>
    %332 = arith.truncf %331 : vector<16x8xf32> to vector<16x8xbf16>
    %333 = vector.extract_strided_slice %304 {offsets = [0, 40], sizes = [16, 8], strides = [1, 1]} : vector<16x96xf32> to vector<16x8xf32>
    %334 = arith.truncf %333 : vector<16x8xf32> to vector<16x8xbf16>
    %335 = vector.extract_strided_slice %304 {offsets = [0, 72], sizes = [16, 8], strides = [1, 1]} : vector<16x96xf32> to vector<16x8xf32>
    %336 = arith.truncf %335 : vector<16x8xf32> to vector<16x8xbf16>
    %cst_179 = arith.constant dense<0.000000e+00> : vector<16x16xf32>
    %337 = tpu.matmul %332, %334, %cst_179 {dimension_numbers = #tpu.dot_dimension_numbers<[1], [1], [0], [0], [0, 0, 1, 0], [], []>} : vector<16x8xbf16>, vector<16x8xbf16>, vector<16x16xf32> -> vector<16x16xf32>
    %338 = arith.addf %337, %11 : vector<16x16xf32>
    %cst_180 = arith.constant dense<0xFF800000> : vector<16xf32>
    %339 = vector.multi_reduction <maximumf>, %338, %cst_180 [1] : vector<16x16xf32> to vector<16xf32>
    %340 = vector.shape_cast %339 : vector<16xf32> to vector<16x1xf32>
    %341 = vector.broadcast %340 : vector<16x1xf32> to vector<16x16xf32>
    %342 = arith.subf %338, %341 : vector<16x16xf32>
    %343 = math.exp %342 : vector<16x16xf32>
    %cst_181 = arith.constant dense<0.000000e+00> : vector<16xf32>
    %344 = vector.multi_reduction <add>, %343, %cst_181 [1] : vector<16x16xf32> to vector<16xf32>
    %345 = vector.shape_cast %344 : vector<16xf32> to vector<16x1xf32>
    %346 = tpu.reciprocal %345 {approx = true} : vector<16x1xf32> -> vector<16x1xf32>
    %347 = vector.broadcast %346 : vector<16x1xf32> to vector<16x16xf32>
    %348 = arith.mulf %343, %347 : vector<16x16xf32>
    %349 = arith.truncf %348 : vector<16x16xf32> to vector<16x16xbf16>
    %cst_182 = arith.constant dense<0.000000e+00> : vector<16x8xf32>
    %350 = tpu.matmul %349, %336, %cst_182 {dimension_numbers = #tpu.dot_dimension_numbers<[1], [0], [0], [1], [0, 0, 1, 1], [], []>} : vector<16x16xbf16>, vector<16x8xbf16>, vector<16x8xf32> -> vector<16x8xf32>
    %351 = arith.truncf %350 : vector<16x8xf32> to vector<16x8xbf16>
    %c1_183 = arith.constant 1 : index
    %c8_184 = arith.constant 8 : index
    %c0_185 = arith.constant 0 : index
    %352 = vector.load %arg8[%c1_183, %c8_184, %c0_185] : memref<2x32x32xbf16, #tpu.memory_space<vmem>>, vector<1x8x32xbf16>
    %353 = vector.shape_cast %352 : vector<1x8x32xbf16> to vector<8x32xbf16>
    %cst_186 = arith.constant dense<0.000000e+00> : vector<16x32xf32>
    %354 = tpu.matmul %351, %353, %cst_186 {dimension_numbers = #tpu.dot_dimension_numbers<[1], [0], [0], [1], [0, 0, 1, 1], [], []>} : vector<16x8xbf16>, vector<8x32xbf16>, vector<16x32xf32> -> vector<16x32xf32>
    %355 = arith.addf %330, %354 : vector<16x32xf32>
    %356 = vector.extract_strided_slice %304 {offsets = [0, 16], sizes = [16, 8], strides = [1, 1]} : vector<16x96xf32> to vector<16x8xf32>
    %357 = arith.truncf %356 : vector<16x8xf32> to vector<16x8xbf16>
    %358 = vector.extract_strided_slice %304 {offsets = [0, 48], sizes = [16, 8], strides = [1, 1]} : vector<16x96xf32> to vector<16x8xf32>
    %359 = arith.truncf %358 : vector<16x8xf32> to vector<16x8xbf16>
    %360 = vector.extract_strided_slice %304 {offsets = [0, 80], sizes = [16, 8], strides = [1, 1]} : vector<16x96xf32> to vector<16x8xf32>
    %361 = arith.truncf %360 : vector<16x8xf32> to vector<16x8xbf16>
    %cst_187 = arith.constant dense<0.000000e+00> : vector<16x16xf32>
    %362 = tpu.matmul %357, %359, %cst_187 {dimension_numbers = #tpu.dot_dimension_numbers<[1], [1], [0], [0], [0, 0, 1, 0], [], []>} : vector<16x8xbf16>, vector<16x8xbf16>, vector<16x16xf32> -> vector<16x16xf32>
    %363 = arith.addf %362, %11 : vector<16x16xf32>
    %cst_188 = arith.constant dense<0xFF800000> : vector<16xf32>
    %364 = vector.multi_reduction <maximumf>, %363, %cst_188 [1] : vector<16x16xf32> to vector<16xf32>
    %365 = vector.shape_cast %364 : vector<16xf32> to vector<16x1xf32>
    %366 = vector.broadcast %365 : vector<16x1xf32> to vector<16x16xf32>
    %367 = arith.subf %363, %366 : vector<16x16xf32>
    %368 = math.exp %367 : vector<16x16xf32>
    %cst_189 = arith.constant dense<0.000000e+00> : vector<16xf32>
    %369 = vector.multi_reduction <add>, %368, %cst_189 [1] : vector<16x16xf32> to vector<16xf32>
    %370 = vector.shape_cast %369 : vector<16xf32> to vector<16x1xf32>
    %371 = tpu.reciprocal %370 {approx = true} : vector<16x1xf32> -> vector<16x1xf32>
    %372 = vector.broadcast %371 : vector<16x1xf32> to vector<16x16xf32>
    %373 = arith.mulf %368, %372 : vector<16x16xf32>
    %374 = arith.truncf %373 : vector<16x16xf32> to vector<16x16xbf16>
    %cst_190 = arith.constant dense<0.000000e+00> : vector<16x8xf32>
    %375 = tpu.matmul %374, %361, %cst_190 {dimension_numbers = #tpu.dot_dimension_numbers<[1], [0], [0], [1], [0, 0, 1, 1], [], []>} : vector<16x16xbf16>, vector<16x8xbf16>, vector<16x8xf32> -> vector<16x8xf32>
    %376 = arith.truncf %375 : vector<16x8xf32> to vector<16x8xbf16>
    %c1_191 = arith.constant 1 : index
    %c16_192 = arith.constant 16 : index
    %c0_193 = arith.constant 0 : index
    %377 = vector.load %arg8[%c1_191, %c16_192, %c0_193] : memref<2x32x32xbf16, #tpu.memory_space<vmem>>, vector<1x8x32xbf16>
    %378 = vector.shape_cast %377 : vector<1x8x32xbf16> to vector<8x32xbf16>
    %cst_194 = arith.constant dense<0.000000e+00> : vector<16x32xf32>
    %379 = tpu.matmul %376, %378, %cst_194 {dimension_numbers = #tpu.dot_dimension_numbers<[1], [0], [0], [1], [0, 0, 1, 1], [], []>} : vector<16x8xbf16>, vector<8x32xbf16>, vector<16x32xf32> -> vector<16x32xf32>
    %380 = arith.addf %355, %379 : vector<16x32xf32>
    %381 = vector.extract_strided_slice %304 {offsets = [0, 24], sizes = [16, 8], strides = [1, 1]} : vector<16x96xf32> to vector<16x8xf32>
    %382 = arith.truncf %381 : vector<16x8xf32> to vector<16x8xbf16>
    %383 = vector.extract_strided_slice %304 {offsets = [0, 56], sizes = [16, 8], strides = [1, 1]} : vector<16x96xf32> to vector<16x8xf32>
    %384 = arith.truncf %383 : vector<16x8xf32> to vector<16x8xbf16>
    %385 = vector.extract_strided_slice %304 {offsets = [0, 88], sizes = [16, 8], strides = [1, 1]} : vector<16x96xf32> to vector<16x8xf32>
    %386 = arith.truncf %385 : vector<16x8xf32> to vector<16x8xbf16>
    %cst_195 = arith.constant dense<0.000000e+00> : vector<16x16xf32>
    %387 = tpu.matmul %382, %384, %cst_195 {dimension_numbers = #tpu.dot_dimension_numbers<[1], [1], [0], [0], [0, 0, 1, 0], [], []>} : vector<16x8xbf16>, vector<16x8xbf16>, vector<16x16xf32> -> vector<16x16xf32>
    %388 = arith.addf %387, %11 : vector<16x16xf32>
    %cst_196 = arith.constant dense<0xFF800000> : vector<16xf32>
    %389 = vector.multi_reduction <maximumf>, %388, %cst_196 [1] : vector<16x16xf32> to vector<16xf32>
    %390 = vector.shape_cast %389 : vector<16xf32> to vector<16x1xf32>
    %391 = vector.broadcast %390 : vector<16x1xf32> to vector<16x16xf32>
    %392 = arith.subf %388, %391 : vector<16x16xf32>
    %393 = math.exp %392 : vector<16x16xf32>
    %cst_197 = arith.constant dense<0.000000e+00> : vector<16xf32>
    %394 = vector.multi_reduction <add>, %393, %cst_197 [1] : vector<16x16xf32> to vector<16xf32>
    %395 = vector.shape_cast %394 : vector<16xf32> to vector<16x1xf32>
    %396 = tpu.reciprocal %395 {approx = true} : vector<16x1xf32> -> vector<16x1xf32>
    %397 = vector.broadcast %396 : vector<16x1xf32> to vector<16x16xf32>
    %398 = arith.mulf %393, %397 : vector<16x16xf32>
    %399 = arith.truncf %398 : vector<16x16xf32> to vector<16x16xbf16>
    %cst_198 = arith.constant dense<0.000000e+00> : vector<16x8xf32>
    %400 = tpu.matmul %399, %386, %cst_198 {dimension_numbers = #tpu.dot_dimension_numbers<[1], [0], [0], [1], [0, 0, 1, 1], [], []>} : vector<16x16xbf16>, vector<16x8xbf16>, vector<16x8xf32> -> vector<16x8xf32>
    %401 = arith.truncf %400 : vector<16x8xf32> to vector<16x8xbf16>
    %c1_199 = arith.constant 1 : index
    %c24_200 = arith.constant 24 : index
    %c0_201 = arith.constant 0 : index
    %402 = vector.load %arg8[%c1_199, %c24_200, %c0_201] : memref<2x32x32xbf16, #tpu.memory_space<vmem>>, vector<1x8x32xbf16>
    %403 = vector.shape_cast %402 : vector<1x8x32xbf16> to vector<8x32xbf16>
    %cst_202 = arith.constant dense<0.000000e+00> : vector<16x32xf32>
    %404 = tpu.matmul %401, %403, %cst_202 {dimension_numbers = #tpu.dot_dimension_numbers<[1], [0], [0], [1], [0, 0, 1, 1], [], []>} : vector<16x8xbf16>, vector<8x32xbf16>, vector<16x32xf32> -> vector<16x32xf32>
    %405 = arith.addf %380, %404 : vector<16x32xf32>
    %c1_203 = arith.constant 1 : index
    %c0_204 = arith.constant 0 : index
    %c0_205 = arith.constant 0 : index
    %406 = vector.load %arg9[%c1_203, %c0_204, %c0_205] : memref<2x1x32xf32, #tpu.memory_space<vmem>>, vector<1x1x32xf32>
    %407 = vector.shape_cast %406 : vector<1x1x32xf32> to vector<1x32xf32>
    %408 = vector.broadcast %407 : vector<1x32xf32> to vector<16x32xf32>
    %409 = arith.addf %405, %408 : vector<16x32xf32>
    %410 = arith.addf %296, %409 : vector<16x32xf32>
    %c1_206 = arith.constant 1 : index
    %c0_207 = arith.constant 0 : index
    %c0_208 = arith.constant 0 : index
    %411 = vector.load %arg10[%c1_206, %c0_207, %c0_208] : memref<2x1x32xf32, #tpu.memory_space<vmem>>, vector<1x1x32xf32>
    %412 = vector.shape_cast %411 : vector<1x1x32xf32> to vector<1x32xf32>
    %c1_209 = arith.constant 1 : index
    %c0_210 = arith.constant 0 : index
    %c0_211 = arith.constant 0 : index
    %413 = vector.load %arg11[%c1_209, %c0_210, %c0_211] : memref<2x1x32xf32, #tpu.memory_space<vmem>>, vector<1x1x32xf32>
    %414 = vector.shape_cast %413 : vector<1x1x32xf32> to vector<1x32xf32>
    %cst_212 = arith.constant dense<0.000000e+00> : vector<16xf32>
    %415 = vector.multi_reduction <add>, %410, %cst_212 [1] : vector<16x32xf32> to vector<16xf32>
    %416 = vector.shape_cast %415 : vector<16xf32> to vector<16x1xf32>
    %cst_213 = arith.constant 3.200000e+01 : f32
    %417 = vector.broadcast %cst_213 : f32 to vector<16x1xf32>
    %418 = arith.divf %416, %417 : vector<16x1xf32>
    %419 = vector.broadcast %418 : vector<16x1xf32> to vector<16x32xf32>
    %420 = arith.subf %410, %419 : vector<16x32xf32>
    %421 = arith.mulf %420, %420 : vector<16x32xf32>
    %cst_214 = arith.constant dense<0.000000e+00> : vector<16xf32>
    %422 = vector.multi_reduction <add>, %421, %cst_214 [1] : vector<16x32xf32> to vector<16xf32>
    %423 = vector.shape_cast %422 : vector<16xf32> to vector<16x1xf32>
    %cst_215 = arith.constant 3.200000e+01 : f32
    %424 = vector.broadcast %cst_215 : f32 to vector<16x1xf32>
    %425 = arith.divf %423, %424 : vector<16x1xf32>
    %426 = vector.broadcast %418 : vector<16x1xf32> to vector<16x32xf32>
    %427 = arith.subf %410, %426 : vector<16x32xf32>
    %cst_216 = arith.constant 9.99999974E-6 : f32
    %428 = vector.broadcast %cst_216 : f32 to vector<16x1xf32>
    %429 = arith.addf %425, %428 : vector<16x1xf32>
    %430 = math.rsqrt %429 : vector<16x1xf32>
    %431 = vector.broadcast %430 : vector<16x1xf32> to vector<16x32xf32>
    %432 = arith.mulf %427, %431 : vector<16x32xf32>
    %433 = vector.broadcast %412 : vector<1x32xf32> to vector<16x32xf32>
    %434 = arith.mulf %432, %433 : vector<16x32xf32>
    %435 = vector.broadcast %414 : vector<1x32xf32> to vector<16x32xf32>
    %436 = arith.addf %434, %435 : vector<16x32xf32>
    %437 = arith.truncf %436 : vector<16x32xf32> to vector<16x32xbf16>
    %cst_217 = arith.constant 0.000000e+00 : f32
    %438 = vector.broadcast %cst_217 : f32 to vector<16x32xf32>
    %c1_218 = arith.constant 1 : index
    %c0_219 = arith.constant 0 : index
    %c0_220 = arith.constant 0 : index
    %439 = vector.load %arg14[%c1_218, %c0_219, %c0_220] : memref<2x32x2048xbf16, #tpu.memory_space<vmem>>, vector<1x32x256xbf16>
    %440 = vector.shape_cast %439 : vector<1x32x256xbf16> to vector<32x256xbf16>
    %cst_221 = arith.constant dense<0.000000e+00> : vector<16x256xf32>
    %441 = tpu.matmul %437, %440, %cst_221 {dimension_numbers = #tpu.dot_dimension_numbers<[1], [0], [0], [1], [0, 0, 1, 1], [], []>} : vector<16x32xbf16>, vector<32x256xbf16>, vector<16x256xf32> -> vector<16x256xf32>
    %c1_222 = arith.constant 1 : index
    %c0_223 = arith.constant 0 : index
    %c0_224 = arith.constant 0 : index
    %442 = vector.load %arg15[%c1_222, %c0_223, %c0_224] : memref<2x1x2048xf32, #tpu.memory_space<vmem>>, vector<1x1x256xf32>
    %443 = vector.shape_cast %442 : vector<1x1x256xf32> to vector<1x256xf32>
    %444 = vector.broadcast %443 : vector<1x256xf32> to vector<16x256xf32>
    %445 = arith.addf %441, %444 : vector<16x256xf32>
    %cst_225 = arith.constant 0.000000e+00 : f32
    %446 = vector.broadcast %cst_225 : f32 to vector<16x256xf32>
    %447 = arith.maximumf %445, %446 : vector<16x256xf32>
    %448 = arith.truncf %447 : vector<16x256xf32> to vector<16x256xbf16>
    %c1_226 = arith.constant 1 : index
    %c0_227 = arith.constant 0 : index
    %c0_228 = arith.constant 0 : index
    %449 = vector.load %arg16[%c1_226, %c0_227, %c0_228] : memref<2x2048x32xbf16, #tpu.memory_space<vmem>>, vector<1x256x32xbf16>
    %450 = vector.shape_cast %449 : vector<1x256x32xbf16> to vector<256x32xbf16>
    %cst_229 = arith.constant dense<0.000000e+00> : vector<16x32xf32>
    %451 = tpu.matmul %448, %450, %cst_229 {dimension_numbers = #tpu.dot_dimension_numbers<[1], [0], [0], [1], [0, 0, 1, 1], [], []>} : vector<16x256xbf16>, vector<256x32xbf16>, vector<16x32xf32> -> vector<16x32xf32>
    %452 = arith.addf %438, %451 : vector<16x32xf32>
    %c1_230 = arith.constant 1 : index
    %c0_231 = arith.constant 0 : index
    %c256_232 = arith.constant 256 : index
    %453 = vector.load %arg14[%c1_230, %c0_231, %c256_232] : memref<2x32x2048xbf16, #tpu.memory_space<vmem>>, vector<1x32x256xbf16>
    %454 = vector.shape_cast %453 : vector<1x32x256xbf16> to vector<32x256xbf16>
    %cst_233 = arith.constant dense<0.000000e+00> : vector<16x256xf32>
    %455 = tpu.matmul %437, %454, %cst_233 {dimension_numbers = #tpu.dot_dimension_numbers<[1], [0], [0], [1], [0, 0, 1, 1], [], []>} : vector<16x32xbf16>, vector<32x256xbf16>, vector<16x256xf32> -> vector<16x256xf32>
    %c1_234 = arith.constant 1 : index
    %c0_235 = arith.constant 0 : index
    %c256_236 = arith.constant 256 : index
    %456 = vector.load %arg15[%c1_234, %c0_235, %c256_236] : memref<2x1x2048xf32, #tpu.memory_space<vmem>>, vector<1x1x256xf32>
    %457 = vector.shape_cast %456 : vector<1x1x256xf32> to vector<1x256xf32>
    %458 = vector.broadcast %457 : vector<1x256xf32> to vector<16x256xf32>
    %459 = arith.addf %455, %458 : vector<16x256xf32>
    %cst_237 = arith.constant 0.000000e+00 : f32
    %460 = vector.broadcast %cst_237 : f32 to vector<16x256xf32>
    %461 = arith.maximumf %459, %460 : vector<16x256xf32>
    %462 = arith.truncf %461 : vector<16x256xf32> to vector<16x256xbf16>
    %c1_238 = arith.constant 1 : index
    %c256_239 = arith.constant 256 : index
    %c0_240 = arith.constant 0 : index
    %463 = vector.load %arg16[%c1_238, %c256_239, %c0_240] : memref<2x2048x32xbf16, #tpu.memory_space<vmem>>, vector<1x256x32xbf16>
    %464 = vector.shape_cast %463 : vector<1x256x32xbf16> to vector<256x32xbf16>
    %cst_241 = arith.constant dense<0.000000e+00> : vector<16x32xf32>
    %465 = tpu.matmul %462, %464, %cst_241 {dimension_numbers = #tpu.dot_dimension_numbers<[1], [0], [0], [1], [0, 0, 1, 1], [], []>} : vector<16x256xbf16>, vector<256x32xbf16>, vector<16x32xf32> -> vector<16x32xf32>
    %466 = arith.addf %452, %465 : vector<16x32xf32>
    %c1_242 = arith.constant 1 : index
    %c0_243 = arith.constant 0 : index
    %c512_244 = arith.constant 512 : index
    %467 = vector.load %arg14[%c1_242, %c0_243, %c512_244] : memref<2x32x2048xbf16, #tpu.memory_space<vmem>>, vector<1x32x256xbf16>
    %468 = vector.shape_cast %467 : vector<1x32x256xbf16> to vector<32x256xbf16>
    %cst_245 = arith.constant dense<0.000000e+00> : vector<16x256xf32>
    %469 = tpu.matmul %437, %468, %cst_245 {dimension_numbers = #tpu.dot_dimension_numbers<[1], [0], [0], [1], [0, 0, 1, 1], [], []>} : vector<16x32xbf16>, vector<32x256xbf16>, vector<16x256xf32> -> vector<16x256xf32>
    %c1_246 = arith.constant 1 : index
    %c0_247 = arith.constant 0 : index
    %c512_248 = arith.constant 512 : index
    %470 = vector.load %arg15[%c1_246, %c0_247, %c512_248] : memref<2x1x2048xf32, #tpu.memory_space<vmem>>, vector<1x1x256xf32>
    %471 = vector.shape_cast %470 : vector<1x1x256xf32> to vector<1x256xf32>
    %472 = vector.broadcast %471 : vector<1x256xf32> to vector<16x256xf32>
    %473 = arith.addf %469, %472 : vector<16x256xf32>
    %cst_249 = arith.constant 0.000000e+00 : f32
    %474 = vector.broadcast %cst_249 : f32 to vector<16x256xf32>
    %475 = arith.maximumf %473, %474 : vector<16x256xf32>
    %476 = arith.truncf %475 : vector<16x256xf32> to vector<16x256xbf16>
    %c1_250 = arith.constant 1 : index
    %c512_251 = arith.constant 512 : index
    %c0_252 = arith.constant 0 : index
    %477 = vector.load %arg16[%c1_250, %c512_251, %c0_252] : memref<2x2048x32xbf16, #tpu.memory_space<vmem>>, vector<1x256x32xbf16>
    %478 = vector.shape_cast %477 : vector<1x256x32xbf16> to vector<256x32xbf16>
    %cst_253 = arith.constant dense<0.000000e+00> : vector<16x32xf32>
    %479 = tpu.matmul %476, %478, %cst_253 {dimension_numbers = #tpu.dot_dimension_numbers<[1], [0], [0], [1], [0, 0, 1, 1], [], []>} : vector<16x256xbf16>, vector<256x32xbf16>, vector<16x32xf32> -> vector<16x32xf32>
    %480 = arith.addf %466, %479 : vector<16x32xf32>
    %c1_254 = arith.constant 1 : index
    %c0_255 = arith.constant 0 : index
    %c768_256 = arith.constant 768 : index
    %481 = vector.load %arg14[%c1_254, %c0_255, %c768_256] : memref<2x32x2048xbf16, #tpu.memory_space<vmem>>, vector<1x32x256xbf16>
    %482 = vector.shape_cast %481 : vector<1x32x256xbf16> to vector<32x256xbf16>
    %cst_257 = arith.constant dense<0.000000e+00> : vector<16x256xf32>
    %483 = tpu.matmul %437, %482, %cst_257 {dimension_numbers = #tpu.dot_dimension_numbers<[1], [0], [0], [1], [0, 0, 1, 1], [], []>} : vector<16x32xbf16>, vector<32x256xbf16>, vector<16x256xf32> -> vector<16x256xf32>
    %c1_258 = arith.constant 1 : index
    %c0_259 = arith.constant 0 : index
    %c768_260 = arith.constant 768 : index
    %484 = vector.load %arg15[%c1_258, %c0_259, %c768_260] : memref<2x1x2048xf32, #tpu.memory_space<vmem>>, vector<1x1x256xf32>
    %485 = vector.shape_cast %484 : vector<1x1x256xf32> to vector<1x256xf32>
    %486 = vector.broadcast %485 : vector<1x256xf32> to vector<16x256xf32>
    %487 = arith.addf %483, %486 : vector<16x256xf32>
    %cst_261 = arith.constant 0.000000e+00 : f32
    %488 = vector.broadcast %cst_261 : f32 to vector<16x256xf32>
    %489 = arith.maximumf %487, %488 : vector<16x256xf32>
    %490 = arith.truncf %489 : vector<16x256xf32> to vector<16x256xbf16>
    %c1_262 = arith.constant 1 : index
    %c768_263 = arith.constant 768 : index
    %c0_264 = arith.constant 0 : index
    %491 = vector.load %arg16[%c1_262, %c768_263, %c0_264] : memref<2x2048x32xbf16, #tpu.memory_space<vmem>>, vector<1x256x32xbf16>
    %492 = vector.shape_cast %491 : vector<1x256x32xbf16> to vector<256x32xbf16>
    %cst_265 = arith.constant dense<0.000000e+00> : vector<16x32xf32>
    %493 = tpu.matmul %490, %492, %cst_265 {dimension_numbers = #tpu.dot_dimension_numbers<[1], [0], [0], [1], [0, 0, 1, 1], [], []>} : vector<16x256xbf16>, vector<256x32xbf16>, vector<16x32xf32> -> vector<16x32xf32>
    %494 = arith.addf %480, %493 : vector<16x32xf32>
    %c1_266 = arith.constant 1 : index
    %c0_267 = arith.constant 0 : index
    %c1024_268 = arith.constant 1024 : index
    %495 = vector.load %arg14[%c1_266, %c0_267, %c1024_268] : memref<2x32x2048xbf16, #tpu.memory_space<vmem>>, vector<1x32x256xbf16>
    %496 = vector.shape_cast %495 : vector<1x32x256xbf16> to vector<32x256xbf16>
    %cst_269 = arith.constant dense<0.000000e+00> : vector<16x256xf32>
    %497 = tpu.matmul %437, %496, %cst_269 {dimension_numbers = #tpu.dot_dimension_numbers<[1], [0], [0], [1], [0, 0, 1, 1], [], []>} : vector<16x32xbf16>, vector<32x256xbf16>, vector<16x256xf32> -> vector<16x256xf32>
    %c1_270 = arith.constant 1 : index
    %c0_271 = arith.constant 0 : index
    %c1024_272 = arith.constant 1024 : index
    %498 = vector.load %arg15[%c1_270, %c0_271, %c1024_272] : memref<2x1x2048xf32, #tpu.memory_space<vmem>>, vector<1x1x256xf32>
    %499 = vector.shape_cast %498 : vector<1x1x256xf32> to vector<1x256xf32>
    %500 = vector.broadcast %499 : vector<1x256xf32> to vector<16x256xf32>
    %501 = arith.addf %497, %500 : vector<16x256xf32>
    %cst_273 = arith.constant 0.000000e+00 : f32
    %502 = vector.broadcast %cst_273 : f32 to vector<16x256xf32>
    %503 = arith.maximumf %501, %502 : vector<16x256xf32>
    %504 = arith.truncf %503 : vector<16x256xf32> to vector<16x256xbf16>
    %c1_274 = arith.constant 1 : index
    %c1024_275 = arith.constant 1024 : index
    %c0_276 = arith.constant 0 : index
    %505 = vector.load %arg16[%c1_274, %c1024_275, %c0_276] : memref<2x2048x32xbf16, #tpu.memory_space<vmem>>, vector<1x256x32xbf16>
    %506 = vector.shape_cast %505 : vector<1x256x32xbf16> to vector<256x32xbf16>
    %cst_277 = arith.constant dense<0.000000e+00> : vector<16x32xf32>
    %507 = tpu.matmul %504, %506, %cst_277 {dimension_numbers = #tpu.dot_dimension_numbers<[1], [0], [0], [1], [0, 0, 1, 1], [], []>} : vector<16x256xbf16>, vector<256x32xbf16>, vector<16x32xf32> -> vector<16x32xf32>
    %508 = arith.addf %494, %507 : vector<16x32xf32>
    %c1_278 = arith.constant 1 : index
    %c0_279 = arith.constant 0 : index
    %c1280_280 = arith.constant 1280 : index
    %509 = vector.load %arg14[%c1_278, %c0_279, %c1280_280] : memref<2x32x2048xbf16, #tpu.memory_space<vmem>>, vector<1x32x256xbf16>
    %510 = vector.shape_cast %509 : vector<1x32x256xbf16> to vector<32x256xbf16>
    %cst_281 = arith.constant dense<0.000000e+00> : vector<16x256xf32>
    %511 = tpu.matmul %437, %510, %cst_281 {dimension_numbers = #tpu.dot_dimension_numbers<[1], [0], [0], [1], [0, 0, 1, 1], [], []>} : vector<16x32xbf16>, vector<32x256xbf16>, vector<16x256xf32> -> vector<16x256xf32>
    %c1_282 = arith.constant 1 : index
    %c0_283 = arith.constant 0 : index
    %c1280_284 = arith.constant 1280 : index
    %512 = vector.load %arg15[%c1_282, %c0_283, %c1280_284] : memref<2x1x2048xf32, #tpu.memory_space<vmem>>, vector<1x1x256xf32>
    %513 = vector.shape_cast %512 : vector<1x1x256xf32> to vector<1x256xf32>
    %514 = vector.broadcast %513 : vector<1x256xf32> to vector<16x256xf32>
    %515 = arith.addf %511, %514 : vector<16x256xf32>
    %cst_285 = arith.constant 0.000000e+00 : f32
    %516 = vector.broadcast %cst_285 : f32 to vector<16x256xf32>
    %517 = arith.maximumf %515, %516 : vector<16x256xf32>
    %518 = arith.truncf %517 : vector<16x256xf32> to vector<16x256xbf16>
    %c1_286 = arith.constant 1 : index
    %c1280_287 = arith.constant 1280 : index
    %c0_288 = arith.constant 0 : index
    %519 = vector.load %arg16[%c1_286, %c1280_287, %c0_288] : memref<2x2048x32xbf16, #tpu.memory_space<vmem>>, vector<1x256x32xbf16>
    %520 = vector.shape_cast %519 : vector<1x256x32xbf16> to vector<256x32xbf16>
    %cst_289 = arith.constant dense<0.000000e+00> : vector<16x32xf32>
    %521 = tpu.matmul %518, %520, %cst_289 {dimension_numbers = #tpu.dot_dimension_numbers<[1], [0], [0], [1], [0, 0, 1, 1], [], []>} : vector<16x256xbf16>, vector<256x32xbf16>, vector<16x32xf32> -> vector<16x32xf32>
    %522 = arith.addf %508, %521 : vector<16x32xf32>
    %c1_290 = arith.constant 1 : index
    %c0_291 = arith.constant 0 : index
    %c1536_292 = arith.constant 1536 : index
    %523 = vector.load %arg14[%c1_290, %c0_291, %c1536_292] : memref<2x32x2048xbf16, #tpu.memory_space<vmem>>, vector<1x32x256xbf16>
    %524 = vector.shape_cast %523 : vector<1x32x256xbf16> to vector<32x256xbf16>
    %cst_293 = arith.constant dense<0.000000e+00> : vector<16x256xf32>
    %525 = tpu.matmul %437, %524, %cst_293 {dimension_numbers = #tpu.dot_dimension_numbers<[1], [0], [0], [1], [0, 0, 1, 1], [], []>} : vector<16x32xbf16>, vector<32x256xbf16>, vector<16x256xf32> -> vector<16x256xf32>
    %c1_294 = arith.constant 1 : index
    %c0_295 = arith.constant 0 : index
    %c1536_296 = arith.constant 1536 : index
    %526 = vector.load %arg15[%c1_294, %c0_295, %c1536_296] : memref<2x1x2048xf32, #tpu.memory_space<vmem>>, vector<1x1x256xf32>
    %527 = vector.shape_cast %526 : vector<1x1x256xf32> to vector<1x256xf32>
    %528 = vector.broadcast %527 : vector<1x256xf32> to vector<16x256xf32>
    %529 = arith.addf %525, %528 : vector<16x256xf32>
    %cst_297 = arith.constant 0.000000e+00 : f32
    %530 = vector.broadcast %cst_297 : f32 to vector<16x256xf32>
    %531 = arith.maximumf %529, %530 : vector<16x256xf32>
    %532 = arith.truncf %531 : vector<16x256xf32> to vector<16x256xbf16>
    %c1_298 = arith.constant 1 : index
    %c1536_299 = arith.constant 1536 : index
    %c0_300 = arith.constant 0 : index
    %533 = vector.load %arg16[%c1_298, %c1536_299, %c0_300] : memref<2x2048x32xbf16, #tpu.memory_space<vmem>>, vector<1x256x32xbf16>
    %534 = vector.shape_cast %533 : vector<1x256x32xbf16> to vector<256x32xbf16>
    %cst_301 = arith.constant dense<0.000000e+00> : vector<16x32xf32>
    %535 = tpu.matmul %532, %534, %cst_301 {dimension_numbers = #tpu.dot_dimension_numbers<[1], [0], [0], [1], [0, 0, 1, 1], [], []>} : vector<16x256xbf16>, vector<256x32xbf16>, vector<16x32xf32> -> vector<16x32xf32>
    %536 = arith.addf %522, %535 : vector<16x32xf32>
    %c1_302 = arith.constant 1 : index
    %c0_303 = arith.constant 0 : index
    %c1792_304 = arith.constant 1792 : index
    %537 = vector.load %arg14[%c1_302, %c0_303, %c1792_304] : memref<2x32x2048xbf16, #tpu.memory_space<vmem>>, vector<1x32x256xbf16>
    %538 = vector.shape_cast %537 : vector<1x32x256xbf16> to vector<32x256xbf16>
    %cst_305 = arith.constant dense<0.000000e+00> : vector<16x256xf32>
    %539 = tpu.matmul %437, %538, %cst_305 {dimension_numbers = #tpu.dot_dimension_numbers<[1], [0], [0], [1], [0, 0, 1, 1], [], []>} : vector<16x32xbf16>, vector<32x256xbf16>, vector<16x256xf32> -> vector<16x256xf32>
    %c1_306 = arith.constant 1 : index
    %c0_307 = arith.constant 0 : index
    %c1792_308 = arith.constant 1792 : index
    %540 = vector.load %arg15[%c1_306, %c0_307, %c1792_308] : memref<2x1x2048xf32, #tpu.memory_space<vmem>>, vector<1x1x256xf32>
    %541 = vector.shape_cast %540 : vector<1x1x256xf32> to vector<1x256xf32>
    %542 = vector.broadcast %541 : vector<1x256xf32> to vector<16x256xf32>
    %543 = arith.addf %539, %542 : vector<16x256xf32>
    %cst_309 = arith.constant 0.000000e+00 : f32
    %544 = vector.broadcast %cst_309 : f32 to vector<16x256xf32>
    %545 = arith.maximumf %543, %544 : vector<16x256xf32>
    %546 = arith.truncf %545 : vector<16x256xf32> to vector<16x256xbf16>
    %c1_310 = arith.constant 1 : index
    %c1792_311 = arith.constant 1792 : index
    %c0_312 = arith.constant 0 : index
    %547 = vector.load %arg16[%c1_310, %c1792_311, %c0_312] : memref<2x2048x32xbf16, #tpu.memory_space<vmem>>, vector<1x256x32xbf16>
    %548 = vector.shape_cast %547 : vector<1x256x32xbf16> to vector<256x32xbf16>
    %cst_313 = arith.constant dense<0.000000e+00> : vector<16x32xf32>
    %549 = tpu.matmul %546, %548, %cst_313 {dimension_numbers = #tpu.dot_dimension_numbers<[1], [0], [0], [1], [0, 0, 1, 1], [], []>} : vector<16x256xbf16>, vector<256x32xbf16>, vector<16x32xf32> -> vector<16x32xf32>
    %550 = arith.addf %536, %549 : vector<16x32xf32>
    %c1_314 = arith.constant 1 : index
    %c0_315 = arith.constant 0 : index
    %c0_316 = arith.constant 0 : index
    %551 = vector.load %arg17[%c1_314, %c0_315, %c0_316] : memref<2x1x32xf32, #tpu.memory_space<vmem>>, vector<1x1x32xf32>
    %552 = vector.shape_cast %551 : vector<1x1x32xf32> to vector<1x32xf32>
    %553 = vector.broadcast %552 : vector<1x32xf32> to vector<16x32xf32>
    %554 = arith.addf %550, %553 : vector<16x32xf32>
    %555 = arith.addf %436, %554 : vector<16x32xf32>
    %c1_317 = arith.constant 1 : index
    %c0_318 = arith.constant 0 : index
    %c0_319 = arith.constant 0 : index
    %556 = vector.load %arg12[%c1_317, %c0_318, %c0_319] : memref<2x1x32xf32, #tpu.memory_space<vmem>>, vector<1x1x32xf32>
    %557 = vector.shape_cast %556 : vector<1x1x32xf32> to vector<1x32xf32>
    %c1_320 = arith.constant 1 : index
    %c0_321 = arith.constant 0 : index
    %c0_322 = arith.constant 0 : index
    %558 = vector.load %arg13[%c1_320, %c0_321, %c0_322] : memref<2x1x32xf32, #tpu.memory_space<vmem>>, vector<1x1x32xf32>
    %559 = vector.shape_cast %558 : vector<1x1x32xf32> to vector<1x32xf32>
    %cst_323 = arith.constant dense<0.000000e+00> : vector<16xf32>
    %560 = vector.multi_reduction <add>, %555, %cst_323 [1] : vector<16x32xf32> to vector<16xf32>
    %561 = vector.shape_cast %560 : vector<16xf32> to vector<16x1xf32>
    %cst_324 = arith.constant 3.200000e+01 : f32
    %562 = vector.broadcast %cst_324 : f32 to vector<16x1xf32>
    %563 = arith.divf %561, %562 : vector<16x1xf32>
    %564 = vector.broadcast %563 : vector<16x1xf32> to vector<16x32xf32>
    %565 = arith.subf %555, %564 : vector<16x32xf32>
    %566 = arith.mulf %565, %565 : vector<16x32xf32>
    %cst_325 = arith.constant dense<0.000000e+00> : vector<16xf32>
    %567 = vector.multi_reduction <add>, %566, %cst_325 [1] : vector<16x32xf32> to vector<16xf32>
    %568 = vector.shape_cast %567 : vector<16xf32> to vector<16x1xf32>
    %cst_326 = arith.constant 3.200000e+01 : f32
    %569 = vector.broadcast %cst_326 : f32 to vector<16x1xf32>
    %570 = arith.divf %568, %569 : vector<16x1xf32>
    %571 = vector.broadcast %563 : vector<16x1xf32> to vector<16x32xf32>
    %572 = arith.subf %555, %571 : vector<16x32xf32>
    %cst_327 = arith.constant 9.99999974E-6 : f32
    %573 = vector.broadcast %cst_327 : f32 to vector<16x1xf32>
    %574 = arith.addf %570, %573 : vector<16x1xf32>
    %575 = math.rsqrt %574 : vector<16x1xf32>
    %576 = vector.broadcast %575 : vector<16x1xf32> to vector<16x32xf32>
    %577 = arith.mulf %572, %576 : vector<16x32xf32>
    %578 = vector.broadcast %557 : vector<1x32xf32> to vector<16x32xf32>
    %579 = arith.mulf %577, %578 : vector<16x32xf32>
    %580 = vector.broadcast %559 : vector<1x32xf32> to vector<16x32xf32>
    %581 = arith.addf %579, %580 : vector<16x32xf32>
    %582 = vector.shape_cast %581 : vector<16x32xf32> to vector<2x8x32xf32>
    %cst_328 = arith.constant dense<0.000000e+00> : vector<2x32xf32>
    %583 = vector.multi_reduction <add>, %582, %cst_328 [1] : vector<2x8x32xf32> to vector<2x32xf32>
    %cst_329 = arith.constant 8.000000e+00 : f32
    %584 = vector.broadcast %cst_329 : f32 to vector<2x32xf32>
    %585 = arith.divf %583, %584 : vector<2x32xf32>
    %c0_330 = arith.constant 0 : index
    %c0_331 = arith.constant 0 : index
    %586 = vector.load %arg18[%c0_330, %c0_331] : memref<1x32xf32, #tpu.memory_space<vmem>>, vector<1x32xf32>
    %cst_332 = arith.constant dense<0.000000e+00> : vector<1x2xf32>
    %587 = tpu.matmul %586, %585, %cst_332 {dimension_numbers = #tpu.dot_dimension_numbers<[1], [1], [0], [0], [0, 0, 1, 0], [], []>} : vector<1x32xf32>, vector<2x32xf32>, vector<1x2xf32> -> vector<1x2xf32>
    %c0_333 = arith.constant 0 : index
    %c0_334 = arith.constant 0 : index
    %588 = vector.load %arg19[%c0_333, %c0_334] : memref<1x1xf32, #tpu.memory_space<vmem>>, vector<1x1xf32>
    %589 = vector.broadcast %588 : vector<1x1xf32> to vector<1x2xf32>
    %590 = arith.addf %587, %589 : vector<1x2xf32>
    %c0_335 = arith.constant 0 : index
    %c0_336 = arith.constant 0 : index
    %c0_337 = arith.constant 0 : index
    %591 = vector.load %arg20[%c0_335, %c0_336, %c0_337] : memref<1x1x2xf32, #tpu.memory_space<vmem>>, vector<1x1x2xf32>
    %592 = vector.shape_cast %591 : vector<1x1x2xf32> to vector<1x2xf32>
    %593 = vector.shape_cast %590 : vector<1x2xf32> to vector<1x1x2xf32>
    tpu.vector_store %arg20[%c0_335, %c0_336, %c0_337], %593 {strides = array<i32>} : memref<1x1x2xf32, #tpu.memory_space<vmem>>, vector<1x1x2xf32>,
    return
  }
  func.func @transform_0(%arg0: i32) -> (i32, i32, i32) {
    %c0_i32 = arith.constant 0 : i32
    %c0_i32_0 = arith.constant 0 : i32
    %c0_i32_1 = arith.constant 0 : i32
    return %arg0, %c0_i32, %c0_i32_0 : i32, i32, i32
  }
  func.func @transform_1(%arg0: i32) -> (i32, i32) {
    %c0_i32 = arith.constant 0 : i32
    %c0_i32_0 = arith.constant 0 : i32
    %c0_i32_1 = arith.constant 0 : i32
    return %c0_i32, %c0_i32_0 : i32, i32
  }
  func.func @transform_2(%arg0: i32) -> (i32, i32) {
    %c0_i32 = arith.constant 0 : i32
    %c0_i32_0 = arith.constant 0 : i32
    %c0_i32_1 = arith.constant 0 : i32
    return %c0_i32, %c0_i32_0 : i32, i32
  }
  func.func @transform_3(%arg0: i32) -> (i32, i32) {
    %c0_i32 = arith.constant 0 : i32
    %c0_i32_0 = arith.constant 0 : i32
    %c0_i32_1 = arith.constant 0 : i32
    return %c0_i32, %c0_i32_0 : i32, i32
  }
  func.func @transform_4(%arg0: i32) -> (i32, i32) {
    %c0_i32 = arith.constant 0 : i32
    %c0_i32_0 = arith.constant 0 : i32
    %c0_i32_1 = arith.constant 0 : i32
    return %c0_i32, %c0_i32_0 : i32, i32
  }
  func.func @transform_5(%arg0: i32) -> (i32, i32, i32) {
    %c0_i32 = arith.constant 0 : i32
    %c0_i32_0 = arith.constant 0 : i32
    %c0_i32_1 = arith.constant 0 : i32
    %c0_i32_2 = arith.constant 0 : i32
    return %c0_i32, %c0_i32_0, %c0_i32_1 : i32, i32, i32
  }
  func.func @transform_6(%arg0: i32) -> (i32, i32, i32) {
    %c0_i32 = arith.constant 0 : i32
    %c0_i32_0 = arith.constant 0 : i32
    %c0_i32_1 = arith.constant 0 : i32
    %c0_i32_2 = arith.constant 0 : i32
    return %c0_i32, %c0_i32_0, %c0_i32_1 : i32, i32, i32
  }
  func.func @transform_7(%arg0: i32) -> (i32, i32, i32) {
    %c0_i32 = arith.constant 0 : i32
    %c0_i32_0 = arith.constant 0 : i32
    %c0_i32_1 = arith.constant 0 : i32
    %c0_i32_2 = arith.constant 0 : i32
    return %c0_i32, %c0_i32_0, %c0_i32_1 : i32, i32, i32
  }
  func.func @transform_8(%arg0: i32) -> (i32, i32, i32) {
    %c0_i32 = arith.constant 0 : i32
    %c0_i32_0 = arith.constant 0 : i32
    %c0_i32_1 = arith.constant 0 : i32
    %c0_i32_2 = arith.constant 0 : i32
    return %c0_i32, %c0_i32_0, %c0_i32_1 : i32, i32, i32
  }
  func.func @transform_9(%arg0: i32) -> (i32, i32, i32) {
    %c0_i32 = arith.constant 0 : i32
    %c0_i32_0 = arith.constant 0 : i32
    %c0_i32_1 = arith.constant 0 : i32
    %c0_i32_2 = arith.constant 0 : i32
    return %c0_i32, %c0_i32_0, %c0_i32_1 : i32, i32, i32
  }
  func.func @transform_10(%arg0: i32) -> (i32, i32, i32) {
    %c0_i32 = arith.constant 0 : i32
    %c0_i32_0 = arith.constant 0 : i32
    %c0_i32_1 = arith.constant 0 : i32
    %c0_i32_2 = arith.constant 0 : i32
    return %c0_i32, %c0_i32_0, %c0_i32_1 : i32, i32, i32
  }
  func.func @transform_11(%arg0: i32) -> (i32, i32, i32) {
    %c0_i32 = arith.constant 0 : i32
    %c0_i32_0 = arith.constant 0 : i32
    %c0_i32_1 = arith.constant 0 : i32
    %c0_i32_2 = arith.constant 0 : i32
    return %c0_i32, %c0_i32_0, %c0_i32_1 : i32, i32, i32
  }
  func.func @transform_12(%arg0: i32) -> (i32, i32, i32) {
    %c0_i32 = arith.constant 0 : i32
    %c0_i32_0 = arith.constant 0 : i32
    %c0_i32_1 = arith.constant 0 : i32
    %c0_i32_2 = arith.constant 0 : i32
    return %c0_i32, %c0_i32_0, %c0_i32_1 : i32, i32, i32
  }
  func.func @transform_13(%arg0: i32) -> (i32, i32, i32) {
    %c0_i32 = arith.constant 0 : i32
    %c0_i32_0 = arith.constant 0 : i32
    %c0_i32_1 = arith.constant 0 : i32
    %c0_i32_2 = arith.constant 0 : i32
    return %c0_i32, %c0_i32_0, %c0_i32_1 : i32, i32, i32
  }
  func.func @transform_14(%arg0: i32) -> (i32, i32, i32) {
    %c0_i32 = arith.constant 0 : i32
    %c0_i32_0 = arith.constant 0 : i32
    %c0_i32_1 = arith.constant 0 : i32
    %c0_i32_2 = arith.constant 0 : i32
    return %c0_i32, %c0_i32_0, %c0_i32_1 : i32, i32, i32
  }
  func.func @transform_15(%arg0: i32) -> (i32, i32, i32) {
    %c0_i32 = arith.constant 0 : i32
    %c0_i32_0 = arith.constant 0 : i32
    %c0_i32_1 = arith.constant 0 : i32
    %c0_i32_2 = arith.constant 0 : i32
    return %c0_i32, %c0_i32_0, %c0_i32_1 : i32, i32, i32
  }
  func.func @transform_16(%arg0: i32) -> (i32, i32, i32) {
    %c0_i32 = arith.constant 0 : i32
    %c0_i32_0 = arith.constant 0 : i32
    %c0_i32_1 = arith.constant 0 : i32
    %c0_i32_2 = arith.constant 0 : i32
    return %c0_i32, %c0_i32_0, %c0_i32_1 : i32, i32, i32
  }
  func.func @transform_17(%arg0: i32) -> (i32, i32) {
    %c0_i32 = arith.constant 0 : i32
    %c0_i32_0 = arith.constant 0 : i32
    %c0_i32_1 = arith.constant 0 : i32
    return %c0_i32, %c0_i32_0 : i32, i32
  }
  func.func @transform_18(%arg0: i32) -> (i32, i32) {
    %c0_i32 = arith.constant 0 : i32
    %c0_i32_0 = arith.constant 0 : i32
    %c0_i32_1 = arith.constant 0 : i32
    return %c0_i32, %c0_i32_0 : i32, i32
  }
  func.func @transform_19(%arg0: i32) -> (i32, i32, i32) {
    %c0_i32 = arith.constant 0 : i32
    %c0_i32_0 = arith.constant 0 : i32
    %c0_i32_1 = arith.constant 0 : i32
    return %arg0, %c0_i32, %c0_i32_0 : i32, i32, i32
  }
}

</mosaic_0001>

<llo_original>
// kernel: forward.1
$region0: #{forward.1}
  #allocation0 [shape = 'u32[]', space=smem, size = 0x4, offset = 0x4, fixed_abs, tag = 'smem constant byte address 0x4 - core index']
  #allocation1 [shape = 'u32[144,128]{1,0:T(1,128)}', space=vmem, size = 0x12000, scoped, tag = 'internal scratch']
  #allocation2 [shape = 'f32[1,1]{1,0:T(1,128)S(1)}', space=vmem, size = 0x200, scoped, tag = 'scoped memory for forward.1']
  %s0 = inlined_call_operand.vmem [shape: f32[2,16,1], index: 0, kind: input, shape index: {}]
  %s1 = inlined_call_operand.vmem [shape: f32[1,32], index: 1, kind: input, shape index: {}]
  %s2 = inlined_call_operand.vmem [shape: f32[1,32], index: 2, kind: input, shape index: {}]
  %s3 = inlined_call_operand.vmem [shape: f32[16,32], index: 3, kind: input, shape index: {}]
  %s4 = inlined_call_operand.vmem [shape: f32[16,16], index: 4, kind: input, shape index: {}]
  %s5 = inlined_call_operand.vmem [shape: bf16[2,32,96], index: 5, kind: input, shape index: {}]
  %s6 = inlined_call_operand.vmem [shape: f32[2,1,96], index: 6, kind: input, shape index: {}]
  %s7 = inlined_call_operand.vmem [shape: bf16[2,32,32], index: 7, kind: input, shape index: {}]
  %s8 = inlined_call_operand.vmem [shape: f32[2,1,32], index: 8, kind: input, shape index: {}]
  %s9 = inlined_call_operand.vmem [shape: f32[2,1,32], index: 9, kind: input, shape index: {}, may-alias: {9,11}]
  %s10 = inlined_call_operand.vmem [shape: f32[2,1,32], index: 10, kind: input, shape index: {}, may-alias: {10,12}]
  %s11 = inlined_call_operand.vmem [shape: f32[2,1,32], index: 11, kind: input, shape index: {}, may-alias: {9,11}]
  %s12 = inlined_call_operand.vmem [shape: f32[2,1,32], index: 12, kind: input, shape index: {}, may-alias: {10,12}]
  %s13 = inlined_call_operand.vmem [shape: bf16[2,32,2048], index: 13, kind: input, shape index: {}]
  %s14 = inlined_call_operand.vmem [shape: f32[2,1,2048], index: 14, kind: input, shape index: {}]
  %s15 = inlined_call_operand.hbm [shape: bf16[2,2048,32], index: 15, kind: input, shape index: {}]
  %s16 = inlined_call_operand.vmem [shape: f32[2,1,32], index: 16, kind: input, shape index: {}]
  %s17 = inlined_call_operand.vmem [shape: f32[1,32], index: 17, kind: input, shape index: {}]
  %s18 = inlined_call_operand.<no memory space> [shape: f32[1,1], index: 18, kind: input, shape index: {}]
  %s19 = inlined_call_operand.vmem [shape: f32[2,1,2], index: 19, kind: output, shape index: {}]
  %s20 = sld [smem:[#allocation0]]
  $region113: #{forward.1} parent=0
    _
  %s22 = ssub.s32 1, %s20
  %s23 = scalar_select 0, %s22, %s20
  %v24 = vstv %s18
  %25 = vst [vmem:[#allocation2] sm:$0x1] %v24
  $region1: #{forward.1} parent=0
    #allocation3 [shape = 'u8[1048576]{0}', space=vmem, size = 0x100000, scoped, tag = 'input window, operand 15, single buffered']
    #allocation4 [shape = 's32[2]{0}', space=sflag, size = 0x8, scoped, tag = 'scoped memory for forward.1']
    %26 = vsyncpa [#allocation4], 0
    loop: start=0, step=1, limit=4
    $region2: #{forward.1} parent=1 // loop_pre_header
      _
    $region3: #{forward.1} parent=1 // loop_header
      %s28 = sphi 0, %s32
      %p29 = scmp.ge.s32.totalorder %s28, 4
      %s38 = sphi 0, %s40
      %s41 = sphi 0, %s38
      %s42 = sphi 0, %s41
      %s58 = sphi 0, %s42
      %s62 = sphi 0, %s62
      %s64 = sphi 0, %s62
      %s65 = sphi 0, %s64
      %s79 = sphi 0, %s65
      %s83 = sphi 0, %s83
      %s85 = sphi 0, %s83
      %s86 = sphi 0, %s85
      %s100 = sphi 0, %s86
      %s104 = sphi 0, %s104
      %s106 = sphi 0, %s104
      %s107 = sphi 0, %s106
      %s121 = sphi 0, %s107
      %s125 = sphi 0, %s125
      %s127 = sphi 0, %s125
      %s128 = sphi 0, %s127
      %s142 = sphi 0, %s128
      %s146 = sphi 0, %s146
      %s148 = sphi 0, %s146
      %s149 = sphi 0, %s148
      %s163 = sphi 0, %s149
      %s167 = sphi 0, %s167
      %s169 = sphi 0, %s167
      %s170 = sphi 0, %s169
      %s184 = sphi 0, %s170
      %s188 = sphi 0, %s188
      %s190 = sphi 0, %s188
      %s191 = sphi 0, %s190
      %s205 = sphi 0, %s191
      %s209 = sphi 0, %s209
      %s211 = sphi 0, %s209
      %s212 = sphi 0, %s211
      %s226 = sphi 0, %s212
      %s230 = sphi 0, %s230
      %s232 = sphi 0, %s230
      %s233 = sphi 0, %s232
      %s247 = sphi 0, %s233
      %s251 = sphi 0, %s251
      %s253 = sphi 0, %s251
      %s254 = sphi 0, %s253
      %s268 = sphi 0, %s254
      %s272 = sphi 0, %s272
      %s274 = sphi 0, %s272
      %s275 = sphi 0, %s274
      %s289 = sphi 0, %s275
      %s293 = sphi 0, %s293
      %s295 = sphi 0, %s293
      %s296 = sphi 0, %s295
      %s310 = sphi 0, %s296
      %s314 = sphi 0, %s314
      %s316 = sphi 0, %s314
      %s317 = sphi 0, %s316
      %s331 = sphi 0, %s317
      %s335 = sphi 0, %s335
      %s337 = sphi 0, %s335
      %s338 = sphi 0, %s337
      %s352 = sphi 0, %s338
      %s356 = sphi 0, %s356
      %s358 = sphi 0, %s356
      %s359 = sphi 0, %s358
      %s373 = sphi 0, %s359
      %s377 = sphi 0, %s377
      %s379 = sphi 0, %s377
      %s380 = sphi 0, %s379
      %s394 = sphi 0, %s380
      %s398 = sphi 0, %s398
      %s400 = sphi 0, %s398
      %s401 = sphi 0, %s400
      %s415 = sphi 0, %s401
      %s419 = sphi 0, %s419
      %s421 = sphi 0, %s419
      %s422 = sphi 0, %s421
      %s436 = sphi 0, %s422
      %s442 = sphi 0, %s444
      %s445 = sphi 0, %s442
      %s446 = sphi 0, %s445
      %s462 = sphi 0, %s446
    $region4: #{forward.1} parent=1 // loop_header_branch
      %31 = sbr.rel (%p29) target = $region8
    $region5: #{forward.1} parent=1 // loop_body
      %s33 = ssub.s32 %s28, 1
      %s34 = ssub.s32 %s28, 2
      %s35 = sadd.s32 %s28, 1
      %s36 = ssub.s32 %s28, %s35
      %p37 = scmp.eq.s32.totalorder %s36, 0
      %s39 = sadd.s32 %s38, 1
      %s40 = scalar_select %p37, %s38, %s39
      %p43 = pneg %p37
      %p44 = scmp.eq.s32.totalorder %s28, 1
      %p45 = por %p43, %p44
      %p46 = scmp.ne.s32.totalorder %s38, %s41
      %p47 = scmp.eq.s32.totalorder %s28, 0
      %p48 = por %p46, %p47
      %p49 = scmp.ne.s32.totalorder %s38, %s41
      %p50 = scmp.eq.s32.totalorder %s33, 1
      %p51 = por %p49, %p50
      %p52 = scmp.ne.s32.totalorder %s41, %s42
      %p53 = scmp.eq.s32.totalorder %s33, 0
      %p54 = por %p52, %p53
      %p55 = scmp.ne.s32.totalorder %s41, %s42
      %p56 = scmp.eq.s32.totalorder %s34, 1
      %p57 = por %p55, %p56
      %p59 = scmp.ne.s32.totalorder %s42, %s58
      %p60 = scmp.eq.s32.totalorder %s34, 0
      %p61 = por %p59, %p60
      %s63 = sadd.s32 %s62, 1
      %p66 = scmp.eq.s32.totalorder %s28, 1
      %p67 = scmp.ne.s32.totalorder %s62, %s64
      %p68 = scmp.eq.s32.totalorder %s28, 0
      %p69 = por %p67, %p68
      %p70 = scmp.ne.s32.totalorder %s62, %s64
      %p71 = scmp.eq.s32.totalorder %s33, 1
      %p72 = por %p70, %p71
      %p73 = scmp.ne.s32.totalorder %s64, %s65
      %p74 = scmp.eq.s32.totalorder %s33, 0
      %p75 = por %p73, %p74
      %p76 = scmp.ne.s32.totalorder %s64, %s65
      %p77 = scmp.eq.s32.totalorder %s34, 1
      %p78 = por %p76, %p77
      %p80 = scmp.ne.s32.totalorder %s65, %s79
      %p81 = scmp.eq.s32.totalorder %s34, 0
      %p82 = por %p80, %p81
      %s84 = sadd.s32 %s83, 1
      %p87 = scmp.eq.s32.totalorder %s28, 1
      %p88 = scmp.ne.s32.totalorder %s83, %s85
      %p89 = scmp.eq.s32.totalorder %s28, 0
      %p90 = por %p88, %p89
      %p91 = scmp.ne.s32.totalorder %s83, %s85
      %p92 = scmp.eq.s32.totalorder %s33, 1
      %p93 = por %p91, %p92
      %p94 = scmp.ne.s32.totalorder %s85, %s86
      %p95 = scmp.eq.s32.totalorder %s33, 0
      %p96 = por %p94, %p95
      %p97 = scmp.ne.s32.totalorder %s85, %s86
      %p98 = scmp.eq.s32.totalorder %s34, 1
      %p99 = por %p97, %p98
      %p101 = scmp.ne.s32.totalorder %s86, %s100
      %p102 = scmp.eq.s32.totalorder %s34, 0
      %p103 = por %p101, %p102
      %s105 = sadd.s32 %s104, 1
      %p108 = scmp.eq.s32.totalorder %s28, 1
      %p109 = scmp.ne.s32.totalorder %s104, %s106
      %p110 = scmp.eq.s32.totalorder %s28, 0
      %p111 = por %p109, %p110
      %p112 = scmp.ne.s32.totalorder %s104, %s106
      %p113 = scmp.eq.s32.totalorder %s33, 1
      %p114 = por %p112, %p113
      %p115 = scmp.ne.s32.totalorder %s106, %s107
      %p116 = scmp.eq.s32.totalorder %s33, 0
      %p117 = por %p115, %p116
      %p118 = scmp.ne.s32.totalorder %s106, %s107
      %p119 = scmp.eq.s32.totalorder %s34, 1
      %p120 = por %p118, %p119
      %p122 = scmp.ne.s32.totalorder %s107, %s121
      %p123 = scmp.eq.s32.totalorder %s34, 0
      %p124 = por %p122, %p123
      %s126 = sadd.s32 %s125, 1
      %p129 = scmp.eq.s32.totalorder %s28, 1
      %p130 = scmp.ne.s32.totalorder %s125, %s127
      %p131 = scmp.eq.s32.totalorder %s28, 0
      %p132 = por %p130, %p131
      %p133 = scmp.ne.s32.totalorder %s125, %s127
      %p134 = scmp.eq.s32.totalorder %s33, 1
      %p135 = por %p133, %p134
      %p136 = scmp.ne.s32.totalorder %s127, %s128
      %p137 = scmp.eq.s32.totalorder %s33, 0
      %p138 = por %p136, %p137
      %p139 = scmp.ne.s32.totalorder %s127, %s128
      %p140 = scmp.eq.s32.totalorder %s34, 1
      %p141 = por %p139, %p140
      %p143 = scmp.ne.s32.totalorder %s128, %s142
      %p144 = scmp.eq.s32.totalorder %s34, 0
      %p145 = por %p143, %p144
      %s147 = sadd.s32 %s146, 1
      %p150 = scmp.eq.s32.totalorder %s28, 1
      %p151 = scmp.ne.s32.totalorder %s146, %s148
      %p152 = scmp.eq.s32.totalorder %s28, 0
      %p153 = por %p151, %p152
      %p154 = scmp.ne.s32.totalorder %s146, %s148
      %p155 = scmp.eq.s32.totalorder %s33, 1
      %p156 = por %p154, %p155
      %p157 = scmp.ne.s32.totalorder %s148, %s149
      %p158 = scmp.eq.s32.totalorder %s33, 0
      %p159 = por %p157, %p158
      %p160 = scmp.ne.s32.totalorder %s148, %s149
      %p161 = scmp.eq.s32.totalorder %s34, 1
      %p162 = por %p160, %p161
      %p164 = scmp.ne.s32.totalorder %s149, %s163
      %p165 = scmp.eq.s32.totalorder %s34, 0
      %p166 = por %p164, %p165
      %s168 = sadd.s32 %s167, 1
      %p171 = scmp.eq.s32.totalorder %s28, 1
      %p172 = scmp.ne.s32.totalorder %s167, %s169
      %p173 = scmp.eq.s32.totalorder %s28, 0
      %p174 = por %p172, %p173
      %p175 = scmp.ne.s32.totalorder %s167, %s169
      %p176 = scmp.eq.s32.totalorder %s33, 1
      %p177 = por %p175, %p176
      %p178 = scmp.ne.s32.totalorder %s169, %s170
      %p179 = scmp.eq.s32.totalorder %s33, 0
      %p180 = por %p178, %p179
      %p181 = scmp.ne.s32.totalorder %s169, %s170
      %p182 = scmp.eq.s32.totalorder %s34, 1
      %p183 = por %p181, %p182
      %p185 = scmp.ne.s32.totalorder %s170, %s184
      %p186 = scmp.eq.s32.totalorder %s34, 0
      %p187 = por %p185, %p186
      %s189 = sadd.s32 %s188, 1
      %p192 = scmp.eq.s32.totalorder %s28, 1
      %p193 = scmp.ne.s32.totalorder %s188, %s190
      %p194 = scmp.eq.s32.totalorder %s28, 0
      %p195 = por %p193, %p194
      %p196 = scmp.ne.s32.totalorder %s188, %s190
      %p197 = scmp.eq.s32.totalorder %s33, 1
      %p198 = por %p196, %p197
      %p199 = scmp.ne.s32.totalorder %s190, %s191
      %p200 = scmp.eq.s32.totalorder %s33, 0
      %p201 = por %p199, %p200
      %p202 = scmp.ne.s32.totalorder %s190, %s191
      %p203 = scmp.eq.s32.totalorder %s34, 1
      %p204 = por %p202, %p203
      %p206 = scmp.ne.s32.totalorder %s191, %s205
      %p207 = scmp.eq.s32.totalorder %s34, 0
      %p208 = por %p206, %p207
      %s210 = sadd.s32 %s209, 1
      %p213 = scmp.eq.s32.totalorder %s28, 1
      %p214 = scmp.ne.s32.totalorder %s209, %s211
      %p215 = scmp.eq.s32.totalorder %s28, 0
      %p216 = por %p214, %p215
      %p217 = scmp.ne.s32.totalorder %s209, %s211
      %p218 = scmp.eq.s32.totalorder %s33, 1
      %p219 = por %p217, %p218
      %p220 = scmp.ne.s32.totalorder %s211, %s212
      %p221 = scmp.eq.s32.totalorder %s33, 0
      %p222 = por %p220, %p221
      %p223 = scmp.ne.s32.totalorder %s211, %s212
      %p224 = scmp.eq.s32.totalorder %s34, 1
      %p225 = por %p223, %p224
      %p227 = scmp.ne.s32.totalorder %s212, %s226
      %p228 = scmp.eq.s32.totalorder %s34, 0
      %p229 = por %p227, %p228
      %s231 = sadd.s32 %s230, 1
      %p234 = scmp.eq.s32.totalorder %s28, 1
      %p235 = scmp.ne.s32.totalorder %s230, %s232
      %p236 = scmp.eq.s32.totalorder %s28, 0
      %p237 = por %p235, %p236
      %p238 = scmp.ne.s32.totalorder %s230, %s232
      %p239 = scmp.eq.s32.totalorder %s33, 1
      %p240 = por %p238, %p239
      %p241 = scmp.ne.s32.totalorder %s232, %s233
      %p242 = scmp.eq.s32.totalorder %s33, 0
      %p243 = por %p241, %p242
      %p244 = scmp.ne.s32.totalorder %s232, %s233
      %p245 = scmp.eq.s32.totalorder %s34, 1
      %p246 = por %p244, %p245
      %p248 = scmp.ne.s32.totalorder %s233, %s247
      %p249 = scmp.eq.s32.totalorder %s34, 0
      %p250 = por %p248, %p249
      %s252 = sadd.s32 %s251, 1
      %p255 = scmp.eq.s32.totalorder %s28, 1
      %p256 = scmp.ne.s32.totalorder %s251, %s253
      %p257 = scmp.eq.s32.totalorder %s28, 0
      %p258 = por %p256, %p257
      %p259 = scmp.ne.s32.totalorder %s251, %s253
      %p260 = scmp.eq.s32.totalorder %s33, 1
      %p261 = por %p259, %p260
      %p262 = scmp.ne.s32.totalorder %s253, %s254
      %p263 = scmp.eq.s32.totalorder %s33, 0
      %p264 = por %p262, %p263
      %p265 = scmp.ne.s32.totalorder %s253, %s254
      %p266 = scmp.eq.s32.totalorder %s34, 1
      %p267 = por %p265, %p266
      %p269 = scmp.ne.s32.totalorder %s254, %s268
      %p270 = scmp.eq.s32.totalorder %s34, 0
      %p271 = por %p269, %p270
      %s273 = sadd.s32 %s272, 1
      %p276 = scmp.eq.s32.totalorder %s28, 1
      %p277 = scmp.ne.s32.totalorder %s272, %s274
      %p278 = scmp.eq.s32.totalorder %s28, 0
      %p279 = por %p277, %p278
      %p280 = scmp.ne.s32.totalorder %s272, %s274
      %p281 = scmp.eq.s32.totalorder %s33, 1
      %p282 = por %p280, %p281
      %p283 = scmp.ne.s32.totalorder %s274, %s275
      %p284 = scmp.eq.s32.totalorder %s33, 0
      %p285 = por %p283, %p284
      %p286 = scmp.ne.s32.totalorder %s274, %s275
      %p287 = scmp.eq.s32.totalorder %s34, 1
      %p288 = por %p286, %p287
      %p290 = scmp.ne.s32.totalorder %s275, %s289
      %p291 = scmp.eq.s32.totalorder %s34, 0
      %p292 = por %p290, %p291
      %s294 = sadd.s32 %s293, 1
      %p297 = scmp.eq.s32.totalorder %s28, 1
      %p298 = scmp.ne.s32.totalorder %s293, %s295
      %p299 = scmp.eq.s32.totalorder %s28, 0
      %p300 = por %p298, %p299
      %p301 = scmp.ne.s32.totalorder %s293, %s295
      %p302 = scmp.eq.s32.totalorder %s33, 1
      %p303 = por %p301, %p302
      %p304 = scmp.ne.s32.totalorder %s295, %s296
      %p305 = scmp.eq.s32.totalorder %s33, 0
      %p306 = por %p304, %p305
      %p307 = scmp.ne.s32.totalorder %s295, %s296
      %p308 = scmp.eq.s32.totalorder %s34, 1
      %p309 = por %p307, %p308
      %p311 = scmp.ne.s32.totalorder %s296, %s310
      %p312 = scmp.eq.s32.totalorder %s34, 0
      %p313 = por %p311, %p312
      %s315 = sadd.s32 %s314, 1
      %p318 = scmp.eq.s32.totalorder %s28, 1
      %p319 = scmp.ne.s32.totalorder %s314, %s316
      %p320 = scmp.eq.s32.totalorder %s28, 0
      %p321 = por %p319, %p320
      %p322 = scmp.ne.s32.totalorder %s314, %s316
      %p323 = scmp.eq.s32.totalorder %s33, 1
      %p324 = por %p322, %p323
      %p325 = scmp.ne.s32.totalorder %s316, %s317
      %p326 = scmp.eq.s32.totalorder %s33, 0
      %p327 = por %p325, %p326
      %p328 = scmp.ne.s32.totalorder %s316, %s317
      %p329 = scmp.eq.s32.totalorder %s34, 1
      %p330 = por %p328, %p329
      %p332 = scmp.ne.s32.totalorder %s317, %s331
      %p333 = scmp.eq.s32.totalorder %s34, 0
      %p334 = por %p332, %p333
      %s336 = sadd.s32 %s335, 1
      %p339 = scmp.eq.s32.totalorder %s28, 1
      %p340 = scmp.ne.s32.totalorder %s335, %s337
      %p341 = scmp.eq.s32.totalorder %s28, 0
      %p342 = por %p340, %p341
      %p343 = scmp.ne.s32.totalorder %s335, %s337
      %p344 = scmp.eq.s32.totalorder %s33, 1
      %p345 = por %p343, %p344
      %p346 = scmp.ne.s32.totalorder %s337, %s338
      %p347 = scmp.eq.s32.totalorder %s33, 0
      %p348 = por %p346, %p347
      %p349 = scmp.ne.s32.totalorder %s337, %s338
      %p350 = scmp.eq.s32.totalorder %s34, 1
      %p351 = por %p349, %p350
      %p353 = scmp.ne.s32.totalorder %s338, %s352
      %p354 = scmp.eq.s32.totalorder %s34, 0
      %p355 = por %p353, %p354
      %s357 = sadd.s32 %s356, 1
      %p360 = scmp.eq.s32.totalorder %s28, 1
      %p361 = scmp.ne.s32.totalorder %s356, %s358
      %p362 = scmp.eq.s32.totalorder %s28, 0
      %p363 = por %p361, %p362
      %p364 = scmp.ne.s32.totalorder %s356, %s358
      %p365 = scmp.eq.s32.totalorder %s33, 1
      %p366 = por %p364, %p365
      %p367 = scmp.ne.s32.totalorder %s358, %s359
      %p368 = scmp.eq.s32.totalorder %s33, 0
      %p369 = por %p367, %p368
      %p370 = scmp.ne.s32.totalorder %s358, %s359
      %p371 = scmp.eq.s32.totalorder %s34, 1
      %p372 = por %p370, %p371
      %p374 = scmp.ne.s32.totalorder %s359, %s373
      %p375 = scmp.eq.s32.totalorder %s34, 0
      %p376 = por %p374, %p375
      %s378 = sadd.s32 %s377, 1
      %p381 = scmp.eq.s32.totalorder %s28, 1
      %p382 = scmp.ne.s32.totalorder %s377, %s379
      %p383 = scmp.eq.s32.totalorder %s28, 0
      %p384 = por %p382, %p383
      %p385 = scmp.ne.s32.totalorder %s377, %s379
      %p386 = scmp.eq.s32.totalorder %s33, 1
      %p387 = por %p385, %p386
      %p388 = scmp.ne.s32.totalorder %s379, %s380
      %p389 = scmp.eq.s32.totalorder %s33, 0
      %p390 = por %p388, %p389
      %p391 = scmp.ne.s32.totalorder %s379, %s380
      %p392 = scmp.eq.s32.totalorder %s34, 1
      %p393 = por %p391, %p392
      %p395 = scmp.ne.s32.totalorder %s380, %s394
      %p396 = scmp.eq.s32.totalorder %s34, 0
      %p397 = por %p395, %p396
      %s399 = sadd.s32 %s398, 1
      %p402 = scmp.eq.s32.totalorder %s28, 1
      %p403 = scmp.ne.s32.totalorder %s398, %s400
      %p404 = scmp.eq.s32.totalorder %s28, 0
      %p405 = por %p403, %p404
      %p406 = scmp.ne.s32.totalorder %s398, %s400
      %p407 = scmp.eq.s32.totalorder %s33, 1
      %p408 = por %p406, %p407
      %p409 = scmp.ne.s32.totalorder %s400, %s401
      %p410 = scmp.eq.s32.totalorder %s33, 0
      %p411 = por %p409, %p410
      %p412 = scmp.ne.s32.totalorder %s400, %s401
      %p413 = scmp.eq.s32.totalorder %s34, 1
      %p414 = por %p412, %p413
      %p416 = scmp.ne.s32.totalorder %s401, %s415
      %p417 = scmp.eq.s32.totalorder %s34, 0
      %p418 = por %p416, %p417
      %s420 = sadd.s32 %s419, 1
      %p423 = scmp.eq.s32.totalorder %s28, 1
      %p424 = scmp.ne.s32.totalorder %s419, %s421
      %p425 = scmp.eq.s32.totalorder %s28, 0
      %p426 = por %p424, %p425
      %p427 = scmp.ne.s32.totalorder %s419, %s421
      %p428 = scmp.eq.s32.totalorder %s33, 1
      %p429 = por %p427, %p428
      %p430 = scmp.ne.s32.totalorder %s421, %s422
      %p431 = scmp.eq.s32.totalorder %s33, 0
      %p432 = por %p430, %p431
      %p433 = scmp.ne.s32.totalorder %s421, %s422
      %p434 = scmp.eq.s32.totalorder %s34, 1
      %p435 = por %p433, %p434
      %p437 = scmp.ne.s32.totalorder %s422, %s436
      %p438 = scmp.eq.s32.totalorder %s34, 0
      %p439 = por %p437, %p438
      %s440 = ssub.s32 %s28, %s35
      %p441 = scmp.eq.s32.totalorder %s440, 0
      %s443 = sadd.s32 %s442, 1
      %s444 = scalar_select %p441, %s442, %s443
      %p447 = pneg %p441
      %p448 = scmp.eq.s32.totalorder %s28, 1
      %p449 = por %p447, %p448
      %p450 = scmp.ne.s32.totalorder %s442, %s445
      %p451 = scmp.eq.s32.totalorder %s28, 0
      %p452 = por %p450, %p451
      %p453 = scmp.ne.s32.totalorder %s442, %s445
      %p454 = scmp.eq.s32.totalorder %s33, 1
      %p455 = por %p453, %p454
      %p456 = scmp.ne.s32.totalorder %s445, %s446
      %p457 = scmp.eq.s32.totalorder %s33, 0
      %p458 = por %p456, %p457
      %p459 = scmp.ne.s32.totalorder %s445, %s446
      %p460 = scmp.eq.s32.totalorder %s34, 1
      %p461 = por %p459, %p460
      %p463 = scmp.ne.s32.totalorder %s446, %s462
      %p464 = scmp.eq.s32.totalorder %s34, 0
      %p465 = por %p463, %p464
      %p466 = scmp.le.s32.totalorder 1, %s28
      %p467 = scmp.lt.s32.totalorder %s28, 3
      %p468 = pnand %p466, %p467
      %p469 = pneg %p468
      // Predicated region
      $region9: #{forward.1} parent=5 // pred_check
        _
      $region10: #{forward.1} parent=5 // pred_check_branch
        %471 = sbr.rel (%p468) target = $region12
      $region11: #{forward.1} parent=5 // pred_region
        %s472 = ssub.s32 %s28, 1
        // Predicated region
        $region13: #{forward.1} parent=11 // pred_check
          %p473 = pneg %p75
        $region14: #{forward.1} parent=11 // pred_check_branch
          %475 = sbr.rel (%p473) target = $region16
        $region15: #{forward.1} parent=11 // pred_region
          _
        $region16: #{forward.1} parent=11 // pred_fallthru
          _
        // Predicated region
        $region17: #{forward.1} parent=11 // pred_check
          %p476 = pneg %p96
        $region18: #{forward.1} parent=11 // pred_check_branch
          %478 = sbr.rel (%p476) target = $region20
        $region19: #{forward.1} parent=11 // pred_region
          _
        $region20: #{forward.1} parent=11 // pred_fallthru
          _
        // Predicated region
        $region21: #{forward.1} parent=11 // pred_check
          %p479 = pneg %p117
        $region22: #{forward.1} parent=11 // pred_check_branch
          %481 = sbr.rel (%p479) target = $region24
        $region23: #{forward.1} parent=11 // pred_region
          _
        $region24: #{forward.1} parent=11 // pred_fallthru
          _
        // Predicated region
        $region25: #{forward.1} parent=11 // pred_check
          %p482 = pneg %p138
        $region26: #{forward.1} parent=11 // pred_check_branch
          %484 = sbr.rel (%p482) target = $region28
        $region27: #{forward.1} parent=11 // pred_region
          _
        $region28: #{forward.1} parent=11 // pred_fallthru
          _
        // Predicated region
        $region29: #{forward.1} parent=11 // pred_check
          %p485 = pneg %p159
        $region30: #{forward.1} parent=11 // pred_check_branch
          %487 = sbr.rel (%p485) target = $region32
        $region31: #{forward.1} parent=11 // pred_region
          _
        $region32: #{forward.1} parent=11 // pred_fallthru
          _
        // Predicated region
        $region33: #{forward.1} parent=11 // pred_check
          %p488 = pneg %p180
        $region34: #{forward.1} parent=11 // pred_check_branch
          %490 = sbr.rel (%p488) target = $region36
        $region35: #{forward.1} parent=11 // pred_region
          _
        $region36: #{forward.1} parent=11 // pred_fallthru
          _
        // Predicated region
        $region37: #{forward.1} parent=11 // pred_check
          %p491 = pneg %p201
        $region38: #{forward.1} parent=11 // pred_check_branch
          %493 = sbr.rel (%p491) target = $region40
        $region39: #{forward.1} parent=11 // pred_region
          _
        $region40: #{forward.1} parent=11 // pred_fallthru
          _
        // Predicated region
        $region41: #{forward.1} parent=11 // pred_check
          %p494 = pneg %p222
        $region42: #{forward.1} parent=11 // pred_check_branch
          %496 = sbr.rel (%p494) target = $region44
        $region43: #{forward.1} parent=11 // pred_region
          _
        $region44: #{forward.1} parent=11 // pred_fallthru
          _
        // Predicated region
        $region45: #{forward.1} parent=11 // pred_check
          %p497 = pneg %p243
        $region46: #{forward.1} parent=11 // pred_check_branch
          %499 = sbr.rel (%p497) target = $region48
        $region47: #{forward.1} parent=11 // pred_region
          _
        $region48: #{forward.1} parent=11 // pred_fallthru
          _
        // Predicated region
        $region49: #{forward.1} parent=11 // pred_check
          %p500 = pneg %p264
        $region50: #{forward.1} parent=11 // pred_check_branch
          %502 = sbr.rel (%p500) target = $region52
        $region51: #{forward.1} parent=11 // pred_region
          _
        $region52: #{forward.1} parent=11 // pred_fallthru
          _
        // Predicated region
        $region53: #{forward.1} parent=11 // pred_check
          %p503 = pneg %p285
        $region54: #{forward.1} parent=11 // pred_check_branch
          %505 = sbr.rel (%p503) target = $region56
        $region55: #{forward.1} parent=11 // pred_region
          _
        $region56: #{forward.1} parent=11 // pred_fallthru
          _
        // Predicated region
        $region57: #{forward.1} parent=11 // pred_check
          %p506 = pneg %p306
        $region58: #{forward.1} parent=11 // pred_check_branch
          %508 = sbr.rel (%p506) target = $region60
        $region59: #{forward.1} parent=11 // pred_region
          _
        $region60: #{forward.1} parent=11 // pred_fallthru
          _
        // Predicated region
        $region61: #{forward.1} parent=11 // pred_check
          %p509 = pneg %p327
        $region62: #{forward.1} parent=11 // pred_check_branch
          %511 = sbr.rel (%p509) target = $region64
        $region63: #{forward.1} parent=11 // pred_region
          _
        $region64: #{forward.1} parent=11 // pred_fallthru
          _
        // Predicated region
        $region65: #{forward.1} parent=11 // pred_check
          %p512 = pneg %p348
        $region66: #{forward.1} parent=11 // pred_check_branch
          %514 = sbr.rel (%p512) target = $region68
        $region67: #{forward.1} parent=11 // pred_region
          _
        $region68: #{forward.1} parent=11 // pred_fallthru
          _
        // Predicated region
        $region69: #{forward.1} parent=11 // pred_check
          %p515 = pneg %p369
        $region70: #{forward.1} parent=11 // pred_check_branch
          %517 = sbr.rel (%p515) target = $region72
        $region71: #{forward.1} parent=11 // pred_region
          %s519 = ssub.s32 32768, 32768
          %520 = vsyncadd [#allocation4], %s519
          %s521 = sshll.u32 [#allocation3], 4
          %s522 = int_to_ptr.vmem [resolvable:$true] %s521
          %527 = dma.hbm_to_vmem [thread:$0]  %s15, 32768, %s522, [#allocation4], 64, 64, 4
        $region72: #{forward.1} parent=11 // pred_fallthru
          _
        // Predicated region
        $region73: #{forward.1} parent=11 // pred_check
          %p528 = pneg %p390
        $region74: #{forward.1} parent=11 // pred_check_branch
          %530 = sbr.rel (%p528) target = $region76
        $region75: #{forward.1} parent=11 // pred_region
          _
        $region76: #{forward.1} parent=11 // pred_fallthru
          _
        // Predicated region
        $region77: #{forward.1} parent=11 // pred_check
          %p531 = pneg %p411
        $region78: #{forward.1} parent=11 // pred_check_branch
          %533 = sbr.rel (%p531) target = $region80
        $region79: #{forward.1} parent=11 // pred_region
          _
        $region80: #{forward.1} parent=11 // pred_fallthru
          _
        // Predicated region
        $region81: #{forward.1} parent=11 // pred_check
          %p534 = pneg %p432
        $region82: #{forward.1} parent=11 // pred_check_branch
          %536 = sbr.rel (%p534) target = $region84
        $region83: #{forward.1} parent=11 // pred_region
          _
        $region84: #{forward.1} parent=11 // pred_fallthru
          _
      $region12: #{forward.1} parent=5 // pred_fallthru
        _
      %p537 = scmp.lt.s32.totalorder %s28, 2
      // Predicated region
      $region85: #{forward.1} parent=5 // pred_check
        %p538 = pneg %p537
      $region86: #{forward.1} parent=5 // pred_check_branch
        %540 = sbr.rel (%p538) target = $region88
      $region87: #{forward.1} parent=5 // pred_region
        // Predicated region
        $region89: #{forward.1} parent=87 // pred_check
          %p541 = pneg %p48
        $region90: #{forward.1} parent=87 // pred_check_branch
          %543 = sbr.rel (%p541) target = $region92
        $region91: #{forward.1} parent=87 // pred_region
          %p544 = scmp.lt.s32.totalorder %s28, 1
          %s545 = scalar_select %p544, %s28, 1
          %s546 = smul.addr %s545, 2
          %s547 = smul.addr %s546, 8
          %s548 = scalar_lea.vmem %s0, %s547
        $region92: #{forward.1} parent=87 // pred_fallthru
          _
      $region88: #{forward.1} parent=5 // pred_fallthru
        _
      %p549 = scmp.le.s32.totalorder 1, %s28
      %p550 = scmp.lt.s32.totalorder %s28, 3
      %p551 = pnand %p549, %p550
      %p552 = pneg %p551
      // Predicated region
      $region93: #{forward.1} parent=5 // pred_check
        _
      $region94: #{forward.1} parent=5 // pred_check_branch
        %554 = sbr.rel (%p551) target = $region96
      $region95: #{forward.1} parent=5 // pred_region
        %s555 = ssub.s32 %s28, 1
        // Predicated region
        $region97: #{forward.1} parent=95 // pred_check
          %p556 = pneg %p369
        $region98: #{forward.1} parent=95 // pred_check_branch
          %558 = sbr.rel (%p556) target = $region100
        $region99: #{forward.1} parent=95 // pred_region
          %559 = dma.done [#allocation4], 32768
        $region100: #{forward.1} parent=95 // pred_fallthru
          _
        %p560 = scmp.lt.s32.totalorder %s33, 1
        %s561 = scalar_select %p560, %s33, 1
        %s562 = smul.addr %s561, 2
        %s563 = smul.addr %s562, 8
        %s564 = scalar_lea.vmem %s0, %s563
        %p565 = pneg %p54
        %p566 = pneg %p51
        %p567 = pneg %p75
        %p568 = pneg %p72
        %p569 = pneg %p96
        %p570 = pneg %p93
        %p571 = pneg %p117
        %p572 = pneg %p114
        %p573 = pneg %p138
        %p574 = pneg %p135
        %p575 = pneg %p159
        %p576 = pneg %p156
        %p577 = pneg %p180
        %p578 = pneg %p177
        %p579 = pneg %p201
        %p580 = pneg %p198
        %p581 = pneg %p222
        %p582 = pneg %p219
        %p583 = pneg %p243
        %p584 = pneg %p240
        %p585 = pneg %p264
        %p586 = pneg %p261
        %p587 = pneg %p285
        %p588 = pneg %p282
        %p589 = pneg %p306
        %p590 = pneg %p303
        %p591 = pneg %p327
        %p592 = pneg %p324
        %p593 = pneg %p348
        %p594 = pneg %p345
        %p595 = pneg %p369
        %p596 = pneg %p366
        %p597 = pneg %p390
        %p598 = pneg %p387
        %p599 = pneg %p411
        %p600 = pneg %p408
        %p601 = pneg %p432
        %p602 = pneg %p429
        %p603 = pneg %p458
        %p604 = pneg %p455
        %p605 = scmp.lt.s32.totalorder %s33, 1
        %s606 = scalar_select %p605, %s33, 1
        %s607 = scalar_lea.vmem %s19, %s606
        %p608 = scmp.lt.s32.totalorder %s33, 1
        %s609 = scalar_select %p608, %s33, 1
        %s610 = smul.addr %s609, 2
        %s611 = smul.addr %s610, 8
        %s612 = scalar_lea.vmem %s0, %s611
        %p613 = scmp.lt.s32.totalorder %s33, 1
        %s614 = scalar_select %p613, %s33, 1
        %s615 = scalar_lea.vmem %s19, %s614
        %v617 = vld [vmem:[%s612] sm:$0xff]
        %v618 = vld [vmem:[%s612 + $0x8] sm:$0xff]
        %v619 = vld [vmem:[%s1] sm:$0x1]
        %621 = vset.pattern.permute.xlu0 0
        %622 = vperm.xlu0 %621, %v617
        %v623 = vpop.permute.xlu0 %622
        %626 = vset.pattern.permute.xlu0 0
        %627 = vperm.xlu0 %626, %v618
        %v628 = vpop.permute.xlu0 %627
        %v631 = vlaneseq
        %v632 = vshrl.u32 %v631, 7
        %v633 = vsub.s32 0, %v632
        %v634 = vrot.slane %v619, %v633
        %v636 = vmul.f32 %v623, %v634
        %v637 = vmul.f32 %v628, %v634
        %v638 = vld [vmem:[%s2] sm:$0x1]
        %v640 = vlaneseq
        %v641 = vshrl.u32 %v640, 7
        %v642 = vsub.s32 0, %v641
        %v643 = vrot.slane %v638, %v642
        %v645 = vadd.f32 %v636, %v643
        %v646 = vadd.f32 %v637, %v643
        %v647 = vld [vmem:[%s3] sm:$0xff]
        %v648 = vld [vmem:[%s3 + $0x8] sm:$0xff]
        %v649 = vadd.f32 %v645, %v647
        %v650 = vadd.f32 %v646, %v648
        %v651 = vld [vmem:[%s4] sm:$0xff]
        %v652 = vld [vmem:[%s4 + $0x8] sm:$0xff]
        %v653 = vpack.c.bf16 %v650, %v649
        %v654 = vld [vmem:[%s5] sm:$0xf]
        %v655 = vld [vmem:[%s5 + $0x4] sm:$0xf]
        %v656 = vld [vmem:[%s5 + $0x8] sm:$0xf]
        %v657 = vld [vmem:[%s5 + $0xc] sm:$0xf]
        %v658 = vld [vmem:[%s6] sm:$0x1]
        %v660 = vlaneseq
        %v661 = vshrl.u32 %v660, 7
        %v662 = vsub.s32 0, %v661
        %v663 = vrot.slane %v658, %v662
        %v669 = vunpack.c.l.b16 %v654
        %v670 = vunpack.c.l.b16 %v655
        %v671 = vunpack.c.l.b16 %v656
        %v672 = vunpack.c.l.b16 %v657
        %v673 = vpack.c.b16 %v670, %v669
        %v674 = vpack.c.b16 %v672, %v671
        %vm677 = vcmask 261120
        %v679 = vsel %vm677, %v653, 0
        %681 = vmatprep.subr.bf16.mxu0 0
        %682 = vmatpush1.bf16.msra.mxu0 %v673
        %683 = vmatprep.subr.bf16.mxu0 0
        %684 = vmatpush1.bf16.msra.mxu0 %v674
        %685 = vmatprep.subr.bf16.mxu0 0
        %686 = vmatpush1.bf16.msra.mxu0 0
        %687 = vmatprep.subr.bf16.mxu0 0
        %688 = vmatpush1.bf16.msra.mxu0 0
        %689 = vmatprep.subr.bf16.mxu0 0
        %690 = vmatpush1.bf16.msra.mxu0 0
        %691 = vmatprep.subr.bf16.mxu0 0
        %692 = vmatpush1.bf16.msra.mxu0 0
        %693 = vmatprep.subr.bf16.mxu0 0
        %694 = vmatpush1.bf16.msra.mxu0 0
        %695 = vmatprep.subr.bf16.mxu0 0
        %696 = vmatpush1.bf16.msra.mxu0 0
        %697 = vmatprep.subr.bf16.mxu0 0
        %698 = vmatpush1.bf16.msra.mxu0 0
        %699 = vmatprep.subr.bf16.mxu0 0
        %700 = vmatpush1.bf16.msra.mxu0 0
        %701 = vmatprep.subr.bf16.mxu0 0
        %702 = vmatpush1.bf16.msra.mxu0 0
        %703 = vmatprep.subr.bf16.mxu0 0
        %704 = vmatpush1.bf16.msra.mxu0 0
        %705 = vmatprep.subr.bf16.mxu0 0
        %706 = vmatpush1.bf16.msra.mxu0 0
        %707 = vmatprep.subr.bf16.mxu0 0
        %708 = vmatpush1.bf16.msra.mxu0 0
        %709 = vmatprep.subr.bf16.mxu0 0
        %710 = vmatpush1.bf16.msra.mxu0 0
        %711 = vmatprep.subr.bf16.mxu0 0
        %712 = vmatpush1.bf16.msra.mxu0 0
        %713 = vmatprep.mubr.bf16.mxu0 0
        %714 = vmatmul.mubr.bf16.gmra.mrb[0].mxu0 %v679
        %v715 = vpop.f32.mrb[0].mxu0
        %v716 = vadd.f32 %v663, %v715
        %v717 = vpop.f32.mrb[0].mxu0
        %v718 = vpop.f32.mrb[0].mxu0
        %v719 = vadd.f32 %v663, %v718
        %v720 = vpop.f32.mrb[0].mxu0
        %721 = vdwg.mxu0
        %v722 = vpack.c.bf16 %v719, %v716
        %724 = vrot.lane.b32.xlu0 %v722, 96
        %v725 = vpop.permute.xlu0 %724
        %vm726 = vcmask 64512
        %v728 = vsel %vm726, %v722, 0
        %v731 = vsel %vm726, %v725, 0
        %733 = vmatprep.subr.bf16.mxu0 0
        %734 = vmatpush1.bf16.xpose.msra.mxu0 %v731
        %735 = vmatprep.subr.bf16.mxu0 0
        %736 = vmatpush1.bf16.xpose.msra.mxu0 0
        %737 = vmatprep.subr.bf16.mxu0 0
        %738 = vmatpush1.bf16.xpose.msra.mxu0 0
        %739 = vmatprep.subr.bf16.mxu0 0
        %740 = vmatpush1.bf16.xpose.msra.mxu0 0
        %741 = vmatprep.subr.bf16.mxu0 0
        %742 = vmatpush1.bf16.xpose.msra.mxu0 0
        %743 = vmatprep.subr.bf16.mxu0 0
        %744 = vmatpush1.bf16.xpose.msra.mxu0 0
        %745 = vmatprep.subr.bf16.mxu0 0
        %746 = vmatpush1.bf16.xpose.msra.mxu0 0
        %747 = vmatprep.subr.bf16.mxu0 0
        %748 = vmatpush1.bf16.xpose.msra.mxu0 0
        %749 = vmatprep.subr.bf16.mxu0 0
        %750 = vmatpush1.bf16.xpose.msra.mxu0 0
        %751 = vmatprep.subr.bf16.mxu0 0
        %752 = vmatpush1.bf16.xpose.msra.mxu0 0
        %753 = vmatprep.subr.bf16.mxu0 0
        %754 = vmatpush1.bf16.xpose.msra.mxu0 0
        %755 = vmatprep.subr.bf16.mxu0 0
        %756 = vmatpush1.bf16.xpose.msra.mxu0 0
        %757 = vmatprep.subr.bf16.mxu0 0
        %758 = vmatpush1.bf16.xpose.msra.mxu0 0
        %759 = vmatprep.subr.bf16.mxu0 0
        %760 = vmatpush1.bf16.xpose.msra.mxu0 0
        %761 = vmatprep.subr.bf16.mxu0 0
        %762 = vmatpush1.bf16.xpose.msra.mxu0 0
        %763 = vmatprep.subr.bf16.mxu0 0
        %764 = vmatpush1.bf16.xpose.msra.mxu0 0
        %765 = vmatprep.mubr.bf16.mxu0 0
        %766 = vmatmul.mubr.bf16.gmra.mrb[0].mxu0 %v728
        %v767 = vpop.f32.mrb[0].mxu0
        %v768 = vadd.f32 %v651, %v767
        %v769 = vpop.f32.mrb[0].mxu0
        %v770 = vpop.f32.mrb[0].mxu0
        %v771 = vadd.f32 %v652, %v770
        %v772 = vpop.f32.mrb[0].mxu0
        %773 = vdwg.mxu0
        %vm774 = vcmask 130048
        %v775 = vsel %vm774, %v768, -inf
        %776 = vmax.xlane.f32.xlu0 %v775
        %v777 = vpop.xlane.xlu0 %776
        %v778 = vsel %vm774, %v771, -inf
        %779 = vmax.xlane.f32.xlu0 %v778
        %v780 = vpop.xlane.xlu0 %779
        %v781 = vsub.f32 %v768, %v777
        %v782 = vsub.f32 %v771, %v780
        %v783 = vmul.f32 %v781, 1.442695
        %v784 = vpow.pop %v783
        %v785 = vmul.f32 %v782, 1.442695
        %v786 = vpow.pop %v785
        %v787 = vsel %vm774, %v784, 0.0
        %788 = vadd.xlane.f32.xlu0 %v787
        %v789 = vpop.xlane.xlu0 %788
        %v790 = vsel %vm774, %v786, 0.0
        %791 = vadd.xlane.f32.xlu0 %v790
        %v792 = vpop.xlane.xlu0 %791
        %v793 = vrcp.pop %v789
        %v794 = vrcp.pop %v792
        %v795 = vmul.f32 %v784, %v793
        %v796 = vmul.f32 %v786, %v794
        %v797 = vpack.c.bf16 %v796, %v795
        %798 = vrot.lane.b32.xlu0 %v722, 64
        %v799 = vpop.permute.xlu0 %798
        %v802 = vsel %vm774, %v797, 0
        %804 = vmatprep.subr.bf16.mxu0 0
        %805 = vmatpush1.bf16.msra.mxu0 %v799
        %806 = vmatprep.subr.bf16.mxu0 0
        %807 = vmatpush1.bf16.msra.mxu0 0
        %808 = vmatprep.subr.bf16.mxu0 0
        %809 = vmatpush1.bf16.msra.mxu0 0
        %810 = vmatprep.subr.bf16.mxu0 0
        %811 = vmatpush1.bf16.msra.mxu0 0
        %812 = vmatprep.subr.bf16.mxu0 0
        %813 = vmatpush1.bf16.msra.mxu0 0
        %814 = vmatprep.subr.bf16.mxu0 0
        %815 = vmatpush1.bf16.msra.mxu0 0
        %816 = vmatprep.subr.bf16.mxu0 0
        %817 = vmatpush1.bf16.msra.mxu0 0
        %818 = vmatprep.subr.bf16.mxu0 0
        %819 = vmatpush1.bf16.msra.mxu0 0
        %820 = vmatprep.subr.bf16.mxu0 0
        %821 = vmatpush1.bf16.msra.mxu0 0
        %822 = vmatprep.subr.bf16.mxu0 0
        %823 = vmatpush1.bf16.msra.mxu0 0
        %824 = vmatprep.subr.bf16.mxu0 0
        %825 = vmatpush1.bf16.msra.mxu0 0
        %826 = vmatprep.subr.bf16.mxu0 0
        %827 = vmatpush1.bf16.msra.mxu0 0
        %828 = vmatprep.subr.bf16.mxu0 0
        %829 = vmatpush1.bf16.msra.mxu0 0
        %830 = vmatprep.subr.bf16.mxu0 0
        %831 = vmatpush1.bf16.msra.mxu0 0
        %832 = vmatprep.subr.bf16.mxu0 0
        %833 = vmatpush1.bf16.msra.mxu0 0
        %834 = vmatprep.subr.bf16.mxu0 0
        %835 = vmatpush1.bf16.msra.mxu0 0
        %836 = vmatprep.mubr.bf16.mxu0 0
        %837 = vmatmul.mubr.bf16.gmra.mrb[0].mxu0 %v802
        %v838 = vpop.f32.mrb[0].mxu0
        %v839 = vadd.f32 0.0, %v838
        %v840 = vpop.f32.mrb[0].mxu0
        %v841 = vpop.f32.mrb[0].mxu0
        %v842 = vadd.f32 0.0, %v841
        %v843 = vpop.f32.mrb[0].mxu0
        %844 = vdwg.mxu0
        %v845 = vpack.c.bf16 %v842, %v839
        %v846 = vld [vmem:[%s7] sm:$0xf]
        %847 = vrot.lane.b32.xlu0 %v722, 120
        %v848 = vpop.permute.xlu0 %847
        %849 = vrot.lane.b32.xlu0 %v722, 88
        %v850 = vpop.permute.xlu0 %849
        %v852 = vsel %vm726, %v848, 0
        %v855 = vsel %vm726, %v850, 0
        %857 = vmatprep.subr.bf16.mxu0 0
        %858 = vmatpush1.bf16.xpose.msra.mxu0 %v855
        %859 = vmatprep.subr.bf16.mxu0 0
        %860 = vmatpush1.bf16.xpose.msra.mxu0 0
        %861 = vmatprep.subr.bf16.mxu0 0
        %862 = vmatpush1.bf16.xpose.msra.mxu0 0
        %863 = vmatprep.subr.bf16.mxu0 0
        %864 = vmatpush1.bf16.xpose.msra.mxu0 0
        %865 = vmatprep.subr.bf16.mxu0 0
        %866 = vmatpush1.bf16.xpose.msra.mxu0 0
        %867 = vmatprep.subr.bf16.mxu0 0
        %868 = vmatpush1.bf16.xpose.msra.mxu0 0
        %869 = vmatprep.subr.bf16.mxu0 0
        %870 = vmatpush1.bf16.xpose.msra.mxu0 0
        %871 = vmatprep.subr.bf16.mxu0 0
        %872 = vmatpush1.bf16.xpose.msra.mxu0 0
        %873 = vmatprep.subr.bf16.mxu0 0
        %874 = vmatpush1.bf16.xpose.msra.mxu0 0
        %875 = vmatprep.subr.bf16.mxu0 0
        %876 = vmatpush1.bf16.xpose.msra.mxu0 0
        %877 = vmatprep.subr.bf16.mxu0 0
        %878 = vmatpush1.bf16.xpose.msra.mxu0 0
        %879 = vmatprep.subr.bf16.mxu0 0
        %880 = vmatpush1.bf16.xpose.msra.mxu0 0
        %881 = vmatprep.subr.bf16.mxu0 0
        %882 = vmatpush1.bf16.xpose.msra.mxu0 0
        %883 = vmatprep.subr.bf16.mxu0 0
        %884 = vmatpush1.bf16.xpose.msra.mxu0 0
        %885 = vmatprep.subr.bf16.mxu0 0
        %886 = vmatpush1.bf16.xpose.msra.mxu0 0
        %887 = vmatprep.subr.bf16.mxu0 0
        %888 = vmatpush1.bf16.xpose.msra.mxu0 0
        %889 = vmatprep.mubr.bf16.mxu0 0
        %890 = vmatmul.mubr.bf16.gmra.mrb[0].mxu0 %v852
        %v891 = vpop.f32.mrb[0].mxu0
        %v892 = vadd.f32 %v651, %v891
        %v893 = vpop.f32.mrb[0].mxu0
        %v894 = vpop.f32.mrb[0].mxu0
        %v895 = vadd.f32 %v652, %v894
        %v896 = vpop.f32.mrb[0].mxu0
        %897 = vdwg.mxu0
        %v898 = vsel %vm774, %v892, -inf
        %899 = vmax.xlane.f32.xlu0 %v898
        %v900 = vpop.xlane.xlu0 %899
        %v901 = vsel %vm774, %v895, -inf
        %902 = vmax.xlane.f32.xlu0 %v901
        %v903 = vpop.xlane.xlu0 %902
        %v904 = vsub.f32 %v892, %v900
        %v905 = vsub.f32 %v895, %v903
        %v906 = vmul.f32 %v904, 1.442695
        %v907 = vpow.pop %v906
        %v908 = vmul.f32 %v905, 1.442695
        %v909 = vpow.pop %v908
        %v910 = vsel %vm774, %v907, 0.0
        %911 = vadd.xlane.f32.xlu0 %v910
        %v912 = vpop.xlane.xlu0 %911
        %v913 = vsel %vm774, %v909, 0.0
        %914 = vadd.xlane.f32.xlu0 %v913
        %v915 = vpop.xlane.xlu0 %914
        %v916 = vrcp.pop %v912
        %v917 = vrcp.pop %v915
        %v918 = vmul.f32 %v907, %v916
        %v919 = vmul.f32 %v909, %v917
        %v920 = vpack.c.bf16 %v919, %v918
        %921 = vrot.lane.b32.xlu0 %v722, 56
        %v922 = vpop.permute.xlu0 %921
        %v925 = vsel %vm774, %v920, 0
        %927 = vmatprep.subr.bf16.mxu0 0
        %928 = vmatpush1.bf16.msra.mxu0 %v922
        %929 = vmatprep.subr.bf16.mxu0 0
        %930 = vmatpush1.bf16.msra.mxu0 0
        %931 = vmatprep.subr.bf16.mxu0 0
        %932 = vmatpush1.bf16.msra.mxu0 0
        %933 = vmatprep.subr.bf16.mxu0 0
        %934 = vmatpush1.bf16.msra.mxu0 0
        %935 = vmatprep.subr.bf16.mxu0 0
        %936 = vmatpush1.bf16.msra.mxu0 0
        %937 = vmatprep.subr.bf16.mxu0 0
        %938 = vmatpush1.bf16.msra.mxu0 0
        %939 = vmatprep.subr.bf16.mxu0 0
        %940 = vmatpush1.bf16.msra.mxu0 0
        %941 = vmatprep.subr.bf16.mxu0 0
        %942 = vmatpush1.bf16.msra.mxu0 0
        %943 = vmatprep.subr.bf16.mxu0 0
        %944 = vmatpush1.bf16.msra.mxu0 0
        %945 = vmatprep.subr.bf16.mxu0 0
        %946 = vmatpush1.bf16.msra.mxu0 0
        %947 = vmatprep.subr.bf16.mxu0 0
        %948 = vmatpush1.bf16.msra.mxu0 0
        %949 = vmatprep.subr.bf16.mxu0 0
        %950 = vmatpush1.bf16.msra.mxu0 0
        %951 = vmatprep.subr.bf16.mxu0 0
        %952 = vmatpush1.bf16.msra.mxu0 0
        %953 = vmatprep.subr.bf16.mxu0 0
        %954 = vmatpush1.bf16.msra.mxu0 0
        %955 = vmatprep.subr.bf16.mxu0 0
        %956 = vmatpush1.bf16.msra.mxu0 0
        %957 = vmatprep.subr.bf16.mxu0 0
        %958 = vmatpush1.bf16.msra.mxu0 0
        %959 = vmatprep.mubr.bf16.mxu0 0
        %960 = vmatmul.mubr.bf16.gmra.mrb[0].mxu0 %v925
        %v961 = vpop.f32.mrb[0].mxu0
        %v962 = vadd.f32 0.0, %v961
        %v963 = vpop.f32.mrb[0].mxu0
        %v964 = vpop.f32.mrb[0].mxu0
        %v965 = vadd.f32 0.0, %v964
        %v966 = vpop.f32.mrb[0].mxu0
        %967 = vdwg.mxu0
        %v968 = vpack.c.bf16 %v965, %v962
        %v969 = vld [vmem:[%s7 + $0x4] sm:$0xf]
        %v971 = vsel %vm726, %v968, 0
        %vm973 = vcmask 1043456
        %v975 = vsel %vm973, %v969, 0
        %977 = vmatprep.subr.bf16.mxu0 0
        %978 = vmatpush1.bf16.msra.mxu0 %v975
        %979 = vmatprep.subr.bf16.mxu0 0
        %980 = vmatpush1.bf16.msra.mxu0 0
        %981 = vmatprep.subr.bf16.mxu0 0
        %982 = vmatpush1.bf16.msra.mxu0 0
        %983 = vmatprep.subr.bf16.mxu0 0
        %984 = vmatpush1.bf16.msra.mxu0 0
        %985 = vmatprep.subr.bf16.mxu0 0
        %986 = vmatpush1.bf16.msra.mxu0 0
        %987 = vmatprep.subr.bf16.mxu0 0
        %988 = vmatpush1.bf16.msra.mxu0 0
        %989 = vmatprep.subr.bf16.mxu0 0
        %990 = vmatpush1.bf16.msra.mxu0 0
        %991 = vmatprep.subr.bf16.mxu0 0
        %992 = vmatpush1.bf16.msra.mxu0 0
        %993 = vmatprep.subr.bf16.mxu0 0
        %994 = vmatpush1.bf16.msra.mxu0 0
        %995 = vmatprep.subr.bf16.mxu0 0
        %996 = vmatpush1.bf16.msra.mxu0 0
        %997 = vmatprep.subr.bf16.mxu0 0
        %998 = vmatpush1.bf16.msra.mxu0 0
        %999 = vmatprep.subr.bf16.mxu0 0
        %1000 = vmatpush1.bf16.msra.mxu0 0
        %1001 = vmatprep.subr.bf16.mxu0 0
        %1002 = vmatpush1.bf16.msra.mxu0 0
        %1003 = vmatprep.subr.bf16.mxu0 0
        %1004 = vmatpush1.bf16.msra.mxu0 0
        %1005 = vmatprep.subr.bf16.mxu0 0
        %1006 = vmatpush1.bf16.msra.mxu0 0
        %1007 = vmatprep.subr.bf16.mxu0 0
        %1008 = vmatpush1.bf16.msra.mxu0 0
        %1009 = vmatprep.mubr.bf16.mxu0 0
        %1010 = vmatmul.mubr.bf16.gmra.mrb[0].mxu0 %v971
        %v1011 = vpop.f32.mrb[0].mxu0
        %v1012 = vadd.f32 0.0, %v1011
        %v1013 = vpop.f32.mrb[0].mxu0
        %v1014 = vpop.f32.mrb[0].mxu0
        %v1015 = vadd.f32 0.0, %v1014
        %v1016 = vpop.f32.mrb[0].mxu0
        %1017 = vdwg.mxu0
        %v1019 = vsel %vm726, %v845, 0
        %v1022 = vsel %vm973, %v846, 0
        %1024 = vmatprep.subr.bf16.mxu0 0
        %1025 = vmatpush1.bf16.msra.mxu0 %v1022
        %1026 = vmatprep.subr.bf16.mxu0 0
        %1027 = vmatpush1.bf16.msra.mxu0 0
        %1028 = vmatprep.subr.bf16.mxu0 0
        %1029 = vmatpush1.bf16.msra.mxu0 0
        %1030 = vmatprep.subr.bf16.mxu0 0
        %1031 = vmatpush1.bf16.msra.mxu0 0
        %1032 = vmatprep.subr.bf16.mxu0 0
        %1033 = vmatpush1.bf16.msra.mxu0 0
        %1034 = vmatprep.subr.bf16.mxu0 0
        %1035 = vmatpush1.bf16.msra.mxu0 0
        %1036 = vmatprep.subr.bf16.mxu0 0
        %1037 = vmatpush1.bf16.msra.mxu0 0
        %1038 = vmatprep.subr.bf16.mxu0 0
        %1039 = vmatpush1.bf16.msra.mxu0 0
        %1040 = vmatprep.subr.bf16.mxu0 0
        %1041 = vmatpush1.bf16.msra.mxu0 0
        %1042 = vmatprep.subr.bf16.mxu0 0
        %1043 = vmatpush1.bf16.msra.mxu0 0
        %1044 = vmatprep.subr.bf16.mxu0 0
        %1045 = vmatpush1.bf16.msra.mxu0 0
        %1046 = vmatprep.subr.bf16.mxu0 0
        %1047 = vmatpush1.bf16.msra.mxu0 0
        %1048 = vmatprep.subr.bf16.mxu0 0
        %1049 = vmatpush1.bf16.msra.mxu0 0
        %1050 = vmatprep.subr.bf16.mxu0 0
        %1051 = vmatpush1.bf16.msra.mxu0 0
        %1052 = vmatprep.subr.bf16.mxu0 0
        %1053 = vmatpush1.bf16.msra.mxu0 0
        %1054 = vmatprep.subr.bf16.mxu0 0
        %1055 = vmatpush1.bf16.msra.mxu0 0
        %1056 = vmatprep.mubr.bf16.mxu0 0
        %1057 = vmatmul.mubr.bf16.gmra.mrb[0].mxu0 %v1019
        %v1058 = vpop.f32.mrb[0].mxu0
        %v1059 = vadd.f32 %v1012, %v1058
        %v1060 = vpop.f32.mrb[0].mxu0
        %v1061 = vpop.f32.mrb[0].mxu0
        %v1062 = vadd.f32 %v1015, %v1061
        %v1063 = vpop.f32.mrb[0].mxu0
        %1064 = vdwg.mxu0
        %1065 = vrot.lane.b32.xlu0 %v722, 112
        %v1066 = vpop.permute.xlu0 %1065
        %1067 = vrot.lane.b32.xlu0 %v722, 80
        %v1068 = vpop.permute.xlu0 %1067
        %v1070 = vsel %vm726, %v1066, 0
        %v1073 = vsel %vm726, %v1068, 0
        %1075 = vmatprep.subr.bf16.mxu0 0
        %1076 = vmatpush1.bf16.xpose.msra.mxu0 %v1073
        %1077 = vmatprep.subr.bf16.mxu0 0
        %1078 = vmatpush1.bf16.xpose.msra.mxu0 0
        %1079 = vmatprep.subr.bf16.mxu0 0
        %1080 = vmatpush1.bf16.xpose.msra.mxu0 0
        %1081 = vmatprep.subr.bf16.mxu0 0
        %1082 = vmatpush1.bf16.xpose.msra.mxu0 0
        %1083 = vmatprep.subr.bf16.mxu0 0
        %1084 = vmatpush1.bf16.xpose.msra.mxu0 0
        %1085 = vmatprep.subr.bf16.mxu0 0
        %1086 = vmatpush1.bf16.xpose.msra.mxu0 0
        %1087 = vmatprep.subr.bf16.mxu0 0
        %1088 = vmatpush1.bf16.xpose.msra.mxu0 0
        %1089 = vmatprep.subr.bf16.mxu0 0
        %1090 = vmatpush1.bf16.xpose.msra.mxu0 0
        %1091 = vmatprep.subr.bf16.mxu0 0
        %1092 = vmatpush1.bf16.xpose.msra.mxu0 0
        %1093 = vmatprep.subr.bf16.mxu0 0
        %1094 = vmatpush1.bf16.xpose.msra.mxu0 0
        %1095 = vmatprep.subr.bf16.mxu0 0
        %1096 = vmatpush1.bf16.xpose.msra.mxu0 0
        %1097 = vmatprep.subr.bf16.mxu0 0
        %1098 = vmatpush1.bf16.xpose.msra.mxu0 0
        %1099 = vmatprep.subr.bf16.mxu0 0
        %1100 = vmatpush1.bf16.xpose.msra.mxu0 0
        %1101 = vmatprep.subr.bf16.mxu0 0
        %1102 = vmatpush1.bf16.xpose.msra.mxu0 0
        %1103 = vmatprep.subr.bf16.mxu0 0
        %1104 = vmatpush1.bf16.xpose.msra.mxu0 0
        %1105 = vmatprep.subr.bf16.mxu0 0
        %1106 = vmatpush1.bf16.xpose.msra.mxu0 0
        %1107 = vmatprep.mubr.bf16.mxu0 0
        %1108 = vmatmul.mubr.bf16.gmra.mrb[0].mxu0 %v1070
        %v1109 = vpop.f32.mrb[0].mxu0
        %v1110 = vadd.f32 %v651, %v1109
        %v1111 = vpop.f32.mrb[0].mxu0
        %v1112 = vpop.f32.mrb[0].mxu0
        %v1113 = vadd.f32 %v652, %v1112
        %v1114 = vpop.f32.mrb[0].mxu0
        %1115 = vdwg.mxu0
        %v1116 = vsel %vm774, %v1110, -inf
        %1117 = vmax.xlane.f32.xlu0 %v1116
        %v1118 = vpop.xlane.xlu0 %1117
        %v1119 = vsel %vm774, %v1113, -inf
        %1120 = vmax.xlane.f32.xlu0 %v1119
        %v1121 = vpop.xlane.xlu0 %1120
        %v1122 = vsub.f32 %v1110, %v1118
        %v1123 = vsub.f32 %v1113, %v1121
        %v1124 = vmul.f32 %v1122, 1.442695
        %v1125 = vpow.pop %v1124
        %v1126 = vmul.f32 %v1123, 1.442695
        %v1127 = vpow.pop %v1126
        %v1128 = vsel %vm774, %v1125, 0.0
        %1129 = vadd.xlane.f32.xlu0 %v1128
        %v1130 = vpop.xlane.xlu0 %1129
        %v1131 = vsel %vm774, %v1127, 0.0
        %1132 = vadd.xlane.f32.xlu0 %v1131
        %v1133 = vpop.xlane.xlu0 %1132
        %v1134 = vrcp.pop %v1130
        %v1135 = vrcp.pop %v1133
        %v1136 = vmul.f32 %v1125, %v1134
        %v1137 = vmul.f32 %v1127, %v1135
        %v1138 = vpack.c.bf16 %v1137, %v1136
        %1139 = vrot.lane.b32.xlu0 %v722, 48
        %v1140 = vpop.permute.xlu0 %1139
        %v1143 = vsel %vm774, %v1138, 0
        %1145 = vmatprep.subr.bf16.mxu0 0
        %1146 = vmatpush1.bf16.msra.mxu0 %v1140
        %1147 = vmatprep.subr.bf16.mxu0 0
        %1148 = vmatpush1.bf16.msra.mxu0 0
        %1149 = vmatprep.subr.bf16.mxu0 0
        %1150 = vmatpush1.bf16.msra.mxu0 0
        %1151 = vmatprep.subr.bf16.mxu0 0
        %1152 = vmatpush1.bf16.msra.mxu0 0
        %1153 = vmatprep.subr.bf16.mxu0 0
        %1154 = vmatpush1.bf16.msra.mxu0 0
        %1155 = vmatprep.subr.bf16.mxu0 0
        %1156 = vmatpush1.bf16.msra.mxu0 0
        %1157 = vmatprep.subr.bf16.mxu0 0
        %1158 = vmatpush1.bf16.msra.mxu0 0
        %1159 = vmatprep.subr.bf16.mxu0 0
        %1160 = vmatpush1.bf16.msra.mxu0 0
        %1161 = vmatprep.subr.bf16.mxu0 0
        %1162 = vmatpush1.bf16.msra.mxu0 0
        %1163 = vmatprep.subr.bf16.mxu0 0
        %1164 = vmatpush1.bf16.msra.mxu0 0
        %1165 = vmatprep.subr.bf16.mxu0 0
        %1166 = vmatpush1.bf16.msra.mxu0 0
        %1167 = vmatprep.subr.bf16.mxu0 0
        %1168 = vmatpush1.bf16.msra.mxu0 0
        %1169 = vmatprep.subr.bf16.mxu0 0
        %1170 = vmatpush1.bf16.msra.mxu0 0
        %1171 = vmatprep.subr.bf16.mxu0 0
        %1172 = vmatpush1.bf16.msra.mxu0 0
        %1173 = vmatprep.subr.bf16.mxu0 0
        %1174 = vmatpush1.bf16.msra.mxu0 0
        %1175 = vmatprep.subr.bf16.mxu0 0
        %1176 = vmatpush1.bf16.msra.mxu0 0
        %1177 = vmatprep.mubr.bf16.mxu0 0
        %1178 = vmatmul.mubr.bf16.gmra.mrb[0].mxu0 %v1143
        %v1179 = vpop.f32.mrb[0].mxu0
        %v1180 = vadd.f32 0.0, %v1179
        %v1181 = vpop.f32.mrb[0].mxu0
        %v1182 = vpop.f32.mrb[0].mxu0
        %v1183 = vadd.f32 0.0, %v1182
        %v1184 = vpop.f32.mrb[0].mxu0
        %1185 = vdwg.mxu0
        %v1186 = vpack.c.bf16 %v1183, %v1180
        %v1187 = vld [vmem:[%s7 + $0x8] sm:$0xf]
        %v1189 = vsel %vm726, %v1186, 0
        %v1192 = vsel %vm973, %v1187, 0
        %1194 = vmatprep.subr.bf16.mxu0 0
        %1195 = vmatpush1.bf16.msra.mxu0 %v1192
        %1196 = vmatprep.subr.bf16.mxu0 0
        %1197 = vmatpush1.bf16.msra.mxu0 0
        %1198 = vmatprep.subr.bf16.mxu0 0
        %1199 = vmatpush1.bf16.msra.mxu0 0
        %1200 = vmatprep.subr.bf16.mxu0 0
        %1201 = vmatpush1.bf16.msra.mxu0 0
        %1202 = vmatprep.subr.bf16.mxu0 0
        %1203 = vmatpush1.bf16.msra.mxu0 0
        %1204 = vmatprep.subr.bf16.mxu0 0
        %1205 = vmatpush1.bf16.msra.mxu0 0
        %1206 = vmatprep.subr.bf16.mxu0 0
        %1207 = vmatpush1.bf16.msra.mxu0 0
        %1208 = vmatprep.subr.bf16.mxu0 0
        %1209 = vmatpush1.bf16.msra.mxu0 0
        %1210 = vmatprep.subr.bf16.mxu0 0
        %1211 = vmatpush1.bf16.msra.mxu0 0
        %1212 = vmatprep.subr.bf16.mxu0 0
        %1213 = vmatpush1.bf16.msra.mxu0 0
        %1214 = vmatprep.subr.bf16.mxu0 0
        %1215 = vmatpush1.bf16.msra.mxu0 0
        %1216 = vmatprep.subr.bf16.mxu0 0
        %1217 = vmatpush1.bf16.msra.mxu0 0
        %1218 = vmatprep.subr.bf16.mxu0 0
        %1219 = vmatpush1.bf16.msra.mxu0 0
        %1220 = vmatprep.subr.bf16.mxu0 0
        %1221 = vmatpush1.bf16.msra.mxu0 0
        %1222 = vmatprep.subr.bf16.mxu0 0
        %1223 = vmatpush1.bf16.msra.mxu0 0
        %1224 = vmatprep.subr.bf16.mxu0 0
        %1225 = vmatpush1.bf16.msra.mxu0 0
        %1226 = vmatprep.mubr.bf16.mxu0 0
        %1227 = vmatmul.mubr.bf16.gmra.mrb[0].mxu0 %v1189
        %v1228 = vpop.f32.mrb[0].mxu0
        %v1229 = vadd.f32 0.0, %v1228
        %v1230 = vpop.f32.mrb[0].mxu0
        %v1231 = vpop.f32.mrb[0].mxu0
        %v1232 = vadd.f32 0.0, %v1231
        %v1233 = vpop.f32.mrb[0].mxu0
        %1234 = vdwg.mxu0
        %v1235 = vadd.f32 %v1059, %v1229
        %v1236 = vadd.f32 %v1062, %v1232
        %1237 = vrot.lane.b32.xlu0 %v722, 104
        %v1238 = vpop.permute.xlu0 %1237
        %1239 = vrot.lane.b32.xlu0 %v722, 72
        %v1240 = vpop.permute.xlu0 %1239
        %v1242 = vsel %vm726, %v1238, 0
        %v1245 = vsel %vm726, %v1240, 0
        %1247 = vmatprep.subr.bf16.mxu0 0
        %1248 = vmatpush1.bf16.xpose.msra.mxu0 %v1245
        %1249 = vmatprep.subr.bf16.mxu0 0
        %1250 = vmatpush1.bf16.xpose.msra.mxu0 0
        %1251 = vmatprep.subr.bf16.mxu0 0
        %1252 = vmatpush1.bf16.xpose.msra.mxu0 0
        %1253 = vmatprep.subr.bf16.mxu0 0
        %1254 = vmatpush1.bf16.xpose.msra.mxu0 0
        %1255 = vmatprep.subr.bf16.mxu0 0
        %1256 = vmatpush1.bf16.xpose.msra.mxu0 0
        %1257 = vmatprep.subr.bf16.mxu0 0
        %1258 = vmatpush1.bf16.xpose.msra.mxu0 0
        %1259 = vmatprep.subr.bf16.mxu0 0
        %1260 = vmatpush1.bf16.xpose.msra.mxu0 0
        %1261 = vmatprep.subr.bf16.mxu0 0
        %1262 = vmatpush1.bf16.xpose.msra.mxu0 0
        %1263 = vmatprep.subr.bf16.mxu0 0
        %1264 = vmatpush1.bf16.xpose.msra.mxu0 0
        %1265 = vmatprep.subr.bf16.mxu0 0
        %1266 = vmatpush1.bf16.xpose.msra.mxu0 0
        %1267 = vmatprep.subr.bf16.mxu0 0
        %1268 = vmatpush1.bf16.xpose.msra.mxu0 0
        %1269 = vmatprep.subr.bf16.mxu0 0
        %1270 = vmatpush1.bf16.xpose.msra.mxu0 0
        %1271 = vmatprep.subr.bf16.mxu0 0
        %1272 = vmatpush1.bf16.xpose.msra.mxu0 0
        %1273 = vmatprep.subr.bf16.mxu0 0
        %1274 = vmatpush1.bf16.xpose.msra.mxu0 0
        %1275 = vmatprep.subr.bf16.mxu0 0
        %1276 = vmatpush1.bf16.xpose.msra.mxu0 0
        %1277 = vmatprep.subr.bf16.mxu0 0
        %1278 = vmatpush1.bf16.xpose.msra.mxu0 0
        %1279 = vmatprep.mubr.bf16.mxu0 0
        %1280 = vmatmul.mubr.bf16.gmra.mrb[0].mxu0 %v1242
        %v1281 = vpop.f32.mrb[0].mxu0
        %v1282 = vadd.f32 %v651, %v1281
        %v1283 = vpop.f32.mrb[0].mxu0
        %v1284 = vpop.f32.mrb[0].mxu0
        %v1285 = vadd.f32 %v652, %v1284
        %v1286 = vpop.f32.mrb[0].mxu0
        %1287 = vdwg.mxu0
        %v1288 = vsel %vm774, %v1282, -inf
        %1289 = vmax.xlane.f32.xlu0 %v1288
        %v1290 = vpop.xlane.xlu0 %1289
        %v1291 = vsel %vm774, %v1285, -inf
        %1292 = vmax.xlane.f32.xlu0 %v1291
        %v1293 = vpop.xlane.xlu0 %1292
        %v1294 = vsub.f32 %v1282, %v1290
        %v1295 = vsub.f32 %v1285, %v1293
        %v1296 = vmul.f32 %v1294, 1.442695
        %v1297 = vpow.pop %v1296
        %v1298 = vmul.f32 %v1295, 1.442695
        %v1299 = vpow.pop %v1298
        %v1300 = vsel %vm774, %v1297, 0.0
        %1301 = vadd.xlane.f32.xlu0 %v1300
        %v1302 = vpop.xlane.xlu0 %1301
        %v1303 = vsel %vm774, %v1299, 0.0
        %1304 = vadd.xlane.f32.xlu0 %v1303
        %v1305 = vpop.xlane.xlu0 %1304
        %v1306 = vrcp.pop %v1302
        %v1307 = vrcp.pop %v1305
        %v1308 = vmul.f32 %v1297, %v1306
        %v1309 = vmul.f32 %v1299, %v1307
        %v1310 = vpack.c.bf16 %v1309, %v1308
        %1311 = vrot.lane.b32.xlu0 %v722, 40
        %v1312 = vpop.permute.xlu0 %1311
        %v1315 = vsel %vm774, %v1310, 0
        %1317 = vmatprep.subr.bf16.mxu0 0
        %1318 = vmatpush1.bf16.msra.mxu0 %v1312
        %1319 = vmatprep.subr.bf16.mxu0 0
        %1320 = vmatpush1.bf16.msra.mxu0 0
        %1321 = vmatprep.subr.bf16.mxu0 0
        %1322 = vmatpush1.bf16.msra.mxu0 0
        %1323 = vmatprep.subr.bf16.mxu0 0
        %1324 = vmatpush1.bf16.msra.mxu0 0
        %1325 = vmatprep.subr.bf16.mxu0 0
        %1326 = vmatpush1.bf16.msra.mxu0 0
        %1327 = vmatprep.subr.bf16.mxu0 0
        %1328 = vmatpush1.bf16.msra.mxu0 0
        %1329 = vmatprep.subr.bf16.mxu0 0
        %1330 = vmatpush1.bf16.msra.mxu0 0
        %1331 = vmatprep.subr.bf16.mxu0 0
        %1332 = vmatpush1.bf16.msra.mxu0 0
        %1333 = vmatprep.subr.bf16.mxu0 0
        %1334 = vmatpush1.bf16.msra.mxu0 0
        %1335 = vmatprep.subr.bf16.mxu0 0
        %1336 = vmatpush1.bf16.msra.mxu0 0
        %1337 = vmatprep.subr.bf16.mxu0 0
        %1338 = vmatpush1.bf16.msra.mxu0 0
        %1339 = vmatprep.subr.bf16.mxu0 0
        %1340 = vmatpush1.bf16.msra.mxu0 0
        %1341 = vmatprep.subr.bf16.mxu0 0
        %1342 = vmatpush1.bf16.msra.mxu0 0
        %1343 = vmatprep.subr.bf16.mxu0 0
        %1344 = vmatpush1.bf16.msra.mxu0 0
        %1345 = vmatprep.subr.bf16.mxu0 0
        %1346 = vmatpush1.bf16.msra.mxu0 0
        %1347 = vmatprep.subr.bf16.mxu0 0
        %1348 = vmatpush1.bf16.msra.mxu0 0
        %1349 = vmatprep.mubr.bf16.mxu0 0
        %1350 = vmatmul.mubr.bf16.gmra.mrb[0].mxu0 %v1315
        %v1351 = vpop.f32.mrb[0].mxu0
        %v1352 = vadd.f32 0.0, %v1351
        %v1353 = vpop.f32.mrb[0].mxu0
        %v1354 = vpop.f32.mrb[0].mxu0
        %v1355 = vadd.f32 0.0, %v1354
        %v1356 = vpop.f32.mrb[0].mxu0
        %1357 = vdwg.mxu0
        %v1358 = vpack.c.bf16 %v1355, %v1352
        %v1359 = vld [vmem:[%s7 + $0xc] sm:$0xf]
        %v1361 = vsel %vm726, %v1358, 0
        %v1364 = vsel %vm973, %v1359, 0
        %1366 = vmatprep.subr.bf16.mxu0 0
        %1367 = vmatpush1.bf16.msra.mxu0 %v1364
        %1368 = vmatprep.subr.bf16.mxu0 0
        %1369 = vmatpush1.bf16.msra.mxu0 0
        %1370 = vmatprep.subr.bf16.mxu0 0
        %1371 = vmatpush1.bf16.msra.mxu0 0
        %1372 = vmatprep.subr.bf16.mxu0 0
        %1373 = vmatpush1.bf16.msra.mxu0 0
        %1374 = vmatprep.subr.bf16.mxu0 0
        %1375 = vmatpush1.bf16.msra.mxu0 0
        %1376 = vmatprep.subr.bf16.mxu0 0
        %1377 = vmatpush1.bf16.msra.mxu0 0
        %1378 = vmatprep.subr.bf16.mxu0 0
        %1379 = vmatpush1.bf16.msra.mxu0 0
        %1380 = vmatprep.subr.bf16.mxu0 0
        %1381 = vmatpush1.bf16.msra.mxu0 0
        %1382 = vmatprep.subr.bf16.mxu0 0
        %1383 = vmatpush1.bf16.msra.mxu0 0
        %1384 = vmatprep.subr.bf16.mxu0 0
        %1385 = vmatpush1.bf16.msra.mxu0 0
        %1386 = vmatprep.subr.bf16.mxu0 0
        %1387 = vmatpush1.bf16.msra.mxu0 0
        %1388 = vmatprep.subr.bf16.mxu0 0
        %1389 = vmatpush1.bf16.msra.mxu0 0
        %1390 = vmatprep.subr.bf16.mxu0 0
        %1391 = vmatpush1.bf16.msra.mxu0 0
        %1392 = vmatprep.subr.bf16.mxu0 0
        %1393 = vmatpush1.bf16.msra.mxu0 0
        %1394 = vmatprep.subr.bf16.mxu0 0
        %1395 = vmatpush1.bf16.msra.mxu0 0
        %1396 = vmatprep.subr.bf16.mxu0 0
        %1397 = vmatpush1.bf16.msra.mxu0 0
        %1398 = vmatprep.mubr.bf16.mxu0 0
        %1399 = vmatmul.mubr.bf16.gmra.mrb[0].mxu0 %v1361
        %v1400 = vpop.f32.mrb[0].mxu0
        %v1401 = vadd.f32 0.0, %v1400
        %v1402 = vpop.f32.mrb[0].mxu0
        %v1403 = vpop.f32.mrb[0].mxu0
        %v1404 = vadd.f32 0.0, %v1403
        %v1405 = vpop.f32.mrb[0].mxu0
        %1406 = vdwg.mxu0
        %v1407 = vadd.f32 %v1235, %v1401
        %v1408 = vadd.f32 %v1236, %v1404
        %v1409 = vld [vmem:[%s8] sm:$0x1]
        %v1411 = vlaneseq
        %v1412 = vshrl.u32 %v1411, 7
        %v1413 = vsub.s32 0, %v1412
        %v1414 = vrot.slane %v1409, %v1413
        %v1416 = vadd.f32 %v1407, %v1414
        %v1417 = vadd.f32 %v1408, %v1414
        %v1418 = vadd.f32 %v649, %v1416
        %v1419 = vadd.f32 %v650, %v1417
        %v1420 = vld [vmem:[%s9] sm:$0x1]
        %v1421 = vld [vmem:[%s10] sm:$0x1]
        %v1422 = vsel %vm677, %v1418, 0.0
        %1423 = vadd.xlane.f32.xlu0 %v1422
        %v1424 = vpop.xlane.xlu0 %1423
        %v1425 = vsel %vm677, %v1419, 0.0
        %1426 = vadd.xlane.f32.xlu0 %v1425
        %v1427 = vpop.xlane.xlu0 %1426
        %v1428 = vrcp.pop 32.0
        %v1429 = vmul.f32 %v1424, %v1428
        %v1430 = vmul.f32 %v1427, %v1428
        %v1431 = vsub.f32 %v1418, %v1429
        %v1432 = vsub.f32 %v1419, %v1430
        %v1433 = vmul.f32 %v1431, %v1431
        %v1434 = vmul.f32 %v1432, %v1432
        %v1435 = vsel %vm677, %v1433, 0.0
        %1436 = vadd.xlane.f32.xlu0 %v1435
        %v1437 = vpop.xlane.xlu0 %1436
        %v1438 = vsel %vm677, %v1434, 0.0
        %1439 = vadd.xlane.f32.xlu0 %v1438
        %v1440 = vpop.xlane.xlu0 %1439
        %v1441 = vmul.f32 %v1437, %v1428
        %v1442 = vmul.f32 %v1440, %v1428
        %v1443 = vadd.f32 %v1441, 1e-05
        %v1444 = vadd.f32 %v1442, 1e-05
        %v1445 = vrsqrt.pop %v1443
        %v1446 = vrsqrt.pop %v1444
        %v1447 = vmul.f32 %v1431, %v1445
        %v1448 = vmul.f32 %v1432, %v1446
        %v1450 = vlaneseq
        %v1451 = vshrl.u32 %v1450, 7
        %v1452 = vsub.s32 0, %v1451
        %v1453 = vrot.slane %v1420, %v1452
        %v1455 = vmul.f32 %v1447, %v1453
        %v1456 = vmul.f32 %v1448, %v1453
        %v1458 = vlaneseq
        %v1459 = vshrl.u32 %v1458, 7
        %v1460 = vsub.s32 0, %v1459
        %v1461 = vrot.slane %v1421, %v1460
        %v1463 = vadd.f32 %v1455, %v1461
        %v1464 = vadd.f32 %v1456, %v1461
        %v1465 = vpack.c.bf16 %v1464, %v1463
        %v1466 = vld [vmem:[%s13] sm:$0xff]
        %v1467 = vld [vmem:[%s13 + $0x40] sm:$0xff]
        %v1468 = vld [vmem:[%s13 + $0x80] sm:$0xff]
        %v1469 = vld [vmem:[%s13 + $0xc0] sm:$0xff]
        %v1470 = vld [vmem:[%s14] sm:$0x3]
        %v1472 = vlaneseq
        %v1473 = vshrl.u32 %v1472, 7
        %v1474 = vsub.s32 0, %v1473
        %v1475 = vrot.slane %v1470, %v1474
        %v1476 = vlaneseq
        %v1477 = vshrl.u32 %v1476, 7
        %v1478 = vsub.s32 1, %v1477
        %v1479 = vrot.slane %v1470, %v1478
        %v1486 = vunpack.c.l.b16 %v1466
        %v1487 = vunpack.c.h.b16 %v1466
        %v1488 = vunpack.c.l.b16 %v1467
        %v1489 = vunpack.c.h.b16 %v1467
        %v1490 = vunpack.c.l.b16 %v1468
        %v1491 = vunpack.c.h.b16 %v1468
        %v1492 = vunpack.c.l.b16 %v1469
        %v1493 = vunpack.c.h.b16 %v1469
        %v1494 = vpack.c.b16 %v1488, %v1486
        %v1495 = vpack.c.b16 %v1489, %v1487
        %v1496 = vpack.c.b16 %v1492, %v1490
        %v1497 = vpack.c.b16 %v1493, %v1491
        %v1503 = vsel %vm677, %v1465, 0
        %1505 = vmatprep.subr.bf16.mxu0 %v1495
        %1506 = vmatpush1.bf16.msra.mxu0 %v1494
        %1507 = vmatprep.subr.bf16.mxu0 %v1497
        %1508 = vmatpush1.bf16.msra.mxu0 %v1496
        %1509 = vmatprep.subr.bf16.mxu0 0
        %1510 = vmatpush1.bf16.msra.mxu0 0
        %1511 = vmatprep.subr.bf16.mxu0 0
        %1512 = vmatpush1.bf16.msra.mxu0 0
        %1513 = vmatprep.subr.bf16.mxu0 0
        %1514 = vmatpush1.bf16.msra.mxu0 0
        %1515 = vmatprep.subr.bf16.mxu0 0
        %1516 = vmatpush1.bf16.msra.mxu0 0
        %1517 = vmatprep.subr.bf16.mxu0 0
        %1518 = vmatpush1.bf16.msra.mxu0 0
        %1519 = vmatprep.subr.bf16.mxu0 0
        %1520 = vmatpush1.bf16.msra.mxu0 0
        %1521 = vmatprep.subr.bf16.mxu0 0
        %1522 = vmatpush1.bf16.msra.mxu0 0
        %1523 = vmatprep.subr.bf16.mxu0 0
        %1524 = vmatpush1.bf16.msra.mxu0 0
        %1525 = vmatprep.subr.bf16.mxu0 0
        %1526 = vmatpush1.bf16.msra.mxu0 0
        %1527 = vmatprep.subr.bf16.mxu0 0
        %1528 = vmatpush1.bf16.msra.mxu0 0
        %1529 = vmatprep.subr.bf16.mxu0 0
        %1530 = vmatpush1.bf16.msra.mxu0 0
        %1531 = vmatprep.subr.bf16.mxu0 0
        %1532 = vmatpush1.bf16.msra.mxu0 0
        %1533 = vmatprep.subr.bf16.mxu0 0
        %1534 = vmatpush1.bf16.msra.mxu0 0
        %1535 = vmatprep.subr.bf16.mxu0 0
        %1536 = vmatpush1.bf16.msra.mxu0 0
        %1537 = vmatprep.mubr.bf16.mxu0 0
        %1538 = vmatmul.mubr.bf16.gmra.mrb[0].mxu0 %v1503
        %v1539 = vpop.f32.mrb[0].mxu0
        %v1540 = vadd.f32 %v1475, %v1539
        %v1541 = vpop.f32.mrb[0].mxu0
        %v1542 = vadd.f32 %v1479, %v1541
        %v1543 = vpop.f32.mrb[0].mxu0
        %v1544 = vadd.f32 %v1475, %v1543
        %v1545 = vpop.f32.mrb[0].mxu0
        %v1546 = vadd.f32 %v1479, %v1545
        %1547 = vdwg.mxu0
        %v1548 = vmax.f32 %v1540, 0.0
        %v1549 = vmax.f32 %v1542, 0.0
        %v1550 = vmax.f32 %v1544, 0.0
        %v1551 = vmax.f32 %v1546, 0.0
        %v1552 = vpack.c.bf16 %v1550, %v1548
        %v1553 = vpack.c.bf16 %v1551, %v1549
        %v1554 = vld [vmem:[#allocation3] sm:$0xf]
        %v1555 = vld [vmem:[#allocation3 + $0x4] sm:$0xf]
        %v1556 = vld [vmem:[#allocation3 + $0x8] sm:$0xf]
        %v1557 = vld [vmem:[#allocation3 + $0xc] sm:$0xf]
        %v1558 = vld [vmem:[#allocation3 + $0x10] sm:$0xf]
        %v1559 = vld [vmem:[#allocation3 + $0x14] sm:$0xf]
        %v1560 = vld [vmem:[#allocation3 + $0x18] sm:$0xf]
        %v1561 = vld [vmem:[#allocation3 + $0x1c] sm:$0xf]
        %v1562 = vld [vmem:[#allocation3 + $0x20] sm:$0xf]
        %v1563 = vld [vmem:[#allocation3 + $0x24] sm:$0xf]
        %v1564 = vld [vmem:[#allocation3 + $0x28] sm:$0xf]
        %v1565 = vld [vmem:[#allocation3 + $0x2c] sm:$0xf]
        %v1566 = vld [vmem:[#allocation3 + $0x30] sm:$0xf]
        %v1567 = vld [vmem:[#allocation3 + $0x34] sm:$0xf]
        %v1568 = vld [vmem:[#allocation3 + $0x38] sm:$0xf]
        %v1569 = vld [vmem:[#allocation3 + $0x3c] sm:$0xf]
        %v1570 = vld [vmem:[#allocation3 + $0x40] sm:$0xf]
        %v1571 = vld [vmem:[#allocation3 + $0x44] sm:$0xf]
        %v1572 = vld [vmem:[#allocation3 + $0x48] sm:$0xf]
        %v1573 = vld [vmem:[#allocation3 + $0x4c] sm:$0xf]
        %v1574 = vld [vmem:[#allocation3 + $0x50] sm:$0xf]
        %v1575 = vld [vmem:[#allocation3 + $0x54] sm:$0xf]
        %v1576 = vld [vmem:[#allocation3 + $0x58] sm:$0xf]
        %v1577 = vld [vmem:[#allocation3 + $0x5c] sm:$0xf]
        %v1578 = vld [vmem:[#allocation3 + $0x60] sm:$0xf]
        %v1579 = vld [vmem:[#allocation3 + $0x64] sm:$0xf]
        %v1580 = vld [vmem:[#allocation3 + $0x68] sm:$0xf]
        %v1581 = vld [vmem:[#allocation3 + $0x6c] sm:$0xf]
        %v1582 = vld [vmem:[#allocation3 + $0x70] sm:$0xf]
        %v1583 = vld [vmem:[#allocation3 + $0x74] sm:$0xf]
        %v1584 = vld [vmem:[#allocation3 + $0x78] sm:$0xf]
        %v1585 = vld [vmem:[#allocation3 + $0x7c] sm:$0xf]
        %v1586 = vld [vmem:[%s13 + $0x8] sm:$0xff]
        %v1587 = vld [vmem:[%s13 + $0x48] sm:$0xff]
        %v1588 = vld [vmem:[%s13 + $0x88] sm:$0xff]
        %v1589 = vld [vmem:[%s13 + $0xc8] sm:$0xff]
        %v1590 = vld [vmem:[%s14 + $0x2] sm:$0x3]
        %v1592 = vlaneseq
        %v1593 = vshrl.u32 %v1592, 7
        %v1594 = vsub.s32 0, %v1593
        %v1595 = vrot.slane %v1590, %v1594
        %v1596 = vlaneseq
        %v1597 = vshrl.u32 %v1596, 7
        %v1598 = vsub.s32 1, %v1597
        %v1599 = vrot.slane %v1590, %v1598
        %v1606 = vunpack.c.l.b16 %v1586
        %v1607 = vunpack.c.h.b16 %v1586
        %v1608 = vunpack.c.l.b16 %v1587
        %v1609 = vunpack.c.h.b16 %v1587
        %v1610 = vunpack.c.l.b16 %v1588
        %v1611 = vunpack.c.h.b16 %v1588
        %v1612 = vunpack.c.l.b16 %v1589
        %v1613 = vunpack.c.h.b16 %v1589
        %v1614 = vpack.c.b16 %v1608, %v1606
        %v1615 = vpack.c.b16 %v1609, %v1607
        %v1616 = vpack.c.b16 %v1612, %v1610
        %v1617 = vpack.c.b16 %v1613, %v1611
        %1622 = vmatprep.subr.bf16.mxu0 %v1615
        %1623 = vmatpush1.bf16.msra.mxu0 %v1614
        %1624 = vmatprep.subr.bf16.mxu0 %v1617
        %1625 = vmatpush1.bf16.msra.mxu0 %v1616
        %1626 = vmatprep.subr.bf16.mxu0 0
        %1627 = vmatpush1.bf16.msra.mxu0 0
        %1628 = vmatprep.subr.bf16.mxu0 0
        %1629 = vmatpush1.bf16.msra.mxu0 0
        %1630 = vmatprep.subr.bf16.mxu0 0
        %1631 = vmatpush1.bf16.msra.mxu0 0
        %1632 = vmatprep.subr.bf16.mxu0 0
        %1633 = vmatpush1.bf16.msra.mxu0 0
        %1634 = vmatprep.subr.bf16.mxu0 0
        %1635 = vmatpush1.bf16.msra.mxu0 0
        %1636 = vmatprep.subr.bf16.mxu0 0
        %1637 = vmatpush1.bf16.msra.mxu0 0
        %1638 = vmatprep.subr.bf16.mxu0 0
        %1639 = vmatpush1.bf16.msra.mxu0 0
        %1640 = vmatprep.subr.bf16.mxu0 0
        %1641 = vmatpush1.bf16.msra.mxu0 0
        %1642 = vmatprep.subr.bf16.mxu0 0
        %1643 = vmatpush1.bf16.msra.mxu0 0
        %1644 = vmatprep.subr.bf16.mxu0 0
        %1645 = vmatpush1.bf16.msra.mxu0 0
        %1646 = vmatprep.subr.bf16.mxu0 0
        %1647 = vmatpush1.bf16.msra.mxu0 0
        %1648 = vmatprep.subr.bf16.mxu0 0
        %1649 = vmatpush1.bf16.msra.mxu0 0
        %1650 = vmatprep.subr.bf16.mxu0 0
        %1651 = vmatpush1.bf16.msra.mxu0 0
        %1652 = vmatprep.subr.bf16.mxu0 0
        %1653 = vmatpush1.bf16.msra.mxu0 0
        %1654 = vmatprep.mubr.bf16.mxu0 0
        %1655 = vmatmul.mubr.bf16.gmra.mrb[0].mxu0 %v1503
        %v1656 = vpop.f32.mrb[0].mxu0
        %v1657 = vadd.f32 %v1595, %v1656
        %v1658 = vpop.f32.mrb[0].mxu0
        %v1659 = vadd.f32 %v1599, %v1658
        %v1660 = vpop.f32.mrb[0].mxu0
        %v1661 = vadd.f32 %v1595, %v1660
        %v1662 = vpop.f32.mrb[0].mxu0
        %v1663 = vadd.f32 %v1599, %v1662
        %1664 = vdwg.mxu0
        %v1665 = vmax.f32 %v1657, 0.0
        %v1666 = vmax.f32 %v1659, 0.0
        %v1667 = vmax.f32 %v1661, 0.0
        %v1668 = vmax.f32 %v1663, 0.0
        %v1669 = vpack.c.bf16 %v1667, %v1665
        %v1670 = vpack.c.bf16 %v1668, %v1666
        %v1671 = vld [vmem:[#allocation3 + $0x80] sm:$0xf]
        %v1672 = vld [vmem:[#allocation3 + $0x84] sm:$0xf]
        %v1673 = vld [vmem:[#allocation3 + $0x88] sm:$0xf]
        %v1674 = vld [vmem:[#allocation3 + $0x8c] sm:$0xf]
        %v1675 = vld [vmem:[#allocation3 + $0x90] sm:$0xf]
        %v1676 = vld [vmem:[#allocation3 + $0x94] sm:$0xf]
        %v1677 = vld [vmem:[#allocation3 + $0x98] sm:$0xf]
        %v1678 = vld [vmem:[#allocation3 + $0x9c] sm:$0xf]
        %v1679 = vld [vmem:[#allocation3 + $0xa0] sm:$0xf]
        %v1680 = vld [vmem:[#allocation3 + $0xa4] sm:$0xf]
        %v1681 = vld [vmem:[#allocation3 + $0xa8] sm:$0xf]
        %v1682 = vld [vmem:[#allocation3 + $0xac] sm:$0xf]
        %v1683 = vld [vmem:[#allocation3 + $0xb0] sm:$0xf]
        %v1684 = vld [vmem:[#allocation3 + $0xb4] sm:$0xf]
        %v1685 = vld [vmem:[#allocation3 + $0xb8] sm:$0xf]
        %v1686 = vld [vmem:[#allocation3 + $0xbc] sm:$0xf]
        %v1687 = vld [vmem:[#allocation3 + $0xc0] sm:$0xf]
        %v1688 = vld [vmem:[#allocation3 + $0xc4] sm:$0xf]
        %v1689 = vld [vmem:[#allocation3 + $0xc8] sm:$0xf]
        %v1690 = vld [vmem:[#allocation3 + $0xcc] sm:$0xf]
        %v1691 = vld [vmem:[#allocation3 + $0xd0] sm:$0xf]
        %v1692 = vld [vmem:[#allocation3 + $0xd4] sm:$0xf]
        %v1693 = vld [vmem:[#allocation3 + $0xd8] sm:$0xf]
        %v1694 = vld [vmem:[#allocation3 + $0xdc] sm:$0xf]
        %v1695 = vld [vmem:[#allocation3 + $0xe0] sm:$0xf]
        %v1696 = vld [vmem:[#allocation3 + $0xe4] sm:$0xf]
        %v1697 = vld [vmem:[#allocation3 + $0xe8] sm:$0xf]
        %v1698 = vld [vmem:[#allocation3 + $0xec] sm:$0xf]
        %v1699 = vld [vmem:[#allocation3 + $0xf0] sm:$0xf]
        %v1700 = vld [vmem:[#allocation3 + $0xf4] sm:$0xf]
        %v1701 = vld [vmem:[#allocation3 + $0xf8] sm:$0xf]
        %v1702 = vld [vmem:[#allocation3 + $0xfc] sm:$0xf]
        %v1735 = vunpack.c.l.b16 %v1671
        %v1736 = vunpack.c.l.b16 %v1672
        %v1737 = vunpack.c.l.b16 %v1673
        %v1738 = vunpack.c.l.b16 %v1674
        %v1739 = vunpack.c.l.b16 %v1675
        %v1740 = vunpack.c.l.b16 %v1676
        %v1741 = vunpack.c.l.b16 %v1677
        %v1742 = vunpack.c.l.b16 %v1678
        %v1743 = vunpack.c.l.b16 %v1679
        %v1744 = vunpack.c.l.b16 %v1680
        %v1745 = vunpack.c.l.b16 %v1681
        %v1746 = vunpack.c.l.b16 %v1682
        %v1747 = vunpack.c.l.b16 %v1683
        %v1748 = vunpack.c.l.b16 %v1684
        %v1749 = vunpack.c.l.b16 %v1685
        %v1750 = vunpack.c.l.b16 %v1686
        %v1751 = vunpack.c.l.b16 %v1687
        %v1752 = vunpack.c.l.b16 %v1688
        %v1753 = vunpack.c.l.b16 %v1689
        %v1754 = vunpack.c.l.b16 %v1690
        %v1755 = vunpack.c.l.b16 %v1691
        %v1756 = vunpack.c.l.b16 %v1692
        %v1757 = vunpack.c.l.b16 %v1693
        %v1758 = vunpack.c.l.b16 %v1694
        %v1759 = vunpack.c.l.b16 %v1695
        %v1760 = vunpack.c.l.b16 %v1696
        %v1761 = vunpack.c.l.b16 %v1697
        %v1762 = vunpack.c.l.b16 %v1698
        %v1763 = vunpack.c.l.b16 %v1699
        %v1764 = vunpack.c.l.b16 %v1700
        %v1765 = vunpack.c.l.b16 %v1701
        %v1766 = vunpack.c.l.b16 %v1702
        %v1767 = vpack.c.b16 %v1736, %v1735
        %v1768 = vpack.c.b16 %v1738, %v1737
        %v1769 = vpack.c.b16 %v1740, %v1739
        %v1770 = vpack.c.b16 %v1742, %v1741
        %v1771 = vpack.c.b16 %v1744, %v1743
        %v1772 = vpack.c.b16 %v1746, %v1745
        %v1773 = vpack.c.b16 %v1748, %v1747
        %v1774 = vpack.c.b16 %v1750, %v1749
        %v1775 = vpack.c.b16 %v1752, %v1751
        %v1776 = vpack.c.b16 %v1754, %v1753
        %v1777 = vpack.c.b16 %v1756, %v1755
        %v1778 = vpack.c.b16 %v1758, %v1757
        %v1779 = vpack.c.b16 %v1760, %v1759
        %v1780 = vpack.c.b16 %v1762, %v1761
        %v1781 = vpack.c.b16 %v1764, %v1763
        %v1782 = vpack.c.b16 %v1766, %v1765
        %1799 = vmatprep.subr.bf16.mxu0 0
        %1800 = vmatpush1.bf16.msra.mxu0 %v1767
        %1801 = vmatprep.subr.bf16.mxu0 0
        %1802 = vmatpush1.bf16.msra.mxu0 %v1768
        %1803 = vmatprep.subr.bf16.mxu0 0
        %1804 = vmatpush1.bf16.msra.mxu0 %v1769
        %1805 = vmatprep.subr.bf16.mxu0 0
        %1806 = vmatpush1.bf16.msra.mxu0 %v1770
        %1807 = vmatprep.subr.bf16.mxu0 0
        %1808 = vmatpush1.bf16.msra.mxu0 %v1771
        %1809 = vmatprep.subr.bf16.mxu0 0
        %1810 = vmatpush1.bf16.msra.mxu0 %v1772
        %1811 = vmatprep.subr.bf16.mxu0 0
        %1812 = vmatpush1.bf16.msra.mxu0 %v1773
        %1813 = vmatprep.subr.bf16.mxu0 0
        %1814 = vmatpush1.bf16.msra.mxu0 %v1774
        %1815 = vmatprep.subr.bf16.mxu0 0
        %1816 = vmatpush1.bf16.msra.mxu0 %v1775
        %1817 = vmatprep.subr.bf16.mxu0 0
        %1818 = vmatpush1.bf16.msra.mxu0 %v1776
        %1819 = vmatprep.subr.bf16.mxu0 0
        %1820 = vmatpush1.bf16.msra.mxu0 %v1777
        %1821 = vmatprep.subr.bf16.mxu0 0
        %1822 = vmatpush1.bf16.msra.mxu0 %v1778
        %1823 = vmatprep.subr.bf16.mxu0 0
        %1824 = vmatpush1.bf16.msra.mxu0 %v1779
        %1825 = vmatprep.subr.bf16.mxu0 0
        %1826 = vmatpush1.bf16.msra.mxu0 %v1780
        %1827 = vmatprep.subr.bf16.mxu0 0
        %1828 = vmatpush1.bf16.msra.mxu0 %v1781
        %1829 = vmatprep.subr.bf16.mxu0 0
        %1830 = vmatpush1.bf16.msra.mxu0 %v1782
        %1831 = vmatprep.mubr.bf16.mxu0 %v1670
        %1832 = vmatmul.mubr.bf16.gmra.mrb[0].mxu0 %v1669
        %v1833 = vpop.f32.mrb[0].mxu0
        %v1834 = vadd.f32 0.0, %v1833
        %v1835 = vpop.f32.mrb[0].mxu0
        %v1836 = vpop.f32.mrb[0].mxu0
        %v1837 = vadd.f32 0.0, %v1836
        %v1838 = vpop.f32.mrb[0].mxu0
        %1839 = vdwg.mxu0
        %v1872 = vunpack.c.l.b16 %v1554
        %v1873 = vunpack.c.l.b16 %v1555
        %v1874 = vunpack.c.l.b16 %v1556
        %v1875 = vunpack.c.l.b16 %v1557
        %v1876 = vunpack.c.l.b16 %v1558
        %v1877 = vunpack.c.l.b16 %v1559
        %v1878 = vunpack.c.l.b16 %v1560
        %v1879 = vunpack.c.l.b16 %v1561
        %v1880 = vunpack.c.l.b16 %v1562
        %v1881 = vunpack.c.l.b16 %v1563
        %v1882 = vunpack.c.l.b16 %v1564
        %v1883 = vunpack.c.l.b16 %v1565
        %v1884 = vunpack.c.l.b16 %v1566
        %v1885 = vunpack.c.l.b16 %v1567
        %v1886 = vunpack.c.l.b16 %v1568
        %v1887 = vunpack.c.l.b16 %v1569
        %v1888 = vunpack.c.l.b16 %v1570
        %v1889 = vunpack.c.l.b16 %v1571
        %v1890 = vunpack.c.l.b16 %v1572
        %v1891 = vunpack.c.l.b16 %v1573
        %v1892 = vunpack.c.l.b16 %v1574
        %v1893 = vunpack.c.l.b16 %v1575
        %v1894 = vunpack.c.l.b16 %v1576
        %v1895 = vunpack.c.l.b16 %v1577
        %v1896 = vunpack.c.l.b16 %v1578
        %v1897 = vunpack.c.l.b16 %v1579
        %v1898 = vunpack.c.l.b16 %v1580
        %v1899 = vunpack.c.l.b16 %v1581
        %v1900 = vunpack.c.l.b16 %v1582
        %v1901 = vunpack.c.l.b16 %v1583
        %v1902 = vunpack.c.l.b16 %v1584
        %v1903 = vunpack.c.l.b16 %v1585
        %v1904 = vpack.c.b16 %v1873, %v1872
        %v1905 = vpack.c.b16 %v1875, %v1874
        %v1906 = vpack.c.b16 %v1877, %v1876
        %v1907 = vpack.c.b16 %v1879, %v1878
        %v1908 = vpack.c.b16 %v1881, %v1880
        %v1909 = vpack.c.b16 %v1883, %v1882
        %v1910 = vpack.c.b16 %v1885, %v1884
        %v1911 = vpack.c.b16 %v1887, %v1886
        %v1912 = vpack.c.b16 %v1889, %v1888
        %v1913 = vpack.c.b16 %v1891, %v1890
        %v1914 = vpack.c.b16 %v1893, %v1892
        %v1915 = vpack.c.b16 %v1895, %v1894
        %v1916 = vpack.c.b16 %v1897, %v1896
        %v1917 = vpack.c.b16 %v1899, %v1898
        %v1918 = vpack.c.b16 %v1901, %v1900
        %v1919 = vpack.c.b16 %v1903, %v1902
        %1936 = vmatprep.subr.bf16.mxu0 0
        %1937 = vmatpush1.bf16.msra.mxu0 %v1904
        %1938 = vmatprep.subr.bf16.mxu0 0
        %1939 = vmatpush1.bf16.msra.mxu0 %v1905
        %1940 = vmatprep.subr.bf16.mxu0 0
        %1941 = vmatpush1.bf16.msra.mxu0 %v1906
        %1942 = vmatprep.subr.bf16.mxu0 0
        %1943 = vmatpush1.bf16.msra.mxu0 %v1907
        %1944 = vmatprep.subr.bf16.mxu0 0
        %1945 = vmatpush1.bf16.msra.mxu0 %v1908
        %1946 = vmatprep.subr.bf16.mxu0 0
        %1947 = vmatpush1.bf16.msra.mxu0 %v1909
        %1948 = vmatprep.subr.bf16.mxu0 0
        %1949 = vmatpush1.bf16.msra.mxu0 %v1910
        %1950 = vmatprep.subr.bf16.mxu0 0
        %1951 = vmatpush1.bf16.msra.mxu0 %v1911
        %1952 = vmatprep.subr.bf16.mxu0 0
        %1953 = vmatpush1.bf16.msra.mxu0 %v1912
        %1954 = vmatprep.subr.bf16.mxu0 0
        %1955 = vmatpush1.bf16.msra.mxu0 %v1913
        %1956 = vmatprep.subr.bf16.mxu0 0
        %1957 = vmatpush1.bf16.msra.mxu0 %v1914
        %1958 = vmatprep.subr.bf16.mxu0 0
        %1959 = vmatpush1.bf16.msra.mxu0 %v1915
        %1960 = vmatprep.subr.bf16.mxu0 0
        %1961 = vmatpush1.bf16.msra.mxu0 %v1916
        %1962 = vmatprep.subr.bf16.mxu0 0
        %1963 = vmatpush1.bf16.msra.mxu0 %v1917
        %1964 = vmatprep.subr.bf16.mxu0 0
        %1965 = vmatpush1.bf16.msra.mxu0 %v1918
        %1966 = vmatprep.subr.bf16.mxu0 0
        %1967 = vmatpush1.bf16.msra.mxu0 %v1919
        %1968 = vmatprep.mubr.bf16.mxu0 %v1553
        %1969 = vmatmul.mubr.bf16.gmra.mrb[0].mxu0 %v1552
        %v1970 = vpop.f32.mrb[0].mxu0
        %v1971 = vadd.f32 %v1834, %v1970
        %v1972 = vpop.f32.mrb[0].mxu0
        %v1973 = vpop.f32.mrb[0].mxu0
        %v1974 = vadd.f32 %v1837, %v1973
        %v1975 = vpop.f32.mrb[0].mxu0
        %1976 = vdwg.mxu0
        %v1977 = vld [vmem:[%s13 + $0x10] sm:$0xff]
        %v1978 = vld [vmem:[%s13 + $0x50] sm:$0xff]
        %v1979 = vld [vmem:[%s13 + $0x90] sm:$0xff]
        %v1980 = vld [vmem:[%s13 + $0xd0] sm:$0xff]
        %v1981 = vld [vmem:[%s14 + $0x4] sm:$0x3]
        %v1983 = vlaneseq
        %v1984 = vshrl.u32 %v1983, 7
        %v1985 = vsub.s32 0, %v1984
        %v1986 = vrot.slane %v1981, %v1985
        %v1987 = vlaneseq
        %v1988 = vshrl.u32 %v1987, 7
        %v1989 = vsub.s32 1, %v1988
        %v1990 = vrot.slane %v1981, %v1989
        %v1997 = vunpack.c.l.b16 %v1977
        %v1998 = vunpack.c.h.b16 %v1977
        %v1999 = vunpack.c.l.b16 %v1978
        %v2000 = vunpack.c.h.b16 %v1978
        %v2001 = vunpack.c.l.b16 %v1979
        %v2002 = vunpack.c.h.b16 %v1979
        %v2003 = vunpack.c.l.b16 %v1980
        %v2004 = vunpack.c.h.b16 %v1980
        %v2005 = vpack.c.b16 %v1999, %v1997
        %v2006 = vpack.c.b16 %v2000, %v1998
        %v2007 = vpack.c.b16 %v2003, %v2001
        %v2008 = vpack.c.b16 %v2004, %v2002
        %2013 = vmatprep.subr.bf16.mxu0 %v2006
        %2014 = vmatpush1.bf16.msra.mxu0 %v2005
        %2015 = vmatprep.subr.bf16.mxu0 %v2008
        %2016 = vmatpush1.bf16.msra.mxu0 %v2007
        %2017 = vmatprep.subr.bf16.mxu0 0
        %2018 = vmatpush1.bf16.msra.mxu0 0
        %2019 = vmatprep.subr.bf16.mxu0 0
        %2020 = vmatpush1.bf16.msra.mxu0 0
        %2021 = vmatprep.subr.bf16.mxu0 0
        %2022 = vmatpush1.bf16.msra.mxu0 0
        %2023 = vmatprep.subr.bf16.mxu0 0
        %2024 = vmatpush1.bf16.msra.mxu0 0
        %2025 = vmatprep.subr.bf16.mxu0 0
        %2026 = vmatpush1.bf16.msra.mxu0 0
        %2027 = vmatprep.subr.bf16.mxu0 0
        %2028 = vmatpush1.bf16.msra.mxu0 0
        %2029 = vmatprep.subr.bf16.mxu0 0
        %2030 = vmatpush1.bf16.msra.mxu0 0
        %2031 = vmatprep.subr.bf16.mxu0 0
        %2032 = vmatpush1.bf16.msra.mxu0 0
        %2033 = vmatprep.subr.bf16.mxu0 0
        %2034 = vmatpush1.bf16.msra.mxu0 0
        %2035 = vmatprep.subr.bf16.mxu0 0
        %2036 = vmatpush1.bf16.msra.mxu0 0
        %2037 = vmatprep.subr.bf16.mxu0 0
        %2038 = vmatpush1.bf16.msra.mxu0 0
        %2039 = vmatprep.subr.bf16.mxu0 0
        %2040 = vmatpush1.bf16.msra.mxu0 0
        %2041 = vmatprep.subr.bf16.mxu0 0
        %2042 = vmatpush1.bf16.msra.mxu0 0
        %2043 = vmatprep.subr.bf16.mxu0 0
        %2044 = vmatpush1.bf16.msra.mxu0 0
        %2045 = vmatprep.mubr.bf16.mxu0 0
        %2046 = vmatmul.mubr.bf16.gmra.mrb[0].mxu0 %v1503
        %v2047 = vpop.f32.mrb[0].mxu0
        %v2048 = vadd.f32 %v1986, %v2047
        %v2049 = vpop.f32.mrb[0].mxu0
        %v2050 = vadd.f32 %v1990, %v2049
        %v2051 = vpop.f32.mrb[0].mxu0
        %v2052 = vadd.f32 %v1986, %v2051
        %v2053 = vpop.f32.mrb[0].mxu0
        %v2054 = vadd.f32 %v1990, %v2053
        %2055 = vdwg.mxu0
        %v2056 = vmax.f32 %v2048, 0.0
        %v2057 = vmax.f32 %v2050, 0.0
        %v2058 = vmax.f32 %v2052, 0.0
        %v2059 = vmax.f32 %v2054, 0.0
        %v2060 = vpack.c.bf16 %v2058, %v2056
        %v2061 = vpack.c.bf16 %v2059, %v2057
        %v2062 = vld [vmem:[#allocation3 + $0x100] sm:$0xf]
        %v2063 = vld [vmem:[#allocation3 + $0x104] sm:$0xf]
        %v2064 = vld [vmem:[#allocation3 + $0x108] sm:$0xf]
        %v2065 = vld [vmem:[#allocation3 + $0x10c] sm:$0xf]
        %v2066 = vld [vmem:[#allocation3 + $0x110] sm:$0xf]
        %v2067 = vld [vmem:[#allocation3 + $0x114] sm:$0xf]
        %v2068 = vld [vmem:[#allocation3 + $0x118] sm:$0xf]
        %v2069 = vld [vmem:[#allocation3 + $0x11c] sm:$0xf]
        %v2070 = vld [vmem:[#allocation3 + $0x120] sm:$0xf]
        %v2071 = vld [vmem:[#allocation3 + $0x124] sm:$0xf]
        %v2072 = vld [vmem:[#allocation3 + $0x128] sm:$0xf]
        %v2073 = vld [vmem:[#allocation3 + $0x12c] sm:$0xf]
        %v2074 = vld [vmem:[#allocation3 + $0x130] sm:$0xf]
        %v2075 = vld [vmem:[#allocation3 + $0x134] sm:$0xf]
        %v2076 = vld [vmem:[#allocation3 + $0x138] sm:$0xf]
        %v2077 = vld [vmem:[#allocation3 + $0x13c] sm:$0xf]
        %v2078 = vld [vmem:[#allocation3 + $0x140] sm:$0xf]
        %v2079 = vld [vmem:[#allocation3 + $0x144] sm:$0xf]
        %v2080 = vld [vmem:[#allocation3 + $0x148] sm:$0xf]
        %v2081 = vld [vmem:[#allocation3 + $0x14c] sm:$0xf]
        %v2082 = vld [vmem:[#allocation3 + $0x150] sm:$0xf]
        %v2083 = vld [vmem:[#allocation3 + $0x154] sm:$0xf]
        %v2084 = vld [vmem:[#allocation3 + $0x158] sm:$0xf]
        %v2085 = vld [vmem:[#allocation3 + $0x15c] sm:$0xf]
        %v2086 = vld [vmem:[#allocation3 + $0x160] sm:$0xf]
        %v2087 = vld [vmem:[#allocation3 + $0x164] sm:$0xf]
        %v2088 = vld [vmem:[#allocation3 + $0x168] sm:$0xf]
        %v2089 = vld [vmem:[#allocation3 + $0x16c] sm:$0xf]
        %v2090 = vld [vmem:[#allocation3 + $0x170] sm:$0xf]
        %v2091 = vld [vmem:[#allocation3 + $0x174] sm:$0xf]
        %v2092 = vld [vmem:[#allocation3 + $0x178] sm:$0xf]
        %v2093 = vld [vmem:[#allocation3 + $0x17c] sm:$0xf]
        %v2126 = vunpack.c.l.b16 %v2062
        %v2127 = vunpack.c.l.b16 %v2063
        %v2128 = vunpack.c.l.b16 %v2064
        %v2129 = vunpack.c.l.b16 %v2065
        %v2130 = vunpack.c.l.b16 %v2066
        %v2131 = vunpack.c.l.b16 %v2067
        %v2132 = vunpack.c.l.b16 %v2068
        %v2133 = vunpack.c.l.b16 %v2069
        %v2134 = vunpack.c.l.b16 %v2070
        %v2135 = vunpack.c.l.b16 %v2071
        %v2136 = vunpack.c.l.b16 %v2072
        %v2137 = vunpack.c.l.b16 %v2073
        %v2138 = vunpack.c.l.b16 %v2074
        %v2139 = vunpack.c.l.b16 %v2075
        %v2140 = vunpack.c.l.b16 %v2076
        %v2141 = vunpack.c.l.b16 %v2077
        %v2142 = vunpack.c.l.b16 %v2078
        %v2143 = vunpack.c.l.b16 %v2079
        %v2144 = vunpack.c.l.b16 %v2080
        %v2145 = vunpack.c.l.b16 %v2081
        %v2146 = vunpack.c.l.b16 %v2082
        %v2147 = vunpack.c.l.b16 %v2083
        %v2148 = vunpack.c.l.b16 %v2084
        %v2149 = vunpack.c.l.b16 %v2085
        %v2150 = vunpack.c.l.b16 %v2086
        %v2151 = vunpack.c.l.b16 %v2087
        %v2152 = vunpack.c.l.b16 %v2088
        %v2153 = vunpack.c.l.b16 %v2089
        %v2154 = vunpack.c.l.b16 %v2090
        %v2155 = vunpack.c.l.b16 %v2091
        %v2156 = vunpack.c.l.b16 %v2092
        %v2157 = vunpack.c.l.b16 %v2093
        %v2158 = vpack.c.b16 %v2127, %v2126
        %v2159 = vpack.c.b16 %v2129, %v2128
        %v2160 = vpack.c.b16 %v2131, %v2130
        %v2161 = vpack.c.b16 %v2133, %v2132
        %v2162 = vpack.c.b16 %v2135, %v2134
        %v2163 = vpack.c.b16 %v2137, %v2136
        %v2164 = vpack.c.b16 %v2139, %v2138
        %v2165 = vpack.c.b16 %v2141, %v2140
        %v2166 = vpack.c.b16 %v2143, %v2142
        %v2167 = vpack.c.b16 %v2145, %v2144
        %v2168 = vpack.c.b16 %v2147, %v2146
        %v2169 = vpack.c.b16 %v2149, %v2148
        %v2170 = vpack.c.b16 %v2151, %v2150
        %v2171 = vpack.c.b16 %v2153, %v2152
        %v2172 = vpack.c.b16 %v2155, %v2154
        %v2173 = vpack.c.b16 %v2157, %v2156
        %2190 = vmatprep.subr.bf16.mxu0 0
        %2191 = vmatpush1.bf16.msra.mxu0 %v2158
        %2192 = vmatprep.subr.bf16.mxu0 0
        %2193 = vmatpush1.bf16.msra.mxu0 %v2159
        %2194 = vmatprep.subr.bf16.mxu0 0
        %2195 = vmatpush1.bf16.msra.mxu0 %v2160
        %2196 = vmatprep.subr.bf16.mxu0 0
        %2197 = vmatpush1.bf16.msra.mxu0 %v2161
        %2198 = vmatprep.subr.bf16.mxu0 0
        %2199 = vmatpush1.bf16.msra.mxu0 %v2162
        %2200 = vmatprep.subr.bf16.mxu0 0
        %2201 = vmatpush1.bf16.msra.mxu0 %v2163
        %2202 = vmatprep.subr.bf16.mxu0 0
        %2203 = vmatpush1.bf16.msra.mxu0 %v2164
        %2204 = vmatprep.subr.bf16.mxu0 0
        %2205 = vmatpush1.bf16.msra.mxu0 %v2165
        %2206 = vmatprep.subr.bf16.mxu0 0
        %2207 = vmatpush1.bf16.msra.mxu0 %v2166
        %2208 = vmatprep.subr.bf16.mxu0 0
        %2209 = vmatpush1.bf16.msra.mxu0 %v2167
        %2210 = vmatprep.subr.bf16.mxu0 0
        %2211 = vmatpush1.bf16.msra.mxu0 %v2168
        %2212 = vmatprep.subr.bf16.mxu0 0
        %2213 = vmatpush1.bf16.msra.mxu0 %v2169
        %2214 = vmatprep.subr.bf16.mxu0 0
        %2215 = vmatpush1.bf16.msra.mxu0 %v2170
        %2216 = vmatprep.subr.bf16.mxu0 0
        %2217 = vmatpush1.bf16.msra.mxu0 %v2171
        %2218 = vmatprep.subr.bf16.mxu0 0
        %2219 = vmatpush1.bf16.msra.mxu0 %v2172
        %2220 = vmatprep.subr.bf16.mxu0 0
        %2221 = vmatpush1.bf16.msra.mxu0 %v2173
        %2222 = vmatprep.mubr.bf16.mxu0 %v2061
        %2223 = vmatmul.mubr.bf16.gmra.mrb[0].mxu0 %v2060
        %v2224 = vpop.f32.mrb[0].mxu0
        %v2225 = vadd.f32 0.0, %v2224
        %v2226 = vpop.f32.mrb[0].mxu0
        %v2227 = vpop.f32.mrb[0].mxu0
        %v2228 = vadd.f32 0.0, %v2227
        %v2229 = vpop.f32.mrb[0].mxu0
        %2230 = vdwg.mxu0
        %v2231 = vadd.f32 %v1971, %v2225
        %v2232 = vadd.f32 %v1974, %v2228
        %v2233 = vld [vmem:[%s13 + $0x18] sm:$0xff]
        %v2234 = vld [vmem:[%s13 + $0x58] sm:$0xff]
        %v2235 = vld [vmem:[%s13 + $0x98] sm:$0xff]
        %v2236 = vld [vmem:[%s13 + $0xd8] sm:$0xff]
        %v2237 = vld [vmem:[%s14 + $0x6] sm:$0x3]
        %v2239 = vlaneseq
        %v2240 = vshrl.u32 %v2239, 7
        %v2241 = vsub.s32 0, %v2240
        %v2242 = vrot.slane %v2237, %v2241
        %v2243 = vlaneseq
        %v2244 = vshrl.u32 %v2243, 7
        %v2245 = vsub.s32 1, %v2244
        %v2246 = vrot.slane %v2237, %v2245
        %v2253 = vunpack.c.l.b16 %v2233
        %v2254 = vunpack.c.h.b16 %v2233
        %v2255 = vunpack.c.l.b16 %v2234
        %v2256 = vunpack.c.h.b16 %v2234
        %v2257 = vunpack.c.l.b16 %v2235
        %v2258 = vunpack.c.h.b16 %v2235
        %v2259 = vunpack.c.l.b16 %v2236
        %v2260 = vunpack.c.h.b16 %v2236
        %v2261 = vpack.c.b16 %v2255, %v2253
        %v2262 = vpack.c.b16 %v2256, %v2254
        %v2263 = vpack.c.b16 %v2259, %v2257
        %v2264 = vpack.c.b16 %v2260, %v2258
        %2269 = vmatprep.subr.bf16.mxu0 %v2262
        %2270 = vmatpush1.bf16.msra.mxu0 %v2261
        %2271 = vmatprep.subr.bf16.mxu0 %v2264
        %2272 = vmatpush1.bf16.msra.mxu0 %v2263
        %2273 = vmatprep.subr.bf16.mxu0 0
        %2274 = vmatpush1.bf16.msra.mxu0 0
        %2275 = vmatprep.subr.bf16.mxu0 0
        %2276 = vmatpush1.bf16.msra.mxu0 0
        %2277 = vmatprep.subr.bf16.mxu0 0
        %2278 = vmatpush1.bf16.msra.mxu0 0
        %2279 = vmatprep.subr.bf16.mxu0 0
        %2280 = vmatpush1.bf16.msra.mxu0 0
        %2281 = vmatprep.subr.bf16.mxu0 0
        %2282 = vmatpush1.bf16.msra.mxu0 0
        %2283 = vmatprep.subr.bf16.mxu0 0
        %2284 = vmatpush1.bf16.msra.mxu0 0
        %2285 = vmatprep.subr.bf16.mxu0 0
        %2286 = vmatpush1.bf16.msra.mxu0 0
        %2287 = vmatprep.subr.bf16.mxu0 0
        %2288 = vmatpush1.bf16.msra.mxu0 0
        %2289 = vmatprep.subr.bf16.mxu0 0
        %2290 = vmatpush1.bf16.msra.mxu0 0
        %2291 = vmatprep.subr.bf16.mxu0 0
        %2292 = vmatpush1.bf16.msra.mxu0 0
        %2293 = vmatprep.subr.bf16.mxu0 0
        %2294 = vmatpush1.bf16.msra.mxu0 0
        %2295 = vmatprep.subr.bf16.mxu0 0
        %2296 = vmatpush1.bf16.msra.mxu0 0
        %2297 = vmatprep.subr.bf16.mxu0 0
        %2298 = vmatpush1.bf16.msra.mxu0 0
        %2299 = vmatprep.subr.bf16.mxu0 0
        %2300 = vmatpush1.bf16.msra.mxu0 0
        %2301 = vmatprep.mubr.bf16.mxu0 0
        %2302 = vmatmul.mubr.bf16.gmra.mrb[0].mxu0 %v1503
        %v2303 = vpop.f32.mrb[0].mxu0
        %v2304 = vadd.f32 %v2242, %v2303
        %v2305 = vpop.f32.mrb[0].mxu0
        %v2306 = vadd.f32 %v2246, %v2305
        %v2307 = vpop.f32.mrb[0].mxu0
        %v2308 = vadd.f32 %v2242, %v2307
        %v2309 = vpop.f32.mrb[0].mxu0
        %v2310 = vadd.f32 %v2246, %v2309
        %2311 = vdwg.mxu0
        %v2312 = vmax.f32 %v2304, 0.0
        %v2313 = vmax.f32 %v2306, 0.0
        %v2314 = vmax.f32 %v2308, 0.0
        %v2315 = vmax.f32 %v2310, 0.0
        %v2316 = vpack.c.bf16 %v2314, %v2312
        %v2317 = vpack.c.bf16 %v2315, %v2313
        %v2318 = vld [vmem:[#allocation3 + $0x180] sm:$0xf]
        %v2319 = vld [vmem:[#allocation3 + $0x184] sm:$0xf]
        %v2320 = vld [vmem:[#allocation3 + $0x188] sm:$0xf]
        %v2321 = vld [vmem:[#allocation3 + $0x18c] sm:$0xf]
        %v2322 = vld [vmem:[#allocation3 + $0x190] sm:$0xf]
        %v2323 = vld [vmem:[#allocation3 + $0x194] sm:$0xf]
        %v2324 = vld [vmem:[#allocation3 + $0x198] sm:$0xf]
        %v2325 = vld [vmem:[#allocation3 + $0x19c] sm:$0xf]
        %v2326 = vld [vmem:[#allocation3 + $0x1a0] sm:$0xf]
        %v2327 = vld [vmem:[#allocation3 + $0x1a4] sm:$0xf]
        %v2328 = vld [vmem:[#allocation3 + $0x1a8] sm:$0xf]
        %v2329 = vld [vmem:[#allocation3 + $0x1ac] sm:$0xf]
        %v2330 = vld [vmem:[#allocation3 + $0x1b0] sm:$0xf]
        %v2331 = vld [vmem:[#allocation3 + $0x1b4] sm:$0xf]
        %v2332 = vld [vmem:[#allocation3 + $0x1b8] sm:$0xf]
        %v2333 = vld [vmem:[#allocation3 + $0x1bc] sm:$0xf]
        %v2334 = vld [vmem:[#allocation3 + $0x1c0] sm:$0xf]
        %v2335 = vld [vmem:[#allocation3 + $0x1c4] sm:$0xf]
        %v2336 = vld [vmem:[#allocation3 + $0x1c8] sm:$0xf]
        %v2337 = vld [vmem:[#allocation3 + $0x1cc] sm:$0xf]
        %v2338 = vld [vmem:[#allocation3 + $0x1d0] sm:$0xf]
        %v2339 = vld [vmem:[#allocation3 + $0x1d4] sm:$0xf]
        %v2340 = vld [vmem:[#allocation3 + $0x1d8] sm:$0xf]
        %v2341 = vld [vmem:[#allocation3 + $0x1dc] sm:$0xf]
        %v2342 = vld [vmem:[#allocation3 + $0x1e0] sm:$0xf]
        %v2343 = vld [vmem:[#allocation3 + $0x1e4] sm:$0xf]
        %v2344 = vld [vmem:[#allocation3 + $0x1e8] sm:$0xf]
        %v2345 = vld [vmem:[#allocation3 + $0x1ec] sm:$0xf]
        %v2346 = vld [vmem:[#allocation3 + $0x1f0] sm:$0xf]
        %v2347 = vld [vmem:[#allocation3 + $0x1f4] sm:$0xf]
        %v2348 = vld [vmem:[#allocation3 + $0x1f8] sm:$0xf]
        %v2349 = vld [vmem:[#allocation3 + $0x1fc] sm:$0xf]
        %v2382 = vunpack.c.l.b16 %v2318
        %v2383 = vunpack.c.l.b16 %v2319
        %v2384 = vunpack.c.l.b16 %v2320
        %v2385 = vunpack.c.l.b16 %v2321
        %v2386 = vunpack.c.l.b16 %v2322
        %v2387 = vunpack.c.l.b16 %v2323
        %v2388 = vunpack.c.l.b16 %v2324
        %v2389 = vunpack.c.l.b16 %v2325
        %v2390 = vunpack.c.l.b16 %v2326
        %v2391 = vunpack.c.l.b16 %v2327
        %v2392 = vunpack.c.l.b16 %v2328
        %v2393 = vunpack.c.l.b16 %v2329
        %v2394 = vunpack.c.l.b16 %v2330
        %v2395 = vunpack.c.l.b16 %v2331
        %v2396 = vunpack.c.l.b16 %v2332
        %v2397 = vunpack.c.l.b16 %v2333
        %v2398 = vunpack.c.l.b16 %v2334
        %v2399 = vunpack.c.l.b16 %v2335
        %v2400 = vunpack.c.l.b16 %v2336
        %v2401 = vunpack.c.l.b16 %v2337
        %v2402 = vunpack.c.l.b16 %v2338
        %v2403 = vunpack.c.l.b16 %v2339
        %v2404 = vunpack.c.l.b16 %v2340
        %v2405 = vunpack.c.l.b16 %v2341
        %v2406 = vunpack.c.l.b16 %v2342
        %v2407 = vunpack.c.l.b16 %v2343
        %v2408 = vunpack.c.l.b16 %v2344
        %v2409 = vunpack.c.l.b16 %v2345
        %v2410 = vunpack.c.l.b16 %v2346
        %v2411 = vunpack.c.l.b16 %v2347
        %v2412 = vunpack.c.l.b16 %v2348
        %v2413 = vunpack.c.l.b16 %v2349
        %v2414 = vpack.c.b16 %v2383, %v2382
        %v2415 = vpack.c.b16 %v2385, %v2384
        %v2416 = vpack.c.b16 %v2387, %v2386
        %v2417 = vpack.c.b16 %v2389, %v2388
        %v2418 = vpack.c.b16 %v2391, %v2390
        %v2419 = vpack.c.b16 %v2393, %v2392
        %v2420 = vpack.c.b16 %v2395, %v2394
        %v2421 = vpack.c.b16 %v2397, %v2396
        %v2422 = vpack.c.b16 %v2399, %v2398
        %v2423 = vpack.c.b16 %v2401, %v2400
        %v2424 = vpack.c.b16 %v2403, %v2402
        %v2425 = vpack.c.b16 %v2405, %v2404
        %v2426 = vpack.c.b16 %v2407, %v2406
        %v2427 = vpack.c.b16 %v2409, %v2408
        %v2428 = vpack.c.b16 %v2411, %v2410
        %v2429 = vpack.c.b16 %v2413, %v2412
        %2446 = vmatprep.subr.bf16.mxu0 0
        %2447 = vmatpush1.bf16.msra.mxu0 %v2414
        %2448 = vmatprep.subr.bf16.mxu0 0
        %2449 = vmatpush1.bf16.msra.mxu0 %v2415
        %2450 = vmatprep.subr.bf16.mxu0 0
        %2451 = vmatpush1.bf16.msra.mxu0 %v2416
        %2452 = vmatprep.subr.bf16.mxu0 0
        %2453 = vmatpush1.bf16.msra.mxu0 %v2417
        %2454 = vmatprep.subr.bf16.mxu0 0
        %2455 = vmatpush1.bf16.msra.mxu0 %v2418
        %2456 = vmatprep.subr.bf16.mxu0 0
        %2457 = vmatpush1.bf16.msra.mxu0 %v2419
        %2458 = vmatprep.subr.bf16.mxu0 0
        %2459 = vmatpush1.bf16.msra.mxu0 %v2420
        %2460 = vmatprep.subr.bf16.mxu0 0
        %2461 = vmatpush1.bf16.msra.mxu0 %v2421
        %2462 = vmatprep.subr.bf16.mxu0 0
        %2463 = vmatpush1.bf16.msra.mxu0 %v2422
        %2464 = vmatprep.subr.bf16.mxu0 0
        %2465 = vmatpush1.bf16.msra.mxu0 %v2423
        %2466 = vmatprep.subr.bf16.mxu0 0
        %2467 = vmatpush1.bf16.msra.mxu0 %v2424
        %2468 = vmatprep.subr.bf16.mxu0 0
        %2469 = vmatpush1.bf16.msra.mxu0 %v2425
        %2470 = vmatprep.subr.bf16.mxu0 0
        %2471 = vmatpush1.bf16.msra.mxu0 %v2426
        %2472 = vmatprep.subr.bf16.mxu0 0
        %2473 = vmatpush1.bf16.msra.mxu0 %v2427
        %2474 = vmatprep.subr.bf16.mxu0 0
        %2475 = vmatpush1.bf16.msra.mxu0 %v2428
        %2476 = vmatprep.subr.bf16.mxu0 0
        %2477 = vmatpush1.bf16.msra.mxu0 %v2429
        %2478 = vmatprep.mubr.bf16.mxu0 %v2317
        %2479 = vmatmul.mubr.bf16.gmra.mrb[0].mxu0 %v2316
        %v2480 = vpop.f32.mrb[0].mxu0
        %v2481 = vadd.f32 0.0, %v2480
        %v2482 = vpop.f32.mrb[0].mxu0
        %v2483 = vpop.f32.mrb[0].mxu0
        %v2484 = vadd.f32 0.0, %v2483
        %v2485 = vpop.f32.mrb[0].mxu0
        %2486 = vdwg.mxu0
        %v2487 = vadd.f32 %v2231, %v2481
        %v2488 = vadd.f32 %v2232, %v2484
        %v2489 = vld [vmem:[%s13 + $0x20] sm:$0xff]
        %v2490 = vld [vmem:[%s13 + $0x60] sm:$0xff]
        %v2491 = vld [vmem:[%s13 + $0xa0] sm:$0xff]
        %v2492 = vld [vmem:[%s13 + $0xe0] sm:$0xff]
        %v2493 = vld [vmem:[%s14 + $0x8] sm:$0x3]
        %v2495 = vlaneseq
        %v2496 = vshrl.u32 %v2495, 7
        %v2497 = vsub.s32 0, %v2496
        %v2498 = vrot.slane %v2493, %v2497
        %v2499 = vlaneseq
        %v2500 = vshrl.u32 %v2499, 7
        %v2501 = vsub.s32 1, %v2500
        %v2502 = vrot.slane %v2493, %v2501
        %v2509 = vunpack.c.l.b16 %v2489
        %v2510 = vunpack.c.h.b16 %v2489
        %v2511 = vunpack.c.l.b16 %v2490
        %v2512 = vunpack.c.h.b16 %v2490
        %v2513 = vunpack.c.l.b16 %v2491
        %v2514 = vunpack.c.h.b16 %v2491
        %v2515 = vunpack.c.l.b16 %v2492
        %v2516 = vunpack.c.h.b16 %v2492
        %v2517 = vpack.c.b16 %v2511, %v2509
        %v2518 = vpack.c.b16 %v2512, %v2510
        %v2519 = vpack.c.b16 %v2515, %v2513
        %v2520 = vpack.c.b16 %v2516, %v2514
        %2525 = vmatprep.subr.bf16.mxu0 %v2518
        %2526 = vmatpush1.bf16.msra.mxu0 %v2517
        %2527 = vmatprep.subr.bf16.mxu0 %v2520
        %2528 = vmatpush1.bf16.msra.mxu0 %v2519
        %2529 = vmatprep.subr.bf16.mxu0 0
        %2530 = vmatpush1.bf16.msra.mxu0 0
        %2531 = vmatprep.subr.bf16.mxu0 0
        %2532 = vmatpush1.bf16.msra.mxu0 0
        %2533 = vmatprep.subr.bf16.mxu0 0
        %2534 = vmatpush1.bf16.msra.mxu0 0
        %2535 = vmatprep.subr.bf16.mxu0 0
        %2536 = vmatpush1.bf16.msra.mxu0 0
        %2537 = vmatprep.subr.bf16.mxu0 0
        %2538 = vmatpush1.bf16.msra.mxu0 0
        %2539 = vmatprep.subr.bf16.mxu0 0
        %2540 = vmatpush1.bf16.msra.mxu0 0
        %2541 = vmatprep.subr.bf16.mxu0 0
        %2542 = vmatpush1.bf16.msra.mxu0 0
        %2543 = vmatprep.subr.bf16.mxu0 0
        %2544 = vmatpush1.bf16.msra.mxu0 0
        %2545 = vmatprep.subr.bf16.mxu0 0
        %2546 = vmatpush1.bf16.msra.mxu0 0
        %2547 = vmatprep.subr.bf16.mxu0 0
        %2548 = vmatpush1.bf16.msra.mxu0 0
        %2549 = vmatprep.subr.bf16.mxu0 0
        %2550 = vmatpush1.bf16.msra.mxu0 0
        %2551 = vmatprep.subr.bf16.mxu0 0
        %2552 = vmatpush1.bf16.msra.mxu0 0
        %2553 = vmatprep.subr.bf16.mxu0 0
        %2554 = vmatpush1.bf16.msra.mxu0 0
        %2555 = vmatprep.subr.bf16.mxu0 0
        %2556 = vmatpush1.bf16.msra.mxu0 0
        %2557 = vmatprep.mubr.bf16.mxu0 0
        %2558 = vmatmul.mubr.bf16.gmra.mrb[0].mxu0 %v1503
        %v2559 = vpop.f32.mrb[0].mxu0
        %v2560 = vadd.f32 %v2498, %v2559
        %v2561 = vpop.f32.mrb[0].mxu0
        %v2562 = vadd.f32 %v2502, %v2561
        %v2563 = vpop.f32.mrb[0].mxu0
        %v2564 = vadd.f32 %v2498, %v2563
        %v2565 = vpop.f32.mrb[0].mxu0
        %v2566 = vadd.f32 %v2502, %v2565
        %2567 = vdwg.mxu0
        %v2568 = vmax.f32 %v2560, 0.0
        %v2569 = vmax.f32 %v2562, 0.0
        %v2570 = vmax.f32 %v2564, 0.0
        %v2571 = vmax.f32 %v2566, 0.0
        %v2572 = vpack.c.bf16 %v2570, %v2568
        %v2573 = vpack.c.bf16 %v2571, %v2569
        %v2574 = vld [vmem:[#allocation3 + $0x200] sm:$0xf]
        %v2575 = vld [vmem:[#allocation3 + $0x204] sm:$0xf]
        %v2576 = vld [vmem:[#allocation3 + $0x208] sm:$0xf]
        %v2577 = vld [vmem:[#allocation3 + $0x20c] sm:$0xf]
        %v2578 = vld [vmem:[#allocation3 + $0x210] sm:$0xf]
        %v2579 = vld [vmem:[#allocation3 + $0x214] sm:$0xf]
        %v2580 = vld [vmem:[#allocation3 + $0x218] sm:$0xf]
        %v2581 = vld [vmem:[#allocation3 + $0x21c] sm:$0xf]
        %v2582 = vld [vmem:[#allocation3 + $0x220] sm:$0xf]
        %v2583 = vld [vmem:[#allocation3 + $0x224] sm:$0xf]
        %v2584 = vld [vmem:[#allocation3 + $0x228] sm:$0xf]
        %v2585 = vld [vmem:[#allocation3 + $0x22c] sm:$0xf]
        %v2586 = vld [vmem:[#allocation3 + $0x230] sm:$0xf]
        %v2587 = vld [vmem:[#allocation3 + $0x234] sm:$0xf]
        %v2588 = vld [vmem:[#allocation3 + $0x238] sm:$0xf]
        %v2589 = vld [vmem:[#allocation3 + $0x23c] sm:$0xf]
        %v2590 = vld [vmem:[#allocation3 + $0x240] sm:$0xf]
        %v2591 = vld [vmem:[#allocation3 + $0x244] sm:$0xf]
        %v2592 = vld [vmem:[#allocation3 + $0x248] sm:$0xf]
        %v2593 = vld [vmem:[#allocation3 + $0x24c] sm:$0xf]
        %v2594 = vld [vmem:[#allocation3 + $0x250] sm:$0xf]
        %v2595 = vld [vmem:[#allocation3 + $0x254] sm:$0xf]
        %v2596 = vld [vmem:[#allocation3 + $0x258] sm:$0xf]
        %v2597 = vld [vmem:[#allocation3 + $0x25c] sm:$0xf]
        %v2598 = vld [vmem:[#allocation3 + $0x260] sm:$0xf]
        %v2599 = vld [vmem:[#allocation3 + $0x264] sm:$0xf]
        %v2600 = vld [vmem:[#allocation3 + $0x268] sm:$0xf]
        %v2601 = vld [vmem:[#allocation3 + $0x26c] sm:$0xf]
        %v2602 = vld [vmem:[#allocation3 + $0x270] sm:$0xf]
        %v2603 = vld [vmem:[#allocation3 + $0x274] sm:$0xf]
        %v2604 = vld [vmem:[#allocation3 + $0x278] sm:$0xf]
        %v2605 = vld [vmem:[#allocation3 + $0x27c] sm:$0xf]
        %v2638 = vunpack.c.l.b16 %v2574
        %v2639 = vunpack.c.l.b16 %v2575
        %v2640 = vunpack.c.l.b16 %v2576
        %v2641 = vunpack.c.l.b16 %v2577
        %v2642 = vunpack.c.l.b16 %v2578
        %v2643 = vunpack.c.l.b16 %v2579
        %v2644 = vunpack.c.l.b16 %v2580
        %v2645 = vunpack.c.l.b16 %v2581
        %v2646 = vunpack.c.l.b16 %v2582
        %v2647 = vunpack.c.l.b16 %v2583
        %v2648 = vunpack.c.l.b16 %v2584
        %v2649 = vunpack.c.l.b16 %v2585
        %v2650 = vunpack.c.l.b16 %v2586
        %v2651 = vunpack.c.l.b16 %v2587
        %v2652 = vunpack.c.l.b16 %v2588
        %v2653 = vunpack.c.l.b16 %v2589
        %v2654 = vunpack.c.l.b16 %v2590
        %v2655 = vunpack.c.l.b16 %v2591
        %v2656 = vunpack.c.l.b16 %v2592
        %v2657 = vunpack.c.l.b16 %v2593
        %v2658 = vunpack.c.l.b16 %v2594
        %v2659 = vunpack.c.l.b16 %v2595
        %v2660 = vunpack.c.l.b16 %v2596
        %v2661 = vunpack.c.l.b16 %v2597
        %v2662 = vunpack.c.l.b16 %v2598
        %v2663 = vunpack.c.l.b16 %v2599
        %v2664 = vunpack.c.l.b16 %v2600
        %v2665 = vunpack.c.l.b16 %v2601
        %v2666 = vunpack.c.l.b16 %v2602
        %v2667 = vunpack.c.l.b16 %v2603
        %v2668 = vunpack.c.l.b16 %v2604
        %v2669 = vunpack.c.l.b16 %v2605
        %v2670 = vpack.c.b16 %v2639, %v2638
        %v2671 = vpack.c.b16 %v2641, %v2640
        %v2672 = vpack.c.b16 %v2643, %v2642
        %v2673 = vpack.c.b16 %v2645, %v2644
        %v2674 = vpack.c.b16 %v2647, %v2646
        %v2675 = vpack.c.b16 %v2649, %v2648
        %v2676 = vpack.c.b16 %v2651, %v2650
        %v2677 = vpack.c.b16 %v2653, %v2652
        %v2678 = vpack.c.b16 %v2655, %v2654
        %v2679 = vpack.c.b16 %v2657, %v2656
        %v2680 = vpack.c.b16 %v2659, %v2658
        %v2681 = vpack.c.b16 %v2661, %v2660
        %v2682 = vpack.c.b16 %v2663, %v2662
        %v2683 = vpack.c.b16 %v2665, %v2664
        %v2684 = vpack.c.b16 %v2667, %v2666
        %v2685 = vpack.c.b16 %v2669, %v2668
        %2702 = vmatprep.subr.bf16.mxu0 0
        %2703 = vmatpush1.bf16.msra.mxu0 %v2670
        %2704 = vmatprep.subr.bf16.mxu0 0
        %2705 = vmatpush1.bf16.msra.mxu0 %v2671
        %2706 = vmatprep.subr.bf16.mxu0 0
        %2707 = vmatpush1.bf16.msra.mxu0 %v2672
        %2708 = vmatprep.subr.bf16.mxu0 0
        %2709 = vmatpush1.bf16.msra.mxu0 %v2673
        %2710 = vmatprep.subr.bf16.mxu0 0
        %2711 = vmatpush1.bf16.msra.mxu0 %v2674
        %2712 = vmatprep.subr.bf16.mxu0 0
        %2713 = vmatpush1.bf16.msra.mxu0 %v2675
        %2714 = vmatprep.subr.bf16.mxu0 0
        %2715 = vmatpush1.bf16.msra.mxu0 %v2676
        %2716 = vmatprep.subr.bf16.mxu0 0
        %2717 = vmatpush1.bf16.msra.mxu0 %v2677
        %2718 = vmatprep.subr.bf16.mxu0 0
        %2719 = vmatpush1.bf16.msra.mxu0 %v2678
        %2720 = vmatprep.subr.bf16.mxu0 0
        %2721 = vmatpush1.bf16.msra.mxu0 %v2679
        %2722 = vmatprep.subr.bf16.mxu0 0
        %2723 = vmatpush1.bf16.msra.mxu0 %v2680
        %2724 = vmatprep.subr.bf16.mxu0 0
        %2725 = vmatpush1.bf16.msra.mxu0 %v2681
        %2726 = vmatprep.subr.bf16.mxu0 0
        %2727 = vmatpush1.bf16.msra.mxu0 %v2682
        %2728 = vmatprep.subr.bf16.mxu0 0
        %2729 = vmatpush1.bf16.msra.mxu0 %v2683
        %2730 = vmatprep.subr.bf16.mxu0 0
        %2731 = vmatpush1.bf16.msra.mxu0 %v2684
        %2732 = vmatprep.subr.bf16.mxu0 0
        %2733 = vmatpush1.bf16.msra.mxu0 %v2685
        %2734 = vmatprep.mubr.bf16.mxu0 %v2573
        %2735 = vmatmul.mubr.bf16.gmra.mrb[0].mxu0 %v2572
        %v2736 = vpop.f32.mrb[0].mxu0
        %v2737 = vadd.f32 0.0, %v2736
        %v2738 = vpop.f32.mrb[0].mxu0
        %v2739 = vpop.f32.mrb[0].mxu0
        %v2740 = vadd.f32 0.0, %v2739
        %v2741 = vpop.f32.mrb[0].mxu0
        %2742 = vdwg.mxu0
        %v2743 = vadd.f32 %v2487, %v2737
        %v2744 = vadd.f32 %v2488, %v2740
        %v2745 = vld [vmem:[%s13 + $0x28] sm:$0xff]
        %v2746 = vld [vmem:[%s13 + $0x68] sm:$0xff]
        %v2747 = vld [vmem:[%s13 + $0xa8] sm:$0xff]
        %v2748 = vld [vmem:[%s13 + $0xe8] sm:$0xff]
        %v2749 = vld [vmem:[%s14 + $0xa] sm:$0x3]
        %v2751 = vlaneseq
        %v2752 = vshrl.u32 %v2751, 7
        %v2753 = vsub.s32 0, %v2752
        %v2754 = vrot.slane %v2749, %v2753
        %v2755 = vlaneseq
        %v2756 = vshrl.u32 %v2755, 7
        %v2757 = vsub.s32 1, %v2756
        %v2758 = vrot.slane %v2749, %v2757
        %v2765 = vunpack.c.l.b16 %v2745
        %v2766 = vunpack.c.h.b16 %v2745
        %v2767 = vunpack.c.l.b16 %v2746
        %v2768 = vunpack.c.h.b16 %v2746
        %v2769 = vunpack.c.l.b16 %v2747
        %v2770 = vunpack.c.h.b16 %v2747
        %v2771 = vunpack.c.l.b16 %v2748
        %v2772 = vunpack.c.h.b16 %v2748
        %v2773 = vpack.c.b16 %v2767, %v2765
        %v2774 = vpack.c.b16 %v2768, %v2766
        %v2775 = vpack.c.b16 %v2771, %v2769
        %v2776 = vpack.c.b16 %v2772, %v2770
        %2781 = vmatprep.subr.bf16.mxu0 %v2774
        %2782 = vmatpush1.bf16.msra.mxu0 %v2773
        %2783 = vmatprep.subr.bf16.mxu0 %v2776
        %2784 = vmatpush1.bf16.msra.mxu0 %v2775
        %2785 = vmatprep.subr.bf16.mxu0 0
        %2786 = vmatpush1.bf16.msra.mxu0 0
        %2787 = vmatprep.subr.bf16.mxu0 0
        %2788 = vmatpush1.bf16.msra.mxu0 0
        %2789 = vmatprep.subr.bf16.mxu0 0
        %2790 = vmatpush1.bf16.msra.mxu0 0
        %2791 = vmatprep.subr.bf16.mxu0 0
        %2792 = vmatpush1.bf16.msra.mxu0 0
        %2793 = vmatprep.subr.bf16.mxu0 0
        %2794 = vmatpush1.bf16.msra.mxu0 0
        %2795 = vmatprep.subr.bf16.mxu0 0
        %2796 = vmatpush1.bf16.msra.mxu0 0
        %2797 = vmatprep.subr.bf16.mxu0 0
        %2798 = vmatpush1.bf16.msra.mxu0 0
        %2799 = vmatprep.subr.bf16.mxu0 0
        %2800 = vmatpush1.bf16.msra.mxu0 0
        %2801 = vmatprep.subr.bf16.mxu0 0
        %2802 = vmatpush1.bf16.msra.mxu0 0
        %2803 = vmatprep.subr.bf16.mxu0 0
        %2804 = vmatpush1.bf16.msra.mxu0 0
        %2805 = vmatprep.subr.bf16.mxu0 0
        %2806 = vmatpush1.bf16.msra.mxu0 0
        %2807 = vmatprep.subr.bf16.mxu0 0
        %2808 = vmatpush1.bf16.msra.mxu0 0
        %2809 = vmatprep.subr.bf16.mxu0 0
        %2810 = vmatpush1.bf16.msra.mxu0 0
        %2811 = vmatprep.subr.bf16.mxu0 0
        %2812 = vmatpush1.bf16.msra.mxu0 0
        %2813 = vmatprep.mubr.bf16.mxu0 0
        %2814 = vmatmul.mubr.bf16.gmra.mrb[0].mxu0 %v1503
        %v2815 = vpop.f32.mrb[0].mxu0
        %v2816 = vadd.f32 %v2754, %v2815
        %v2817 = vpop.f32.mrb[0].mxu0
        %v2818 = vadd.f32 %v2758, %v2817
        %v2819 = vpop.f32.mrb[0].mxu0
        %v2820 = vadd.f32 %v2754, %v2819
        %v2821 = vpop.f32.mrb[0].mxu0
        %v2822 = vadd.f32 %v2758, %v2821
        %2823 = vdwg.mxu0
        %v2824 = vmax.f32 %v2816, 0.0
        %v2825 = vmax.f32 %v2818, 0.0
        %v2826 = vmax.f32 %v2820, 0.0
        %v2827 = vmax.f32 %v2822, 0.0
        %v2828 = vpack.c.bf16 %v2826, %v2824
        %v2829 = vpack.c.bf16 %v2827, %v2825
        %v2830 = vld [vmem:[#allocation3 + $0x280] sm:$0xf]
        %v2831 = vld [vmem:[#allocation3 + $0x284] sm:$0xf]
        %v2832 = vld [vmem:[#allocation3 + $0x288] sm:$0xf]
        %v2833 = vld [vmem:[#allocation3 + $0x28c] sm:$0xf]
        %v2834 = vld [vmem:[#allocation3 + $0x290] sm:$0xf]
        %v2835 = vld [vmem:[#allocation3 + $0x294] sm:$0xf]
        %v2836 = vld [vmem:[#allocation3 + $0x298] sm:$0xf]
        %v2837 = vld [vmem:[#allocation3 + $0x29c] sm:$0xf]
        %v2838 = vld [vmem:[#allocation3 + $0x2a0] sm:$0xf]
        %v2839 = vld [vmem:[#allocation3 + $0x2a4] sm:$0xf]
        %v2840 = vld [vmem:[#allocation3 + $0x2a8] sm:$0xf]
        %v2841 = vld [vmem:[#allocation3 + $0x2ac] sm:$0xf]
        %v2842 = vld [vmem:[#allocation3 + $0x2b0] sm:$0xf]
        %v2843 = vld [vmem:[#allocation3 + $0x2b4] sm:$0xf]
        %v2844 = vld [vmem:[#allocation3 + $0x2b8] sm:$0xf]
        %v2845 = vld [vmem:[#allocation3 + $0x2bc] sm:$0xf]
        %v2846 = vld [vmem:[#allocation3 + $0x2c0] sm:$0xf]
        %v2847 = vld [vmem:[#allocation3 + $0x2c4] sm:$0xf]
        %v2848 = vld [vmem:[#allocation3 + $0x2c8] sm:$0xf]
        %v2849 = vld [vmem:[#allocation3 + $0x2cc] sm:$0xf]
        %v2850 = vld [vmem:[#allocation3 + $0x2d0] sm:$0xf]
        %v2851 = vld [vmem:[#allocation3 + $0x2d4] sm:$0xf]
        %v2852 = vld [vmem:[#allocation3 + $0x2d8] sm:$0xf]
        %v2853 = vld [vmem:[#allocation3 + $0x2dc] sm:$0xf]
        %v2854 = vld [vmem:[#allocation3 + $0x2e0] sm:$0xf]
        %v2855 = vld [vmem:[#allocation3 + $0x2e4] sm:$0xf]
        %v2856 = vld [vmem:[#allocation3 + $0x2e8] sm:$0xf]
        %v2857 = vld [vmem:[#allocation3 + $0x2ec] sm:$0xf]
        %v2858 = vld [vmem:[#allocation3 + $0x2f0] sm:$0xf]
        %v2859 = vld [vmem:[#allocation3 + $0x2f4] sm:$0xf]
        %v2860 = vld [vmem:[#allocation3 + $0x2f8] sm:$0xf]
        %v2861 = vld [vmem:[#allocation3 + $0x2fc] sm:$0xf]
        %v2894 = vunpack.c.l.b16 %v2830
        %v2895 = vunpack.c.l.b16 %v2831
        %v2896 = vunpack.c.l.b16 %v2832
        %v2897 = vunpack.c.l.b16 %v2833
        %v2898 = vunpack.c.l.b16 %v2834
        %v2899 = vunpack.c.l.b16 %v2835
        %v2900 = vunpack.c.l.b16 %v2836
        %v2901 = vunpack.c.l.b16 %v2837
        %v2902 = vunpack.c.l.b16 %v2838
        %v2903 = vunpack.c.l.b16 %v2839
        %v2904 = vunpack.c.l.b16 %v2840
        %v2905 = vunpack.c.l.b16 %v2841
        %v2906 = vunpack.c.l.b16 %v2842
        %v2907 = vunpack.c.l.b16 %v2843
        %v2908 = vunpack.c.l.b16 %v2844
        %v2909 = vunpack.c.l.b16 %v2845
        %v2910 = vunpack.c.l.b16 %v2846
        %v2911 = vunpack.c.l.b16 %v2847
        %v2912 = vunpack.c.l.b16 %v2848
        %v2913 = vunpack.c.l.b16 %v2849
        %v2914 = vunpack.c.l.b16 %v2850
        %v2915 = vunpack.c.l.b16 %v2851
        %v2916 = vunpack.c.l.b16 %v2852
        %v2917 = vunpack.c.l.b16 %v2853
        %v2918 = vunpack.c.l.b16 %v2854
        %v2919 = vunpack.c.l.b16 %v2855
        %v2920 = vunpack.c.l.b16 %v2856
        %v2921 = vunpack.c.l.b16 %v2857
        %v2922 = vunpack.c.l.b16 %v2858
        %v2923 = vunpack.c.l.b16 %v2859
        %v2924 = vunpack.c.l.b16 %v2860
        %v2925 = vunpack.c.l.b16 %v2861
        %v2926 = vpack.c.b16 %v2895, %v2894
        %v2927 = vpack.c.b16 %v2897, %v2896
        %v2928 = vpack.c.b16 %v2899, %v2898
        %v2929 = vpack.c.b16 %v2901, %v2900
        %v2930 = vpack.c.b16 %v2903, %v2902
        %v2931 = vpack.c.b16 %v2905, %v2904
        %v2932 = vpack.c.b16 %v2907, %v2906
        %v2933 = vpack.c.b16 %v2909, %v2908
        %v2934 = vpack.c.b16 %v2911, %v2910
        %v2935 = vpack.c.b16 %v2913, %v2912
        %v2936 = vpack.c.b16 %v2915, %v2914
        %v2937 = vpack.c.b16 %v2917, %v2916
        %v2938 = vpack.c.b16 %v2919, %v2918
        %v2939 = vpack.c.b16 %v2921, %v2920
        %v2940 = vpack.c.b16 %v2923, %v2922
        %v2941 = vpack.c.b16 %v2925, %v2924
        %2958 = vmatprep.subr.bf16.mxu0 0
        %2959 = vmatpush1.bf16.msra.mxu0 %v2926
        %2960 = vmatprep.subr.bf16.mxu0 0
        %2961 = vmatpush1.bf16.msra.mxu0 %v2927
        %2962 = vmatprep.subr.bf16.mxu0 0
        %2963 = vmatpush1.bf16.msra.mxu0 %v2928
        %2964 = vmatprep.subr.bf16.mxu0 0
        %2965 = vmatpush1.bf16.msra.mxu0 %v2929
        %2966 = vmatprep.subr.bf16.mxu0 0
        %2967 = vmatpush1.bf16.msra.mxu0 %v2930
        %2968 = vmatprep.subr.bf16.mxu0 0
        %2969 = vmatpush1.bf16.msra.mxu0 %v2931
        %2970 = vmatprep.subr.bf16.mxu0 0
        %2971 = vmatpush1.bf16.msra.mxu0 %v2932
        %2972 = vmatprep.subr.bf16.mxu0 0
        %2973 = vmatpush1.bf16.msra.mxu0 %v2933
        %2974 = vmatprep.subr.bf16.mxu0 0
        %2975 = vmatpush1.bf16.msra.mxu0 %v2934
        %2976 = vmatprep.subr.bf16.mxu0 0
        %2977 = vmatpush1.bf16.msra.mxu0 %v2935
        %2978 = vmatprep.subr.bf16.mxu0 0
        %2979 = vmatpush1.bf16.msra.mxu0 %v2936
        %2980 = vmatprep.subr.bf16.mxu0 0
        %2981 = vmatpush1.bf16.msra.mxu0 %v2937
        %2982 = vmatprep.subr.bf16.mxu0 0
        %2983 = vmatpush1.bf16.msra.mxu0 %v2938
        %2984 = vmatprep.subr.bf16.mxu0 0
        %2985 = vmatpush1.bf16.msra.mxu0 %v2939
        %2986 = vmatprep.subr.bf16.mxu0 0
        %2987 = vmatpush1.bf16.msra.mxu0 %v2940
        %2988 = vmatprep.subr.bf16.mxu0 0
        %2989 = vmatpush1.bf16.msra.mxu0 %v2941
        %2990 = vmatprep.mubr.bf16.mxu0 %v2829
        %2991 = vmatmul.mubr.bf16.gmra.mrb[0].mxu0 %v2828
        %v2992 = vpop.f32.mrb[0].mxu0
        %v2993 = vadd.f32 0.0, %v2992
        %v2994 = vpop.f32.mrb[0].mxu0
        %v2995 = vpop.f32.mrb[0].mxu0
        %v2996 = vadd.f32 0.0, %v2995
        %v2997 = vpop.f32.mrb[0].mxu0
        %2998 = vdwg.mxu0
        %v2999 = vadd.f32 %v2743, %v2993
        %v3000 = vadd.f32 %v2744, %v2996
        %v3001 = vld [vmem:[%s13 + $0x30] sm:$0xff]
        %v3002 = vld [vmem:[%s13 + $0x70] sm:$0xff]
        %v3003 = vld [vmem:[%s13 + $0xb0] sm:$0xff]
        %v3004 = vld [vmem:[%s13 + $0xf0] sm:$0xff]
        %v3005 = vld [vmem:[%s14 + $0xc] sm:$0x3]
        %v3007 = vlaneseq
        %v3008 = vshrl.u32 %v3007, 7
        %v3009 = vsub.s32 0, %v3008
        %v3010 = vrot.slane %v3005, %v3009
        %v3011 = vlaneseq
        %v3012 = vshrl.u32 %v3011, 7
        %v3013 = vsub.s32 1, %v3012
        %v3014 = vrot.slane %v3005, %v3013
        %v3021 = vunpack.c.l.b16 %v3001
        %v3022 = vunpack.c.h.b16 %v3001
        %v3023 = vunpack.c.l.b16 %v3002
        %v3024 = vunpack.c.h.b16 %v3002
        %v3025 = vunpack.c.l.b16 %v3003
        %v3026 = vunpack.c.h.b16 %v3003
        %v3027 = vunpack.c.l.b16 %v3004
        %v3028 = vunpack.c.h.b16 %v3004
        %v3029 = vpack.c.b16 %v3023, %v3021
        %v3030 = vpack.c.b16 %v3024, %v3022
        %v3031 = vpack.c.b16 %v3027, %v3025
        %v3032 = vpack.c.b16 %v3028, %v3026
        %3037 = vmatprep.subr.bf16.mxu0 %v3030
        %3038 = vmatpush1.bf16.msra.mxu0 %v3029
        %3039 = vmatprep.subr.bf16.mxu0 %v3032
        %3040 = vmatpush1.bf16.msra.mxu0 %v3031
        %3041 = vmatprep.subr.bf16.mxu0 0
        %3042 = vmatpush1.bf16.msra.mxu0 0
        %3043 = vmatprep.subr.bf16.mxu0 0
        %3044 = vmatpush1.bf16.msra.mxu0 0
        %3045 = vmatprep.subr.bf16.mxu0 0
        %3046 = vmatpush1.bf16.msra.mxu0 0
        %3047 = vmatprep.subr.bf16.mxu0 0
        %3048 = vmatpush1.bf16.msra.mxu0 0
        %3049 = vmatprep.subr.bf16.mxu0 0
        %3050 = vmatpush1.bf16.msra.mxu0 0
        %3051 = vmatprep.subr.bf16.mxu0 0
        %3052 = vmatpush1.bf16.msra.mxu0 0
        %3053 = vmatprep.subr.bf16.mxu0 0
        %3054 = vmatpush1.bf16.msra.mxu0 0
        %3055 = vmatprep.subr.bf16.mxu0 0
        %3056 = vmatpush1.bf16.msra.mxu0 0
        %3057 = vmatprep.subr.bf16.mxu0 0
        %3058 = vmatpush1.bf16.msra.mxu0 0
        %3059 = vmatprep.subr.bf16.mxu0 0
        %3060 = vmatpush1.bf16.msra.mxu0 0
        %3061 = vmatprep.subr.bf16.mxu0 0
        %3062 = vmatpush1.bf16.msra.mxu0 0
        %3063 = vmatprep.subr.bf16.mxu0 0
        %3064 = vmatpush1.bf16.msra.mxu0 0
        %3065 = vmatprep.subr.bf16.mxu0 0
        %3066 = vmatpush1.bf16.msra.mxu0 0
        %3067 = vmatprep.subr.bf16.mxu0 0
        %3068 = vmatpush1.bf16.msra.mxu0 0
        %3069 = vmatprep.mubr.bf16.mxu0 0
        %3070 = vmatmul.mubr.bf16.gmra.mrb[0].mxu0 %v1503
        %v3071 = vpop.f32.mrb[0].mxu0
        %v3072 = vadd.f32 %v3010, %v3071
        %v3073 = vpop.f32.mrb[0].mxu0
        %v3074 = vadd.f32 %v3014, %v3073
        %v3075 = vpop.f32.mrb[0].mxu0
        %v3076 = vadd.f32 %v3010, %v3075
        %v3077 = vpop.f32.mrb[0].mxu0
        %v3078 = vadd.f32 %v3014, %v3077
        %3079 = vdwg.mxu0
        %v3080 = vmax.f32 %v3072, 0.0
        %v3081 = vmax.f32 %v3074, 0.0
        %v3082 = vmax.f32 %v3076, 0.0
        %v3083 = vmax.f32 %v3078, 0.0
        %v3084 = vpack.c.bf16 %v3082, %v3080
        %v3085 = vpack.c.bf16 %v3083, %v3081
        %v3086 = vld [vmem:[#allocation3 + $0x300] sm:$0xf]
        %v3087 = vld [vmem:[#allocation3 + $0x304] sm:$0xf]
        %v3088 = vld [vmem:[#allocation3 + $0x308] sm:$0xf]
        %v3089 = vld [vmem:[#allocation3 + $0x30c] sm:$0xf]
        %v3090 = vld [vmem:[#allocation3 + $0x310] sm:$0xf]
        %v3091 = vld [vmem:[#allocation3 + $0x314] sm:$0xf]
        %v3092 = vld [vmem:[#allocation3 + $0x318] sm:$0xf]
        %v3093 = vld [vmem:[#allocation3 + $0x31c] sm:$0xf]
        %v3094 = vld [vmem:[#allocation3 + $0x320] sm:$0xf]
        %v3095 = vld [vmem:[#allocation3 + $0x324] sm:$0xf]
        %v3096 = vld [vmem:[#allocation3 + $0x328] sm:$0xf]
        %v3097 = vld [vmem:[#allocation3 + $0x32c] sm:$0xf]
        %v3098 = vld [vmem:[#allocation3 + $0x330] sm:$0xf]
        %v3099 = vld [vmem:[#allocation3 + $0x334] sm:$0xf]
        %v3100 = vld [vmem:[#allocation3 + $0x338] sm:$0xf]
        %v3101 = vld [vmem:[#allocation3 + $0x33c] sm:$0xf]
        %v3102 = vld [vmem:[#allocation3 + $0x340] sm:$0xf]
        %v3103 = vld [vmem:[#allocation3 + $0x344] sm:$0xf]
        %v3104 = vld [vmem:[#allocation3 + $0x348] sm:$0xf]
        %v3105 = vld [vmem:[#allocation3 + $0x34c] sm:$0xf]
        %v3106 = vld [vmem:[#allocation3 + $0x350] sm:$0xf]
        %v3107 = vld [vmem:[#allocation3 + $0x354] sm:$0xf]
        %v3108 = vld [vmem:[#allocation3 + $0x358] sm:$0xf]
        %v3109 = vld [vmem:[#allocation3 + $0x35c] sm:$0xf]
        %v3110 = vld [vmem:[#allocation3 + $0x360] sm:$0xf]
        %v3111 = vld [vmem:[#allocation3 + $0x364] sm:$0xf]
        %v3112 = vld [vmem:[#allocation3 + $0x368] sm:$0xf]
        %v3113 = vld [vmem:[#allocation3 + $0x36c] sm:$0xf]
        %v3114 = vld [vmem:[#allocation3 + $0x370] sm:$0xf]
        %v3115 = vld [vmem:[#allocation3 + $0x374] sm:$0xf]
        %v3116 = vld [vmem:[#allocation3 + $0x378] sm:$0xf]
        %v3117 = vld [vmem:[#allocation3 + $0x37c] sm:$0xf]
        %v3150 = vunpack.c.l.b16 %v3086
        %v3151 = vunpack.c.l.b16 %v3087
        %v3152 = vunpack.c.l.b16 %v3088
        %v3153 = vunpack.c.l.b16 %v3089
        %v3154 = vunpack.c.l.b16 %v3090
        %v3155 = vunpack.c.l.b16 %v3091
        %v3156 = vunpack.c.l.b16 %v3092
        %v3157 = vunpack.c.l.b16 %v3093
        %v3158 = vunpack.c.l.b16 %v3094
        %v3159 = vunpack.c.l.b16 %v3095
        %v3160 = vunpack.c.l.b16 %v3096
        %v3161 = vunpack.c.l.b16 %v3097
        %v3162 = vunpack.c.l.b16 %v3098
        %v3163 = vunpack.c.l.b16 %v3099
        %v3164 = vunpack.c.l.b16 %v3100
        %v3165 = vunpack.c.l.b16 %v3101
        %v3166 = vunpack.c.l.b16 %v3102
        %v3167 = vunpack.c.l.b16 %v3103
        %v3168 = vunpack.c.l.b16 %v3104
        %v3169 = vunpack.c.l.b16 %v3105
        %v3170 = vunpack.c.l.b16 %v3106
        %v3171 = vunpack.c.l.b16 %v3107
        %v3172 = vunpack.c.l.b16 %v3108
        %v3173 = vunpack.c.l.b16 %v3109
        %v3174 = vunpack.c.l.b16 %v3110
        %v3175 = vunpack.c.l.b16 %v3111
        %v3176 = vunpack.c.l.b16 %v3112
        %v3177 = vunpack.c.l.b16 %v3113
        %v3178 = vunpack.c.l.b16 %v3114
        %v3179 = vunpack.c.l.b16 %v3115
        %v3180 = vunpack.c.l.b16 %v3116
        %v3181 = vunpack.c.l.b16 %v3117
        %v3182 = vpack.c.b16 %v3151, %v3150
        %v3183 = vpack.c.b16 %v3153, %v3152
        %v3184 = vpack.c.b16 %v3155, %v3154
        %v3185 = vpack.c.b16 %v3157, %v3156
        %v3186 = vpack.c.b16 %v3159, %v3158
        %v3187 = vpack.c.b16 %v3161, %v3160
        %v3188 = vpack.c.b16 %v3163, %v3162
        %v3189 = vpack.c.b16 %v3165, %v3164
        %v3190 = vpack.c.b16 %v3167, %v3166
        %v3191 = vpack.c.b16 %v3169, %v3168
        %v3192 = vpack.c.b16 %v3171, %v3170
        %v3193 = vpack.c.b16 %v3173, %v3172
        %v3194 = vpack.c.b16 %v3175, %v3174
        %v3195 = vpack.c.b16 %v3177, %v3176
        %v3196 = vpack.c.b16 %v3179, %v3178
        %v3197 = vpack.c.b16 %v3181, %v3180
        %3214 = vmatprep.subr.bf16.mxu0 0
        %3215 = vmatpush1.bf16.msra.mxu0 %v3182
        %3216 = vmatprep.subr.bf16.mxu0 0
        %3217 = vmatpush1.bf16.msra.mxu0 %v3183
        %3218 = vmatprep.subr.bf16.mxu0 0
        %3219 = vmatpush1.bf16.msra.mxu0 %v3184
        %3220 = vmatprep.subr.bf16.mxu0 0
        %3221 = vmatpush1.bf16.msra.mxu0 %v3185
        %3222 = vmatprep.subr.bf16.mxu0 0
        %3223 = vmatpush1.bf16.msra.mxu0 %v3186
        %3224 = vmatprep.subr.bf16.mxu0 0
        %3225 = vmatpush1.bf16.msra.mxu0 %v3187
        %3226 = vmatprep.subr.bf16.mxu0 0
        %3227 = vmatpush1.bf16.msra.mxu0 %v3188
        %3228 = vmatprep.subr.bf16.mxu0 0
        %3229 = vmatpush1.bf16.msra.mxu0 %v3189
        %3230 = vmatprep.subr.bf16.mxu0 0
        %3231 = vmatpush1.bf16.msra.mxu0 %v3190
        %3232 = vmatprep.subr.bf16.mxu0 0
        %3233 = vmatpush1.bf16.msra.mxu0 %v3191
        %3234 = vmatprep.subr.bf16.mxu0 0
        %3235 = vmatpush1.bf16.msra.mxu0 %v3192
        %3236 = vmatprep.subr.bf16.mxu0 0
        %3237 = vmatpush1.bf16.msra.mxu0 %v3193
        %3238 = vmatprep.subr.bf16.mxu0 0
        %3239 = vmatpush1.bf16.msra.mxu0 %v3194
        %3240 = vmatprep.subr.bf16.mxu0 0
        %3241 = vmatpush1.bf16.msra.mxu0 %v3195
        %3242 = vmatprep.subr.bf16.mxu0 0
        %3243 = vmatpush1.bf16.msra.mxu0 %v3196
        %3244 = vmatprep.subr.bf16.mxu0 0
        %3245 = vmatpush1.bf16.msra.mxu0 %v3197
        %3246 = vmatprep.mubr.bf16.mxu0 %v3085
        %3247 = vmatmul.mubr.bf16.gmra.mrb[0].mxu0 %v3084
        %v3248 = vpop.f32.mrb[0].mxu0
        %v3249 = vadd.f32 0.0, %v3248
        %v3250 = vpop.f32.mrb[0].mxu0
        %v3251 = vpop.f32.mrb[0].mxu0
        %v3252 = vadd.f32 0.0, %v3251
        %v3253 = vpop.f32.mrb[0].mxu0
        %3254 = vdwg.mxu0
        %v3255 = vadd.f32 %v2999, %v3249
        %v3256 = vadd.f32 %v3000, %v3252
        %v3257 = vld [vmem:[%s13 + $0x38] sm:$0xff]
        %v3258 = vld [vmem:[%s13 + $0x78] sm:$0xff]
        %v3259 = vld [vmem:[%s13 + $0xb8] sm:$0xff]
        %v3260 = vld [vmem:[%s13 + $0xf8] sm:$0xff]
        %v3261 = vld [vmem:[%s14 + $0xe] sm:$0x3]
        %v3263 = vlaneseq
        %v3264 = vshrl.u32 %v3263, 7
        %v3265 = vsub.s32 0, %v3264
        %v3266 = vrot.slane %v3261, %v3265
        %v3267 = vlaneseq
        %v3268 = vshrl.u32 %v3267, 7
        %v3269 = vsub.s32 1, %v3268
        %v3270 = vrot.slane %v3261, %v3269
        %v3277 = vunpack.c.l.b16 %v3257
        %v3278 = vunpack.c.h.b16 %v3257
        %v3279 = vunpack.c.l.b16 %v3258
        %v3280 = vunpack.c.h.b16 %v3258
        %v3281 = vunpack.c.l.b16 %v3259
        %v3282 = vunpack.c.h.b16 %v3259
        %v3283 = vunpack.c.l.b16 %v3260
        %v3284 = vunpack.c.h.b16 %v3260
        %v3285 = vpack.c.b16 %v3279, %v3277
        %v3286 = vpack.c.b16 %v3280, %v3278
        %v3287 = vpack.c.b16 %v3283, %v3281
        %v3288 = vpack.c.b16 %v3284, %v3282
        %3293 = vmatprep.subr.bf16.mxu0 %v3286
        %3294 = vmatpush1.bf16.msra.mxu0 %v3285
        %3295 = vmatprep.subr.bf16.mxu0 %v3288
        %3296 = vmatpush1.bf16.msra.mxu0 %v3287
        %3297 = vmatprep.subr.bf16.mxu0 0
        %3298 = vmatpush1.bf16.msra.mxu0 0
        %3299 = vmatprep.subr.bf16.mxu0 0
        %3300 = vmatpush1.bf16.msra.mxu0 0
        %3301 = vmatprep.subr.bf16.mxu0 0
        %3302 = vmatpush1.bf16.msra.mxu0 0
        %3303 = vmatprep.subr.bf16.mxu0 0
        %3304 = vmatpush1.bf16.msra.mxu0 0
        %3305 = vmatprep.subr.bf16.mxu0 0
        %3306 = vmatpush1.bf16.msra.mxu0 0
        %3307 = vmatprep.subr.bf16.mxu0 0
        %3308 = vmatpush1.bf16.msra.mxu0 0
        %3309 = vmatprep.subr.bf16.mxu0 0
        %3310 = vmatpush1.bf16.msra.mxu0 0
        %3311 = vmatprep.subr.bf16.mxu0 0
        %3312 = vmatpush1.bf16.msra.mxu0 0
        %3313 = vmatprep.subr.bf16.mxu0 0
        %3314 = vmatpush1.bf16.msra.mxu0 0
        %3315 = vmatprep.subr.bf16.mxu0 0
        %3316 = vmatpush1.bf16.msra.mxu0 0
        %3317 = vmatprep.subr.bf16.mxu0 0
        %3318 = vmatpush1.bf16.msra.mxu0 0
        %3319 = vmatprep.subr.bf16.mxu0 0
        %3320 = vmatpush1.bf16.msra.mxu0 0
        %3321 = vmatprep.subr.bf16.mxu0 0
        %3322 = vmatpush1.bf16.msra.mxu0 0
        %3323 = vmatprep.subr.bf16.mxu0 0
        %3324 = vmatpush1.bf16.msra.mxu0 0
        %3325 = vmatprep.mubr.bf16.mxu0 0
        %3326 = vmatmul.mubr.bf16.gmra.mrb[0].mxu0 %v1503
        %v3327 = vpop.f32.mrb[0].mxu0
        %v3328 = vadd.f32 %v3266, %v3327
        %v3329 = vpop.f32.mrb[0].mxu0
        %v3330 = vadd.f32 %v3270, %v3329
        %v3331 = vpop.f32.mrb[0].mxu0
        %v3332 = vadd.f32 %v3266, %v3331
        %v3333 = vpop.f32.mrb[0].mxu0
        %v3334 = vadd.f32 %v3270, %v3333
        %3335 = vdwg.mxu0
        %v3336 = vmax.f32 %v3328, 0.0
        %v3337 = vmax.f32 %v3330, 0.0
        %v3338 = vmax.f32 %v3332, 0.0
        %v3339 = vmax.f32 %v3334, 0.0
        %v3340 = vpack.c.bf16 %v3338, %v3336
        %v3341 = vpack.c.bf16 %v3339, %v3337
        %v3342 = vld [vmem:[#allocation3 + $0x380] sm:$0xf]
        %v3343 = vld [vmem:[#allocation3 + $0x384] sm:$0xf]
        %v3344 = vld [vmem:[#allocation3 + $0x388] sm:$0xf]
        %v3345 = vld [vmem:[#allocation3 + $0x38c] sm:$0xf]
        %v3346 = vld [vmem:[#allocation3 + $0x390] sm:$0xf]
        %v3347 = vld [vmem:[#allocation3 + $0x394] sm:$0xf]
        %v3348 = vld [vmem:[#allocation3 + $0x398] sm:$0xf]
        %v3349 = vld [vmem:[#allocation3 + $0x39c] sm:$0xf]
        %v3350 = vld [vmem:[#allocation3 + $0x3a0] sm:$0xf]
        %v3351 = vld [vmem:[#allocation3 + $0x3a4] sm:$0xf]
        %v3352 = vld [vmem:[#allocation3 + $0x3a8] sm:$0xf]
        %v3353 = vld [vmem:[#allocation3 + $0x3ac] sm:$0xf]
        %v3354 = vld [vmem:[#allocation3 + $0x3b0] sm:$0xf]
        %v3355 = vld [vmem:[#allocation3 + $0x3b4] sm:$0xf]
        %v3356 = vld [vmem:[#allocation3 + $0x3b8] sm:$0xf]
        %v3357 = vld [vmem:[#allocation3 + $0x3bc] sm:$0xf]
        %v3358 = vld [vmem:[#allocation3 + $0x3c0] sm:$0xf]
        %v3359 = vld [vmem:[#allocation3 + $0x3c4] sm:$0xf]
        %v3360 = vld [vmem:[#allocation3 + $0x3c8] sm:$0xf]
        %v3361 = vld [vmem:[#allocation3 + $0x3cc] sm:$0xf]
        %v3362 = vld [vmem:[#allocation3 + $0x3d0] sm:$0xf]
        %v3363 = vld [vmem:[#allocation3 + $0x3d4] sm:$0xf]
        %v3364 = vld [vmem:[#allocation3 + $0x3d8] sm:$0xf]
        %v3365 = vld [vmem:[#allocation3 + $0x3dc] sm:$0xf]
        %v3366 = vld [vmem:[#allocation3 + $0x3e0] sm:$0xf]
        %v3367 = vld [vmem:[#allocation3 + $0x3e4] sm:$0xf]
        %v3368 = vld [vmem:[#allocation3 + $0x3e8] sm:$0xf]
        %v3369 = vld [vmem:[#allocation3 + $0x3ec] sm:$0xf]
        %v3370 = vld [vmem:[#allocation3 + $0x3f0] sm:$0xf]
        %v3371 = vld [vmem:[#allocation3 + $0x3f4] sm:$0xf]
        %v3372 = vld [vmem:[#allocation3 + $0x3f8] sm:$0xf]
        %v3373 = vld [vmem:[#allocation3 + $0x3fc] sm:$0xf]
        %v3406 = vunpack.c.l.b16 %v3342
        %v3407 = vunpack.c.l.b16 %v3343
        %v3408 = vunpack.c.l.b16 %v3344
        %v3409 = vunpack.c.l.b16 %v3345
        %v3410 = vunpack.c.l.b16 %v3346
        %v3411 = vunpack.c.l.b16 %v3347
        %v3412 = vunpack.c.l.b16 %v3348
        %v3413 = vunpack.c.l.b16 %v3349
        %v3414 = vunpack.c.l.b16 %v3350
        %v3415 = vunpack.c.l.b16 %v3351
        %v3416 = vunpack.c.l.b16 %v3352
        %v3417 = vunpack.c.l.b16 %v3353
        %v3418 = vunpack.c.l.b16 %v3354
        %v3419 = vunpack.c.l.b16 %v3355
        %v3420 = vunpack.c.l.b16 %v3356
        %v3421 = vunpack.c.l.b16 %v3357
        %v3422 = vunpack.c.l.b16 %v3358
        %v3423 = vunpack.c.l.b16 %v3359
        %v3424 = vunpack.c.l.b16 %v3360
        %v3425 = vunpack.c.l.b16 %v3361
        %v3426 = vunpack.c.l.b16 %v3362
        %v3427 = vunpack.c.l.b16 %v3363
        %v3428 = vunpack.c.l.b16 %v3364
        %v3429 = vunpack.c.l.b16 %v3365
        %v3430 = vunpack.c.l.b16 %v3366
        %v3431 = vunpack.c.l.b16 %v3367
        %v3432 = vunpack.c.l.b16 %v3368
        %v3433 = vunpack.c.l.b16 %v3369
        %v3434 = vunpack.c.l.b16 %v3370
        %v3435 = vunpack.c.l.b16 %v3371
        %v3436 = vunpack.c.l.b16 %v3372
        %v3437 = vunpack.c.l.b16 %v3373
        %v3438 = vpack.c.b16 %v3407, %v3406
        %v3439 = vpack.c.b16 %v3409, %v3408
        %v3440 = vpack.c.b16 %v3411, %v3410
        %v3441 = vpack.c.b16 %v3413, %v3412
        %v3442 = vpack.c.b16 %v3415, %v3414
        %v3443 = vpack.c.b16 %v3417, %v3416
        %v3444 = vpack.c.b16 %v3419, %v3418
        %v3445 = vpack.c.b16 %v3421, %v3420
        %v3446 = vpack.c.b16 %v3423, %v3422
        %v3447 = vpack.c.b16 %v3425, %v3424
        %v3448 = vpack.c.b16 %v3427, %v3426
        %v3449 = vpack.c.b16 %v3429, %v3428
        %v3450 = vpack.c.b16 %v3431, %v3430
        %v3451 = vpack.c.b16 %v3433, %v3432
        %v3452 = vpack.c.b16 %v3435, %v3434
        %v3453 = vpack.c.b16 %v3437, %v3436
        %3470 = vmatprep.subr.bf16.mxu0 0
        %3471 = vmatpush1.bf16.msra.mxu0 %v3438
        %3472 = vmatprep.subr.bf16.mxu0 0
        %3473 = vmatpush1.bf16.msra.mxu0 %v3439
        %3474 = vmatprep.subr.bf16.mxu0 0
        %3475 = vmatpush1.bf16.msra.mxu0 %v3440
        %3476 = vmatprep.subr.bf16.mxu0 0
        %3477 = vmatpush1.bf16.msra.mxu0 %v3441
        %3478 = vmatprep.subr.bf16.mxu0 0
        %3479 = vmatpush1.bf16.msra.mxu0 %v3442
        %3480 = vmatprep.subr.bf16.mxu0 0
        %3481 = vmatpush1.bf16.msra.mxu0 %v3443
        %3482 = vmatprep.subr.bf16.mxu0 0
        %3483 = vmatpush1.bf16.msra.mxu0 %v3444
        %3484 = vmatprep.subr.bf16.mxu0 0
        %3485 = vmatpush1.bf16.msra.mxu0 %v3445
        %3486 = vmatprep.subr.bf16.mxu0 0
        %3487 = vmatpush1.bf16.msra.mxu0 %v3446
        %3488 = vmatprep.subr.bf16.mxu0 0
        %3489 = vmatpush1.bf16.msra.mxu0 %v3447
        %3490 = vmatprep.subr.bf16.mxu0 0
        %3491 = vmatpush1.bf16.msra.mxu0 %v3448
        %3492 = vmatprep.subr.bf16.mxu0 0
        %3493 = vmatpush1.bf16.msra.mxu0 %v3449
        %3494 = vmatprep.subr.bf16.mxu0 0
        %3495 = vmatpush1.bf16.msra.mxu0 %v3450
        %3496 = vmatprep.subr.bf16.mxu0 0
        %3497 = vmatpush1.bf16.msra.mxu0 %v3451
        %3498 = vmatprep.subr.bf16.mxu0 0
        %3499 = vmatpush1.bf16.msra.mxu0 %v3452
        %3500 = vmatprep.subr.bf16.mxu0 0
        %3501 = vmatpush1.bf16.msra.mxu0 %v3453
        %3502 = vmatprep.mubr.bf16.mxu0 %v3341
        %3503 = vmatmul.mubr.bf16.gmra.mrb[0].mxu0 %v3340
        %v3504 = vpop.f32.mrb[0].mxu0
        %v3505 = vadd.f32 0.0, %v3504
        %v3506 = vpop.f32.mrb[0].mxu0
        %v3507 = vpop.f32.mrb[0].mxu0
        %v3508 = vadd.f32 0.0, %v3507
        %v3509 = vpop.f32.mrb[0].mxu0
        %3510 = vdwg.mxu0
        %v3511 = vadd.f32 %v3255, %v3505
        %v3512 = vadd.f32 %v3256, %v3508
        %v3513 = vld [vmem:[%s16] sm:$0x1]
        %v3515 = vlaneseq
        %v3516 = vshrl.u32 %v3515, 7
        %v3517 = vsub.s32 0, %v3516
        %v3518 = vrot.slane %v3513, %v3517
        %v3520 = vadd.f32 %v3511, %v3518
        %v3521 = vadd.f32 %v3512, %v3518
        %v3522 = vadd.f32 %v1463, %v3520
        %v3523 = vadd.f32 %v1464, %v3521
        %v3524 = vld [vmem:[%s11] sm:$0x1]
        %v3525 = vld [vmem:[%s12] sm:$0x1]
        %v3526 = vsel %vm677, %v3522, 0.0
        %3527 = vadd.xlane.f32.xlu0 %v3526
        %v3528 = vpop.xlane.xlu0 %3527
        %v3529 = vsel %vm677, %v3523, 0.0
        %3530 = vadd.xlane.f32.xlu0 %v3529
        %v3531 = vpop.xlane.xlu0 %3530
        %v3532 = vmul.f32 %v3528, %v1428
        %v3533 = vmul.f32 %v3531, %v1428
        %v3534 = vsub.f32 %v3522, %v3532
        %v3535 = vsub.f32 %v3523, %v3533
        %v3536 = vmul.f32 %v3534, %v3534
        %v3537 = vmul.f32 %v3535, %v3535
        %v3538 = vsel %vm677, %v3536, 0.0
        %3539 = vadd.xlane.f32.xlu0 %v3538
        %v3540 = vpop.xlane.xlu0 %3539
        %v3541 = vsel %vm677, %v3537, 0.0
        %3542 = vadd.xlane.f32.xlu0 %v3541
        %v3543 = vpop.xlane.xlu0 %3542
        %v3544 = vmul.f32 %v3540, %v1428
        %v3545 = vmul.f32 %v3543, %v1428
        %v3546 = vadd.f32 %v3544, 1e-05
        %v3547 = vadd.f32 %v3545, 1e-05
        %v3548 = vrsqrt.pop %v3546
        %v3549 = vrsqrt.pop %v3547
        %v3550 = vmul.f32 %v3534, %v3548
        %v3551 = vmul.f32 %v3535, %v3549
        %v3553 = vlaneseq
        %v3554 = vshrl.u32 %v3553, 7
        %v3555 = vsub.s32 0, %v3554
        %v3556 = vrot.slane %v3524, %v3555
        %v3558 = vmul.f32 %v3550, %v3556
        %v3559 = vmul.f32 %v3551, %v3556
        %v3561 = vlaneseq
        %v3562 = vshrl.u32 %v3561, 7
        %v3563 = vsub.s32 0, %v3562
        %v3564 = vrot.slane %v3525, %v3563
        %v3566 = vadd.f32 %v3558, %v3564
        %v3567 = vadd.f32 %v3559, %v3564
        %v3568 = vpack.c.bf16 %v3567, %v3566
        %s3569 = scalar_lea.vmem %s5, 16
        %v3570 = vld [vmem:[%s3569] sm:$0xf]
        %v3571 = vld [vmem:[%s3569 + $0x4] sm:$0xf]
        %v3572 = vld [vmem:[%s3569 + $0x8] sm:$0xf]
        %v3573 = vld [vmem:[%s3569 + $0xc] sm:$0xf]
        %s3574 = scalar_lea.vmem %s6, 1
        %v3575 = vld [vmem:[%s3574] sm:$0x1]
        %v3577 = vlaneseq
        %v3578 = vshrl.u32 %v3577, 7
        %v3579 = vsub.s32 0, %v3578
        %v3580 = vrot.slane %v3575, %v3579
        %v3586 = vunpack.c.l.b16 %v3570
        %v3587 = vunpack.c.l.b16 %v3571
        %v3588 = vunpack.c.l.b16 %v3572
        %v3589 = vunpack.c.l.b16 %v3573
        %v3590 = vpack.c.b16 %v3587, %v3586
        %v3591 = vpack.c.b16 %v3589, %v3588
        %v3595 = vsel %vm677, %v3568, 0
        %3597 = vmatprep.subr.bf16.mxu0 0
        %3598 = vmatpush1.bf16.msra.mxu0 %v3590
        %3599 = vmatprep.subr.bf16.mxu0 0
        %3600 = vmatpush1.bf16.msra.mxu0 %v3591
        %3601 = vmatprep.subr.bf16.mxu0 0
        %3602 = vmatpush1.bf16.msra.mxu0 0
        %3603 = vmatprep.subr.bf16.mxu0 0
        %3604 = vmatpush1.bf16.msra.mxu0 0
        %3605 = vmatprep.subr.bf16.mxu0 0
        %3606 = vmatpush1.bf16.msra.mxu0 0
        %3607 = vmatprep.subr.bf16.mxu0 0
        %3608 = vmatpush1.bf16.msra.mxu0 0
        %3609 = vmatprep.subr.bf16.mxu0 0
        %3610 = vmatpush1.bf16.msra.mxu0 0
        %3611 = vmatprep.subr.bf16.mxu0 0
        %3612 = vmatpush1.bf16.msra.mxu0 0
        %3613 = vmatprep.subr.bf16.mxu0 0
        %3614 = vmatpush1.bf16.msra.mxu0 0
        %3615 = vmatprep.subr.bf16.mxu0 0
        %3616 = vmatpush1.bf16.msra.mxu0 0
        %3617 = vmatprep.subr.bf16.mxu0 0
        %3618 = vmatpush1.bf16.msra.mxu0 0
        %3619 = vmatprep.subr.bf16.mxu0 0
        %3620 = vmatpush1.bf16.msra.mxu0 0
        %3621 = vmatprep.subr.bf16.mxu0 0
        %3622 = vmatpush1.bf16.msra.mxu0 0
        %3623 = vmatprep.subr.bf16.mxu0 0
        %3624 = vmatpush1.bf16.msra.mxu0 0
        %3625 = vmatprep.subr.bf16.mxu0 0
        %3626 = vmatpush1.bf16.msra.mxu0 0
        %3627 = vmatprep.subr.bf16.mxu0 0
        %3628 = vmatpush1.bf16.msra.mxu0 0
        %3629 = vmatprep.mubr.bf16.mxu0 0
        %3630 = vmatmul.mubr.bf16.gmra.mrb[0].mxu0 %v3595
        %v3631 = vpop.f32.mrb[0].mxu0
        %v3632 = vadd.f32 %v3580, %v3631
        %v3633 = vpop.f32.mrb[0].mxu0
        %v3634 = vpop.f32.mrb[0].mxu0
        %v3635 = vadd.f32 %v3580, %v3634
        %v3636 = vpop.f32.mrb[0].mxu0
        %3637 = vdwg.mxu0
        %v3638 = vpack.c.bf16 %v3635, %v3632
        %3640 = vrot.lane.b32.xlu0 %v3638, 96
        %v3641 = vpop.permute.xlu0 %3640
        %v3643 = vsel %vm726, %v3638, 0
        %v3646 = vsel %vm726, %v3641, 0
        %3648 = vmatprep.subr.bf16.mxu0 0
        %3649 = vmatpush1.bf16.xpose.msra.mxu0 %v3646
        %3650 = vmatprep.subr.bf16.mxu0 0
        %3651 = vmatpush1.bf16.xpose.msra.mxu0 0
        %3652 = vmatprep.subr.bf16.mxu0 0
        %3653 = vmatpush1.bf16.xpose.msra.mxu0 0
        %3654 = vmatprep.subr.bf16.mxu0 0
        %3655 = vmatpush1.bf16.xpose.msra.mxu0 0
        %3656 = vmatprep.subr.bf16.mxu0 0
        %3657 = vmatpush1.bf16.xpose.msra.mxu0 0
        %3658 = vmatprep.subr.bf16.mxu0 0
        %3659 = vmatpush1.bf16.xpose.msra.mxu0 0
        %3660 = vmatprep.subr.bf16.mxu0 0
        %3661 = vmatpush1.bf16.xpose.msra.mxu0 0
        %3662 = vmatprep.subr.bf16.mxu0 0
        %3663 = vmatpush1.bf16.xpose.msra.mxu0 0
        %3664 = vmatprep.subr.bf16.mxu0 0
        %3665 = vmatpush1.bf16.xpose.msra.mxu0 0
        %3666 = vmatprep.subr.bf16.mxu0 0
        %3667 = vmatpush1.bf16.xpose.msra.mxu0 0
        %3668 = vmatprep.subr.bf16.mxu0 0
        %3669 = vmatpush1.bf16.xpose.msra.mxu0 0
        %3670 = vmatprep.subr.bf16.mxu0 0
        %3671 = vmatpush1.bf16.xpose.msra.mxu0 0
        %3672 = vmatprep.subr.bf16.mxu0 0
        %3673 = vmatpush1.bf16.xpose.msra.mxu0 0
        %3674 = vmatprep.subr.bf16.mxu0 0
        %3675 = vmatpush1.bf16.xpose.msra.mxu0 0
        %3676 = vmatprep.subr.bf16.mxu0 0
        %3677 = vmatpush1.bf16.xpose.msra.mxu0 0
        %3678 = vmatprep.subr.bf16.mxu0 0
        %3679 = vmatpush1.bf16.xpose.msra.mxu0 0
        %3680 = vmatprep.mubr.bf16.mxu0 0
        %3681 = vmatmul.mubr.bf16.gmra.mrb[0].mxu0 %v3643
        %v3682 = vpop.f32.mrb[0].mxu0
        %v3683 = vadd.f32 %v651, %v3682
        %v3684 = vpop.f32.mrb[0].mxu0
        %v3685 = vpop.f32.mrb[0].mxu0
        %v3686 = vadd.f32 %v652, %v3685
        %v3687 = vpop.f32.mrb[0].mxu0
        %3688 = vdwg.mxu0
        %v3689 = vsel %vm774, %v3683, -inf
        %3690 = vmax.xlane.f32.xlu0 %v3689
        %v3691 = vpop.xlane.xlu0 %3690
        %v3692 = vsel %vm774, %v3686, -inf
        %3693 = vmax.xlane.f32.xlu0 %v3692
        %v3694 = vpop.xlane.xlu0 %3693
        %v3695 = vsub.f32 %v3683, %v3691
        %v3696 = vsub.f32 %v3686, %v3694
        %v3697 = vmul.f32 %v3695, 1.442695
        %v3698 = vpow.pop %v3697
        %v3699 = vmul.f32 %v3696, 1.442695
        %v3700 = vpow.pop %v3699
        %v3701 = vsel %vm774, %v3698, 0.0
        %3702 = vadd.xlane.f32.xlu0 %v3701
        %v3703 = vpop.xlane.xlu0 %3702
        %v3704 = vsel %vm774, %v3700, 0.0
        %3705 = vadd.xlane.f32.xlu0 %v3704
        %v3706 = vpop.xlane.xlu0 %3705
        %v3707 = vrcp.pop %v3703
        %v3708 = vrcp.pop %v3706
        %v3709 = vmul.f32 %v3698, %v3707
        %v3710 = vmul.f32 %v3700, %v3708
        %v3711 = vpack.c.bf16 %v3710, %v3709
        %3712 = vrot.lane.b32.xlu0 %v3638, 64
        %v3713 = vpop.permute.xlu0 %3712
        %v3716 = vsel %vm774, %v3711, 0
        %3718 = vmatprep.subr.bf16.mxu0 0
        %3719 = vmatpush1.bf16.msra.mxu0 %v3713
        %3720 = vmatprep.subr.bf16.mxu0 0
        %3721 = vmatpush1.bf16.msra.mxu0 0
        %3722 = vmatprep.subr.bf16.mxu0 0
        %3723 = vmatpush1.bf16.msra.mxu0 0
        %3724 = vmatprep.subr.bf16.mxu0 0
        %3725 = vmatpush1.bf16.msra.mxu0 0
        %3726 = vmatprep.subr.bf16.mxu0 0
        %3727 = vmatpush1.bf16.msra.mxu0 0
        %3728 = vmatprep.subr.bf16.mxu0 0
        %3729 = vmatpush1.bf16.msra.mxu0 0
        %3730 = vmatprep.subr.bf16.mxu0 0
        %3731 = vmatpush1.bf16.msra.mxu0 0
        %3732 = vmatprep.subr.bf16.mxu0 0
        %3733 = vmatpush1.bf16.msra.mxu0 0
        %3734 = vmatprep.subr.bf16.mxu0 0
        %3735 = vmatpush1.bf16.msra.mxu0 0
        %3736 = vmatprep.subr.bf16.mxu0 0
        %3737 = vmatpush1.bf16.msra.mxu0 0
        %3738 = vmatprep.subr.bf16.mxu0 0
        %3739 = vmatpush1.bf16.msra.mxu0 0
        %3740 = vmatprep.subr.bf16.mxu0 0
        %3741 = vmatpush1.bf16.msra.mxu0 0
        %3742 = vmatprep.subr.bf16.mxu0 0
        %3743 = vmatpush1.bf16.msra.mxu0 0
        %3744 = vmatprep.subr.bf16.mxu0 0
        %3745 = vmatpush1.bf16.msra.mxu0 0
        %3746 = vmatprep.subr.bf16.mxu0 0
        %3747 = vmatpush1.bf16.msra.mxu0 0
        %3748 = vmatprep.subr.bf16.mxu0 0
        %3749 = vmatpush1.bf16.msra.mxu0 0
        %3750 = vmatprep.mubr.bf16.mxu0 0
        %3751 = vmatmul.mubr.bf16.gmra.mrb[0].mxu0 %v3716
        %v3752 = vpop.f32.mrb[0].mxu0
        %v3753 = vadd.f32 0.0, %v3752
        %v3754 = vpop.f32.mrb[0].mxu0
        %v3755 = vpop.f32.mrb[0].mxu0
        %v3756 = vadd.f32 0.0, %v3755
        %v3757 = vpop.f32.mrb[0].mxu0
        %3758 = vdwg.mxu0
        %v3759 = vpack.c.bf16 %v3756, %v3753
        %s3760 = scalar_lea.vmem %s7, 16
        %v3761 = vld [vmem:[%s3760] sm:$0xf]
        %3762 = vrot.lane.b32.xlu0 %v3638, 120
        %v3763 = vpop.permute.xlu0 %3762
        %3764 = vrot.lane.b32.xlu0 %v3638, 88
        %v3765 = vpop.permute.xlu0 %3764
        %v3767 = vsel %vm726, %v3763, 0
        %v3770 = vsel %vm726, %v3765, 0
        %3772 = vmatprep.subr.bf16.mxu0 0
        %3773 = vmatpush1.bf16.xpose.msra.mxu0 %v3770
        %3774 = vmatprep.subr.bf16.mxu0 0
        %3775 = vmatpush1.bf16.xpose.msra.mxu0 0
        %3776 = vmatprep.subr.bf16.mxu0 0
        %3777 = vmatpush1.bf16.xpose.msra.mxu0 0
        %3778 = vmatprep.subr.bf16.mxu0 0
        %3779 = vmatpush1.bf16.xpose.msra.mxu0 0
        %3780 = vmatprep.subr.bf16.mxu0 0
        %3781 = vmatpush1.bf16.xpose.msra.mxu0 0
        %3782 = vmatprep.subr.bf16.mxu0 0
        %3783 = vmatpush1.bf16.xpose.msra.mxu0 0
        %3784 = vmatprep.subr.bf16.mxu0 0
        %3785 = vmatpush1.bf16.xpose.msra.mxu0 0
        %3786 = vmatprep.subr.bf16.mxu0 0
        %3787 = vmatpush1.bf16.xpose.msra.mxu0 0
        %3788 = vmatprep.subr.bf16.mxu0 0
        %3789 = vmatpush1.bf16.xpose.msra.mxu0 0
        %3790 = vmatprep.subr.bf16.mxu0 0
        %3791 = vmatpush1.bf16.xpose.msra.mxu0 0
        %3792 = vmatprep.subr.bf16.mxu0 0
        %3793 = vmatpush1.bf16.xpose.msra.mxu0 0
        %3794 = vmatprep.subr.bf16.mxu0 0
        %3795 = vmatpush1.bf16.xpose.msra.mxu0 0
        %3796 = vmatprep.subr.bf16.mxu0 0
        %3797 = vmatpush1.bf16.xpose.msra.mxu0 0
        %3798 = vmatprep.subr.bf16.mxu0 0
        %3799 = vmatpush1.bf16.xpose.msra.mxu0 0
        %3800 = vmatprep.subr.bf16.mxu0 0
        %3801 = vmatpush1.bf16.xpose.msra.mxu0 0
        %3802 = vmatprep.subr.bf16.mxu0 0
        %3803 = vmatpush1.bf16.xpose.msra.mxu0 0
        %3804 = vmatprep.mubr.bf16.mxu0 0
        %3805 = vmatmul.mubr.bf16.gmra.mrb[0].mxu0 %v3767
        %v3806 = vpop.f32.mrb[0].mxu0
        %v3807 = vadd.f32 %v651, %v3806
        %v3808 = vpop.f32.mrb[0].mxu0
        %v3809 = vpop.f32.mrb[0].mxu0
        %v3810 = vadd.f32 %v652, %v3809
        %v3811 = vpop.f32.mrb[0].mxu0
        %3812 = vdwg.mxu0
        %v3813 = vsel %vm774, %v3807, -inf
        %3814 = vmax.xlane.f32.xlu0 %v3813
        %v3815 = vpop.xlane.xlu0 %3814
        %v3816 = vsel %vm774, %v3810, -inf
        %3817 = vmax.xlane.f32.xlu0 %v3816
        %v3818 = vpop.xlane.xlu0 %3817
        %v3819 = vsub.f32 %v3807, %v3815
        %v3820 = vsub.f32 %v3810, %v3818
        %v3821 = vmul.f32 %v3819, 1.442695
        %v3822 = vpow.pop %v3821
        %v3823 = vmul.f32 %v3820, 1.442695
        %v3824 = vpow.pop %v3823
        %v3825 = vsel %vm774, %v3822, 0.0
        %3826 = vadd.xlane.f32.xlu0 %v3825
        %v3827 = vpop.xlane.xlu0 %3826
        %v3828 = vsel %vm774, %v3824, 0.0
        %3829 = vadd.xlane.f32.xlu0 %v3828
        %v3830 = vpop.xlane.xlu0 %3829
        %v3831 = vrcp.pop %v3827
        %v3832 = vrcp.pop %v3830
        %v3833 = vmul.f32 %v3822, %v3831
        %v3834 = vmul.f32 %v3824, %v3832
        %v3835 = vpack.c.bf16 %v3834, %v3833
        %3836 = vrot.lane.b32.xlu0 %v3638, 56
        %v3837 = vpop.permute.xlu0 %3836
        %v3840 = vsel %vm774, %v3835, 0
        %3842 = vmatprep.subr.bf16.mxu0 0
        %3843 = vmatpush1.bf16.msra.mxu0 %v3837
        %3844 = vmatprep.subr.bf16.mxu0 0
        %3845 = vmatpush1.bf16.msra.mxu0 0
        %3846 = vmatprep.subr.bf16.mxu0 0
        %3847 = vmatpush1.bf16.msra.mxu0 0
        %3848 = vmatprep.subr.bf16.mxu0 0
        %3849 = vmatpush1.bf16.msra.mxu0 0
        %3850 = vmatprep.subr.bf16.mxu0 0
        %3851 = vmatpush1.bf16.msra.mxu0 0
        %3852 = vmatprep.subr.bf16.mxu0 0
        %3853 = vmatpush1.bf16.msra.mxu0 0
        %3854 = vmatprep.subr.bf16.mxu0 0
        %3855 = vmatpush1.bf16.msra.mxu0 0
        %3856 = vmatprep.subr.bf16.mxu0 0
        %3857 = vmatpush1.bf16.msra.mxu0 0
        %3858 = vmatprep.subr.bf16.mxu0 0
        %3859 = vmatpush1.bf16.msra.mxu0 0
        %3860 = vmatprep.subr.bf16.mxu0 0
        %3861 = vmatpush1.bf16.msra.mxu0 0
        %3862 = vmatprep.subr.bf16.mxu0 0
        %3863 = vmatpush1.bf16.msra.mxu0 0
        %3864 = vmatprep.subr.bf16.mxu0 0
        %3865 = vmatpush1.bf16.msra.mxu0 0
        %3866 = vmatprep.subr.bf16.mxu0 0
        %3867 = vmatpush1.bf16.msra.mxu0 0
        %3868 = vmatprep.subr.bf16.mxu0 0
        %3869 = vmatpush1.bf16.msra.mxu0 0
        %3870 = vmatprep.subr.bf16.mxu0 0
        %3871 = vmatpush1.bf16.msra.mxu0 0
        %3872 = vmatprep.subr.bf16.mxu0 0
        %3873 = vmatpush1.bf16.msra.mxu0 0
        %3874 = vmatprep.mubr.bf16.mxu0 0
        %3875 = vmatmul.mubr.bf16.gmra.mrb[0].mxu0 %v3840
        %v3876 = vpop.f32.mrb[0].mxu0
        %v3877 = vadd.f32 0.0, %v3876
        %v3878 = vpop.f32.mrb[0].mxu0
        %v3879 = vpop.f32.mrb[0].mxu0
        %v3880 = vadd.f32 0.0, %v3879
        %v3881 = vpop.f32.mrb[0].mxu0
        %3882 = vdwg.mxu0
        %v3883 = vpack.c.bf16 %v3880, %v3877
        %v3884 = vld [vmem:[%s3760 + $0x4] sm:$0xf]
        %v3886 = vsel %vm726, %v3883, 0
        %v3889 = vsel %vm973, %v3884, 0
        %3891 = vmatprep.subr.bf16.mxu0 0
        %3892 = vmatpush1.bf16.msra.mxu0 %v3889
        %3893 = vmatprep.subr.bf16.mxu0 0
        %3894 = vmatpush1.bf16.msra.mxu0 0
        %3895 = vmatprep.subr.bf16.mxu0 0
        %3896 = vmatpush1.bf16.msra.mxu0 0
        %3897 = vmatprep.subr.bf16.mxu0 0
        %3898 = vmatpush1.bf16.msra.mxu0 0
        %3899 = vmatprep.subr.bf16.mxu0 0
        %3900 = vmatpush1.bf16.msra.mxu0 0
        %3901 = vmatprep.subr.bf16.mxu0 0
        %3902 = vmatpush1.bf16.msra.mxu0 0
        %3903 = vmatprep.subr.bf16.mxu0 0
        %3904 = vmatpush1.bf16.msra.mxu0 0
        %3905 = vmatprep.subr.bf16.mxu0 0
        %3906 = vmatpush1.bf16.msra.mxu0 0
        %3907 = vmatprep.subr.bf16.mxu0 0
        %3908 = vmatpush1.bf16.msra.mxu0 0
        %3909 = vmatprep.subr.bf16.mxu0 0
        %3910 = vmatpush1.bf16.msra.mxu0 0
        %3911 = vmatprep.subr.bf16.mxu0 0
        %3912 = vmatpush1.bf16.msra.mxu0 0
        %3913 = vmatprep.subr.bf16.mxu0 0
        %3914 = vmatpush1.bf16.msra.mxu0 0
        %3915 = vmatprep.subr.bf16.mxu0 0
        %3916 = vmatpush1.bf16.msra.mxu0 0
        %3917 = vmatprep.subr.bf16.mxu0 0
        %3918 = vmatpush1.bf16.msra.mxu0 0
        %3919 = vmatprep.subr.bf16.mxu0 0
        %3920 = vmatpush1.bf16.msra.mxu0 0
        %3921 = vmatprep.subr.bf16.mxu0 0
        %3922 = vmatpush1.bf16.msra.mxu0 0
        %3923 = vmatprep.mubr.bf16.mxu0 0
        %3924 = vmatmul.mubr.bf16.gmra.mrb[0].mxu0 %v3886
        %v3925 = vpop.f32.mrb[0].mxu0
        %v3926 = vadd.f32 0.0, %v3925
        %v3927 = vpop.f32.mrb[0].mxu0
        %v3928 = vpop.f32.mrb[0].mxu0
        %v3929 = vadd.f32 0.0, %v3928
        %v3930 = vpop.f32.mrb[0].mxu0
        %3931 = vdwg.mxu0
        %v3933 = vsel %vm726, %v3759, 0
        %v3936 = vsel %vm973, %v3761, 0
        %3938 = vmatprep.subr.bf16.mxu0 0
        %3939 = vmatpush1.bf16.msra.mxu0 %v3936
        %3940 = vmatprep.subr.bf16.mxu0 0
        %3941 = vmatpush1.bf16.msra.mxu0 0
        %3942 = vmatprep.subr.bf16.mxu0 0
        %3943 = vmatpush1.bf16.msra.mxu0 0
        %3944 = vmatprep.subr.bf16.mxu0 0
        %3945 = vmatpush1.bf16.msra.mxu0 0
        %3946 = vmatprep.subr.bf16.mxu0 0
        %3947 = vmatpush1.bf16.msra.mxu0 0
        %3948 = vmatprep.subr.bf16.mxu0 0
        %3949 = vmatpush1.bf16.msra.mxu0 0
        %3950 = vmatprep.subr.bf16.mxu0 0
        %3951 = vmatpush1.bf16.msra.mxu0 0
        %3952 = vmatprep.subr.bf16.mxu0 0
        %3953 = vmatpush1.bf16.msra.mxu0 0
        %3954 = vmatprep.subr.bf16.mxu0 0
        %3955 = vmatpush1.bf16.msra.mxu0 0
        %3956 = vmatprep.subr.bf16.mxu0 0
        %3957 = vmatpush1.bf16.msra.mxu0 0
        %3958 = vmatprep.subr.bf16.mxu0 0
        %3959 = vmatpush1.bf16.msra.mxu0 0
        %3960 = vmatprep.subr.bf16.mxu0 0
        %3961 = vmatpush1.bf16.msra.mxu0 0
        %3962 = vmatprep.subr.bf16.mxu0 0
        %3963 = vmatpush1.bf16.msra.mxu0 0
        %3964 = vmatprep.subr.bf16.mxu0 0
        %3965 = vmatpush1.bf16.msra.mxu0 0
        %3966 = vmatprep.subr.bf16.mxu0 0
        %3967 = vmatpush1.bf16.msra.mxu0 0
        %3968 = vmatprep.subr.bf16.mxu0 0
        %3969 = vmatpush1.bf16.msra.mxu0 0
        %3970 = vmatprep.mubr.bf16.mxu0 0
        %3971 = vmatmul.mubr.bf16.gmra.mrb[0].mxu0 %v3933
        %v3972 = vpop.f32.mrb[0].mxu0
        %v3973 = vadd.f32 %v3926, %v3972
        %v3974 = vpop.f32.mrb[0].mxu0
        %v3975 = vpop.f32.mrb[0].mxu0
        %v3976 = vadd.f32 %v3929, %v3975
        %v3977 = vpop.f32.mrb[0].mxu0
        %3978 = vdwg.mxu0
        %3979 = vrot.lane.b32.xlu0 %v3638, 112
        %v3980 = vpop.permute.xlu0 %3979
        %3981 = vrot.lane.b32.xlu0 %v3638, 80
        %v3982 = vpop.permute.xlu0 %3981
        %v3984 = vsel %vm726, %v3980, 0
        %v3987 = vsel %vm726, %v3982, 0
        %3989 = vmatprep.subr.bf16.mxu0 0
        %3990 = vmatpush1.bf16.xpose.msra.mxu0 %v3987
        %3991 = vmatprep.subr.bf16.mxu0 0
        %3992 = vmatpush1.bf16.xpose.msra.mxu0 0
        %3993 = vmatprep.subr.bf16.mxu0 0
        %3994 = vmatpush1.bf16.xpose.msra.mxu0 0
        %3995 = vmatprep.subr.bf16.mxu0 0
        %3996 = vmatpush1.bf16.xpose.msra.mxu0 0
        %3997 = vmatprep.subr.bf16.mxu0 0
        %3998 = vmatpush1.bf16.xpose.msra.mxu0 0
        %3999 = vmatprep.subr.bf16.mxu0 0
        %4000 = vmatpush1.bf16.xpose.msra.mxu0 0
        %4001 = vmatprep.subr.bf16.mxu0 0
        %4002 = vmatpush1.bf16.xpose.msra.mxu0 0
        %4003 = vmatprep.subr.bf16.mxu0 0
        %4004 = vmatpush1.bf16.xpose.msra.mxu0 0
        %4005 = vmatprep.subr.bf16.mxu0 0
        %4006 = vmatpush1.bf16.xpose.msra.mxu0 0
        %4007 = vmatprep.subr.bf16.mxu0 0
        %4008 = vmatpush1.bf16.xpose.msra.mxu0 0
        %4009 = vmatprep.subr.bf16.mxu0 0
        %4010 = vmatpush1.bf16.xpose.msra.mxu0 0
        %4011 = vmatprep.subr.bf16.mxu0 0
        %4012 = vmatpush1.bf16.xpose.msra.mxu0 0
        %4013 = vmatprep.subr.bf16.mxu0 0
        %4014 = vmatpush1.bf16.xpose.msra.mxu0 0
        %4015 = vmatprep.subr.bf16.mxu0 0
        %4016 = vmatpush1.bf16.xpose.msra.mxu0 0
        %4017 = vmatprep.subr.bf16.mxu0 0
        %4018 = vmatpush1.bf16.xpose.msra.mxu0 0
        %4019 = vmatprep.subr.bf16.mxu0 0
        %4020 = vmatpush1.bf16.xpose.msra.mxu0 0
        %4021 = vmatprep.mubr.bf16.mxu0 0
        %4022 = vmatmul.mubr.bf16.gmra.mrb[0].mxu0 %v3984
        %v4023 = vpop.f32.mrb[0].mxu0
        %v4024 = vadd.f32 %v651, %v4023
        %v4025 = vpop.f32.mrb[0].mxu0
        %v4026 = vpop.f32.mrb[0].mxu0
        %v4027 = vadd.f32 %v652, %v4026
        %v4028 = vpop.f32.mrb[0].mxu0
        %4029 = vdwg.mxu0
        %v4030 = vsel %vm774, %v4024, -inf
        %4031 = vmax.xlane.f32.xlu0 %v4030
        %v4032 = vpop.xlane.xlu0 %4031
        %v4033 = vsel %vm774, %v4027, -inf
        %4034 = vmax.xlane.f32.xlu0 %v4033
        %v4035 = vpop.xlane.xlu0 %4034
        %v4036 = vsub.f32 %v4024, %v4032
        %v4037 = vsub.f32 %v4027, %v4035
        %v4038 = vmul.f32 %v4036, 1.442695
        %v4039 = vpow.pop %v4038
        %v4040 = vmul.f32 %v4037, 1.442695
        %v4041 = vpow.pop %v4040
        %v4042 = vsel %vm774, %v4039, 0.0
        %4043 = vadd.xlane.f32.xlu0 %v4042
        %v4044 = vpop.xlane.xlu0 %4043
        %v4045 = vsel %vm774, %v4041, 0.0
        %4046 = vadd.xlane.f32.xlu0 %v4045
        %v4047 = vpop.xlane.xlu0 %4046
        %v4048 = vrcp.pop %v4044
        %v4049 = vrcp.pop %v4047
        %v4050 = vmul.f32 %v4039, %v4048
        %v4051 = vmul.f32 %v4041, %v4049
        %v4052 = vpack.c.bf16 %v4051, %v4050
        %4053 = vrot.lane.b32.xlu0 %v3638, 48
        %v4054 = vpop.permute.xlu0 %4053
        %v4057 = vsel %vm774, %v4052, 0
        %4059 = vmatprep.subr.bf16.mxu0 0
        %4060 = vmatpush1.bf16.msra.mxu0 %v4054
        %4061 = vmatprep.subr.bf16.mxu0 0
        %4062 = vmatpush1.bf16.msra.mxu0 0
        %4063 = vmatprep.subr.bf16.mxu0 0
        %4064 = vmatpush1.bf16.msra.mxu0 0
        %4065 = vmatprep.subr.bf16.mxu0 0
        %4066 = vmatpush1.bf16.msra.mxu0 0
        %4067 = vmatprep.subr.bf16.mxu0 0
        %4068 = vmatpush1.bf16.msra.mxu0 0
        %4069 = vmatprep.subr.bf16.mxu0 0
        %4070 = vmatpush1.bf16.msra.mxu0 0
        %4071 = vmatprep.subr.bf16.mxu0 0
        %4072 = vmatpush1.bf16.msra.mxu0 0
        %4073 = vmatprep.subr.bf16.mxu0 0
        %4074 = vmatpush1.bf16.msra.mxu0 0
        %4075 = vmatprep.subr.bf16.mxu0 0
        %4076 = vmatpush1.bf16.msra.mxu0 0
        %4077 = vmatprep.subr.bf16.mxu0 0
        %4078 = vmatpush1.bf16.msra.mxu0 0
        %4079 = vmatprep.subr.bf16.mxu0 0
        %4080 = vmatpush1.bf16.msra.mxu0 0
        %4081 = vmatprep.subr.bf16.mxu0 0
        %4082 = vmatpush1.bf16.msra.mxu0 0
        %4083 = vmatprep.subr.bf16.mxu0 0
        %4084 = vmatpush1.bf16.msra.mxu0 0
        %4085 = vmatprep.subr.bf16.mxu0 0
        %4086 = vmatpush1.bf16.msra.mxu0 0
        %4087 = vmatprep.subr.bf16.mxu0 0
        %4088 = vmatpush1.bf16.msra.mxu0 0
        %4089 = vmatprep.subr.bf16.mxu0 0
        %4090 = vmatpush1.bf16.msra.mxu0 0
        %4091 = vmatprep.mubr.bf16.mxu0 0
        %4092 = vmatmul.mubr.bf16.gmra.mrb[0].mxu0 %v4057
        %v4093 = vpop.f32.mrb[0].mxu0
        %v4094 = vadd.f32 0.0, %v4093
        %v4095 = vpop.f32.mrb[0].mxu0
        %v4096 = vpop.f32.mrb[0].mxu0
        %v4097 = vadd.f32 0.0, %v4096
        %v4098 = vpop.f32.mrb[0].mxu0
        %4099 = vdwg.mxu0
        %v4100 = vpack.c.bf16 %v4097, %v4094
        %v4101 = vld [vmem:[%s3760 + $0x8] sm:$0xf]
        %v4103 = vsel %vm726, %v4100, 0
        %v4106 = vsel %vm973, %v4101, 0
        %4108 = vmatprep.subr.bf16.mxu0 0
        %4109 = vmatpush1.bf16.msra.mxu0 %v4106
        %4110 = vmatprep.subr.bf16.mxu0 0
        %4111 = vmatpush1.bf16.msra.mxu0 0
        %4112 = vmatprep.subr.bf16.mxu0 0
        %4113 = vmatpush1.bf16.msra.mxu0 0
        %4114 = vmatprep.subr.bf16.mxu0 0
        %4115 = vmatpush1.bf16.msra.mxu0 0
        %4116 = vmatprep.subr.bf16.mxu0 0
        %4117 = vmatpush1.bf16.msra.mxu0 0
        %4118 = vmatprep.subr.bf16.mxu0 0
        %4119 = vmatpush1.bf16.msra.mxu0 0
        %4120 = vmatprep.subr.bf16.mxu0 0
        %4121 = vmatpush1.bf16.msra.mxu0 0
        %4122 = vmatprep.subr.bf16.mxu0 0
        %4123 = vmatpush1.bf16.msra.mxu0 0
        %4124 = vmatprep.subr.bf16.mxu0 0
        %4125 = vmatpush1.bf16.msra.mxu0 0
        %4126 = vmatprep.subr.bf16.mxu0 0
        %4127 = vmatpush1.bf16.msra.mxu0 0
        %4128 = vmatprep.subr.bf16.mxu0 0
        %4129 = vmatpush1.bf16.msra.mxu0 0
        %4130 = vmatprep.subr.bf16.mxu0 0
        %4131 = vmatpush1.bf16.msra.mxu0 0
        %4132 = vmatprep.subr.bf16.mxu0 0
        %4133 = vmatpush1.bf16.msra.mxu0 0
        %4134 = vmatprep.subr.bf16.mxu0 0
        %4135 = vmatpush1.bf16.msra.mxu0 0
        %4136 = vmatprep.subr.bf16.mxu0 0
        %4137 = vmatpush1.bf16.msra.mxu0 0
        %4138 = vmatprep.subr.bf16.mxu0 0
        %4139 = vmatpush1.bf16.msra.mxu0 0
        %4140 = vmatprep.mubr.bf16.mxu0 0
        %4141 = vmatmul.mubr.bf16.gmra.mrb[0].mxu0 %v4103
        %v4142 = vpop.f32.mrb[0].mxu0
        %v4143 = vadd.f32 0.0, %v4142
        %v4144 = vpop.f32.mrb[0].mxu0
        %v4145 = vpop.f32.mrb[0].mxu0
        %v4146 = vadd.f32 0.0, %v4145
        %v4147 = vpop.f32.mrb[0].mxu0
        %4148 = vdwg.mxu0
        %v4149 = vadd.f32 %v3973, %v4143
        %v4150 = vadd.f32 %v3976, %v4146
        %4151 = vrot.lane.b32.xlu0 %v3638, 104
        %v4152 = vpop.permute.xlu0 %4151
        %4153 = vrot.lane.b32.xlu0 %v3638, 72
        %v4154 = vpop.permute.xlu0 %4153
        %v4156 = vsel %vm726, %v4152, 0
        %v4159 = vsel %vm726, %v4154, 0
        %4161 = vmatprep.subr.bf16.mxu0 0
        %4162 = vmatpush1.bf16.xpose.msra.mxu0 %v4159
        %4163 = vmatprep.subr.bf16.mxu0 0
        %4164 = vmatpush1.bf16.xpose.msra.mxu0 0
        %4165 = vmatprep.subr.bf16.mxu0 0
        %4166 = vmatpush1.bf16.xpose.msra.mxu0 0
        %4167 = vmatprep.subr.bf16.mxu0 0
        %4168 = vmatpush1.bf16.xpose.msra.mxu0 0
        %4169 = vmatprep.subr.bf16.mxu0 0
        %4170 = vmatpush1.bf16.xpose.msra.mxu0 0
        %4171 = vmatprep.subr.bf16.mxu0 0
        %4172 = vmatpush1.bf16.xpose.msra.mxu0 0
        %4173 = vmatprep.subr.bf16.mxu0 0
        %4174 = vmatpush1.bf16.xpose.msra.mxu0 0
        %4175 = vmatprep.subr.bf16.mxu0 0
        %4176 = vmatpush1.bf16.xpose.msra.mxu0 0
        %4177 = vmatprep.subr.bf16.mxu0 0
        %4178 = vmatpush1.bf16.xpose.msra.mxu0 0
        %4179 = vmatprep.subr.bf16.mxu0 0
        %4180 = vmatpush1.bf16.xpose.msra.mxu0 0
        %4181 = vmatprep.subr.bf16.mxu0 0
        %4182 = vmatpush1.bf16.xpose.msra.mxu0 0
        %4183 = vmatprep.subr.bf16.mxu0 0
        %4184 = vmatpush1.bf16.xpose.msra.mxu0 0
        %4185 = vmatprep.subr.bf16.mxu0 0
        %4186 = vmatpush1.bf16.xpose.msra.mxu0 0
        %4187 = vmatprep.subr.bf16.mxu0 0
        %4188 = vmatpush1.bf16.xpose.msra.mxu0 0
        %4189 = vmatprep.subr.bf16.mxu0 0
        %4190 = vmatpush1.bf16.xpose.msra.mxu0 0
        %4191 = vmatprep.subr.bf16.mxu0 0
        %4192 = vmatpush1.bf16.xpose.msra.mxu0 0
        %4193 = vmatprep.mubr.bf16.mxu0 0
        %4194 = vmatmul.mubr.bf16.gmra.mrb[0].mxu0 %v4156
        %v4195 = vpop.f32.mrb[0].mxu0
        %v4196 = vadd.f32 %v651, %v4195
        %v4197 = vpop.f32.mrb[0].mxu0
        %v4198 = vpop.f32.mrb[0].mxu0
        %v4199 = vadd.f32 %v652, %v4198
        %v4200 = vpop.f32.mrb[0].mxu0
        %4201 = vdwg.mxu0
        %v4202 = vsel %vm774, %v4196, -inf
        %4203 = vmax.xlane.f32.xlu0 %v4202
        %v4204 = vpop.xlane.xlu0 %4203
        %v4205 = vsel %vm774, %v4199, -inf
        %4206 = vmax.xlane.f32.xlu0 %v4205
        %v4207 = vpop.xlane.xlu0 %4206
        %v4208 = vsub.f32 %v4196, %v4204
        %v4209 = vsub.f32 %v4199, %v4207
        %v4210 = vmul.f32 %v4208, 1.442695
        %v4211 = vpow.pop %v4210
        %v4212 = vmul.f32 %v4209, 1.442695
        %v4213 = vpow.pop %v4212
        %v4214 = vsel %vm774, %v4211, 0.0
        %4215 = vadd.xlane.f32.xlu0 %v4214
        %v4216 = vpop.xlane.xlu0 %4215
        %v4217 = vsel %vm774, %v4213, 0.0
        %4218 = vadd.xlane.f32.xlu0 %v4217
        %v4219 = vpop.xlane.xlu0 %4218
        %v4220 = vrcp.pop %v4216
        %v4221 = vrcp.pop %v4219
        %v4222 = vmul.f32 %v4211, %v4220
        %v4223 = vmul.f32 %v4213, %v4221
        %v4224 = vpack.c.bf16 %v4223, %v4222
        %4225 = vrot.lane.b32.xlu0 %v3638, 40
        %v4226 = vpop.permute.xlu0 %4225
        %v4229 = vsel %vm774, %v4224, 0
        %4231 = vmatprep.subr.bf16.mxu0 0
        %4232 = vmatpush1.bf16.msra.mxu0 %v4226
        %4233 = vmatprep.subr.bf16.mxu0 0
        %4234 = vmatpush1.bf16.msra.mxu0 0
        %4235 = vmatprep.subr.bf16.mxu0 0
        %4236 = vmatpush1.bf16.msra.mxu0 0
        %4237 = vmatprep.subr.bf16.mxu0 0
        %4238 = vmatpush1.bf16.msra.mxu0 0
        %4239 = vmatprep.subr.bf16.mxu0 0
        %4240 = vmatpush1.bf16.msra.mxu0 0
        %4241 = vmatprep.subr.bf16.mxu0 0
        %4242 = vmatpush1.bf16.msra.mxu0 0
        %4243 = vmatprep.subr.bf16.mxu0 0
        %4244 = vmatpush1.bf16.msra.mxu0 0
        %4245 = vmatprep.subr.bf16.mxu0 0
        %4246 = vmatpush1.bf16.msra.mxu0 0
        %4247 = vmatprep.subr.bf16.mxu0 0
        %4248 = vmatpush1.bf16.msra.mxu0 0
        %4249 = vmatprep.subr.bf16.mxu0 0
        %4250 = vmatpush1.bf16.msra.mxu0 0
        %4251 = vmatprep.subr.bf16.mxu0 0
        %4252 = vmatpush1.bf16.msra.mxu0 0
        %4253 = vmatprep.subr.bf16.mxu0 0
        %4254 = vmatpush1.bf16.msra.mxu0 0
        %4255 = vmatprep.subr.bf16.mxu0 0
        %4256 = vmatpush1.bf16.msra.mxu0 0
        %4257 = vmatprep.subr.bf16.mxu0 0
        %4258 = vmatpush1.bf16.msra.mxu0 0
        %4259 = vmatprep.subr.bf16.mxu0 0
        %4260 = vmatpush1.bf16.msra.mxu0 0
        %4261 = vmatprep.subr.bf16.mxu0 0
        %4262 = vmatpush1.bf16.msra.mxu0 0
        %4263 = vmatprep.mubr.bf16.mxu0 0
        %4264 = vmatmul.mubr.bf16.gmra.mrb[0].mxu0 %v4229
        %v4265 = vpop.f32.mrb[0].mxu0
        %v4266 = vadd.f32 0.0, %v4265
        %v4267 = vpop.f32.mrb[0].mxu0
        %v4268 = vpop.f32.mrb[0].mxu0
        %v4269 = vadd.f32 0.0, %v4268
        %v4270 = vpop.f32.mrb[0].mxu0
        %4271 = vdwg.mxu0
        %v4272 = vpack.c.bf16 %v4269, %v4266
        %v4273 = vld [vmem:[%s3760 + $0xc] sm:$0xf]
        %v4275 = vsel %vm726, %v4272, 0
        %v4278 = vsel %vm973, %v4273, 0
        %4280 = vmatprep.subr.bf16.mxu0 0
        %4281 = vmatpush1.bf16.msra.mxu0 %v4278
        %4282 = vmatprep.subr.bf16.mxu0 0
        %4283 = vmatpush1.bf16.msra.mxu0 0
        %4284 = vmatprep.subr.bf16.mxu0 0
        %4285 = vmatpush1.bf16.msra.mxu0 0
        %4286 = vmatprep.subr.bf16.mxu0 0
        %4287 = vmatpush1.bf16.msra.mxu0 0
        %4288 = vmatprep.subr.bf16.mxu0 0
        %4289 = vmatpush1.bf16.msra.mxu0 0
        %4290 = vmatprep.subr.bf16.mxu0 0
        %4291 = vmatpush1.bf16.msra.mxu0 0
        %4292 = vmatprep.subr.bf16.mxu0 0
        %4293 = vmatpush1.bf16.msra.mxu0 0
        %4294 = vmatprep.subr.bf16.mxu0 0
        %4295 = vmatpush1.bf16.msra.mxu0 0
        %4296 = vmatprep.subr.bf16.mxu0 0
        %4297 = vmatpush1.bf16.msra.mxu0 0
        %4298 = vmatprep.subr.bf16.mxu0 0
        %4299 = vmatpush1.bf16.msra.mxu0 0
        %4300 = vmatprep.subr.bf16.mxu0 0
        %4301 = vmatpush1.bf16.msra.mxu0 0
        %4302 = vmatprep.subr.bf16.mxu0 0
        %4303 = vmatpush1.bf16.msra.mxu0 0
        %4304 = vmatprep.subr.bf16.mxu0 0
        %4305 = vmatpush1.bf16.msra.mxu0 0
        %4306 = vmatprep.subr.bf16.mxu0 0
        %4307 = vmatpush1.bf16.msra.mxu0 0
        %4308 = vmatprep.subr.bf16.mxu0 0
        %4309 = vmatpush1.bf16.msra.mxu0 0
        %4310 = vmatprep.subr.bf16.mxu0 0
        %4311 = vmatpush1.bf16.msra.mxu0 0
        %4312 = vmatprep.mubr.bf16.mxu0 0
        %4313 = vmatmul.mubr.bf16.gmra.mrb[0].mxu0 %v4275
        %v4314 = vpop.f32.mrb[0].mxu0
        %v4315 = vadd.f32 0.0, %v4314
        %v4316 = vpop.f32.mrb[0].mxu0
        %v4317 = vpop.f32.mrb[0].mxu0
        %v4318 = vadd.f32 0.0, %v4317
        %v4319 = vpop.f32.mrb[0].mxu0
        %4320 = vdwg.mxu0
        %v4321 = vadd.f32 %v4149, %v4315
        %v4322 = vadd.f32 %v4150, %v4318
        %s4323 = scalar_lea.vmem %s8, 1
        %v4324 = vld [vmem:[%s4323] sm:$0x1]
        %v4326 = vlaneseq
        %v4327 = vshrl.u32 %v4326, 7
        %v4328 = vsub.s32 0, %v4327
        %v4329 = vrot.slane %v4324, %v4328
        %v4331 = vadd.f32 %v4321, %v4329
        %v4332 = vadd.f32 %v4322, %v4329
        %v4333 = vadd.f32 %v3566, %v4331
        %v4334 = vadd.f32 %v3567, %v4332
        %s4335 = scalar_lea.vmem %s9, 1
        %v4336 = vld [vmem:[%s4335] sm:$0x1]
        %s4337 = scalar_lea.vmem %s10, 1
        %v4338 = vld [vmem:[%s4337] sm:$0x1]
        %v4339 = vsel %vm677, %v4333, 0.0
        %4340 = vadd.xlane.f32.xlu0 %v4339
        %v4341 = vpop.xlane.xlu0 %4340
        %v4342 = vsel %vm677, %v4334, 0.0
        %4343 = vadd.xlane.f32.xlu0 %v4342
        %v4344 = vpop.xlane.xlu0 %4343
        %v4345 = vmul.f32 %v4341, %v1428
        %v4346 = vmul.f32 %v4344, %v1428
        %v4347 = vsub.f32 %v4333, %v4345
        %v4348 = vsub.f32 %v4334, %v4346
        %v4349 = vmul.f32 %v4347, %v4347
        %v4350 = vmul.f32 %v4348, %v4348
        %v4351 = vsel %vm677, %v4349, 0.0
        %4352 = vadd.xlane.f32.xlu0 %v4351
        %v4353 = vpop.xlane.xlu0 %4352
        %v4354 = vsel %vm677, %v4350, 0.0
        %4355 = vadd.xlane.f32.xlu0 %v4354
        %v4356 = vpop.xlane.xlu0 %4355
        %v4357 = vmul.f32 %v4353, %v1428
        %v4358 = vmul.f32 %v4356, %v1428
        %v4359 = vadd.f32 %v4357, 1e-05
        %v4360 = vadd.f32 %v4358, 1e-05
        %v4361 = vrsqrt.pop %v4359
        %v4362 = vrsqrt.pop %v4360
        %v4363 = vmul.f32 %v4347, %v4361
        %v4364 = vmul.f32 %v4348, %v4362
        %v4366 = vlaneseq
        %v4367 = vshrl.u32 %v4366, 7
        %v4368 = vsub.s32 0, %v4367
        %v4369 = vrot.slane %v4336, %v4368
        %v4371 = vmul.f32 %v4363, %v4369
        %v4372 = vmul.f32 %v4364, %v4369
        %v4374 = vlaneseq
        %v4375 = vshrl.u32 %v4374, 7
        %v4376 = vsub.s32 0, %v4375
        %v4377 = vrot.slane %v4338, %v4376
        %v4379 = vadd.f32 %v4371, %v4377
        %v4380 = vadd.f32 %v4372, %v4377
        %v4381 = vpack.c.bf16 %v4380, %v4379
        %s4382 = scalar_lea.vmem %s13, 256
        %v4383 = vld [vmem:[%s4382] sm:$0xff]
        %v4384 = vld [vmem:[%s4382 + $0x40] sm:$0xff]
        %v4385 = vld [vmem:[%s4382 + $0x80] sm:$0xff]
        %v4386 = vld [vmem:[%s4382 + $0xc0] sm:$0xff]
        %s4387 = scalar_lea.vmem %s14, 16
        %v4388 = vld [vmem:[%s4387] sm:$0x3]
        %v4390 = vlaneseq
        %v4391 = vshrl.u32 %v4390, 7
        %v4392 = vsub.s32 0, %v4391
        %v4393 = vrot.slane %v4388, %v4392
        %v4394 = vlaneseq
        %v4395 = vshrl.u32 %v4394, 7
        %v4396 = vsub.s32 1, %v4395
        %v4397 = vrot.slane %v4388, %v4396
        %v4404 = vunpack.c.l.b16 %v4383
        %v4405 = vunpack.c.h.b16 %v4383
        %v4406 = vunpack.c.l.b16 %v4384
        %v4407 = vunpack.c.h.b16 %v4384
        %v4408 = vunpack.c.l.b16 %v4385
        %v4409 = vunpack.c.h.b16 %v4385
        %v4410 = vunpack.c.l.b16 %v4386
        %v4411 = vunpack.c.h.b16 %v4386
        %v4412 = vpack.c.b16 %v4406, %v4404
        %v4413 = vpack.c.b16 %v4407, %v4405
        %v4414 = vpack.c.b16 %v4410, %v4408
        %v4415 = vpack.c.b16 %v4411, %v4409
        %v4421 = vsel %vm677, %v4381, 0
        %4423 = vmatprep.subr.bf16.mxu0 %v4413
        %4424 = vmatpush1.bf16.msra.mxu0 %v4412
        %4425 = vmatprep.subr.bf16.mxu0 %v4415
        %4426 = vmatpush1.bf16.msra.mxu0 %v4414
        %4427 = vmatprep.subr.bf16.mxu0 0
        %4428 = vmatpush1.bf16.msra.mxu0 0
        %4429 = vmatprep.subr.bf16.mxu0 0
        %4430 = vmatpush1.bf16.msra.mxu0 0
        %4431 = vmatprep.subr.bf16.mxu0 0
        %4432 = vmatpush1.bf16.msra.mxu0 0
        %4433 = vmatprep.subr.bf16.mxu0 0
        %4434 = vmatpush1.bf16.msra.mxu0 0
        %4435 = vmatprep.subr.bf16.mxu0 0
        %4436 = vmatpush1.bf16.msra.mxu0 0
        %4437 = vmatprep.subr.bf16.mxu0 0
        %4438 = vmatpush1.bf16.msra.mxu0 0
        %4439 = vmatprep.subr.bf16.mxu0 0
        %4440 = vmatpush1.bf16.msra.mxu0 0
        %4441 = vmatprep.subr.bf16.mxu0 0
        %4442 = vmatpush1.bf16.msra.mxu0 0
        %4443 = vmatprep.subr.bf16.mxu0 0
        %4444 = vmatpush1.bf16.msra.mxu0 0
        %4445 = vmatprep.subr.bf16.mxu0 0
        %4446 = vmatpush1.bf16.msra.mxu0 0
        %4447 = vmatprep.subr.bf16.mxu0 0
        %4448 = vmatpush1.bf16.msra.mxu0 0
        %4449 = vmatprep.subr.bf16.mxu0 0
        %4450 = vmatpush1.bf16.msra.mxu0 0
        %4451 = vmatprep.subr.bf16.mxu0 0
        %4452 = vmatpush1.bf16.msra.mxu0 0
        %4453 = vmatprep.subr.bf16.mxu0 0
        %4454 = vmatpush1.bf16.msra.mxu0 0
        %4455 = vmatprep.mubr.bf16.mxu0 0
        %4456 = vmatmul.mubr.bf16.gmra.mrb[0].mxu0 %v4421
        %v4457 = vpop.f32.mrb[0].mxu0
        %v4458 = vadd.f32 %v4393, %v4457
        %v4459 = vpop.f32.mrb[0].mxu0
        %v4460 = vadd.f32 %v4397, %v4459
        %v4461 = vpop.f32.mrb[0].mxu0
        %v4462 = vadd.f32 %v4393, %v4461
        %v4463 = vpop.f32.mrb[0].mxu0
        %v4464 = vadd.f32 %v4397, %v4463
        %4465 = vdwg.mxu0
        %v4466 = vmax.f32 %v4458, 0.0
        %v4467 = vmax.f32 %v4460, 0.0
        %v4468 = vmax.f32 %v4462, 0.0
        %v4469 = vmax.f32 %v4464, 0.0
        %v4470 = vpack.c.bf16 %v4468, %v4466
        %v4471 = vpack.c.bf16 %v4469, %v4467
        %s4472 = scalar_lea.vmem [#allocation3], 1024
        %v4473 = vld [vmem:[%s4472] sm:$0xf]
        %v4474 = vld [vmem:[%s4472 + $0x4] sm:$0xf]
        %v4475 = vld [vmem:[%s4472 + $0x8] sm:$0xf]
        %v4476 = vld [vmem:[%s4472 + $0xc] sm:$0xf]
        %v4477 = vld [vmem:[%s4472 + $0x10] sm:$0xf]
        %v4478 = vld [vmem:[%s4472 + $0x14] sm:$0xf]
        %v4479 = vld [vmem:[%s4472 + $0x18] sm:$0xf]
        %v4480 = vld [vmem:[%s4472 + $0x1c] sm:$0xf]
        %v4481 = vld [vmem:[%s4472 + $0x20] sm:$0xf]
        %v4482 = vld [vmem:[%s4472 + $0x24] sm:$0xf]
        %v4483 = vld [vmem:[%s4472 + $0x28] sm:$0xf]
        %v4484 = vld [vmem:[%s4472 + $0x2c] sm:$0xf]
        %v4485 = vld [vmem:[%s4472 + $0x30] sm:$0xf]
        %v4486 = vld [vmem:[%s4472 + $0x34] sm:$0xf]
        %v4487 = vld [vmem:[%s4472 + $0x38] sm:$0xf]
        %v4488 = vld [vmem:[%s4472 + $0x3c] sm:$0xf]
        %v4489 = vld [vmem:[%s4472 + $0x40] sm:$0xf]
        %v4490 = vld [vmem:[%s4472 + $0x44] sm:$0xf]
        %v4491 = vld [vmem:[%s4472 + $0x48] sm:$0xf]
        %v4492 = vld [vmem:[%s4472 + $0x4c] sm:$0xf]
        %v4493 = vld [vmem:[%s4472 + $0x50] sm:$0xf]
        %v4494 = vld [vmem:[%s4472 + $0x54] sm:$0xf]
        %v4495 = vld [vmem:[%s4472 + $0x58] sm:$0xf]
        %v4496 = vld [vmem:[%s4472 + $0x5c] sm:$0xf]
        %v4497 = vld [vmem:[%s4472 + $0x60] sm:$0xf]
        %v4498 = vld [vmem:[%s4472 + $0x64] sm:$0xf]
        %v4499 = vld [vmem:[%s4472 + $0x68] sm:$0xf]
        %v4500 = vld [vmem:[%s4472 + $0x6c] sm:$0xf]
        %v4501 = vld [vmem:[%s4472 + $0x70] sm:$0xf]
        %v4502 = vld [vmem:[%s4472 + $0x74] sm:$0xf]
        %v4503 = vld [vmem:[%s4472 + $0x78] sm:$0xf]
        %v4504 = vld [vmem:[%s4472 + $0x7c] sm:$0xf]
        %v4505 = vld [vmem:[%s4382 + $0x8] sm:$0xff]
        %v4506 = vld [vmem:[%s4382 + $0x48] sm:$0xff]
        %v4507 = vld [vmem:[%s4382 + $0x88] sm:$0xff]
        %v4508 = vld [vmem:[%s4382 + $0xc8] sm:$0xff]
        %v4509 = vld [vmem:[%s4387 + $0x2] sm:$0x3]
        %v4511 = vlaneseq
        %v4512 = vshrl.u32 %v4511, 7
        %v4513 = vsub.s32 0, %v4512
        %v4514 = vrot.slane %v4509, %v4513
        %v4515 = vlaneseq
        %v4516 = vshrl.u32 %v4515, 7
        %v4517 = vsub.s32 1, %v4516
        %v4518 = vrot.slane %v4509, %v4517
        %v4525 = vunpack.c.l.b16 %v4505
        %v4526 = vunpack.c.h.b16 %v4505
        %v4527 = vunpack.c.l.b16 %v4506
        %v4528 = vunpack.c.h.b16 %v4506
        %v4529 = vunpack.c.l.b16 %v4507
        %v4530 = vunpack.c.h.b16 %v4507
        %v4531 = vunpack.c.l.b16 %v4508
        %v4532 = vunpack.c.h.b16 %v4508
        %v4533 = vpack.c.b16 %v4527, %v4525
        %v4534 = vpack.c.b16 %v4528, %v4526
        %v4535 = vpack.c.b16 %v4531, %v4529
        %v4536 = vpack.c.b16 %v4532, %v4530
        %4541 = vmatprep.subr.bf16.mxu0 %v4534
        %4542 = vmatpush1.bf16.msra.mxu0 %v4533
        %4543 = vmatprep.subr.bf16.mxu0 %v4536
        %4544 = vmatpush1.bf16.msra.mxu0 %v4535
        %4545 = vmatprep.subr.bf16.mxu0 0
        %4546 = vmatpush1.bf16.msra.mxu0 0
        %4547 = vmatprep.subr.bf16.mxu0 0
        %4548 = vmatpush1.bf16.msra.mxu0 0
        %4549 = vmatprep.subr.bf16.mxu0 0
        %4550 = vmatpush1.bf16.msra.mxu0 0
        %4551 = vmatprep.subr.bf16.mxu0 0
        %4552 = vmatpush1.bf16.msra.mxu0 0
        %4553 = vmatprep.subr.bf16.mxu0 0
        %4554 = vmatpush1.bf16.msra.mxu0 0
        %4555 = vmatprep.subr.bf16.mxu0 0
        %4556 = vmatpush1.bf16.msra.mxu0 0
        %4557 = vmatprep.subr.bf16.mxu0 0
        %4558 = vmatpush1.bf16.msra.mxu0 0
        %4559 = vmatprep.subr.bf16.mxu0 0
        %4560 = vmatpush1.bf16.msra.mxu0 0
        %4561 = vmatprep.subr.bf16.mxu0 0
        %4562 = vmatpush1.bf16.msra.mxu0 0
        %4563 = vmatprep.subr.bf16.mxu0 0
        %4564 = vmatpush1.bf16.msra.mxu0 0
        %4565 = vmatprep.subr.bf16.mxu0 0
        %4566 = vmatpush1.bf16.msra.mxu0 0
        %4567 = vmatprep.subr.bf16.mxu0 0
        %4568 = vmatpush1.bf16.msra.mxu0 0
        %4569 = vmatprep.subr.bf16.mxu0 0
        %4570 = vmatpush1.bf16.msra.mxu0 0
        %4571 = vmatprep.subr.bf16.mxu0 0
        %4572 = vmatpush1.bf16.msra.mxu0 0
        %4573 = vmatprep.mubr.bf16.mxu0 0
        %4574 = vmatmul.mubr.bf16.gmra.mrb[0].mxu0 %v4421
        %v4575 = vpop.f32.mrb[0].mxu0
        %v4576 = vadd.f32 %v4514, %v4575
        %v4577 = vpop.f32.mrb[0].mxu0
        %v4578 = vadd.f32 %v4518, %v4577
        %v4579 = vpop.f32.mrb[0].mxu0
        %v4580 = vadd.f32 %v4514, %v4579
        %v4581 = vpop.f32.mrb[0].mxu0
        %v4582 = vadd.f32 %v4518, %v4581
        %4583 = vdwg.mxu0
        %v4584 = vmax.f32 %v4576, 0.0
        %v4585 = vmax.f32 %v4578, 0.0
        %v4586 = vmax.f32 %v4580, 0.0
        %v4587 = vmax.f32 %v4582, 0.0
        %v4588 = vpack.c.bf16 %v4586, %v4584
        %v4589 = vpack.c.bf16 %v4587, %v4585
        %v4590 = vld [vmem:[%s4472 + $0x80] sm:$0xf]
        %v4591 = vld [vmem:[%s4472 + $0x84] sm:$0xf]
        %v4592 = vld [vmem:[%s4472 + $0x88] sm:$0xf]
        %v4593 = vld [vmem:[%s4472 + $0x8c] sm:$0xf]
        %v4594 = vld [vmem:[%s4472 + $0x90] sm:$0xf]
        %v4595 = vld [vmem:[%s4472 + $0x94] sm:$0xf]
        %v4596 = vld [vmem:[%s4472 + $0x98] sm:$0xf]
        %v4597 = vld [vmem:[%s4472 + $0x9c] sm:$0xf]
        %v4598 = vld [vmem:[%s4472 + $0xa0] sm:$0xf]
        %v4599 = vld [vmem:[%s4472 + $0xa4] sm:$0xf]
        %v4600 = vld [vmem:[%s4472 + $0xa8] sm:$0xf]
        %v4601 = vld [vmem:[%s4472 + $0xac] sm:$0xf]
        %v4602 = vld [vmem:[%s4472 + $0xb0] sm:$0xf]
        %v4603 = vld [vmem:[%s4472 + $0xb4] sm:$0xf]
        %v4604 = vld [vmem:[%s4472 + $0xb8] sm:$0xf]
        %v4605 = vld [vmem:[%s4472 + $0xbc] sm:$0xf]
        %v4606 = vld [vmem:[%s4472 + $0xc0] sm:$0xf]
        %v4607 = vld [vmem:[%s4472 + $0xc4] sm:$0xf]
        %v4608 = vld [vmem:[%s4472 + $0xc8] sm:$0xf]
        %v4609 = vld [vmem:[%s4472 + $0xcc] sm:$0xf]
        %v4610 = vld [vmem:[%s4472 + $0xd0] sm:$0xf]
        %v4611 = vld [vmem:[%s4472 + $0xd4] sm:$0xf]
        %v4612 = vld [vmem:[%s4472 + $0xd8] sm:$0xf]
        %v4613 = vld [vmem:[%s4472 + $0xdc] sm:$0xf]
        %v4614 = vld [vmem:[%s4472 + $0xe0] sm:$0xf]
        %v4615 = vld [vmem:[%s4472 + $0xe4] sm:$0xf]
        %v4616 = vld [vmem:[%s4472 + $0xe8] sm:$0xf]
        %v4617 = vld [vmem:[%s4472 + $0xec] sm:$0xf]
        %v4618 = vld [vmem:[%s4472 + $0xf0] sm:$0xf]
        %v4619 = vld [vmem:[%s4472 + $0xf4] sm:$0xf]
        %v4620 = vld [vmem:[%s4472 + $0xf8] sm:$0xf]
        %v4621 = vld [vmem:[%s4472 + $0xfc] sm:$0xf]
        %v4654 = vunpack.c.l.b16 %v4590
        %v4655 = vunpack.c.l.b16 %v4591
        %v4656 = vunpack.c.l.b16 %v4592
        %v4657 = vunpack.c.l.b16 %v4593
        %v4658 = vunpack.c.l.b16 %v4594
        %v4659 = vunpack.c.l.b16 %v4595
        %v4660 = vunpack.c.l.b16 %v4596
        %v4661 = vunpack.c.l.b16 %v4597
        %v4662 = vunpack.c.l.b16 %v4598
        %v4663 = vunpack.c.l.b16 %v4599
        %v4664 = vunpack.c.l.b16 %v4600
        %v4665 = vunpack.c.l.b16 %v4601
        %v4666 = vunpack.c.l.b16 %v4602
        %v4667 = vunpack.c.l.b16 %v4603
        %v4668 = vunpack.c.l.b16 %v4604
        %v4669 = vunpack.c.l.b16 %v4605
        %v4670 = vunpack.c.l.b16 %v4606
        %v4671 = vunpack.c.l.b16 %v4607
        %v4672 = vunpack.c.l.b16 %v4608
        %v4673 = vunpack.c.l.b16 %v4609
        %v4674 = vunpack.c.l.b16 %v4610
        %v4675 = vunpack.c.l.b16 %v4611
        %v4676 = vunpack.c.l.b16 %v4612
        %v4677 = vunpack.c.l.b16 %v4613
        %v4678 = vunpack.c.l.b16 %v4614
        %v4679 = vunpack.c.l.b16 %v4615
        %v4680 = vunpack.c.l.b16 %v4616
        %v4681 = vunpack.c.l.b16 %v4617
        %v4682 = vunpack.c.l.b16 %v4618
        %v4683 = vunpack.c.l.b16 %v4619
        %v4684 = vunpack.c.l.b16 %v4620
        %v4685 = vunpack.c.l.b16 %v4621
        %v4686 = vpack.c.b16 %v4655, %v4654
        %v4687 = vpack.c.b16 %v4657, %v4656
        %v4688 = vpack.c.b16 %v4659, %v4658
        %v4689 = vpack.c.b16 %v4661, %v4660
        %v4690 = vpack.c.b16 %v4663, %v4662
        %v4691 = vpack.c.b16 %v4665, %v4664
        %v4692 = vpack.c.b16 %v4667, %v4666
        %v4693 = vpack.c.b16 %v4669, %v4668
        %v4694 = vpack.c.b16 %v4671, %v4670
        %v4695 = vpack.c.b16 %v4673, %v4672
        %v4696 = vpack.c.b16 %v4675, %v4674
        %v4697 = vpack.c.b16 %v4677, %v4676
        %v4698 = vpack.c.b16 %v4679, %v4678
        %v4699 = vpack.c.b16 %v4681, %v4680
        %v4700 = vpack.c.b16 %v4683, %v4682
        %v4701 = vpack.c.b16 %v4685, %v4684
        %4718 = vmatprep.subr.bf16.mxu0 0
        %4719 = vmatpush1.bf16.msra.mxu0 %v4686
        %4720 = vmatprep.subr.bf16.mxu0 0
        %4721 = vmatpush1.bf16.msra.mxu0 %v4687
        %4722 = vmatprep.subr.bf16.mxu0 0
        %4723 = vmatpush1.bf16.msra.mxu0 %v4688
        %4724 = vmatprep.subr.bf16.mxu0 0
        %4725 = vmatpush1.bf16.msra.mxu0 %v4689
        %4726 = vmatprep.subr.bf16.mxu0 0
        %4727 = vmatpush1.bf16.msra.mxu0 %v4690
        %4728 = vmatprep.subr.bf16.mxu0 0
        %4729 = vmatpush1.bf16.msra.mxu0 %v4691
        %4730 = vmatprep.subr.bf16.mxu0 0
        %4731 = vmatpush1.bf16.msra.mxu0 %v4692
        %4732 = vmatprep.subr.bf16.mxu0 0
        %4733 = vmatpush1.bf16.msra.mxu0 %v4693
        %4734 = vmatprep.subr.bf16.mxu0 0
        %4735 = vmatpush1.bf16.msra.mxu0 %v4694
        %4736 = vmatprep.subr.bf16.mxu0 0
        %4737 = vmatpush1.bf16.msra.mxu0 %v4695
        %4738 = vmatprep.subr.bf16.mxu0 0
        %4739 = vmatpush1.bf16.msra.mxu0 %v4696
        %4740 = vmatprep.subr.bf16.mxu0 0
        %4741 = vmatpush1.bf16.msra.mxu0 %v4697
        %4742 = vmatprep.subr.bf16.mxu0 0
        %4743 = vmatpush1.bf16.msra.mxu0 %v4698
        %4744 = vmatprep.subr.bf16.mxu0 0
        %4745 = vmatpush1.bf16.msra.mxu0 %v4699
        %4746 = vmatprep.subr.bf16.mxu0 0
        %4747 = vmatpush1.bf16.msra.mxu0 %v4700
        %4748 = vmatprep.subr.bf16.mxu0 0
        %4749 = vmatpush1.bf16.msra.mxu0 %v4701
        %4750 = vmatprep.mubr.bf16.mxu0 %v4589
        %4751 = vmatmul.mubr.bf16.gmra.mrb[0].mxu0 %v4588
        %v4752 = vpop.f32.mrb[0].mxu0
        %v4753 = vadd.f32 0.0, %v4752
        %v4754 = vpop.f32.mrb[0].mxu0
        %v4755 = vpop.f32.mrb[0].mxu0
        %v4756 = vadd.f32 0.0, %v4755
        %v4757 = vpop.f32.mrb[0].mxu0
        %4758 = vdwg.mxu0
        %v4791 = vunpack.c.l.b16 %v4473
        %v4792 = vunpack.c.l.b16 %v4474
        %v4793 = vunpack.c.l.b16 %v4475
        %v4794 = vunpack.c.l.b16 %v4476
        %v4795 = vunpack.c.l.b16 %v4477
        %v4796 = vunpack.c.l.b16 %v4478
        %v4797 = vunpack.c.l.b16 %v4479
        %v4798 = vunpack.c.l.b16 %v4480
        %v4799 = vunpack.c.l.b16 %v4481
        %v4800 = vunpack.c.l.b16 %v4482
        %v4801 = vunpack.c.l.b16 %v4483
        %v4802 = vunpack.c.l.b16 %v4484
        %v4803 = vunpack.c.l.b16 %v4485
        %v4804 = vunpack.c.l.b16 %v4486
        %v4805 = vunpack.c.l.b16 %v4487
        %v4806 = vunpack.c.l.b16 %v4488
        %v4807 = vunpack.c.l.b16 %v4489
        %v4808 = vunpack.c.l.b16 %v4490
        %v4809 = vunpack.c.l.b16 %v4491
        %v4810 = vunpack.c.l.b16 %v4492
        %v4811 = vunpack.c.l.b16 %v4493
        %v4812 = vunpack.c.l.b16 %v4494
        %v4813 = vunpack.c.l.b16 %v4495
        %v4814 = vunpack.c.l.b16 %v4496
        %v4815 = vunpack.c.l.b16 %v4497
        %v4816 = vunpack.c.l.b16 %v4498
        %v4817 = vunpack.c.l.b16 %v4499
        %v4818 = vunpack.c.l.b16 %v4500
        %v4819 = vunpack.c.l.b16 %v4501
        %v4820 = vunpack.c.l.b16 %v4502
        %v4821 = vunpack.c.l.b16 %v4503
        %v4822 = vunpack.c.l.b16 %v4504
        %v4823 = vpack.c.b16 %v4792, %v4791
        %v4824 = vpack.c.b16 %v4794, %v4793
        %v4825 = vpack.c.b16 %v4796, %v4795
        %v4826 = vpack.c.b16 %v4798, %v4797
        %v4827 = vpack.c.b16 %v4800, %v4799
        %v4828 = vpack.c.b16 %v4802, %v4801
        %v4829 = vpack.c.b16 %v4804, %v4803
        %v4830 = vpack.c.b16 %v4806, %v4805
        %v4831 = vpack.c.b16 %v4808, %v4807
        %v4832 = vpack.c.b16 %v4810, %v4809
        %v4833 = vpack.c.b16 %v4812, %v4811
        %v4834 = vpack.c.b16 %v4814, %v4813
        %v4835 = vpack.c.b16 %v4816, %v4815
        %v4836 = vpack.c.b16 %v4818, %v4817
        %v4837 = vpack.c.b16 %v4820, %v4819
        %v4838 = vpack.c.b16 %v4822, %v4821
        %4855 = vmatprep.subr.bf16.mxu0 0
        %4856 = vmatpush1.bf16.msra.mxu0 %v4823
        %4857 = vmatprep.subr.bf16.mxu0 0
        %4858 = vmatpush1.bf16.msra.mxu0 %v4824
        %4859 = vmatprep.subr.bf16.mxu0 0
        %4860 = vmatpush1.bf16.msra.mxu0 %v4825
        %4861 = vmatprep.subr.bf16.mxu0 0
        %4862 = vmatpush1.bf16.msra.mxu0 %v4826
        %4863 = vmatprep.subr.bf16.mxu0 0
        %4864 = vmatpush1.bf16.msra.mxu0 %v4827
        %4865 = vmatprep.subr.bf16.mxu0 0
        %4866 = vmatpush1.bf16.msra.mxu0 %v4828
        %4867 = vmatprep.subr.bf16.mxu0 0
        %4868 = vmatpush1.bf16.msra.mxu0 %v4829
        %4869 = vmatprep.subr.bf16.mxu0 0
        %4870 = vmatpush1.bf16.msra.mxu0 %v4830
        %4871 = vmatprep.subr.bf16.mxu0 0
        %4872 = vmatpush1.bf16.msra.mxu0 %v4831
        %4873 = vmatprep.subr.bf16.mxu0 0
        %4874 = vmatpush1.bf16.msra.mxu0 %v4832
        %4875 = vmatprep.subr.bf16.mxu0 0
        %4876 = vmatpush1.bf16.msra.mxu0 %v4833
        %4877 = vmatprep.subr.bf16.mxu0 0
        %4878 = vmatpush1.bf16.msra.mxu0 %v4834
        %4879 = vmatprep.subr.bf16.mxu0 0
        %4880 = vmatpush1.bf16.msra.mxu0 %v4835
        %4881 = vmatprep.subr.bf16.mxu0 0
        %4882 = vmatpush1.bf16.msra.mxu0 %v4836
        %4883 = vmatprep.subr.bf16.mxu0 0
        %4884 = vmatpush1.bf16.msra.mxu0 %v4837
        %4885 = vmatprep.subr.bf16.mxu0 0
        %4886 = vmatpush1.bf16.msra.mxu0 %v4838
        %4887 = vmatprep.mubr.bf16.mxu0 %v4471
        %4888 = vmatmul.mubr.bf16.gmra.mrb[0].mxu0 %v4470
        %v4889 = vpop.f32.mrb[0].mxu0
        %v4890 = vadd.f32 %v4753, %v4889
        %v4891 = vpop.f32.mrb[0].mxu0
        %v4892 = vpop.f32.mrb[0].mxu0
        %v4893 = vadd.f32 %v4756, %v4892
        %v4894 = vpop.f32.mrb[0].mxu0
        %4895 = vdwg.mxu0
        %v4896 = vld [vmem:[%s4382 + $0x10] sm:$0xff]
        %v4897 = vld [vmem:[%s4382 + $0x50] sm:$0xff]
        %v4898 = vld [vmem:[%s4382 + $0x90] sm:$0xff]
        %v4899 = vld [vmem:[%s4382 + $0xd0] sm:$0xff]
        %v4900 = vld [vmem:[%s4387 + $0x4] sm:$0x3]
        %v4902 = vlaneseq
        %v4903 = vshrl.u32 %v4902, 7
        %v4904 = vsub.s32 0, %v4903
        %v4905 = vrot.slane %v4900, %v4904
        %v4906 = vlaneseq
        %v4907 = vshrl.u32 %v4906, 7
        %v4908 = vsub.s32 1, %v4907
        %v4909 = vrot.slane %v4900, %v4908
        %v4916 = vunpack.c.l.b16 %v4896
        %v4917 = vunpack.c.h.b16 %v4896
        %v4918 = vunpack.c.l.b16 %v4897
        %v4919 = vunpack.c.h.b16 %v4897
        %v4920 = vunpack.c.l.b16 %v4898
        %v4921 = vunpack.c.h.b16 %v4898
        %v4922 = vunpack.c.l.b16 %v4899
        %v4923 = vunpack.c.h.b16 %v4899
        %v4924 = vpack.c.b16 %v4918, %v4916
        %v4925 = vpack.c.b16 %v4919, %v4917
        %v4926 = vpack.c.b16 %v4922, %v4920
        %v4927 = vpack.c.b16 %v4923, %v4921
        %4932 = vmatprep.subr.bf16.mxu0 %v4925
        %4933 = vmatpush1.bf16.msra.mxu0 %v4924
        %4934 = vmatprep.subr.bf16.mxu0 %v4927
        %4935 = vmatpush1.bf16.msra.mxu0 %v4926
        %4936 = vmatprep.subr.bf16.mxu0 0
        %4937 = vmatpush1.bf16.msra.mxu0 0
        %4938 = vmatprep.subr.bf16.mxu0 0
        %4939 = vmatpush1.bf16.msra.mxu0 0
        %4940 = vmatprep.subr.bf16.mxu0 0
        %4941 = vmatpush1.bf16.msra.mxu0 0
        %4942 = vmatprep.subr.bf16.mxu0 0
        %4943 = vmatpush1.bf16.msra.mxu0 0
        %4944 = vmatprep.subr.bf16.mxu0 0
        %4945 = vmatpush1.bf16.msra.mxu0 0
        %4946 = vmatprep.subr.bf16.mxu0 0
        %4947 = vmatpush1.bf16.msra.mxu0 0
        %4948 = vmatprep.subr.bf16.mxu0 0
        %4949 = vmatpush1.bf16.msra.mxu0 0
        %4950 = vmatprep.subr.bf16.mxu0 0
        %4951 = vmatpush1.bf16.msra.mxu0 0
        %4952 = vmatprep.subr.bf16.mxu0 0
        %4953 = vmatpush1.bf16.msra.mxu0 0
        %4954 = vmatprep.subr.bf16.mxu0 0
        %4955 = vmatpush1.bf16.msra.mxu0 0
        %4956 = vmatprep.subr.bf16.mxu0 0
        %4957 = vmatpush1.bf16.msra.mxu0 0
        %4958 = vmatprep.subr.bf16.mxu0 0
        %4959 = vmatpush1.bf16.msra.mxu0 0
        %4960 = vmatprep.subr.bf16.mxu0 0
        %4961 = vmatpush1.bf16.msra.mxu0 0
        %4962 = vmatprep.subr.bf16.mxu0 0
        %4963 = vmatpush1.bf16.msra.mxu0 0
        %4964 = vmatprep.mubr.bf16.mxu0 0
        %4965 = vmatmul.mubr.bf16.gmra.mrb[0].mxu0 %v4421
        %v4966 = vpop.f32.mrb[0].mxu0
        %v4967 = vadd.f32 %v4905, %v4966
        %v4968 = vpop.f32.mrb[0].mxu0
        %v4969 = vadd.f32 %v4909, %v4968
        %v4970 = vpop.f32.mrb[0].mxu0
        %v4971 = vadd.f32 %v4905, %v4970
        %v4972 = vpop.f32.mrb[0].mxu0
        %v4973 = vadd.f32 %v4909, %v4972
        %4974 = vdwg.mxu0
        %v4975 = vmax.f32 %v4967, 0.0
        %v4976 = vmax.f32 %v4969, 0.0
        %v4977 = vmax.f32 %v4971, 0.0
        %v4978 = vmax.f32 %v4973, 0.0
        %v4979 = vpack.c.bf16 %v4977, %v4975
        %v4980 = vpack.c.bf16 %v4978, %v4976
        %v4981 = vld [vmem:[%s4472 + $0x100] sm:$0xf]
        %v4982 = vld [vmem:[%s4472 + $0x104] sm:$0xf]
        %v4983 = vld [vmem:[%s4472 + $0x108] sm:$0xf]
        %v4984 = vld [vmem:[%s4472 + $0x10c] sm:$0xf]
        %v4985 = vld [vmem:[%s4472 + $0x110] sm:$0xf]
        %v4986 = vld [vmem:[%s4472 + $0x114] sm:$0xf]
        %v4987 = vld [vmem:[%s4472 + $0x118] sm:$0xf]
        %v4988 = vld [vmem:[%s4472 + $0x11c] sm:$0xf]
        %v4989 = vld [vmem:[%s4472 + $0x120] sm:$0xf]
        %v4990 = vld [vmem:[%s4472 + $0x124] sm:$0xf]
        %v4991 = vld [vmem:[%s4472 + $0x128] sm:$0xf]
        %v4992 = vld [vmem:[%s4472 + $0x12c] sm:$0xf]
        %v4993 = vld [vmem:[%s4472 + $0x130] sm:$0xf]
        %v4994 = vld [vmem:[%s4472 + $0x134] sm:$0xf]
        %v4995 = vld [vmem:[%s4472 + $0x138] sm:$0xf]
        %v4996 = vld [vmem:[%s4472 + $0x13c] sm:$0xf]
        %v4997 = vld [vmem:[%s4472 + $0x140] sm:$0xf]
        %v4998 = vld [vmem:[%s4472 + $0x144] sm:$0xf]
        %v4999 = vld [vmem:[%s4472 + $0x148] sm:$0xf]
        %v5000 = vld [vmem:[%s4472 + $0x14c] sm:$0xf]
        %v5001 = vld [vmem:[%s4472 + $0x150] sm:$0xf]
        %v5002 = vld [vmem:[%s4472 + $0x154] sm:$0xf]
        %v5003 = vld [vmem:[%s4472 + $0x158] sm:$0xf]
        %v5004 = vld [vmem:[%s4472 + $0x15c] sm:$0xf]
        %v5005 = vld [vmem:[%s4472 + $0x160] sm:$0xf]
        %v5006 = vld [vmem:[%s4472 + $0x164] sm:$0xf]
        %v5007 = vld [vmem:[%s4472 + $0x168] sm:$0xf]
        %v5008 = vld [vmem:[%s4472 + $0x16c] sm:$0xf]
        %v5009 = vld [vmem:[%s4472 + $0x170] sm:$0xf]
        %v5010 = vld [vmem:[%s4472 + $0x174] sm:$0xf]
        %v5011 = vld [vmem:[%s4472 + $0x178] sm:$0xf]
        %v5012 = vld [vmem:[%s4472 + $0x17c] sm:$0xf]
        %v5045 = vunpack.c.l.b16 %v4981
        %v5046 = vunpack.c.l.b16 %v4982
        %v5047 = vunpack.c.l.b16 %v4983
        %v5048 = vunpack.c.l.b16 %v4984
        %v5049 = vunpack.c.l.b16 %v4985
        %v5050 = vunpack.c.l.b16 %v4986
        %v5051 = vunpack.c.l.b16 %v4987
        %v5052 = vunpack.c.l.b16 %v4988
        %v5053 = vunpack.c.l.b16 %v4989
        %v5054 = vunpack.c.l.b16 %v4990
        %v5055 = vunpack.c.l.b16 %v4991
        %v5056 = vunpack.c.l.b16 %v4992
        %v5057 = vunpack.c.l.b16 %v4993
        %v5058 = vunpack.c.l.b16 %v4994
        %v5059 = vunpack.c.l.b16 %v4995
        %v5060 = vunpack.c.l.b16 %v4996
        %v5061 = vunpack.c.l.b16 %v4997
        %v5062 = vunpack.c.l.b16 %v4998
        %v5063 = vunpack.c.l.b16 %v4999
        %v5064 = vunpack.c.l.b16 %v5000
        %v5065 = vunpack.c.l.b16 %v5001
        %v5066 = vunpack.c.l.b16 %v5002
        %v5067 = vunpack.c.l.b16 %v5003
        %v5068 = vunpack.c.l.b16 %v5004
        %v5069 = vunpack.c.l.b16 %v5005
        %v5070 = vunpack.c.l.b16 %v5006
        %v5071 = vunpack.c.l.b16 %v5007
        %v5072 = vunpack.c.l.b16 %v5008
        %v5073 = vunpack.c.l.b16 %v5009
        %v5074 = vunpack.c.l.b16 %v5010
        %v5075 = vunpack.c.l.b16 %v5011
        %v5076 = vunpack.c.l.b16 %v5012
        %v5077 = vpack.c.b16 %v5046, %v5045
        %v5078 = vpack.c.b16 %v5048, %v5047
        %v5079 = vpack.c.b16 %v5050, %v5049
        %v5080 = vpack.c.b16 %v5052, %v5051
        %v5081 = vpack.c.b16 %v5054, %v5053
        %v5082 = vpack.c.b16 %v5056, %v5055
        %v5083 = vpack.c.b16 %v5058, %v5057
        %v5084 = vpack.c.b16 %v5060, %v5059
        %v5085 = vpack.c.b16 %v5062, %v5061
        %v5086 = vpack.c.b16 %v5064, %v5063
        %v5087 = vpack.c.b16 %v5066, %v5065
        %v5088 = vpack.c.b16 %v5068, %v5067
        %v5089 = vpack.c.b16 %v5070, %v5069
        %v5090 = vpack.c.b16 %v5072, %v5071
        %v5091 = vpack.c.b16 %v5074, %v5073
        %v5092 = vpack.c.b16 %v5076, %v5075
        %5109 = vmatprep.subr.bf16.mxu0 0
        %5110 = vmatpush1.bf16.msra.mxu0 %v5077
        %5111 = vmatprep.subr.bf16.mxu0 0
        %5112 = vmatpush1.bf16.msra.mxu0 %v5078
        %5113 = vmatprep.subr.bf16.mxu0 0
        %5114 = vmatpush1.bf16.msra.mxu0 %v5079
        %5115 = vmatprep.subr.bf16.mxu0 0
        %5116 = vmatpush1.bf16.msra.mxu0 %v5080
        %5117 = vmatprep.subr.bf16.mxu0 0
        %5118 = vmatpush1.bf16.msra.mxu0 %v5081
        %5119 = vmatprep.subr.bf16.mxu0 0
        %5120 = vmatpush1.bf16.msra.mxu0 %v5082
        %5121 = vmatprep.subr.bf16.mxu0 0
        %5122 = vmatpush1.bf16.msra.mxu0 %v5083
        %5123 = vmatprep.subr.bf16.mxu0 0
        %5124 = vmatpush1.bf16.msra.mxu0 %v5084
        %5125 = vmatprep.subr.bf16.mxu0 0
        %5126 = vmatpush1.bf16.msra.mxu0 %v5085
        %5127 = vmatprep.subr.bf16.mxu0 0
        %5128 = vmatpush1.bf16.msra.mxu0 %v5086
        %5129 = vmatprep.subr.bf16.mxu0 0
        %5130 = vmatpush1.bf16.msra.mxu0 %v5087
        %5131 = vmatprep.subr.bf16.mxu0 0
        %5132 = vmatpush1.bf16.msra.mxu0 %v5088
        %5133 = vmatprep.subr.bf16.mxu0 0
        %5134 = vmatpush1.bf16.msra.mxu0 %v5089
        %5135 = vmatprep.subr.bf16.mxu0 0
        %5136 = vmatpush1.bf16.msra.mxu0 %v5090
        %5137 = vmatprep.subr.bf16.mxu0 0
        %5138 = vmatpush1.bf16.msra.mxu0 %v5091
        %5139 = vmatprep.subr.bf16.mxu0 0
        %5140 = vmatpush1.bf16.msra.mxu0 %v5092
        %5141 = vmatprep.mubr.bf16.mxu0 %v4980
        %5142 = vmatmul.mubr.bf16.gmra.mrb[0].mxu0 %v4979
        %v5143 = vpop.f32.mrb[0].mxu0
        %v5144 = vadd.f32 0.0, %v5143
        %v5145 = vpop.f32.mrb[0].mxu0
        %v5146 = vpop.f32.mrb[0].mxu0
        %v5147 = vadd.f32 0.0, %v5146
        %v5148 = vpop.f32.mrb[0].mxu0
        %5149 = vdwg.mxu0
        %v5150 = vadd.f32 %v4890, %v5144
        %v5151 = vadd.f32 %v4893, %v5147
        %v5152 = vld [vmem:[%s4382 + $0x18] sm:$0xff]
        %v5153 = vld [vmem:[%s4382 + $0x58] sm:$0xff]
        %v5154 = vld [vmem:[%s4382 + $0x98] sm:$0xff]
        %v5155 = vld [vmem:[%s4382 + $0xd8] sm:$0xff]
        %v5156 = vld [vmem:[%s4387 + $0x6] sm:$0x3]
        %v5158 = vlaneseq
        %v5159 = vshrl.u32 %v5158, 7
        %v5160 = vsub.s32 0, %v5159
        %v5161 = vrot.slane %v5156, %v5160
        %v5162 = vlaneseq
        %v5163 = vshrl.u32 %v5162, 7
        %v5164 = vsub.s32 1, %v5163
        %v5165 = vrot.slane %v5156, %v5164
        %v5172 = vunpack.c.l.b16 %v5152
        %v5173 = vunpack.c.h.b16 %v5152
        %v5174 = vunpack.c.l.b16 %v5153
        %v5175 = vunpack.c.h.b16 %v5153
        %v5176 = vunpack.c.l.b16 %v5154
        %v5177 = vunpack.c.h.b16 %v5154
        %v5178 = vunpack.c.l.b16 %v5155
        %v5179 = vunpack.c.h.b16 %v5155
        %v5180 = vpack.c.b16 %v5174, %v5172
        %v5181 = vpack.c.b16 %v5175, %v5173
        %v5182 = vpack.c.b16 %v5178, %v5176
        %v5183 = vpack.c.b16 %v5179, %v5177
        %5188 = vmatprep.subr.bf16.mxu0 %v5181
        %5189 = vmatpush1.bf16.msra.mxu0 %v5180
        %5190 = vmatprep.subr.bf16.mxu0 %v5183
        %5191 = vmatpush1.bf16.msra.mxu0 %v5182
        %5192 = vmatprep.subr.bf16.mxu0 0
        %5193 = vmatpush1.bf16.msra.mxu0 0
        %5194 = vmatprep.subr.bf16.mxu0 0
        %5195 = vmatpush1.bf16.msra.mxu0 0
        %5196 = vmatprep.subr.bf16.mxu0 0
        %5197 = vmatpush1.bf16.msra.mxu0 0
        %5198 = vmatprep.subr.bf16.mxu0 0
        %5199 = vmatpush1.bf16.msra.mxu0 0
        %5200 = vmatprep.subr.bf16.mxu0 0
        %5201 = vmatpush1.bf16.msra.mxu0 0
        %5202 = vmatprep.subr.bf16.mxu0 0
        %5203 = vmatpush1.bf16.msra.mxu0 0
        %5204 = vmatprep.subr.bf16.mxu0 0
        %5205 = vmatpush1.bf16.msra.mxu0 0
        %5206 = vmatprep.subr.bf16.mxu0 0
        %5207 = vmatpush1.bf16.msra.mxu0 0
        %5208 = vmatprep.subr.bf16.mxu0 0
        %5209 = vmatpush1.bf16.msra.mxu0 0
        %5210 = vmatprep.subr.bf16.mxu0 0
        %5211 = vmatpush1.bf16.msra.mxu0 0
        %5212 = vmatprep.subr.bf16.mxu0 0
        %5213 = vmatpush1.bf16.msra.mxu0 0
        %5214 = vmatprep.subr.bf16.mxu0 0
        %5215 = vmatpush1.bf16.msra.mxu0 0
        %5216 = vmatprep.subr.bf16.mxu0 0
        %5217 = vmatpush1.bf16.msra.mxu0 0
        %5218 = vmatprep.subr.bf16.mxu0 0
        %5219 = vmatpush1.bf16.msra.mxu0 0
        %5220 = vmatprep.mubr.bf16.mxu0 0
        %5221 = vmatmul.mubr.bf16.gmra.mrb[0].mxu0 %v4421
        %v5222 = vpop.f32.mrb[0].mxu0
        %v5223 = vadd.f32 %v5161, %v5222
        %v5224 = vpop.f32.mrb[0].mxu0
        %v5225 = vadd.f32 %v5165, %v5224
        %v5226 = vpop.f32.mrb[0].mxu0
        %v5227 = vadd.f32 %v5161, %v5226
        %v5228 = vpop.f32.mrb[0].mxu0
        %v5229 = vadd.f32 %v5165, %v5228
        %5230 = vdwg.mxu0
        %v5231 = vmax.f32 %v5223, 0.0
        %v5232 = vmax.f32 %v5225, 0.0
        %v5233 = vmax.f32 %v5227, 0.0
        %v5234 = vmax.f32 %v5229, 0.0
        %v5235 = vpack.c.bf16 %v5233, %v5231
        %v5236 = vpack.c.bf16 %v5234, %v5232
        %v5237 = vld [vmem:[%s4472 + $0x180] sm:$0xf]
        %v5238 = vld [vmem:[%s4472 + $0x184] sm:$0xf]
        %v5239 = vld [vmem:[%s4472 + $0x188] sm:$0xf]
        %v5240 = vld [vmem:[%s4472 + $0x18c] sm:$0xf]
        %v5241 = vld [vmem:[%s4472 + $0x190] sm:$0xf]
        %v5242 = vld [vmem:[%s4472 + $0x194] sm:$0xf]
        %v5243 = vld [vmem:[%s4472 + $0x198] sm:$0xf]
        %v5244 = vld [vmem:[%s4472 + $0x19c] sm:$0xf]
        %v5245 = vld [vmem:[%s4472 + $0x1a0] sm:$0xf]
        %v5246 = vld [vmem:[%s4472 + $0x1a4] sm:$0xf]
        %v5247 = vld [vmem:[%s4472 + $0x1a8] sm:$0xf]
        %v5248 = vld [vmem:[%s4472 + $0x1ac] sm:$0xf]
        %v5249 = vld [vmem:[%s4472 + $0x1b0] sm:$0xf]
        %v5250 = vld [vmem:[%s4472 + $0x1b4] sm:$0xf]
        %v5251 = vld [vmem:[%s4472 + $0x1b8] sm:$0xf]
        %v5252 = vld [vmem:[%s4472 + $0x1bc] sm:$0xf]
        %v5253 = vld [vmem:[%s4472 + $0x1c0] sm:$0xf]
        %v5254 = vld [vmem:[%s4472 + $0x1c4] sm:$0xf]
        %v5255 = vld [vmem:[%s4472 + $0x1c8] sm:$0xf]
        %v5256 = vld [vmem:[%s4472 + $0x1cc] sm:$0xf]
        %v5257 = vld [vmem:[%s4472 + $0x1d0] sm:$0xf]
        %v5258 = vld [vmem:[%s4472 + $0x1d4] sm:$0xf]
        %v5259 = vld [vmem:[%s4472 + $0x1d8] sm:$0xf]
        %v5260 = vld [vmem:[%s4472 + $0x1dc] sm:$0xf]
        %v5261 = vld [vmem:[%s4472 + $0x1e0] sm:$0xf]
        %v5262 = vld [vmem:[%s4472 + $0x1e4] sm:$0xf]
        %v5263 = vld [vmem:[%s4472 + $0x1e8] sm:$0xf]
        %v5264 = vld [vmem:[%s4472 + $0x1ec] sm:$0xf]
        %v5265 = vld [vmem:[%s4472 + $0x1f0] sm:$0xf]
        %v5266 = vld [vmem:[%s4472 + $0x1f4] sm:$0xf]
        %v5267 = vld [vmem:[%s4472 + $0x1f8] sm:$0xf]
        %v5268 = vld [vmem:[%s4472 + $0x1fc] sm:$0xf]
        %v5301 = vunpack.c.l.b16 %v5237
        %v5302 = vunpack.c.l.b16 %v5238
        %v5303 = vunpack.c.l.b16 %v5239
        %v5304 = vunpack.c.l.b16 %v5240
        %v5305 = vunpack.c.l.b16 %v5241
        %v5306 = vunpack.c.l.b16 %v5242
        %v5307 = vunpack.c.l.b16 %v5243
        %v5308 = vunpack.c.l.b16 %v5244
        %v5309 = vunpack.c.l.b16 %v5245
        %v5310 = vunpack.c.l.b16 %v5246
        %v5311 = vunpack.c.l.b16 %v5247
        %v5312 = vunpack.c.l.b16 %v5248
        %v5313 = vunpack.c.l.b16 %v5249
        %v5314 = vunpack.c.l.b16 %v5250
        %v5315 = vunpack.c.l.b16 %v5251
        %v5316 = vunpack.c.l.b16 %v5252
        %v5317 = vunpack.c.l.b16 %v5253
        %v5318 = vunpack.c.l.b16 %v5254
        %v5319 = vunpack.c.l.b16 %v5255
        %v5320 = vunpack.c.l.b16 %v5256
        %v5321 = vunpack.c.l.b16 %v5257
        %v5322 = vunpack.c.l.b16 %v5258
        %v5323 = vunpack.c.l.b16 %v5259
        %v5324 = vunpack.c.l.b16 %v5260
        %v5325 = vunpack.c.l.b16 %v5261
        %v5326 = vunpack.c.l.b16 %v5262
        %v5327 = vunpack.c.l.b16 %v5263
        %v5328 = vunpack.c.l.b16 %v5264
        %v5329 = vunpack.c.l.b16 %v5265
        %v5330 = vunpack.c.l.b16 %v5266
        %v5331 = vunpack.c.l.b16 %v5267
        %v5332 = vunpack.c.l.b16 %v5268
        %v5333 = vpack.c.b16 %v5302, %v5301
        %v5334 = vpack.c.b16 %v5304, %v5303
        %v5335 = vpack.c.b16 %v5306, %v5305
        %v5336 = vpack.c.b16 %v5308, %v5307
        %v5337 = vpack.c.b16 %v5310, %v5309
        %v5338 = vpack.c.b16 %v5312, %v5311
        %v5339 = vpack.c.b16 %v5314, %v5313
        %v5340 = vpack.c.b16 %v5316, %v5315
        %v5341 = vpack.c.b16 %v5318, %v5317
        %v5342 = vpack.c.b16 %v5320, %v5319
        %v5343 = vpack.c.b16 %v5322, %v5321
        %v5344 = vpack.c.b16 %v5324, %v5323
        %v5345 = vpack.c.b16 %v5326, %v5325
        %v5346 = vpack.c.b16 %v5328, %v5327
        %v5347 = vpack.c.b16 %v5330, %v5329
        %v5348 = vpack.c.b16 %v5332, %v5331
        %5365 = vmatprep.subr.bf16.mxu0 0
        %5366 = vmatpush1.bf16.msra.mxu0 %v5333
        %5367 = vmatprep.subr.bf16.mxu0 0
        %5368 = vmatpush1.bf16.msra.mxu0 %v5334
        %5369 = vmatprep.subr.bf16.mxu0 0
        %5370 = vmatpush1.bf16.msra.mxu0 %v5335
        %5371 = vmatprep.subr.bf16.mxu0 0
        %5372 = vmatpush1.bf16.msra.mxu0 %v5336
        %5373 = vmatprep.subr.bf16.mxu0 0
        %5374 = vmatpush1.bf16.msra.mxu0 %v5337
        %5375 = vmatprep.subr.bf16.mxu0 0
        %5376 = vmatpush1.bf16.msra.mxu0 %v5338
        %5377 = vmatprep.subr.bf16.mxu0 0
        %5378 = vmatpush1.bf16.msra.mxu0 %v5339
        %5379 = vmatprep.subr.bf16.mxu0 0
        %5380 = vmatpush1.bf16.msra.mxu0 %v5340
        %5381 = vmatprep.subr.bf16.mxu0 0
        %5382 = vmatpush1.bf16.msra.mxu0 %v5341
        %5383 = vmatprep.subr.bf16.mxu0 0
        %5384 = vmatpush1.bf16.msra.mxu0 %v5342
        %5385 = vmatprep.subr.bf16.mxu0 0
        %5386 = vmatpush1.bf16.msra.mxu0 %v5343
        %5387 = vmatprep.subr.bf16.mxu0 0
        %5388 = vmatpush1.bf16.msra.mxu0 %v5344
        %5389 = vmatprep.subr.bf16.mxu0 0
        %5390 = vmatpush1.bf16.msra.mxu0 %v5345
        %5391 = vmatprep.subr.bf16.mxu0 0
        %5392 = vmatpush1.bf16.msra.mxu0 %v5346
        %5393 = vmatprep.subr.bf16.mxu0 0
        %5394 = vmatpush1.bf16.msra.mxu0 %v5347
        %5395 = vmatprep.subr.bf16.mxu0 0
        %5396 = vmatpush1.bf16.msra.mxu0 %v5348
        %5397 = vmatprep.mubr.bf16.mxu0 %v5236
        %5398 = vmatmul.mubr.bf16.gmra.mrb[0].mxu0 %v5235
        %v5399 = vpop.f32.mrb[0].mxu0
        %v5400 = vadd.f32 0.0, %v5399
        %v5401 = vpop.f32.mrb[0].mxu0
        %v5402 = vpop.f32.mrb[0].mxu0
        %v5403 = vadd.f32 0.0, %v5402
        %v5404 = vpop.f32.mrb[0].mxu0
        %5405 = vdwg.mxu0
        %v5406 = vadd.f32 %v5150, %v5400
        %v5407 = vadd.f32 %v5151, %v5403
        %v5408 = vld [vmem:[%s4382 + $0x20] sm:$0xff]
        %v5409 = vld [vmem:[%s4382 + $0x60] sm:$0xff]
        %v5410 = vld [vmem:[%s4382 + $0xa0] sm:$0xff]
        %v5411 = vld [vmem:[%s4382 + $0xe0] sm:$0xff]
        %v5412 = vld [vmem:[%s4387 + $0x8] sm:$0x3]
        %v5414 = vlaneseq
        %v5415 = vshrl.u32 %v5414, 7
        %v5416 = vsub.s32 0, %v5415
        %v5417 = vrot.slane %v5412, %v5416
        %v5418 = vlaneseq
        %v5419 = vshrl.u32 %v5418, 7
        %v5420 = vsub.s32 1, %v5419
        %v5421 = vrot.slane %v5412, %v5420
        %v5428 = vunpack.c.l.b16 %v5408
        %v5429 = vunpack.c.h.b16 %v5408
        %v5430 = vunpack.c.l.b16 %v5409
        %v5431 = vunpack.c.h.b16 %v5409
        %v5432 = vunpack.c.l.b16 %v5410
        %v5433 = vunpack.c.h.b16 %v5410
        %v5434 = vunpack.c.l.b16 %v5411
        %v5435 = vunpack.c.h.b16 %v5411
        %v5436 = vpack.c.b16 %v5430, %v5428
        %v5437 = vpack.c.b16 %v5431, %v5429
        %v5438 = vpack.c.b16 %v5434, %v5432
        %v5439 = vpack.c.b16 %v5435, %v5433
        %5444 = vmatprep.subr.bf16.mxu0 %v5437
        %5445 = vmatpush1.bf16.msra.mxu0 %v5436
        %5446 = vmatprep.subr.bf16.mxu0 %v5439
        %5447 = vmatpush1.bf16.msra.mxu0 %v5438
        %5448 = vmatprep.subr.bf16.mxu0 0
        %5449 = vmatpush1.bf16.msra.mxu0 0
        %5450 = vmatprep.subr.bf16.mxu0 0
        %5451 = vmatpush1.bf16.msra.mxu0 0
        %5452 = vmatprep.subr.bf16.mxu0 0
        %5453 = vmatpush1.bf16.msra.mxu0 0
        %5454 = vmatprep.subr.bf16.mxu0 0
        %5455 = vmatpush1.bf16.msra.mxu0 0
        %5456 = vmatprep.subr.bf16.mxu0 0
        %5457 = vmatpush1.bf16.msra.mxu0 0
        %5458 = vmatprep.subr.bf16.mxu0 0
        %5459 = vmatpush1.bf16.msra.mxu0 0
        %5460 = vmatprep.subr.bf16.mxu0 0
        %5461 = vmatpush1.bf16.msra.mxu0 0
        %5462 = vmatprep.subr.bf16.mxu0 0
        %5463 = vmatpush1.bf16.msra.mxu0 0
        %5464 = vmatprep.subr.bf16.mxu0 0
        %5465 = vmatpush1.bf16.msra.mxu0 0
        %5466 = vmatprep.subr.bf16.mxu0 0
        %5467 = vmatpush1.bf16.msra.mxu0 0
        %5468 = vmatprep.subr.bf16.mxu0 0
        %5469 = vmatpush1.bf16.msra.mxu0 0
        %5470 = vmatprep.subr.bf16.mxu0 0
        %5471 = vmatpush1.bf16.msra.mxu0 0
        %5472 = vmatprep.subr.bf16.mxu0 0
        %5473 = vmatpush1.bf16.msra.mxu0 0
        %5474 = vmatprep.subr.bf16.mxu0 0
        %5475 = vmatpush1.bf16.msra.mxu0 0
        %5476 = vmatprep.mubr.bf16.mxu0 0
        %5477 = vmatmul.mubr.bf16.gmra.mrb[0].mxu0 %v4421
        %v5478 = vpop.f32.mrb[0].mxu0
        %v5479 = vadd.f32 %v5417, %v5478
        %v5480 = vpop.f32.mrb[0].mxu0
        %v5481 = vadd.f32 %v5421, %v5480
        %v5482 = vpop.f32.mrb[0].mxu0
        %v5483 = vadd.f32 %v5417, %v5482
        %v5484 = vpop.f32.mrb[0].mxu0
        %v5485 = vadd.f32 %v5421, %v5484
        %5486 = vdwg.mxu0
        %v5487 = vmax.f32 %v5479, 0.0
        %v5488 = vmax.f32 %v5481, 0.0
        %v5489 = vmax.f32 %v5483, 0.0
        %v5490 = vmax.f32 %v5485, 0.0
        %v5491 = vpack.c.bf16 %v5489, %v5487
        %v5492 = vpack.c.bf16 %v5490, %v5488
        %v5493 = vld [vmem:[%s4472 + $0x200] sm:$0xf]
        %v5494 = vld [vmem:[%s4472 + $0x204] sm:$0xf]
        %v5495 = vld [vmem:[%s4472 + $0x208] sm:$0xf]
        %v5496 = vld [vmem:[%s4472 + $0x20c] sm:$0xf]
        %v5497 = vld [vmem:[%s4472 + $0x210] sm:$0xf]
        %v5498 = vld [vmem:[%s4472 + $0x214] sm:$0xf]
        %v5499 = vld [vmem:[%s4472 + $0x218] sm:$0xf]
        %v5500 = vld [vmem:[%s4472 + $0x21c] sm:$0xf]
        %v5501 = vld [vmem:[%s4472 + $0x220] sm:$0xf]
        %v5502 = vld [vmem:[%s4472 + $0x224] sm:$0xf]
        %v5503 = vld [vmem:[%s4472 + $0x228] sm:$0xf]
        %v5504 = vld [vmem:[%s4472 + $0x22c] sm:$0xf]
        %v5505 = vld [vmem:[%s4472 + $0x230] sm:$0xf]
        %v5506 = vld [vmem:[%s4472 + $0x234] sm:$0xf]
        %v5507 = vld [vmem:[%s4472 + $0x238] sm:$0xf]
        %v5508 = vld [vmem:[%s4472 + $0x23c] sm:$0xf]
        %v5509 = vld [vmem:[%s4472 + $0x240] sm:$0xf]
        %v5510 = vld [vmem:[%s4472 + $0x244] sm:$0xf]
        %v5511 = vld [vmem:[%s4472 + $0x248] sm:$0xf]
        %v5512 = vld [vmem:[%s4472 + $0x24c] sm:$0xf]
        %v5513 = vld [vmem:[%s4472 + $0x250] sm:$0xf]
        %v5514 = vld [vmem:[%s4472 + $0x254] sm:$0xf]
        %v5515 = vld [vmem:[%s4472 + $0x258] sm:$0xf]
        %v5516 = vld [vmem:[%s4472 + $0x25c] sm:$0xf]
        %v5517 = vld [vmem:[%s4472 + $0x260] sm:$0xf]
        %v5518 = vld [vmem:[%s4472 + $0x264] sm:$0xf]
        %v5519 = vld [vmem:[%s4472 + $0x268] sm:$0xf]
        %v5520 = vld [vmem:[%s4472 + $0x26c] sm:$0xf]
        %v5521 = vld [vmem:[%s4472 + $0x270] sm:$0xf]
        %v5522 = vld [vmem:[%s4472 + $0x274] sm:$0xf]
        %v5523 = vld [vmem:[%s4472 + $0x278] sm:$0xf]
        %v5524 = vld [vmem:[%s4472 + $0x27c] sm:$0xf]
        %v5557 = vunpack.c.l.b16 %v5493
        %v5558 = vunpack.c.l.b16 %v5494
        %v5559 = vunpack.c.l.b16 %v5495
        %v5560 = vunpack.c.l.b16 %v5496
        %v5561 = vunpack.c.l.b16 %v5497
        %v5562 = vunpack.c.l.b16 %v5498
        %v5563 = vunpack.c.l.b16 %v5499
        %v5564 = vunpack.c.l.b16 %v5500
        %v5565 = vunpack.c.l.b16 %v5501
        %v5566 = vunpack.c.l.b16 %v5502
        %v5567 = vunpack.c.l.b16 %v5503
        %v5568 = vunpack.c.l.b16 %v5504
        %v5569 = vunpack.c.l.b16 %v5505
        %v5570 = vunpack.c.l.b16 %v5506
        %v5571 = vunpack.c.l.b16 %v5507
        %v5572 = vunpack.c.l.b16 %v5508
        %v5573 = vunpack.c.l.b16 %v5509
        %v5574 = vunpack.c.l.b16 %v5510
        %v5575 = vunpack.c.l.b16 %v5511
        %v5576 = vunpack.c.l.b16 %v5512
        %v5577 = vunpack.c.l.b16 %v5513
        %v5578 = vunpack.c.l.b16 %v5514
        %v5579 = vunpack.c.l.b16 %v5515
        %v5580 = vunpack.c.l.b16 %v5516
        %v5581 = vunpack.c.l.b16 %v5517
        %v5582 = vunpack.c.l.b16 %v5518
        %v5583 = vunpack.c.l.b16 %v5519
        %v5584 = vunpack.c.l.b16 %v5520
        %v5585 = vunpack.c.l.b16 %v5521
        %v5586 = vunpack.c.l.b16 %v5522
        %v5587 = vunpack.c.l.b16 %v5523
        %v5588 = vunpack.c.l.b16 %v5524
        %v5589 = vpack.c.b16 %v5558, %v5557
        %v5590 = vpack.c.b16 %v5560, %v5559
        %v5591 = vpack.c.b16 %v5562, %v5561
        %v5592 = vpack.c.b16 %v5564, %v5563
        %v5593 = vpack.c.b16 %v5566, %v5565
        %v5594 = vpack.c.b16 %v5568, %v5567
        %v5595 = vpack.c.b16 %v5570, %v5569
        %v5596 = vpack.c.b16 %v5572, %v5571
        %v5597 = vpack.c.b16 %v5574, %v5573
        %v5598 = vpack.c.b16 %v5576, %v5575
        %v5599 = vpack.c.b16 %v5578, %v5577
        %v5600 = vpack.c.b16 %v5580, %v5579
        %v5601 = vpack.c.b16 %v5582, %v5581
        %v5602 = vpack.c.b16 %v5584, %v5583
        %v5603 = vpack.c.b16 %v5586, %v5585
        %v5604 = vpack.c.b16 %v5588, %v5587
        %5621 = vmatprep.subr.bf16.mxu0 0
        %5622 = vmatpush1.bf16.msra.mxu0 %v5589
        %5623 = vmatprep.subr.bf16.mxu0 0
        %5624 = vmatpush1.bf16.msra.mxu0 %v5590
        %5625 = vmatprep.subr.bf16.mxu0 0
        %5626 = vmatpush1.bf16.msra.mxu0 %v5591
        %5627 = vmatprep.subr.bf16.mxu0 0
        %5628 = vmatpush1.bf16.msra.mxu0 %v5592
        %5629 = vmatprep.subr.bf16.mxu0 0
        %5630 = vmatpush1.bf16.msra.mxu0 %v5593
        %5631 = vmatprep.subr.bf16.mxu0 0
        %5632 = vmatpush1.bf16.msra.mxu0 %v5594
        %5633 = vmatprep.subr.bf16.mxu0 0
        %5634 = vmatpush1.bf16.msra.mxu0 %v5595
        %5635 = vmatprep.subr.bf16.mxu0 0
        %5636 = vmatpush1.bf16.msra.mxu0 %v5596
        %5637 = vmatprep.subr.bf16.mxu0 0
        %5638 = vmatpush1.bf16.msra.mxu0 %v5597
        %5639 = vmatprep.subr.bf16.mxu0 0
        %5640 = vmatpush1.bf16.msra.mxu0 %v5598
        %5641 = vmatprep.subr.bf16.mxu0 0
        %5642 = vmatpush1.bf16.msra.mxu0 %v5599
        %5643 = vmatprep.subr.bf16.mxu0 0
        %5644 = vmatpush1.bf16.msra.mxu0 %v5600
        %5645 = vmatprep.subr.bf16.mxu0 0
        %5646 = vmatpush1.bf16.msra.mxu0 %v5601
        %5647 = vmatprep.subr.bf16.mxu0 0
        %5648 = vmatpush1.bf16.msra.mxu0 %v5602
        %5649 = vmatprep.subr.bf16.mxu0 0
        %5650 = vmatpush1.bf16.msra.mxu0 %v5603
        %5651 = vmatprep.subr.bf16.mxu0 0
        %5652 = vmatpush1.bf16.msra.mxu0 %v5604
        %5653 = vmatprep.mubr.bf16.mxu0 %v5492
        %5654 = vmatmul.mubr.bf16.gmra.mrb[0].mxu0 %v5491
        %v5655 = vpop.f32.mrb[0].mxu0
        %v5656 = vadd.f32 0.0, %v5655
        %v5657 = vpop.f32.mrb[0].mxu0
        %v5658 = vpop.f32.mrb[0].mxu0
        %v5659 = vadd.f32 0.0, %v5658
        %v5660 = vpop.f32.mrb[0].mxu0
        %5661 = vdwg.mxu0
        %v5662 = vadd.f32 %v5406, %v5656
        %v5663 = vadd.f32 %v5407, %v5659
        %v5664 = vld [vmem:[%s4382 + $0x28] sm:$0xff]
        %v5665 = vld [vmem:[%s4382 + $0x68] sm:$0xff]
        %v5666 = vld [vmem:[%s4382 + $0xa8] sm:$0xff]
        %v5667 = vld [vmem:[%s4382 + $0xe8] sm:$0xff]
        %v5668 = vld [vmem:[%s4387 + $0xa] sm:$0x3]
        %v5670 = vlaneseq
        %v5671 = vshrl.u32 %v5670, 7
        %v5672 = vsub.s32 0, %v5671
        %v5673 = vrot.slane %v5668, %v5672
        %v5674 = vlaneseq
        %v5675 = vshrl.u32 %v5674, 7
        %v5676 = vsub.s32 1, %v5675
        %v5677 = vrot.slane %v5668, %v5676
        %v5684 = vunpack.c.l.b16 %v5664
        %v5685 = vunpack.c.h.b16 %v5664
        %v5686 = vunpack.c.l.b16 %v5665
        %v5687 = vunpack.c.h.b16 %v5665
        %v5688 = vunpack.c.l.b16 %v5666
        %v5689 = vunpack.c.h.b16 %v5666
        %v5690 = vunpack.c.l.b16 %v5667
        %v5691 = vunpack.c.h.b16 %v5667
        %v5692 = vpack.c.b16 %v5686, %v5684
        %v5693 = vpack.c.b16 %v5687, %v5685
        %v5694 = vpack.c.b16 %v5690, %v5688
        %v5695 = vpack.c.b16 %v5691, %v5689
        %5700 = vmatprep.subr.bf16.mxu0 %v5693
        %5701 = vmatpush1.bf16.msra.mxu0 %v5692
        %5702 = vmatprep.subr.bf16.mxu0 %v5695
        %5703 = vmatpush1.bf16.msra.mxu0 %v5694
        %5704 = vmatprep.subr.bf16.mxu0 0
        %5705 = vmatpush1.bf16.msra.mxu0 0
        %5706 = vmatprep.subr.bf16.mxu0 0
        %5707 = vmatpush1.bf16.msra.mxu0 0
        %5708 = vmatprep.subr.bf16.mxu0 0
        %5709 = vmatpush1.bf16.msra.mxu0 0
        %5710 = vmatprep.subr.bf16.mxu0 0
        %5711 = vmatpush1.bf16.msra.mxu0 0
        %5712 = vmatprep.subr.bf16.mxu0 0
        %5713 = vmatpush1.bf16.msra.mxu0 0
        %5714 = vmatprep.subr.bf16.mxu0 0
        %5715 = vmatpush1.bf16.msra.mxu0 0
        %5716 = vmatprep.subr.bf16.mxu0 0
        %5717 = vmatpush1.bf16.msra.mxu0 0
        %5718 = vmatprep.subr.bf16.mxu0 0
        %5719 = vmatpush1.bf16.msra.mxu0 0
        %5720 = vmatprep.subr.bf16.mxu0 0
        %5721 = vmatpush1.bf16.msra.mxu0 0
        %5722 = vmatprep.subr.bf16.mxu0 0
        %5723 = vmatpush1.bf16.msra.mxu0 0
        %5724 = vmatprep.subr.bf16.mxu0 0
        %5725 = vmatpush1.bf16.msra.mxu0 0
        %5726 = vmatprep.subr.bf16.mxu0 0
        %5727 = vmatpush1.bf16.msra.mxu0 0
        %5728 = vmatprep.subr.bf16.mxu0 0
        %5729 = vmatpush1.bf16.msra.mxu0 0
        %5730 = vmatprep.subr.bf16.mxu0 0
        %5731 = vmatpush1.bf16.msra.mxu0 0
        %5732 = vmatprep.mubr.bf16.mxu0 0
        %5733 = vmatmul.mubr.bf16.gmra.mrb[0].mxu0 %v4421
        %v5734 = vpop.f32.mrb[0].mxu0
        %v5735 = vadd.f32 %v5673, %v5734
        %v5736 = vpop.f32.mrb[0].mxu0
        %v5737 = vadd.f32 %v5677, %v5736
        %v5738 = vpop.f32.mrb[0].mxu0
        %v5739 = vadd.f32 %v5673, %v5738
        %v5740 = vpop.f32.mrb[0].mxu0
        %v5741 = vadd.f32 %v5677, %v5740
        %5742 = vdwg.mxu0
        %v5743 = vmax.f32 %v5735, 0.0
        %v5744 = vmax.f32 %v5737, 0.0
        %v5745 = vmax.f32 %v5739, 0.0
        %v5746 = vmax.f32 %v5741, 0.0
        %v5747 = vpack.c.bf16 %v5745, %v5743
        %v5748 = vpack.c.bf16 %v5746, %v5744
        %v5749 = vld [vmem:[%s4472 + $0x280] sm:$0xf]
        %v5750 = vld [vmem:[%s4472 + $0x284] sm:$0xf]
        %v5751 = vld [vmem:[%s4472 + $0x288] sm:$0xf]
        %v5752 = vld [vmem:[%s4472 + $0x28c] sm:$0xf]
        %v5753 = vld [vmem:[%s4472 + $0x290] sm:$0xf]
        %v5754 = vld [vmem:[%s4472 + $0x294] sm:$0xf]
        %v5755 = vld [vmem:[%s4472 + $0x298] sm:$0xf]
        %v5756 = vld [vmem:[%s4472 + $0x29c] sm:$0xf]
        %v5757 = vld [vmem:[%s4472 + $0x2a0] sm:$0xf]
        %v5758 = vld [vmem:[%s4472 + $0x2a4] sm:$0xf]
        %v5759 = vld [vmem:[%s4472 + $0x2a8] sm:$0xf]
        %v5760 = vld [vmem:[%s4472 + $0x2ac] sm:$0xf]
        %v5761 = vld [vmem:[%s4472 + $0x2b0] sm:$0xf]
        %v5762 = vld [vmem:[%s4472 + $0x2b4] sm:$0xf]
        %v5763 = vld [vmem:[%s4472 + $0x2b8] sm:$0xf]
        %v5764 = vld [vmem:[%s4472 + $0x2bc] sm:$0xf]
        %v5765 = vld [vmem:[%s4472 + $0x2c0] sm:$0xf]
        %v5766 = vld [vmem:[%s4472 + $0x2c4] sm:$0xf]
        %v5767 = vld [vmem:[%s4472 + $0x2c8] sm:$0xf]
        %v5768 = vld [vmem:[%s4472 + $0x2cc] sm:$0xf]
        %v5769 = vld [vmem:[%s4472 + $0x2d0] sm:$0xf]
        %v5770 = vld [vmem:[%s4472 + $0x2d4] sm:$0xf]
        %v5771 = vld [vmem:[%s4472 + $0x2d8] sm:$0xf]
        %v5772 = vld [vmem:[%s4472 + $0x2dc] sm:$0xf]
        %v5773 = vld [vmem:[%s4472 + $0x2e0] sm:$0xf]
        %v5774 = vld [vmem:[%s4472 + $0x2e4] sm:$0xf]
        %v5775 = vld [vmem:[%s4472 + $0x2e8] sm:$0xf]
        %v5776 = vld [vmem:[%s4472 + $0x2ec] sm:$0xf]
        %v5777 = vld [vmem:[%s4472 + $0x2f0] sm:$0xf]
        %v5778 = vld [vmem:[%s4472 + $0x2f4] sm:$0xf]
        %v5779 = vld [vmem:[%s4472 + $0x2f8] sm:$0xf]
        %v5780 = vld [vmem:[%s4472 + $0x2fc] sm:$0xf]
        %v5813 = vunpack.c.l.b16 %v5749
        %v5814 = vunpack.c.l.b16 %v5750
        %v5815 = vunpack.c.l.b16 %v5751
        %v5816 = vunpack.c.l.b16 %v5752
        %v5817 = vunpack.c.l.b16 %v5753
        %v5818 = vunpack.c.l.b16 %v5754
        %v5819 = vunpack.c.l.b16 %v5755
        %v5820 = vunpack.c.l.b16 %v5756
        %v5821 = vunpack.c.l.b16 %v5757
        %v5822 = vunpack.c.l.b16 %v5758
        %v5823 = vunpack.c.l.b16 %v5759
        %v5824 = vunpack.c.l.b16 %v5760
        %v5825 = vunpack.c.l.b16 %v5761
        %v5826 = vunpack.c.l.b16 %v5762
        %v5827 = vunpack.c.l.b16 %v5763
        %v5828 = vunpack.c.l.b16 %v5764
        %v5829 = vunpack.c.l.b16 %v5765
        %v5830 = vunpack.c.l.b16 %v5766
        %v5831 = vunpack.c.l.b16 %v5767
        %v5832 = vunpack.c.l.b16 %v5768
        %v5833 = vunpack.c.l.b16 %v5769
        %v5834 = vunpack.c.l.b16 %v5770
        %v5835 = vunpack.c.l.b16 %v5771
        %v5836 = vunpack.c.l.b16 %v5772
        %v5837 = vunpack.c.l.b16 %v5773
        %v5838 = vunpack.c.l.b16 %v5774
        %v5839 = vunpack.c.l.b16 %v5775
        %v5840 = vunpack.c.l.b16 %v5776
        %v5841 = vunpack.c.l.b16 %v5777
        %v5842 = vunpack.c.l.b16 %v5778
        %v5843 = vunpack.c.l.b16 %v5779
        %v5844 = vunpack.c.l.b16 %v5780
        %v5845 = vpack.c.b16 %v5814, %v5813
        %v5846 = vpack.c.b16 %v5816, %v5815
        %v5847 = vpack.c.b16 %v5818, %v5817
        %v5848 = vpack.c.b16 %v5820, %v5819
        %v5849 = vpack.c.b16 %v5822, %v5821
        %v5850 = vpack.c.b16 %v5824, %v5823
        %v5851 = vpack.c.b16 %v5826, %v5825
        %v5852 = vpack.c.b16 %v5828, %v5827
        %v5853 = vpack.c.b16 %v5830, %v5829
        %v5854 = vpack.c.b16 %v5832, %v5831
        %v5855 = vpack.c.b16 %v5834, %v5833
        %v5856 = vpack.c.b16 %v5836, %v5835
        %v5857 = vpack.c.b16 %v5838, %v5837
        %v5858 = vpack.c.b16 %v5840, %v5839
        %v5859 = vpack.c.b16 %v5842, %v5841
        %v5860 = vpack.c.b16 %v5844, %v5843
        %5877 = vmatprep.subr.bf16.mxu0 0
        %5878 = vmatpush1.bf16.msra.mxu0 %v5845
        %5879 = vmatprep.subr.bf16.mxu0 0
        %5880 = vmatpush1.bf16.msra.mxu0 %v5846
        %5881 = vmatprep.subr.bf16.mxu0 0
        %5882 = vmatpush1.bf16.msra.mxu0 %v5847
        %5883 = vmatprep.subr.bf16.mxu0 0
        %5884 = vmatpush1.bf16.msra.mxu0 %v5848
        %5885 = vmatprep.subr.bf16.mxu0 0
        %5886 = vmatpush1.bf16.msra.mxu0 %v5849
        %5887 = vmatprep.subr.bf16.mxu0 0
        %5888 = vmatpush1.bf16.msra.mxu0 %v5850
        %5889 = vmatprep.subr.bf16.mxu0 0
        %5890 = vmatpush1.bf16.msra.mxu0 %v5851
        %5891 = vmatprep.subr.bf16.mxu0 0
        %5892 = vmatpush1.bf16.msra.mxu0 %v5852
        %5893 = vmatprep.subr.bf16.mxu0 0
        %5894 = vmatpush1.bf16.msra.mxu0 %v5853
        %5895 = vmatprep.subr.bf16.mxu0 0
        %5896 = vmatpush1.bf16.msra.mxu0 %v5854
        %5897 = vmatprep.subr.bf16.mxu0 0
        %5898 = vmatpush1.bf16.msra.mxu0 %v5855
        %5899 = vmatprep.subr.bf16.mxu0 0
        %5900 = vmatpush1.bf16.msra.mxu0 %v5856
        %5901 = vmatprep.subr.bf16.mxu0 0
        %5902 = vmatpush1.bf16.msra.mxu0 %v5857
        %5903 = vmatprep.subr.bf16.mxu0 0
        %5904 = vmatpush1.bf16.msra.mxu0 %v5858
        %5905 = vmatprep.subr.bf16.mxu0 0
        %5906 = vmatpush1.bf16.msra.mxu0 %v5859
        %5907 = vmatprep.subr.bf16.mxu0 0
        %5908 = vmatpush1.bf16.msra.mxu0 %v5860
        %5909 = vmatprep.mubr.bf16.mxu0 %v5748
        %5910 = vmatmul.mubr.bf16.gmra.mrb[0].mxu0 %v5747
        %v5911 = vpop.f32.mrb[0].mxu0
        %v5912 = vadd.f32 0.0, %v5911
        %v5913 = vpop.f32.mrb[0].mxu0
        %v5914 = vpop.f32.mrb[0].mxu0
        %v5915 = vadd.f32 0.0, %v5914
        %v5916 = vpop.f32.mrb[0].mxu0
        %5917 = vdwg.mxu0
        %v5918 = vadd.f32 %v5662, %v5912
        %v5919 = vadd.f32 %v5663, %v5915
        %v5920 = vld [vmem:[%s4382 + $0x30] sm:$0xff]
        %v5921 = vld [vmem:[%s4382 + $0x70] sm:$0xff]
        %v5922 = vld [vmem:[%s4382 + $0xb0] sm:$0xff]
        %v5923 = vld [vmem:[%s4382 + $0xf0] sm:$0xff]
        %v5924 = vld [vmem:[%s4387 + $0xc] sm:$0x3]
        %v5926 = vlaneseq
        %v5927 = vshrl.u32 %v5926, 7
        %v5928 = vsub.s32 0, %v5927
        %v5929 = vrot.slane %v5924, %v5928
        %v5930 = vlaneseq
        %v5931 = vshrl.u32 %v5930, 7
        %v5932 = vsub.s32 1, %v5931
        %v5933 = vrot.slane %v5924, %v5932
        %v5940 = vunpack.c.l.b16 %v5920
        %v5941 = vunpack.c.h.b16 %v5920
        %v5942 = vunpack.c.l.b16 %v5921
        %v5943 = vunpack.c.h.b16 %v5921
        %v5944 = vunpack.c.l.b16 %v5922
        %v5945 = vunpack.c.h.b16 %v5922
        %v5946 = vunpack.c.l.b16 %v5923
        %v5947 = vunpack.c.h.b16 %v5923
        %v5948 = vpack.c.b16 %v5942, %v5940
        %v5949 = vpack.c.b16 %v5943, %v5941
        %v5950 = vpack.c.b16 %v5946, %v5944
        %v5951 = vpack.c.b16 %v5947, %v5945
        %5956 = vmatprep.subr.bf16.mxu0 %v5949
        %5957 = vmatpush1.bf16.msra.mxu0 %v5948
        %5958 = vmatprep.subr.bf16.mxu0 %v5951
        %5959 = vmatpush1.bf16.msra.mxu0 %v5950
        %5960 = vmatprep.subr.bf16.mxu0 0
        %5961 = vmatpush1.bf16.msra.mxu0 0
        %5962 = vmatprep.subr.bf16.mxu0 0
        %5963 = vmatpush1.bf16.msra.mxu0 0
        %5964 = vmatprep.subr.bf16.mxu0 0
        %5965 = vmatpush1.bf16.msra.mxu0 0
        %5966 = vmatprep.subr.bf16.mxu0 0
        %5967 = vmatpush1.bf16.msra.mxu0 0
        %5968 = vmatprep.subr.bf16.mxu0 0
        %5969 = vmatpush1.bf16.msra.mxu0 0
        %5970 = vmatprep.subr.bf16.mxu0 0
        %5971 = vmatpush1.bf16.msra.mxu0 0
        %5972 = vmatprep.subr.bf16.mxu0 0
        %5973 = vmatpush1.bf16.msra.mxu0 0
        %5974 = vmatprep.subr.bf16.mxu0 0
        %5975 = vmatpush1.bf16.msra.mxu0 0
        %5976 = vmatprep.subr.bf16.mxu0 0
        %5977 = vmatpush1.bf16.msra.mxu0 0
        %5978 = vmatprep.subr.bf16.mxu0 0
        %5979 = vmatpush1.bf16.msra.mxu0 0
        %5980 = vmatprep.subr.bf16.mxu0 0
        %5981 = vmatpush1.bf16.msra.mxu0 0
        %5982 = vmatprep.subr.bf16.mxu0 0
        %5983 = vmatpush1.bf16.msra.mxu0 0
        %5984 = vmatprep.subr.bf16.mxu0 0
        %5985 = vmatpush1.bf16.msra.mxu0 0
        %5986 = vmatprep.subr.bf16.mxu0 0
        %5987 = vmatpush1.bf16.msra.mxu0 0
        %5988 = vmatprep.mubr.bf16.mxu0 0
        %5989 = vmatmul.mubr.bf16.gmra.mrb[0].mxu0 %v4421
        %v5990 = vpop.f32.mrb[0].mxu0
        %v5991 = vadd.f32 %v5929, %v5990
        %v5992 = vpop.f32.mrb[0].mxu0
        %v5993 = vadd.f32 %v5933, %v5992
        %v5994 = vpop.f32.mrb[0].mxu0
        %v5995 = vadd.f32 %v5929, %v5994
        %v5996 = vpop.f32.mrb[0].mxu0
        %v5997 = vadd.f32 %v5933, %v5996
        %5998 = vdwg.mxu0
        %v5999 = vmax.f32 %v5991, 0.0
        %v6000 = vmax.f32 %v5993, 0.0
        %v6001 = vmax.f32 %v5995, 0.0
        %v6002 = vmax.f32 %v5997, 0.0
        %v6003 = vpack.c.bf16 %v6001, %v5999
        %v6004 = vpack.c.bf16 %v6002, %v6000
        %v6005 = vld [vmem:[%s4472 + $0x300] sm:$0xf]
        %v6006 = vld [vmem:[%s4472 + $0x304] sm:$0xf]
        %v6007 = vld [vmem:[%s4472 + $0x308] sm:$0xf]
        %v6008 = vld [vmem:[%s4472 + $0x30c] sm:$0xf]
        %v6009 = vld [vmem:[%s4472 + $0x310] sm:$0xf]
        %v6010 = vld [vmem:[%s4472 + $0x314] sm:$0xf]
        %v6011 = vld [vmem:[%s4472 + $0x318] sm:$0xf]
        %v6012 = vld [vmem:[%s4472 + $0x31c] sm:$0xf]
        %v6013 = vld [vmem:[%s4472 + $0x320] sm:$0xf]
        %v6014 = vld [vmem:[%s4472 + $0x324] sm:$0xf]
        %v6015 = vld [vmem:[%s4472 + $0x328] sm:$0xf]
        %v6016 = vld [vmem:[%s4472 + $0x32c] sm:$0xf]
        %v6017 = vld [vmem:[%s4472 + $0x330] sm:$0xf]
        %v6018 = vld [vmem:[%s4472 + $0x334] sm:$0xf]
        %v6019 = vld [vmem:[%s4472 + $0x338] sm:$0xf]
        %v6020 = vld [vmem:[%s4472 + $0x33c] sm:$0xf]
        %v6021 = vld [vmem:[%s4472 + $0x340] sm:$0xf]
        %v6022 = vld [vmem:[%s4472 + $0x344] sm:$0xf]
        %v6023 = vld [vmem:[%s4472 + $0x348] sm:$0xf]
        %v6024 = vld [vmem:[%s4472 + $0x34c] sm:$0xf]
        %v6025 = vld [vmem:[%s4472 + $0x350] sm:$0xf]
        %v6026 = vld [vmem:[%s4472 + $0x354] sm:$0xf]
        %v6027 = vld [vmem:[%s4472 + $0x358] sm:$0xf]
        %v6028 = vld [vmem:[%s4472 + $0x35c] sm:$0xf]
        %v6029 = vld [vmem:[%s4472 + $0x360] sm:$0xf]
        %v6030 = vld [vmem:[%s4472 + $0x364] sm:$0xf]
        %v6031 = vld [vmem:[%s4472 + $0x368] sm:$0xf]
        %v6032 = vld [vmem:[%s4472 + $0x36c] sm:$0xf]
        %v6033 = vld [vmem:[%s4472 + $0x370] sm:$0xf]
        %v6034 = vld [vmem:[%s4472 + $0x374] sm:$0xf]
        %v6035 = vld [vmem:[%s4472 + $0x378] sm:$0xf]
        %v6036 = vld [vmem:[%s4472 + $0x37c] sm:$0xf]
        %v6069 = vunpack.c.l.b16 %v6005
        %v6070 = vunpack.c.l.b16 %v6006
        %v6071 = vunpack.c.l.b16 %v6007
        %v6072 = vunpack.c.l.b16 %v6008
        %v6073 = vunpack.c.l.b16 %v6009
        %v6074 = vunpack.c.l.b16 %v6010
        %v6075 = vunpack.c.l.b16 %v6011
        %v6076 = vunpack.c.l.b16 %v6012
        %v6077 = vunpack.c.l.b16 %v6013
        %v6078 = vunpack.c.l.b16 %v6014
        %v6079 = vunpack.c.l.b16 %v6015
        %v6080 = vunpack.c.l.b16 %v6016
        %v6081 = vunpack.c.l.b16 %v6017
        %v6082 = vunpack.c.l.b16 %v6018
        %v6083 = vunpack.c.l.b16 %v6019
        %v6084 = vunpack.c.l.b16 %v6020
        %v6085 = vunpack.c.l.b16 %v6021
        %v6086 = vunpack.c.l.b16 %v6022
        %v6087 = vunpack.c.l.b16 %v6023
        %v6088 = vunpack.c.l.b16 %v6024
        %v6089 = vunpack.c.l.b16 %v6025
        %v6090 = vunpack.c.l.b16 %v6026
        %v6091 = vunpack.c.l.b16 %v6027
        %v6092 = vunpack.c.l.b16 %v6028
        %v6093 = vunpack.c.l.b16 %v6029
        %v6094 = vunpack.c.l.b16 %v6030
        %v6095 = vunpack.c.l.b16 %v6031
        %v6096 = vunpack.c.l.b16 %v6032
        %v6097 = vunpack.c.l.b16 %v6033
        %v6098 = vunpack.c.l.b16 %v6034
        %v6099 = vunpack.c.l.b16 %v6035
        %v6100 = vunpack.c.l.b16 %v6036
        %v6101 = vpack.c.b16 %v6070, %v6069
        %v6102 = vpack.c.b16 %v6072, %v6071
        %v6103 = vpack.c.b16 %v6074, %v6073
        %v6104 = vpack.c.b16 %v6076, %v6075
        %v6105 = vpack.c.b16 %v6078, %v6077
        %v6106 = vpack.c.b16 %v6080, %v6079
        %v6107 = vpack.c.b16 %v6082, %v6081
        %v6108 = vpack.c.b16 %v6084, %v6083
        %v6109 = vpack.c.b16 %v6086, %v6085
        %v6110 = vpack.c.b16 %v6088, %v6087
        %v6111 = vpack.c.b16 %v6090, %v6089
        %v6112 = vpack.c.b16 %v6092, %v6091
        %v6113 = vpack.c.b16 %v6094, %v6093
        %v6114 = vpack.c.b16 %v6096, %v6095
        %v6115 = vpack.c.b16 %v6098, %v6097
        %v6116 = vpack.c.b16 %v6100, %v6099
        %6133 = vmatprep.subr.bf16.mxu0 0
        %6134 = vmatpush1.bf16.msra.mxu0 %v6101
        %6135 = vmatprep.subr.bf16.mxu0 0
        %6136 = vmatpush1.bf16.msra.mxu0 %v6102
        %6137 = vmatprep.subr.bf16.mxu0 0
        %6138 = vmatpush1.bf16.msra.mxu0 %v6103
        %6139 = vmatprep.subr.bf16.mxu0 0
        %6140 = vmatpush1.bf16.msra.mxu0 %v6104
        %6141 = vmatprep.subr.bf16.mxu0 0
        %6142 = vmatpush1.bf16.msra.mxu0 %v6105
        %6143 = vmatprep.subr.bf16.mxu0 0
        %6144 = vmatpush1.bf16.msra.mxu0 %v6106
        %6145 = vmatprep.subr.bf16.mxu0 0
        %6146 = vmatpush1.bf16.msra.mxu0 %v6107
        %6147 = vmatprep.subr.bf16.mxu0 0
        %6148 = vmatpush1.bf16.msra.mxu0 %v6108
        %6149 = vmatprep.subr.bf16.mxu0 0
        %6150 = vmatpush1.bf16.msra.mxu0 %v6109
        %6151 = vmatprep.subr.bf16.mxu0 0
        %6152 = vmatpush1.bf16.msra.mxu0 %v6110
        %6153 = vmatprep.subr.bf16.mxu0 0
        %6154 = vmatpush1.bf16.msra.mxu0 %v6111
        %6155 = vmatprep.subr.bf16.mxu0 0
        %6156 = vmatpush1.bf16.msra.mxu0 %v6112
        %6157 = vmatprep.subr.bf16.mxu0 0
        %6158 = vmatpush1.bf16.msra.mxu0 %v6113
        %6159 = vmatprep.subr.bf16.mxu0 0
        %6160 = vmatpush1.bf16.msra.mxu0 %v6114
        %6161 = vmatprep.subr.bf16.mxu0 0
        %6162 = vmatpush1.bf16.msra.mxu0 %v6115
        %6163 = vmatprep.subr.bf16.mxu0 0
        %6164 = vmatpush1.bf16.msra.mxu0 %v6116
        %6165 = vmatprep.mubr.bf16.mxu0 %v6004
        %6166 = vmatmul.mubr.bf16.gmra.mrb[0].mxu0 %v6003
        %v6167 = vpop.f32.mrb[0].mxu0
        %v6168 = vadd.f32 0.0, %v6167
        %v6169 = vpop.f32.mrb[0].mxu0
        %v6170 = vpop.f32.mrb[0].mxu0
        %v6171 = vadd.f32 0.0, %v6170
        %v6172 = vpop.f32.mrb[0].mxu0
        %6173 = vdwg.mxu0
        %v6174 = vadd.f32 %v5918, %v6168
        %v6175 = vadd.f32 %v5919, %v6171
        %v6176 = vld [vmem:[%s4382 + $0x38] sm:$0xff]
        %v6177 = vld [vmem:[%s4382 + $0x78] sm:$0xff]
        %v6178 = vld [vmem:[%s4382 + $0xb8] sm:$0xff]
        %v6179 = vld [vmem:[%s4382 + $0xf8] sm:$0xff]
        %v6180 = vld [vmem:[%s4387 + $0xe] sm:$0x3]
        %v6182 = vlaneseq
        %v6183 = vshrl.u32 %v6182, 7
        %v6184 = vsub.s32 0, %v6183
        %v6185 = vrot.slane %v6180, %v6184
        %v6186 = vlaneseq
        %v6187 = vshrl.u32 %v6186, 7
        %v6188 = vsub.s32 1, %v6187
        %v6189 = vrot.slane %v6180, %v6188
        %v6196 = vunpack.c.l.b16 %v6176
        %v6197 = vunpack.c.h.b16 %v6176
        %v6198 = vunpack.c.l.b16 %v6177
        %v6199 = vunpack.c.h.b16 %v6177
        %v6200 = vunpack.c.l.b16 %v6178
        %v6201 = vunpack.c.h.b16 %v6178
        %v6202 = vunpack.c.l.b16 %v6179
        %v6203 = vunpack.c.h.b16 %v6179
        %v6204 = vpack.c.b16 %v6198, %v6196
        %v6205 = vpack.c.b16 %v6199, %v6197
        %v6206 = vpack.c.b16 %v6202, %v6200
        %v6207 = vpack.c.b16 %v6203, %v6201
        %6212 = vmatprep.subr.bf16.mxu0 %v6205
        %6213 = vmatpush1.bf16.msra.mxu0 %v6204
        %6214 = vmatprep.subr.bf16.mxu0 %v6207
        %6215 = vmatpush1.bf16.msra.mxu0 %v6206
        %6216 = vmatprep.subr.bf16.mxu0 0
        %6217 = vmatpush1.bf16.msra.mxu0 0
        %6218 = vmatprep.subr.bf16.mxu0 0
        %6219 = vmatpush1.bf16.msra.mxu0 0
        %6220 = vmatprep.subr.bf16.mxu0 0
        %6221 = vmatpush1.bf16.msra.mxu0 0
        %6222 = vmatprep.subr.bf16.mxu0 0
        %6223 = vmatpush1.bf16.msra.mxu0 0
        %6224 = vmatprep.subr.bf16.mxu0 0
        %6225 = vmatpush1.bf16.msra.mxu0 0
        %6226 = vmatprep.subr.bf16.mxu0 0
        %6227 = vmatpush1.bf16.msra.mxu0 0
        %6228 = vmatprep.subr.bf16.mxu0 0
        %6229 = vmatpush1.bf16.msra.mxu0 0
        %6230 = vmatprep.subr.bf16.mxu0 0
        %6231 = vmatpush1.bf16.msra.mxu0 0
        %6232 = vmatprep.subr.bf16.mxu0 0
        %6233 = vmatpush1.bf16.msra.mxu0 0
        %6234 = vmatprep.subr.bf16.mxu0 0
        %6235 = vmatpush1.bf16.msra.mxu0 0
        %6236 = vmatprep.subr.bf16.mxu0 0
        %6237 = vmatpush1.bf16.msra.mxu0 0
        %6238 = vmatprep.subr.bf16.mxu0 0
        %6239 = vmatpush1.bf16.msra.mxu0 0
        %6240 = vmatprep.subr.bf16.mxu0 0
        %6241 = vmatpush1.bf16.msra.mxu0 0
        %6242 = vmatprep.subr.bf16.mxu0 0
        %6243 = vmatpush1.bf16.msra.mxu0 0
        %6244 = vmatprep.mubr.bf16.mxu0 0
        %6245 = vmatmul.mubr.bf16.gmra.mrb[0].mxu0 %v4421
        %v6246 = vpop.f32.mrb[0].mxu0
        %v6247 = vadd.f32 %v6185, %v6246
        %v6248 = vpop.f32.mrb[0].mxu0
        %v6249 = vadd.f32 %v6189, %v6248
        %v6250 = vpop.f32.mrb[0].mxu0
        %v6251 = vadd.f32 %v6185, %v6250
        %v6252 = vpop.f32.mrb[0].mxu0
        %v6253 = vadd.f32 %v6189, %v6252
        %6254 = vdwg.mxu0
        %v6255 = vmax.f32 %v6247, 0.0
        %v6256 = vmax.f32 %v6249, 0.0
        %v6257 = vmax.f32 %v6251, 0.0
        %v6258 = vmax.f32 %v6253, 0.0
        %v6259 = vpack.c.bf16 %v6257, %v6255
        %v6260 = vpack.c.bf16 %v6258, %v6256
        %v6261 = vld [vmem:[%s4472 + $0x380] sm:$0xf]
        %v6262 = vld [vmem:[%s4472 + $0x384] sm:$0xf]
        %v6263 = vld [vmem:[%s4472 + $0x388] sm:$0xf]
        %v6264 = vld [vmem:[%s4472 + $0x38c] sm:$0xf]
        %v6265 = vld [vmem:[%s4472 + $0x390] sm:$0xf]
        %v6266 = vld [vmem:[%s4472 + $0x394] sm:$0xf]
        %v6267 = vld [vmem:[%s4472 + $0x398] sm:$0xf]
        %v6268 = vld [vmem:[%s4472 + $0x39c] sm:$0xf]
        %v6269 = vld [vmem:[%s4472 + $0x3a0] sm:$0xf]
        %v6270 = vld [vmem:[%s4472 + $0x3a4] sm:$0xf]
        %v6271 = vld [vmem:[%s4472 + $0x3a8] sm:$0xf]
        %v6272 = vld [vmem:[%s4472 + $0x3ac] sm:$0xf]
        %v6273 = vld [vmem:[%s4472 + $0x3b0] sm:$0xf]
        %v6274 = vld [vmem:[%s4472 + $0x3b4] sm:$0xf]
        %v6275 = vld [vmem:[%s4472 + $0x3b8] sm:$0xf]
        %v6276 = vld [vmem:[%s4472 + $0x3bc] sm:$0xf]
        %v6277 = vld [vmem:[%s4472 + $0x3c0] sm:$0xf]
        %v6278 = vld [vmem:[%s4472 + $0x3c4] sm:$0xf]
        %v6279 = vld [vmem:[%s4472 + $0x3c8] sm:$0xf]
        %v6280 = vld [vmem:[%s4472 + $0x3cc] sm:$0xf]
        %v6281 = vld [vmem:[%s4472 + $0x3d0] sm:$0xf]
        %v6282 = vld [vmem:[%s4472 + $0x3d4] sm:$0xf]
        %v6283 = vld [vmem:[%s4472 + $0x3d8] sm:$0xf]
        %v6284 = vld [vmem:[%s4472 + $0x3dc] sm:$0xf]
        %v6285 = vld [vmem:[%s4472 + $0x3e0] sm:$0xf]
        %v6286 = vld [vmem:[%s4472 + $0x3e4] sm:$0xf]
        %v6287 = vld [vmem:[%s4472 + $0x3e8] sm:$0xf]
        %v6288 = vld [vmem:[%s4472 + $0x3ec] sm:$0xf]
        %v6289 = vld [vmem:[%s4472 + $0x3f0] sm:$0xf]
        %v6290 = vld [vmem:[%s4472 + $0x3f4] sm:$0xf]
        %v6291 = vld [vmem:[%s4472 + $0x3f8] sm:$0xf]
        %v6292 = vld [vmem:[%s4472 + $0x3fc] sm:$0xf]
        %v6325 = vunpack.c.l.b16 %v6261
        %v6326 = vunpack.c.l.b16 %v6262
        %v6327 = vunpack.c.l.b16 %v6263
        %v6328 = vunpack.c.l.b16 %v6264
        %v6329 = vunpack.c.l.b16 %v6265
        %v6330 = vunpack.c.l.b16 %v6266
        %v6331 = vunpack.c.l.b16 %v6267
        %v6332 = vunpack.c.l.b16 %v6268
        %v6333 = vunpack.c.l.b16 %v6269
        %v6334 = vunpack.c.l.b16 %v6270
        %v6335 = vunpack.c.l.b16 %v6271
        %v6336 = vunpack.c.l.b16 %v6272
        %v6337 = vunpack.c.l.b16 %v6273
        %v6338 = vunpack.c.l.b16 %v6274
        %v6339 = vunpack.c.l.b16 %v6275
        %v6340 = vunpack.c.l.b16 %v6276
        %v6341 = vunpack.c.l.b16 %v6277
        %v6342 = vunpack.c.l.b16 %v6278
        %v6343 = vunpack.c.l.b16 %v6279
        %v6344 = vunpack.c.l.b16 %v6280
        %v6345 = vunpack.c.l.b16 %v6281
        %v6346 = vunpack.c.l.b16 %v6282
        %v6347 = vunpack.c.l.b16 %v6283
        %v6348 = vunpack.c.l.b16 %v6284
        %v6349 = vunpack.c.l.b16 %v6285
        %v6350 = vunpack.c.l.b16 %v6286
        %v6351 = vunpack.c.l.b16 %v6287
        %v6352 = vunpack.c.l.b16 %v6288
        %v6353 = vunpack.c.l.b16 %v6289
        %v6354 = vunpack.c.l.b16 %v6290
        %v6355 = vunpack.c.l.b16 %v6291
        %v6356 = vunpack.c.l.b16 %v6292
        %v6357 = vpack.c.b16 %v6326, %v6325
        %v6358 = vpack.c.b16 %v6328, %v6327
        %v6359 = vpack.c.b16 %v6330, %v6329
        %v6360 = vpack.c.b16 %v6332, %v6331
        %v6361 = vpack.c.b16 %v6334, %v6333
        %v6362 = vpack.c.b16 %v6336, %v6335
        %v6363 = vpack.c.b16 %v6338, %v6337
        %v6364 = vpack.c.b16 %v6340, %v6339
        %v6365 = vpack.c.b16 %v6342, %v6341
        %v6366 = vpack.c.b16 %v6344, %v6343
        %v6367 = vpack.c.b16 %v6346, %v6345
        %v6368 = vpack.c.b16 %v6348, %v6347
        %v6369 = vpack.c.b16 %v6350, %v6349
        %v6370 = vpack.c.b16 %v6352, %v6351
        %v6371 = vpack.c.b16 %v6354, %v6353
        %v6372 = vpack.c.b16 %v6356, %v6355
        %6389 = vmatprep.subr.bf16.mxu0 0
        %6390 = vmatpush1.bf16.msra.mxu0 %v6357
        %6391 = vmatprep.subr.bf16.mxu0 0
        %6392 = vmatpush1.bf16.msra.mxu0 %v6358
        %6393 = vmatprep.subr.bf16.mxu0 0
        %6394 = vmatpush1.bf16.msra.mxu0 %v6359
        %6395 = vmatprep.subr.bf16.mxu0 0
        %6396 = vmatpush1.bf16.msra.mxu0 %v6360
        %6397 = vmatprep.subr.bf16.mxu0 0
        %6398 = vmatpush1.bf16.msra.mxu0 %v6361
        %6399 = vmatprep.subr.bf16.mxu0 0
        %6400 = vmatpush1.bf16.msra.mxu0 %v6362
        %6401 = vmatprep.subr.bf16.mxu0 0
        %6402 = vmatpush1.bf16.msra.mxu0 %v6363
        %6403 = vmatprep.subr.bf16.mxu0 0
        %6404 = vmatpush1.bf16.msra.mxu0 %v6364
        %6405 = vmatprep.subr.bf16.mxu0 0
        %6406 = vmatpush1.bf16.msra.mxu0 %v6365
        %6407 = vmatprep.subr.bf16.mxu0 0
        %6408 = vmatpush1.bf16.msra.mxu0 %v6366
        %6409 = vmatprep.subr.bf16.mxu0 0
        %6410 = vmatpush1.bf16.msra.mxu0 %v6367
        %6411 = vmatprep.subr.bf16.mxu0 0
        %6412 = vmatpush1.bf16.msra.mxu0 %v6368
        %6413 = vmatprep.subr.bf16.mxu0 0
        %6414 = vmatpush1.bf16.msra.mxu0 %v6369
        %6415 = vmatprep.subr.bf16.mxu0 0
        %6416 = vmatpush1.bf16.msra.mxu0 %v6370
        %6417 = vmatprep.subr.bf16.mxu0 0
        %6418 = vmatpush1.bf16.msra.mxu0 %v6371
        %6419 = vmatprep.subr.bf16.mxu0 0
        %6420 = vmatpush1.bf16.msra.mxu0 %v6372
        %6421 = vmatprep.mubr.bf16.mxu0 %v6260
        %6422 = vmatmul.mubr.bf16.gmra.mrb[0].mxu0 %v6259
        %v6423 = vpop.f32.mrb[0].mxu0
        %v6424 = vadd.f32 0.0, %v6423
        %v6425 = vpop.f32.mrb[0].mxu0
        %v6426 = vpop.f32.mrb[0].mxu0
        %v6427 = vadd.f32 0.0, %v6426
        %v6428 = vpop.f32.mrb[0].mxu0
        %6429 = vdwg.mxu0
        %v6430 = vadd.f32 %v6174, %v6424
        %v6431 = vadd.f32 %v6175, %v6427
        %s6432 = scalar_lea.vmem %s16, 1
        %v6433 = vld [vmem:[%s6432] sm:$0x1]
        %v6435 = vlaneseq
        %v6436 = vshrl.u32 %v6435, 7
        %v6437 = vsub.s32 0, %v6436
        %v6438 = vrot.slane %v6433, %v6437
        %v6440 = vadd.f32 %v6430, %v6438
        %v6441 = vadd.f32 %v6431, %v6438
        %v6442 = vadd.f32 %v4379, %v6440
        %v6443 = vadd.f32 %v4380, %v6441
        %s6444 = scalar_lea.vmem %s11, 1
        %v6445 = vld [vmem:[%s6444] sm:$0x1]
        %s6446 = scalar_lea.vmem %s12, 1
        %v6447 = vld [vmem:[%s6446] sm:$0x1]
        %v6448 = vsel %vm677, %v6442, 0.0
        %6449 = vadd.xlane.f32.xlu0 %v6448
        %v6450 = vpop.xlane.xlu0 %6449
        %v6451 = vsel %vm677, %v6443, 0.0
        %6452 = vadd.xlane.f32.xlu0 %v6451
        %v6453 = vpop.xlane.xlu0 %6452
        %v6454 = vmul.f32 %v6450, %v1428
        %v6455 = vmul.f32 %v6453, %v1428
        %v6456 = vsub.f32 %v6442, %v6454
        %v6457 = vsub.f32 %v6443, %v6455
        %v6458 = vmul.f32 %v6456, %v6456
        %v6459 = vmul.f32 %v6457, %v6457
        %v6460 = vsel %vm677, %v6458, 0.0
        %6461 = vadd.xlane.f32.xlu0 %v6460
        %v6462 = vpop.xlane.xlu0 %6461
        %v6463 = vsel %vm677, %v6459, 0.0
        %6464 = vadd.xlane.f32.xlu0 %v6463
        %v6465 = vpop.xlane.xlu0 %6464
        %v6466 = vmul.f32 %v6462, %v1428
        %v6467 = vmul.f32 %v6465, %v1428
        %v6468 = vadd.f32 %v6466, 1e-05
        %v6469 = vadd.f32 %v6467, 1e-05
        %v6470 = vrsqrt.pop %v6468
        %v6471 = vrsqrt.pop %v6469
        %v6472 = vmul.f32 %v6456, %v6470
        %v6473 = vmul.f32 %v6457, %v6471
        %v6475 = vlaneseq
        %v6476 = vshrl.u32 %v6475, 7
        %v6477 = vsub.s32 0, %v6476
        %v6478 = vrot.slane %v6445, %v6477
        %v6480 = vmul.f32 %v6472, %v6478
        %v6481 = vmul.f32 %v6473, %v6478
        %v6483 = vlaneseq
        %v6484 = vshrl.u32 %v6483, 7
        %v6485 = vsub.s32 0, %v6484
        %v6486 = vrot.slane %v6447, %v6485
        %v6488 = vadd.f32 %v6480, %v6486
        %v6489 = vadd.f32 %v6481, %v6486
        %v6490 = vsel %vm677, %v6488, 0.0
        %v6491 = vrot.slane %v6490, 4
        %v6492 = vadd.f32 %v6490, %v6491
        %v6493 = vrot.slane %v6492, 2
        %v6494 = vadd.f32 %v6492, %v6493
        %v6495 = vrot.slane %v6494, 1
        %v6496 = vadd.f32 %v6494, %v6495
        %v6497 = vsel %vm677, %v6489, 0.0
        %v6498 = vrot.slane %v6497, 4
        %v6499 = vadd.f32 %v6497, %v6498
        %v6500 = vrot.slane %v6499, 2
        %v6501 = vadd.f32 %v6499, %v6500
        %v6502 = vrot.slane %v6501, 1
        %v6503 = vadd.f32 %v6501, %v6502
        %v6504 = vrcp.pop 8.0
        %v6505 = vmul.f32 %v6496, %v6504
        %v6506 = vmul.f32 %v6503, %v6504
        %v6507 = vld [vmem:[%s17] sm:$0x1]
        %v6508 = vld [vmem:[#allocation2] sm:$0x1]
        %6510 = vset.pattern.permute.xlu0 0
        %6511 = vperm.xlu0 %6510, %v6508
        %v6512 = vpop.permute.xlu0 %6511
        %v6514 = vlaneseq
        %v6515 = vshrl.u32 %v6514, 7
        %v6516 = vsub.s32 0, %v6515
        %v6517 = vrot.slane %v6512, %v6516
        %vm6520 = vcmask 1041409
        %v6521 = vsel %vm6520, %v6506, %v6505
        %v6523 = vsel %vm677, %v6507, 0
        %v6525 = vsel %vm677, %v6521, 0
        %6527 = vmatprep.subr.mxu0 0.0
        %6528 = vmatpush1.xpose.msra.mxu0 %v6525
        %6529 = vmatprep.subr.mxu0 0.0
        %6530 = vmatpush1.xpose.msra.mxu0 0.0
        %6531 = vmatprep.subr.mxu0 0.0
        %6532 = vmatpush1.xpose.msra.mxu0 0.0
        %6533 = vmatprep.subr.mxu0 0.0
        %6534 = vmatpush1.xpose.msra.mxu0 0.0
        %6535 = vmatprep.subr.mxu0 0.0
        %6536 = vmatpush1.xpose.msra.mxu0 0.0
        %6537 = vmatprep.subr.mxu0 0.0
        %6538 = vmatpush1.xpose.msra.mxu0 0.0
        %6539 = vmatprep.subr.mxu0 0.0
        %6540 = vmatpush1.xpose.msra.mxu0 0.0
        %6541 = vmatprep.subr.mxu0 0.0
        %6542 = vmatpush1.xpose.msra.mxu0 0.0
        %6543 = vmatprep.subr.mxu0 0.0
        %6544 = vmatpush1.xpose.msra.mxu0 0.0
        %6545 = vmatprep.subr.mxu0 0.0
        %6546 = vmatpush1.xpose.msra.mxu0 0.0
        %6547 = vmatprep.subr.mxu0 0.0
        %6548 = vmatpush1.xpose.msra.mxu0 0.0
        %6549 = vmatprep.subr.mxu0 0.0
        %6550 = vmatpush1.xpose.msra.mxu0 0.0
        %6551 = vmatprep.subr.mxu0 0.0
        %6552 = vmatpush1.xpose.msra.mxu0 0.0
        %6553 = vmatprep.subr.mxu0 0.0
        %6554 = vmatpush1.xpose.msra.mxu0 0.0
        %6555 = vmatprep.subr.mxu0 0.0
        %6556 = vmatpush1.xpose.msra.mxu0 0.0
        %6557 = vmatprep.subr.mxu0 0.0
        %6558 = vmatpush1.xpose.msra.mxu0 0.0
        %6559 = vmatprep.subr.mxu0 0.0
        %6560 = vmatpush1.xpose.msra.mxu0 0.0
        %6561 = vmatprep.subr.mxu0 0.0
        %6562 = vmatpush1.xpose.msra.mxu0 0.0
        %6563 = vmatprep.subr.mxu0 0.0
        %6564 = vmatpush1.xpose.msra.mxu0 0.0
        %6565 = vmatprep.subr.mxu0 0.0
        %6566 = vmatpush1.xpose.msra.mxu0 0.0
        %6567 = vmatprep.subr.mxu0 0.0
        %6568 = vmatpush1.xpose.msra.mxu0 0.0
        %6569 = vmatprep.subr.mxu0 0.0
        %6570 = vmatpush1.xpose.msra.mxu0 0.0
        %6571 = vmatprep.subr.mxu0 0.0
        %6572 = vmatpush1.xpose.msra.mxu0 0.0
        %6573 = vmatprep.subr.mxu0 0.0
        %6574 = vmatpush1.xpose.msra.mxu0 0.0
        %6575 = vmatprep.subr.mxu0 0.0
        %6576 = vmatpush1.xpose.msra.mxu0 0.0
        %6577 = vmatprep.subr.mxu0 0.0
        %6578 = vmatpush1.xpose.msra.mxu0 0.0
        %6579 = vmatprep.subr.mxu0 0.0
        %6580 = vmatpush1.xpose.msra.mxu0 0.0
        %6581 = vmatprep.subr.mxu0 0.0
        %6582 = vmatpush1.xpose.msra.mxu0 0.0
        %6583 = vmatprep.subr.mxu0 0.0
        %6584 = vmatpush1.xpose.msra.mxu0 0.0
        %6585 = vmatprep.subr.mxu0 0.0
        %6586 = vmatpush1.xpose.msra.mxu0 0.0
        %6587 = vmatprep.subr.mxu0 0.0
        %6588 = vmatpush1.xpose.msra.mxu0 0.0
        %6589 = vmatprep.subr.mxu0 0.0
        %6590 = vmatpush1.xpose.msra.mxu0 0.0
        %6591 = vmatprep.mubr.f32.mxu0 0.0
        %6592 = vmatmul.mubr.f32.gmra.mrb[0].mxu0 %v6523
        %v6593 = vpop.f32.mrb[0].mxu0
        %v6594 = vadd.f32 %v6517, %v6593
        %v6595 = vpop.f32.mrb[0].mxu0
        %6596 = vdwg.mxu0
        %vm6597 = vcmask 8192
        %6598 = vst.msk [vmem:[%s615] sm:$0x1] %vm6597, %v6594
        %p6599 = scmp.lt.s32.totalorder %s33, 1
        %s6600 = scalar_select %p6599, %s33, 1
        %s6601 = scalar_lea.vmem %s19, %s6600
        // Predicated region
        $region101: #{forward.1} parent=95 // pred_check
          %p6602 = pneg %p455
        $region102: #{forward.1} parent=95 // pred_check_branch
          %6604 = sbr.rel (%p6602) target = $region104
        $region103: #{forward.1} parent=95 // pred_region
          _
        $region104: #{forward.1} parent=95 // pred_fallthru
          _
      $region96: #{forward.1} parent=5 // pred_fallthru
        _
      %p6605 = scmp.le.s32.totalorder 2, %s28
      // Predicated region
      $region105: #{forward.1} parent=5 // pred_check
        %p6606 = pneg %p6605
      $region106: #{forward.1} parent=5 // pred_check_branch
        %6608 = sbr.rel (%p6606) target = $region108
      $region107: #{forward.1} parent=5 // pred_region
        %s6609 = ssub.s32 %s28, 2
        // Predicated region
        $region109: #{forward.1} parent=107 // pred_check
          %p6610 = pneg %p461
        $region110: #{forward.1} parent=107 // pred_check_branch
          %6612 = sbr.rel (%p6610) target = $region112
        $region111: #{forward.1} parent=107 // pred_region
          %p6613 = scmp.lt.s32.totalorder %s34, 1
          %s6614 = scalar_select %p6613, %s34, 1
          %s6615 = scalar_lea.vmem %s19, %s6614
        $region112: #{forward.1} parent=107 // pred_fallthru
          _
      $region108: #{forward.1} parent=5 // pred_fallthru
        _
    $region6: #{forward.1} parent=1 // loop_footer
      %s32 = sadd.s32 1, %s28
    $region7: #{forward.1} parent=1 // loop_footer_branch
      %27 = sbr.rel target = $region3
    $region8: #{forward.1} parent=1 // loop_exit
      _
    %6616 = vsyncpa [#allocation4], 1
    %s6617 = scalar_lea.sflag [#allocation4], 1
    %6618 = vsyncpa %s6617, 1

</llo_original>
